<compile_context>
chip_gen: v6e
topology: v6e:2x2x1
jax: 0.10.0
libtpu: 0.0.40
codegen_flags: <defaults>
</compile_context>

<pallas_src>
import functools

import jax
import jax.numpy as jnp
from jax.experimental import pallas as pl
from jax.experimental.pallas import tpu as pltpu


# ----------------------------------------------------------------------------
# Kernel 1: per-edge scalar MLP  (num_rbf -> U -> 2U -> 3U, SiLU) * cosine_cutoff
# ----------------------------------------------------------------------------
def _silu(x):
    # exp on the EUP, approx reciprocal on the EUP -> no full-precision VPU divide
    return x * pl.reciprocal(1.0 + jnp.exp(-x), approx=True)


def edge_mlp_kernel(ea_ref, dist_ref, w1, b1, w2, b2, w3, b3, out_ref, *, cutoff):
    x = ea_ref[...]                                              # (te, num_rbf)
    h = _silu(jnp.dot(x, w1[...], preferred_element_type=jnp.float32) + b1[...])
    h = _silu(jnp.dot(h, w2[...], preferred_element_type=jnp.float32) + b2[...])
    h = _silu(jnp.dot(h, w3[...], preferred_element_type=jnp.float32) + b3[...])
    r = dist_ref[...]                                            # (te, 1)
    c = 0.5 * (jnp.cos(jnp.pi * r / cutoff) + 1.0) * (r < cutoff).astype(jnp.float32)
    out_ref[...] = h * c                                         # (te, 3U) channel-major


def edge_mlp(edge_attr, bond_dist, w1, b1, w2, b2, w3, b3, cutoff, te=128):
    E, num_rbf = edge_attr.shape
    U = w1.shape[1]
    grid = (E // te,)
    return pl.pallas_call(
        functools.partial(edge_mlp_kernel, cutoff=cutoff),
        out_shape=jax.ShapeDtypeStruct((E, 3 * U), jnp.float32),
        grid_spec=pltpu.PrefetchScalarGridSpec(
            num_scalar_prefetch=0,
            grid=grid,
            in_specs=[
                pl.BlockSpec((te, num_rbf), lambda i: (i, 0)),
                pl.BlockSpec((te, 1), lambda i: (i, 0)),
                pl.BlockSpec((num_rbf, U), lambda i: (0, 0)),
                pl.BlockSpec((1, U), lambda i: (0, 0)),
                pl.BlockSpec((U, 2 * U), lambda i: (0, 0)),
                pl.BlockSpec((1, 2 * U), lambda i: (0, 0)),
                pl.BlockSpec((2 * U, 3 * U), lambda i: (0, 0)),
                pl.BlockSpec((1, 3 * U), lambda i: (0, 0)),
            ],
            out_specs=pl.BlockSpec((te, 3 * U), lambda i: (i, 0)),
        ),
        compiler_params=pltpu.CompilerParams(dimension_semantics=("parallel",)),
    )(edge_attr, bond_dist.reshape(E, 1), w1, b1, w2, b2, w3, b3)


# ----------------------------------------------------------------------------
# Kernel 2: per-node tensor update.  Layout (9, N, U) with p = 3*row + col.
# I/A/S symmetry-reduced channel mixes, stacked along sublanes -> 3 matmuls/stage.
# ----------------------------------------------------------------------------
def node_kernel(x_ref, f_ref, wt_ref, o_ref, stk3, stk6):
    # x_ref/o_ref: (9, tn, U);  f_ref: (3, tn, U) per-node sums of edge factors;
    # wt_ref: (6, U, U);  stk3: (3*tn, U) scratch;  stk6: (6*tn, U) scratch.
    tn = x_ref.shape[1]

    # ---- normalize: Xn = X / (||X||^2 + 1); stash Xn in o_ref for the residual ----
    X = [x_ref[p] for p in range(9)]
    norm = X[0] * X[0]
    for p in range(1, 9):
        norm = norm + X[p] * X[p]
    inv = pl.reciprocal(norm + 1.0, approx=True)
    Xn = [x * inv for x in X]
    for p in range(9):
        o_ref[p] = Xn[p]

    # ---- decompose(Xn): 1 scalar + 3 antisymmetric + 6 symmetric components ----
    tr1 = (Xn[0] + Xn[4] + Xn[8]) * (1.0 / 3.0)
    a01 = 0.5 * (Xn[1] - Xn[3])
    a02 = 0.5 * (Xn[2] - Xn[6])
    a12 = 0.5 * (Xn[5] - Xn[7])
    s00 = Xn[0] - tr1
    s11 = Xn[4] - tr1
    s22 = Xn[8] - tr1
    s01 = 0.5 * (Xn[1] + Xn[3])
    s02 = 0.5 * (Xn[2] + Xn[6])
    s12 = 0.5 * (Xn[5] + Xn[7])

    # ---- channel mixes 0..2 (stacked components -> 3 matmuls) ----
    i1 = jnp.dot(tr1, wt_ref[0], preferred_element_type=jnp.float32)

    stk3[pl.ds(0 * tn, tn), :] = a01
    stk3[pl.ds(1 * tn, tn), :] = a02
    stk3[pl.ds(2 * tn, tn), :] = a12
    a1 = jnp.dot(stk3[...], wt_ref[1], preferred_element_type=jnp.float32)
    a1_01, a1_02, a1_12 = a1[0:tn], a1[tn:2 * tn], a1[2 * tn:3 * tn]

    stk6[pl.ds(0 * tn, tn), :] = s00
    stk6[pl.ds(1 * tn, tn), :] = s01
    stk6[pl.ds(2 * tn, tn), :] = s02
    stk6[pl.ds(3 * tn, tn), :] = s11
    stk6[pl.ds(4 * tn, tn), :] = s12
    stk6[pl.ds(5 * tn, tn), :] = s22
    s1 = jnp.dot(stk6[...], wt_ref[2], preferred_element_type=jnp.float32)
    s1_00, s1_01, s1_02 = s1[0:tn], s1[tn:2 * tn], s1[2 * tn:3 * tn]
    s1_11, s1_12, s1_22 = s1[3 * tn:4 * tn], s1[4 * tn:5 * tn], s1[5 * tn:6 * tn]

    # ---- Y = I1+A1+S1;  M = fI*I1 + fA*A1 + fS*S1 (message, factors pre-summed) ----
    fI, fA, fS = f_ref[0], f_ref[1], f_ref[2]
    fIi1 = fI * i1
    fAa01, fAa02, fAa12 = fA * a1_01, fA * a1_02, fA * a1_12
    fSs00, fSs01, fSs02 = fS * s1_00, fS * s1_01, fS * s1_02
    fSs11, fSs12, fSs22 = fS * s1_11, fS * s1_12, fS * s1_22

    Y = [i1 + s1_00, a1_01 + s1_01, a1_02 + s1_02,
         s1_01 - a1_01, i1 + s1_11, a1_12 + s1_12,
         s1_02 - a1_02, s1_12 - a1_12, i1 + s1_22]
    M = [fIi1 + fSs00, fAa01 + fSs01, fAa02 + fSs02,
         fSs01 - fAa01, fIi1 + fSs11, fAa12 + fSs12,
         fSs02 - fAa02, fSs12 - fAa12, fIi1 + fSs22]

    # ---- O(3): AB = M @ Y + Y @ M (batched 3x3, elementwise over (node, unit)) ----
    AB = []
    for i in range(3):
        for j in range(3):
            acc = M[3 * i] * Y[j] + Y[3 * i] * M[j]
            for k in range(1, 3):
                acc = acc + M[3 * i + k] * Y[3 * k + j] + Y[3 * i + k] * M[3 * k + j]
            AB.append(acc)

    # ---- decompose(AB), scale by 1 / (||AB||^2 + 1) ----
    norm2 = AB[0] * AB[0]
    for p in range(1, 9):
        norm2 = norm2 + AB[p] * AB[p]
    inv2 = pl.reciprocal(norm2 + 1.0, approx=True)

    tr2 = (AB[0] + AB[4] + AB[8]) * (1.0 / 3.0)
    b01 = 0.5 * (AB[1] - AB[3]) * inv2
    b02 = 0.5 * (AB[2] - AB[6]) * inv2
    b12 = 0.5 * (AB[5] - AB[7]) * inv2
    t00 = (AB[0] - tr2) * inv2
    t11 = (AB[4] - tr2) * inv2
    t22 = (AB[8] - tr2) * inv2
    t01 = 0.5 * (AB[1] + AB[3]) * inv2
    t02 = 0.5 * (AB[2] + AB[6]) * inv2
    t12 = 0.5 * (AB[5] + AB[7]) * inv2
    i2 = tr2 * inv2

    # ---- channel mixes 3..5 (stacked) ----
    i3 = jnp.dot(i2, wt_ref[3], preferred_element_type=jnp.float32)

    stk3[pl.ds(0 * tn, tn), :] = b01
    stk3[pl.ds(1 * tn, tn), :] = b02
    stk3[pl.ds(2 * tn, tn), :] = b12
    a3 = jnp.dot(stk3[...], wt_ref[4], preferred_element_type=jnp.float32)
    a3_01, a3_02, a3_12 = a3[0:tn], a3[tn:2 * tn], a3[2 * tn:3 * tn]

    stk6[pl.ds(0 * tn, tn), :] = t00
    stk6[pl.ds(1 * tn, tn), :] = t01
    stk6[pl.ds(2 * tn, tn), :] = t02
    stk6[pl.ds(3 * tn, tn), :] = t11
    stk6[pl.ds(4 * tn, tn), :] = t12
    stk6[pl.ds(5 * tn, tn), :] = t22
    s3 = jnp.dot(stk6[...], wt_ref[5], preferred_element_type=jnp.float32)
    s3_00, s3_01, s3_02 = s3[0:tn], s3[tn:2 * tn], s3[2 * tn:3 * tn]
    s3_11, s3_12, s3_22 = s3[3 * tn:4 * tn], s3[4 * tn:5 * tn], s3[5 * tn:6 * tn]

    dX = [i3 + s3_00, a3_01 + s3_01, a3_02 + s3_02,
          s3_01 - a3_01, i3 + s3_11, a3_12 + s3_12,
          s3_02 - a3_02, s3_12 - a3_12, i3 + s3_22]

    # ---- out = Xn (stashed) + dX + dX @ dX ----
    for i in range(3):
        for j in range(3):
            p = 3 * i + j
            acc = dX[3 * i] * dX[j]
            for k in range(1, 3):
                acc = acc + dX[3 * i + k] * dX[3 * k + j]
            o_ref[p] = o_ref[p] + dX[p] + acc


def node_update(Xp, Fp, Wt, tn=64):
    _, N, U = Xp.shape
    grid = (N // tn,)
    return pl.pallas_call(
        node_kernel,
        out_shape=jax.ShapeDtypeStruct((9, N, U), jnp.float32),
        grid_spec=pltpu.PrefetchScalarGridSpec(
            num_scalar_prefetch=0,
            grid=grid,
            in_specs=[
                pl.BlockSpec((9, tn, U), lambda i: (0, i, 0)),
                pl.BlockSpec((3, tn, U), lambda i: (0, i, 0)),
                pl.BlockSpec((6, U, U), lambda i: (0, 0, 0)),
            ],
            out_specs=pl.BlockSpec((9, tn, U), lambda i: (0, i, 0)),
            scratch_shapes=[
                pltpu.VMEM((3 * tn, U), jnp.float32),
                pltpu.VMEM((6 * tn, U), jnp.float32),
            ],
        ),
        compiler_params=pltpu.CompilerParams(dimension_semantics=("parallel",)),
    )(Xp, Fp, Wt)


# ----------------------------------------------------------------------------
# Full forward (Pallas kernels + thin JAX glue for layout / graph segment-sum)
# ----------------------------------------------------------------------------
def _round_up(x, m):
    return ((x + m - 1) // m) * m


def tensornet_interaction(X, edge_attr, bond_dist, dst, params, cutoff, te=128, tn=64):
    """X: (N, U, 3, 3); edge_attr: (E, num_rbf); bond_dist: (E,); dst: (E,) int32."""
    N, U = X.shape[0], X.shape[1]
    E = edge_attr.shape[0]
    U3 = 3 * U

    # Pre-permute last-layer columns so the kernel writes channel-major (E, 3, U):
    # new column k*U + u  <-  original column 3*u + k  (torch .reshape(E, U, 3)).
    cols = jnp.arange(U3)
    old = 3 * (cols % U) + (cols // U)
    w3p = params["w3"][:, old]
    b3p = params["b3"][:, old]

    # Pad edges to a tile multiple; padded edges get dist > cutoff => factor 0.
    E_pad = _round_up(max(E, te), te)
    if E_pad != E:
        edge_attr = jnp.pad(edge_attr, ((0, E_pad - E), (0, 0)))
        bond_dist = jnp.pad(bond_dist, (0, E_pad - E), constant_values=cutoff + 1.0)
        dst = jnp.pad(dst, (0, E_pad - E))

    ea = edge_mlp(edge_attr, bond_dist,
                  params["w1"], params["b1"], params["w2"], params["b2"],
                  w3p, b3p, cutoff, te=te)                        # (E_pad, 3U) channel-major
    ea3 = ea.reshape(E_pad, 3, U)                                 # lane-dense last dim

    # Per-node sum of edge factors.  Literal DGL code gathers at dst and scatter-sums
    # at dst, so msg[n] = (I,A,S)[n] * sum_{e: dst_e == n} f_e  -> factor sum is exact.
    F = jax.ops.segment_sum(ea3, dst, num_segments=N)             # (N, 3, U)
    Fp = jnp.transpose(F, (1, 0, 2))                              # (3, N, U)

    Xp = jnp.transpose(X, (2, 3, 0, 1)).reshape(9, N, U)          # (9, N, U), p = 3i + j

    # Pad nodes to a tile multiple; padded nodes are all-zero (output is zero too).
    N_pad = _round_up(max(N, tn), tn)
    if N_pad != N:
        Xp = jnp.pad(Xp, ((0, 0), (0, N_pad - N), (0, 0)))
        Fp = jnp.pad(Fp, ((0, 0), (0, N_pad - N), (0, 0)))

    out = node_update(Xp, Fp, params["Wt"], tn=tn)                # (9, N_pad, U)
    out = out[:, :N, :]
    return jnp.transpose(out.reshape(3, 3, N, U), (2, 3, 0, 1))   # (N, U, 3, 3)


# ----------------------------------------------------------------------------
# Pure-JAX reference (mirrors the PyTorch forward literally) for validation
# ----------------------------------------------------------------------------
def reference_forward(X, edge_attr, bond_dist, dst, params, cutoff):
    N, U = X.shape[0], X.shape[1]
    C = 0.5 * (jnp.cos(jnp.pi * bond_dist / cutoff) + 1.0) * (bond_dist < cutoff).astype(jnp.float32)
    h = edge_attr
    for w, b in ((params["w1"], params["b1"]), (params["w2"], params["b2"]),
                 (params["w3"], params["b3"])):
        h = jax.nn.silu(h @ w + b)
    ea = (h * C[:, None]).reshape(h.shape[0], U, 3)

    def tensor_norm(t):
        return (t ** 2).sum((-2, -1))

    def decompose(t):
        eye = jnp.eye(3, dtype=t.dtype)
        I = jnp.mean(jnp.diagonal(t, axis1=-2, axis2=-1), axis=-1)[..., None, None] * eye
        A = 0.5 * (t - jnp.swapaxes(t, -1, -2))
        S = 0.5 * (t + jnp.swapaxes(t, -1, -2)) - I
        return I, A, S

    Wt = params["Wt"]

    def mix(t, w):
        return jnp.einsum("nuij,uv->nvij", t, w)

    Xn = X / (tensor_norm(X) + 1)[..., None, None]
    I, A, S = decompose(Xn)
    I, A, S = mix(I, Wt[0]), mix(A, Wt[1]), mix(S, Wt[2])
    Y = I + A + S

    fI, fA, fS = ea[..., 0], ea[..., 1], ea[..., 2]
    Ie = jax.ops.segment_sum(fI[:, :, None, None] * I[dst], dst, num_segments=N)
    Ae = jax.ops.segment_sum(fA[:, :, None, None] * A[dst], dst, num_segments=N)
    Se = jax.ops.segment_sum(fS[:, :, None, None] * S[dst], dst, num_segments=N)
    msg = Ie + Ae + Se

    Amat = jnp.matmul(msg, Y)
    Bmat = jnp.matmul(Y, msg)
    I, A, S = decompose(Amat + Bmat)
    normp1 = (tensor_norm(I + A + S) + 1)[..., None, None]
    I, A, S = I / normp1, A / normp1, S / normp1
    I, A, S = mix(I, Wt[3]), mix(A, Wt[4]), mix(S, Wt[5])
    dX = I + A + S
    return Xn + dX + jnp.matmul(dX, dX)


# ----------------------------------------------------------------------------
if __name__ == "__main__":
    N_NODES, N_EDGES = 16, 64
    NUM_RBF, UNITS = 8, 128
    CUTOFF = 5.0

    key = jax.random.PRNGKey(0)
    keys = jax.random.split(key, 12)

    X = jax.random.normal(keys[0], (N_NODES, UNITS, 3, 3), dtype=jnp.float32)
    edge_attr = jax.random.normal(keys[1], (N_EDGES, NUM_RBF), dtype=jnp.float32)
    bond_dist = jax.random.uniform(keys[2], (N_EDGES,), minval=0.5, maxval=6.0,
                                   dtype=jnp.float32)
    dst = jax.random.randint(keys[3], (N_EDGES,), 0, N_NODES, dtype=jnp.int32)

    def unif(k, shape, fan_in):
        bound = 1.0 / jnp.sqrt(float(fan_in))
        return jax.random.uniform(k, shape, minval=-bound, maxval=bound,
                                  dtype=jnp.float32)

    # weights stored as [in, out] (i.e. torch weight transposed)
    params = {
        "w1": unif(keys[4], (NUM_RBF, UNITS), NUM_RBF),
        "b1": unif(keys[5], (1, UNITS), NUM_RBF),
        "w2": unif(keys[6], (UNITS, 2 * UNITS), UNITS),
        "b2": unif(keys[7], (1, 2 * UNITS), UNITS),
        "w3": unif(keys[8], (2 * UNITS, 3 * UNITS), 2 * UNITS),
        "b3": unif(keys[9], (1, 3 * UNITS), 2 * UNITS),
        "Wt": unif(keys[10], (6, UNITS, UNITS), UNITS),
    }

    fwd = jax.jit(functools.partial(tensornet_interaction, cutoff=CUTOFF))
    out = jax.block_until_ready(fwd(X, edge_attr, bond_dist, dst, params))

    ref = jax.block_until_ready(
        reference_forward(X, edge_attr, bond_dist, dst, params, CUTOFF))

    max_err = float(jnp.max(jnp.abs(out - ref)))
    assert out.shape == (N_NODES, UNITS, 3, 3)
    assert max_err < 5e-2, f"max abs error too large: {max_err}"
    print("KERNEL_OK")
</pallas_src>

<mosaic_0001>
module attributes {stable_mosaic.version = 11 : i64} {
  func.func @edge_mlp_kernel(%arg0: i32, %arg1: memref<128x8xf32, #tpu.memory_space<vmem>>, %arg2: memref<128x1xf32, #tpu.memory_space<vmem>>, %arg3: memref<8x128xf32, #tpu.memory_space<vmem>>, %arg4: memref<1x128xf32, #tpu.memory_space<vmem>>, %arg5: memref<128x256xf32, #tpu.memory_space<vmem>>, %arg6: memref<1x256xf32, #tpu.memory_space<vmem>>, %arg7: memref<256x384xf32, #tpu.memory_space<vmem>>, %arg8: memref<1x384xf32, #tpu.memory_space<vmem>>, %arg9: memref<128x384xf32, #tpu.memory_space<vmem>>) attributes {dimension_semantics = [#tpu.dimension_semantics<parallel>], iteration_bounds = array<i64: 1>, scalar_prefetch = 0 : i64, scratch_operands = 0 : i64, tpu.core_type = #tpu.core_type<tc>, window_params = [{transform_indices = @transform_0, window_bounds = array<i64: 128, 8>}, {transform_indices = @transform_1, window_bounds = array<i64: 128, 1>}, {pipeline_mode = #tpu.pipeline_mode<synchronous>, transform_indices = @transform_2, window_bounds = array<i64: 8, 128>}, {pipeline_mode = #tpu.pipeline_mode<synchronous>, transform_indices = @transform_3, window_bounds = array<i64: 1, 128>}, {pipeline_mode = #tpu.pipeline_mode<synchronous>, transform_indices = @transform_4, window_bounds = array<i64: 128, 256>}, {pipeline_mode = #tpu.pipeline_mode<synchronous>, transform_indices = @transform_5, window_bounds = array<i64: 1, 256>}, {pipeline_mode = #tpu.pipeline_mode<synchronous>, transform_indices = @transform_6, window_bounds = array<i64: 256, 384>}, {pipeline_mode = #tpu.pipeline_mode<synchronous>, transform_indices = @transform_7, window_bounds = array<i64: 1, 384>}, {transform_indices = @transform_8, window_bounds = array<i64: 128, 384>}]} {
    %c0 = arith.constant 0 : index
    %c0_0 = arith.constant 0 : index
    %0 = vector.load %arg1[%c0, %c0_0] : memref<128x8xf32, #tpu.memory_space<vmem>>, vector<128x8xf32>
    %c0_1 = arith.constant 0 : index
    %c0_2 = arith.constant 0 : index
    %1 = vector.load %arg3[%c0_1, %c0_2] : memref<8x128xf32, #tpu.memory_space<vmem>>, vector<8x128xf32>
    %cst = arith.constant dense<0.000000e+00> : vector<128x128xf32>
    %2 = tpu.matmul %0, %1, %cst {dimension_numbers = #tpu.dot_dimension_numbers<[1], [0], [0], [1], [0, 0, 1, 1], [], []>} : vector<128x8xf32>, vector<8x128xf32>, vector<128x128xf32> -> vector<128x128xf32>
    %c0_3 = arith.constant 0 : index
    %c0_4 = arith.constant 0 : index
    %3 = vector.load %arg4[%c0_3, %c0_4] : memref<1x128xf32, #tpu.memory_space<vmem>>, vector<1x128xf32>
    %4 = vector.broadcast %3 : vector<1x128xf32> to vector<128x128xf32>
    %5 = arith.addf %2, %4 : vector<128x128xf32>
    %cst_5 = arith.constant 0.000000e+00 : f32
    %6 = vector.broadcast %cst_5 : f32 to vector<128x128xf32>
    %7 = arith.subf %6, %5 : vector<128x128xf32>
    %8 = math.exp %7 : vector<128x128xf32>
    %cst_6 = arith.constant 1.000000e+00 : f32
    %9 = vector.broadcast %cst_6 : f32 to vector<128x128xf32>
    %10 = arith.addf %9, %8 : vector<128x128xf32>
    %11 = tpu.reciprocal %10 {approx = true} : vector<128x128xf32> -> vector<128x128xf32>
    %12 = arith.mulf %5, %11 : vector<128x128xf32>
    %c0_7 = arith.constant 0 : index
    %c0_8 = arith.constant 0 : index
    %13 = vector.load %arg5[%c0_7, %c0_8] : memref<128x256xf32, #tpu.memory_space<vmem>>, vector<128x256xf32>
    %cst_9 = arith.constant dense<0.000000e+00> : vector<128x256xf32>
    %14 = tpu.matmul %12, %13, %cst_9 {dimension_numbers = #tpu.dot_dimension_numbers<[1], [0], [0], [1], [0, 0, 1, 1], [], []>} : vector<128x128xf32>, vector<128x256xf32>, vector<128x256xf32> -> vector<128x256xf32>
    %c0_10 = arith.constant 0 : index
    %c0_11 = arith.constant 0 : index
    %15 = vector.load %arg6[%c0_10, %c0_11] : memref<1x256xf32, #tpu.memory_space<vmem>>, vector<1x256xf32>
    %16 = vector.broadcast %15 : vector<1x256xf32> to vector<128x256xf32>
    %17 = arith.addf %14, %16 : vector<128x256xf32>
    %cst_12 = arith.constant 0.000000e+00 : f32
    %18 = vector.broadcast %cst_12 : f32 to vector<128x256xf32>
    %19 = arith.subf %18, %17 : vector<128x256xf32>
    %20 = math.exp %19 : vector<128x256xf32>
    %cst_13 = arith.constant 1.000000e+00 : f32
    %21 = vector.broadcast %cst_13 : f32 to vector<128x256xf32>
    %22 = arith.addf %21, %20 : vector<128x256xf32>
    %23 = tpu.reciprocal %22 {approx = true} : vector<128x256xf32> -> vector<128x256xf32>
    %24 = arith.mulf %17, %23 : vector<128x256xf32>
    %c0_14 = arith.constant 0 : index
    %c0_15 = arith.constant 0 : index
    %25 = vector.load %arg7[%c0_14, %c0_15] : memref<256x384xf32, #tpu.memory_space<vmem>>, vector<256x384xf32>
    %cst_16 = arith.constant dense<0.000000e+00> : vector<128x384xf32>
    %26 = tpu.matmul %24, %25, %cst_16 {dimension_numbers = #tpu.dot_dimension_numbers<[1], [0], [0], [1], [0, 0, 1, 1], [], []>} : vector<128x256xf32>, vector<256x384xf32>, vector<128x384xf32> -> vector<128x384xf32>
    %c0_17 = arith.constant 0 : index
    %c0_18 = arith.constant 0 : index
    %27 = vector.load %arg8[%c0_17, %c0_18] : memref<1x384xf32, #tpu.memory_space<vmem>>, vector<1x384xf32>
    %28 = vector.broadcast %27 : vector<1x384xf32> to vector<128x384xf32>
    %29 = arith.addf %26, %28 : vector<128x384xf32>
    %cst_19 = arith.constant 0.000000e+00 : f32
    %30 = vector.broadcast %cst_19 : f32 to vector<128x384xf32>
    %31 = arith.subf %30, %29 : vector<128x384xf32>
    %32 = math.exp %31 : vector<128x384xf32>
    %cst_20 = arith.constant 1.000000e+00 : f32
    %33 = vector.broadcast %cst_20 : f32 to vector<128x384xf32>
    %34 = arith.addf %33, %32 : vector<128x384xf32>
    %35 = tpu.reciprocal %34 {approx = true} : vector<128x384xf32> -> vector<128x384xf32>
    %36 = arith.mulf %29, %35 : vector<128x384xf32>
    %c0_21 = arith.constant 0 : index
    %c0_22 = arith.constant 0 : index
    %37 = vector.load %arg2[%c0_21, %c0_22] : memref<128x1xf32, #tpu.memory_space<vmem>>, vector<128x1xf32>
    %cst_23 = arith.constant 3.14159274 : f32
    %38 = vector.broadcast %cst_23 : f32 to vector<128x1xf32>
    %39 = arith.mulf %38, %37 : vector<128x1xf32>
    %cst_24 = arith.constant 5.000000e+00 : f32
    %40 = vector.broadcast %cst_24 : f32 to vector<128x1xf32>
    %41 = arith.divf %39, %40 : vector<128x1xf32>
    %42 = math.cos %41 : vector<128x1xf32>
    %cst_25 = arith.constant 1.000000e+00 : f32
    %43 = vector.broadcast %cst_25 : f32 to vector<128x1xf32>
    %44 = arith.addf %42, %43 : vector<128x1xf32>
    %cst_26 = arith.constant 5.000000e-01 : f32
    %45 = vector.broadcast %cst_26 : f32 to vector<128x1xf32>
    %46 = arith.mulf %45, %44 : vector<128x1xf32>
    %cst_27 = arith.constant 5.000000e+00 : f32
    %47 = vector.broadcast %cst_27 : f32 to vector<128x1xf32>
    %48 = arith.cmpf olt, %37, %47 : vector<128x1xf32>
    %49 = arith.extui %48 : vector<128x1xi1> to vector<128x1xi32>
    %50 = arith.sitofp %49 : vector<128x1xi32> to vector<128x1xf32>
    %51 = arith.mulf %46, %50 : vector<128x1xf32>
    %52 = vector.broadcast %51 : vector<128x1xf32> to vector<128x384xf32>
    %53 = arith.mulf %36, %52 : vector<128x384xf32>
    %c0_28 = arith.constant 0 : index
    %c0_29 = arith.constant 0 : index
    %54 = vector.load %arg9[%c0_28, %c0_29] : memref<128x384xf32, #tpu.memory_space<vmem>>, vector<128x384xf32>
    tpu.vector_store %arg9[%c0_28, %c0_29], %53 {strides = array<i32>} : memref<128x384xf32, #tpu.memory_space<vmem>>, vector<128x384xf32>,
    return
  }
  func.func @transform_0(%arg0: i32) -> (i32, i32) {
    %c0_i32 = arith.constant 0 : i32
    %c0_i32_0 = arith.constant 0 : i32
    return %arg0, %c0_i32 : i32, i32
  }
  func.func @transform_1(%arg0: i32) -> (i32, i32) {
    %c0_i32 = arith.constant 0 : i32
    %c0_i32_0 = arith.constant 0 : i32
    return %arg0, %c0_i32 : i32, i32
  }
  func.func @transform_2(%arg0: i32) -> (i32, i32) {
    %c0_i32 = arith.constant 0 : i32
    %c0_i32_0 = arith.constant 0 : i32
    %c0_i32_1 = arith.constant 0 : i32
    return %c0_i32, %c0_i32_0 : i32, i32
  }
  func.func @transform_3(%arg0: i32) -> (i32, i32) {
    %c0_i32 = arith.constant 0 : i32
    %c0_i32_0 = arith.constant 0 : i32
    %c0_i32_1 = arith.constant 0 : i32
    return %c0_i32, %c0_i32_0 : i32, i32
  }
  func.func @transform_4(%arg0: i32) -> (i32, i32) {
    %c0_i32 = arith.constant 0 : i32
    %c0_i32_0 = arith.constant 0 : i32
    %c0_i32_1 = arith.constant 0 : i32
    return %c0_i32, %c0_i32_0 : i32, i32
  }
  func.func @transform_5(%arg0: i32) -> (i32, i32) {
    %c0_i32 = arith.constant 0 : i32
    %c0_i32_0 = arith.constant 0 : i32
    %c0_i32_1 = arith.constant 0 : i32
    return %c0_i32, %c0_i32_0 : i32, i32
  }
  func.func @transform_6(%arg0: i32) -> (i32, i32) {
    %c0_i32 = arith.constant 0 : i32
    %c0_i32_0 = arith.constant 0 : i32
    %c0_i32_1 = arith.constant 0 : i32
    return %c0_i32, %c0_i32_0 : i32, i32
  }
  func.func @transform_7(%arg0: i32) -> (i32, i32) {
    %c0_i32 = arith.constant 0 : i32
    %c0_i32_0 = arith.constant 0 : i32
    %c0_i32_1 = arith.constant 0 : i32
    return %c0_i32, %c0_i32_0 : i32, i32
  }
  func.func @transform_8(%arg0: i32) -> (i32, i32) {
    %c0_i32 = arith.constant 0 : i32
    %c0_i32_0 = arith.constant 0 : i32
    return %arg0, %c0_i32 : i32, i32
  }
}

module attributes {stable_mosaic.version = 11 : i64} {
  func.func @node_kernel(%arg0: i32, %arg1: memref<9x64x128xf32, #tpu.memory_space<vmem>>, %arg2: memref<3x64x128xf32, #tpu.memory_space<vmem>>, %arg3: memref<6x128x128xf32, #tpu.memory_space<vmem>>, %arg4: memref<9x64x128xf32, #tpu.memory_space<vmem>>, %arg5: memref<192x128xf32, #tpu.memory_space<vmem>>, %arg6: memref<384x128xf32, #tpu.memory_space<vmem>>) attributes {dimension_semantics = [#tpu.dimension_semantics<parallel>], iteration_bounds = array<i64: 1>, scalar_prefetch = 0 : i64, scratch_operands = 2 : i64, tpu.core_type = #tpu.core_type<tc>, window_params = [{transform_indices = @transform_0, window_bounds = array<i64: 9, 64, 128>}, {transform_indices = @transform_1, window_bounds = array<i64: 3, 64, 128>}, {pipeline_mode = #tpu.pipeline_mode<synchronous>, transform_indices = @transform_2, window_bounds = array<i64: 6, 128, 128>}, {transform_indices = @transform_3, window_bounds = array<i64: 9, 64, 128>}]} {
    %c0 = arith.constant 0 : index
    %c0_0 = arith.constant 0 : index
    %c0_1 = arith.constant 0 : index
    %0 = vector.load %arg1[%c0, %c0_0, %c0_1] : memref<9x64x128xf32, #tpu.memory_space<vmem>>, vector<1x64x128xf32>
    %1 = vector.shape_cast %0 : vector<1x64x128xf32> to vector<64x128xf32>
    %c1 = arith.constant 1 : index
    %c0_2 = arith.constant 0 : index
    %c0_3 = arith.constant 0 : index
    %2 = vector.load %arg1[%c1, %c0_2, %c0_3] : memref<9x64x128xf32, #tpu.memory_space<vmem>>, vector<1x64x128xf32>
    %3 = vector.shape_cast %2 : vector<1x64x128xf32> to vector<64x128xf32>
    %c2 = arith.constant 2 : index
    %c0_4 = arith.constant 0 : index
    %c0_5 = arith.constant 0 : index
    %4 = vector.load %arg1[%c2, %c0_4, %c0_5] : memref<9x64x128xf32, #tpu.memory_space<vmem>>, vector<1x64x128xf32>
    %5 = vector.shape_cast %4 : vector<1x64x128xf32> to vector<64x128xf32>
    %c3 = arith.constant 3 : index
    %c0_6 = arith.constant 0 : index
    %c0_7 = arith.constant 0 : index
    %6 = vector.load %arg1[%c3, %c0_6, %c0_7] : memref<9x64x128xf32, #tpu.memory_space<vmem>>, vector<1x64x128xf32>
    %7 = vector.shape_cast %6 : vector<1x64x128xf32> to vector<64x128xf32>
    %c4 = arith.constant 4 : index
    %c0_8 = arith.constant 0 : index
    %c0_9 = arith.constant 0 : index
    %8 = vector.load %arg1[%c4, %c0_8, %c0_9] : memref<9x64x128xf32, #tpu.memory_space<vmem>>, vector<1x64x128xf32>
    %9 = vector.shape_cast %8 : vector<1x64x128xf32> to vector<64x128xf32>
    %c5 = arith.constant 5 : index
    %c0_10 = arith.constant 0 : index
    %c0_11 = arith.constant 0 : index
    %10 = vector.load %arg1[%c5, %c0_10, %c0_11] : memref<9x64x128xf32, #tpu.memory_space<vmem>>, vector<1x64x128xf32>
    %11 = vector.shape_cast %10 : vector<1x64x128xf32> to vector<64x128xf32>
    %c6 = arith.constant 6 : index
    %c0_12 = arith.constant 0 : index
    %c0_13 = arith.constant 0 : index
    %12 = vector.load %arg1[%c6, %c0_12, %c0_13] : memref<9x64x128xf32, #tpu.memory_space<vmem>>, vector<1x64x128xf32>
    %13 = vector.shape_cast %12 : vector<1x64x128xf32> to vector<64x128xf32>
    %c7 = arith.constant 7 : index
    %c0_14 = arith.constant 0 : index
    %c0_15 = arith.constant 0 : index
    %14 = vector.load %arg1[%c7, %c0_14, %c0_15] : memref<9x64x128xf32, #tpu.memory_space<vmem>>, vector<1x64x128xf32>
    %15 = vector.shape_cast %14 : vector<1x64x128xf32> to vector<64x128xf32>
    %c8 = arith.constant 8 : index
    %c0_16 = arith.constant 0 : index
    %c0_17 = arith.constant 0 : index
    %16 = vector.load %arg1[%c8, %c0_16, %c0_17] : memref<9x64x128xf32, #tpu.memory_space<vmem>>, vector<1x64x128xf32>
    %17 = vector.shape_cast %16 : vector<1x64x128xf32> to vector<64x128xf32>
    %18 = arith.mulf %1, %1 : vector<64x128xf32>
    %19 = arith.mulf %3, %3 : vector<64x128xf32>
    %20 = arith.addf %18, %19 : vector<64x128xf32>
    %21 = arith.mulf %5, %5 : vector<64x128xf32>
    %22 = arith.addf %20, %21 : vector<64x128xf32>
    %23 = arith.mulf %7, %7 : vector<64x128xf32>
    %24 = arith.addf %22, %23 : vector<64x128xf32>
    %25 = arith.mulf %9, %9 : vector<64x128xf32>
    %26 = arith.addf %24, %25 : vector<64x128xf32>
    %27 = arith.mulf %11, %11 : vector<64x128xf32>
    %28 = arith.addf %26, %27 : vector<64x128xf32>
    %29 = arith.mulf %13, %13 : vector<64x128xf32>
    %30 = arith.addf %28, %29 : vector<64x128xf32>
    %31 = arith.mulf %15, %15 : vector<64x128xf32>
    %32 = arith.addf %30, %31 : vector<64x128xf32>
    %33 = arith.mulf %17, %17 : vector<64x128xf32>
    %34 = arith.addf %32, %33 : vector<64x128xf32>
    %cst = arith.constant 1.000000e+00 : f32
    %35 = vector.broadcast %cst : f32 to vector<64x128xf32>
    %36 = arith.addf %34, %35 : vector<64x128xf32>
    %37 = tpu.reciprocal %36 {approx = true} : vector<64x128xf32> -> vector<64x128xf32>
    %38 = arith.mulf %1, %37 : vector<64x128xf32>
    %39 = arith.mulf %3, %37 : vector<64x128xf32>
    %40 = arith.mulf %5, %37 : vector<64x128xf32>
    %41 = arith.mulf %7, %37 : vector<64x128xf32>
    %42 = arith.mulf %9, %37 : vector<64x128xf32>
    %43 = arith.mulf %11, %37 : vector<64x128xf32>
    %44 = arith.mulf %13, %37 : vector<64x128xf32>
    %45 = arith.mulf %15, %37 : vector<64x128xf32>
    %46 = arith.mulf %17, %37 : vector<64x128xf32>
    %c0_18 = arith.constant 0 : index
    %c0_19 = arith.constant 0 : index
    %c0_20 = arith.constant 0 : index
    %47 = vector.load %arg4[%c0_18, %c0_19, %c0_20] : memref<9x64x128xf32, #tpu.memory_space<vmem>>, vector<1x64x128xf32>
    %48 = vector.shape_cast %47 : vector<1x64x128xf32> to vector<64x128xf32>
    %49 = vector.shape_cast %38 : vector<64x128xf32> to vector<1x64x128xf32>
    tpu.vector_store %arg4[%c0_18, %c0_19, %c0_20], %49 {strides = array<i32>} : memref<9x64x128xf32, #tpu.memory_space<vmem>>, vector<1x64x128xf32>,
    %c1_21 = arith.constant 1 : index
    %c0_22 = arith.constant 0 : index
    %c0_23 = arith.constant 0 : index
    %50 = vector.load %arg4[%c1_21, %c0_22, %c0_23] : memref<9x64x128xf32, #tpu.memory_space<vmem>>, vector<1x64x128xf32>
    %51 = vector.shape_cast %50 : vector<1x64x128xf32> to vector<64x128xf32>
    %52 = vector.shape_cast %39 : vector<64x128xf32> to vector<1x64x128xf32>
    tpu.vector_store %arg4[%c1_21, %c0_22, %c0_23], %52 {strides = array<i32>} : memref<9x64x128xf32, #tpu.memory_space<vmem>>, vector<1x64x128xf32>,
    %c2_24 = arith.constant 2 : index
    %c0_25 = arith.constant 0 : index
    %c0_26 = arith.constant 0 : index
    %53 = vector.load %arg4[%c2_24, %c0_25, %c0_26] : memref<9x64x128xf32, #tpu.memory_space<vmem>>, vector<1x64x128xf32>
    %54 = vector.shape_cast %53 : vector<1x64x128xf32> to vector<64x128xf32>
    %55 = vector.shape_cast %40 : vector<64x128xf32> to vector<1x64x128xf32>
    tpu.vector_store %arg4[%c2_24, %c0_25, %c0_26], %55 {strides = array<i32>} : memref<9x64x128xf32, #tpu.memory_space<vmem>>, vector<1x64x128xf32>,
    %c3_27 = arith.constant 3 : index
    %c0_28 = arith.constant 0 : index
    %c0_29 = arith.constant 0 : index
    %56 = vector.load %arg4[%c3_27, %c0_28, %c0_29] : memref<9x64x128xf32, #tpu.memory_space<vmem>>, vector<1x64x128xf32>
    %57 = vector.shape_cast %56 : vector<1x64x128xf32> to vector<64x128xf32>
    %58 = vector.shape_cast %41 : vector<64x128xf32> to vector<1x64x128xf32>
    tpu.vector_store %arg4[%c3_27, %c0_28, %c0_29], %58 {strides = array<i32>} : memref<9x64x128xf32, #tpu.memory_space<vmem>>, vector<1x64x128xf32>,
    %c4_30 = arith.constant 4 : index
    %c0_31 = arith.constant 0 : index
    %c0_32 = arith.constant 0 : index
    %59 = vector.load %arg4[%c4_30, %c0_31, %c0_32] : memref<9x64x128xf32, #tpu.memory_space<vmem>>, vector<1x64x128xf32>
    %60 = vector.shape_cast %59 : vector<1x64x128xf32> to vector<64x128xf32>
    %61 = vector.shape_cast %42 : vector<64x128xf32> to vector<1x64x128xf32>
    tpu.vector_store %arg4[%c4_30, %c0_31, %c0_32], %61 {strides = array<i32>} : memref<9x64x128xf32, #tpu.memory_space<vmem>>, vector<1x64x128xf32>,
    %c5_33 = arith.constant 5 : index
    %c0_34 = arith.constant 0 : index
    %c0_35 = arith.constant 0 : index
    %62 = vector.load %arg4[%c5_33, %c0_34, %c0_35] : memref<9x64x128xf32, #tpu.memory_space<vmem>>, vector<1x64x128xf32>
    %63 = vector.shape_cast %62 : vector<1x64x128xf32> to vector<64x128xf32>
    %64 = vector.shape_cast %43 : vector<64x128xf32> to vector<1x64x128xf32>
    tpu.vector_store %arg4[%c5_33, %c0_34, %c0_35], %64 {strides = array<i32>} : memref<9x64x128xf32, #tpu.memory_space<vmem>>, vector<1x64x128xf32>,
    %c6_36 = arith.constant 6 : index
    %c0_37 = arith.constant 0 : index
    %c0_38 = arith.constant 0 : index
    %65 = vector.load %arg4[%c6_36, %c0_37, %c0_38] : memref<9x64x128xf32, #tpu.memory_space<vmem>>, vector<1x64x128xf32>
    %66 = vector.shape_cast %65 : vector<1x64x128xf32> to vector<64x128xf32>
    %67 = vector.shape_cast %44 : vector<64x128xf32> to vector<1x64x128xf32>
    tpu.vector_store %arg4[%c6_36, %c0_37, %c0_38], %67 {strides = array<i32>} : memref<9x64x128xf32, #tpu.memory_space<vmem>>, vector<1x64x128xf32>,
    %c7_39 = arith.constant 7 : index
    %c0_40 = arith.constant 0 : index
    %c0_41 = arith.constant 0 : index
    %68 = vector.load %arg4[%c7_39, %c0_40, %c0_41] : memref<9x64x128xf32, #tpu.memory_space<vmem>>, vector<1x64x128xf32>
    %69 = vector.shape_cast %68 : vector<1x64x128xf32> to vector<64x128xf32>
    %70 = vector.shape_cast %45 : vector<64x128xf32> to vector<1x64x128xf32>
    tpu.vector_store %arg4[%c7_39, %c0_40, %c0_41], %70 {strides = array<i32>} : memref<9x64x128xf32, #tpu.memory_space<vmem>>, vector<1x64x128xf32>,
    %c8_42 = arith.constant 8 : index
    %c0_43 = arith.constant 0 : index
    %c0_44 = arith.constant 0 : index
    %71 = vector.load %arg4[%c8_42, %c0_43, %c0_44] : memref<9x64x128xf32, #tpu.memory_space<vmem>>, vector<1x64x128xf32>
    %72 = vector.shape_cast %71 : vector<1x64x128xf32> to vector<64x128xf32>
    %73 = vector.shape_cast %46 : vector<64x128xf32> to vector<1x64x128xf32>
    tpu.vector_store %arg4[%c8_42, %c0_43, %c0_44], %73 {strides = array<i32>} : memref<9x64x128xf32, #tpu.memory_space<vmem>>, vector<1x64x128xf32>,
    %74 = arith.addf %38, %42 : vector<64x128xf32>
    %75 = arith.addf %74, %46 : vector<64x128xf32>
    %cst_45 = arith.constant 0.333333343 : f32
    %76 = vector.broadcast %cst_45 : f32 to vector<64x128xf32>
    %77 = arith.mulf %75, %76 : vector<64x128xf32>
    %78 = arith.subf %39, %41 : vector<64x128xf32>
    %cst_46 = arith.constant 5.000000e-01 : f32
    %79 = vector.broadcast %cst_46 : f32 to vector<64x128xf32>
    %80 = arith.mulf %79, %78 : vector<64x128xf32>
    %81 = arith.subf %40, %44 : vector<64x128xf32>
    %cst_47 = arith.constant 5.000000e-01 : f32
    %82 = vector.broadcast %cst_47 : f32 to vector<64x128xf32>
    %83 = arith.mulf %82, %81 : vector<64x128xf32>
    %84 = arith.subf %43, %45 : vector<64x128xf32>
    %cst_48 = arith.constant 5.000000e-01 : f32
    %85 = vector.broadcast %cst_48 : f32 to vector<64x128xf32>
    %86 = arith.mulf %85, %84 : vector<64x128xf32>
    %87 = arith.subf %38, %77 : vector<64x128xf32>
    %88 = arith.subf %42, %77 : vector<64x128xf32>
    %89 = arith.subf %46, %77 : vector<64x128xf32>
    %90 = arith.addf %39, %41 : vector<64x128xf32>
    %cst_49 = arith.constant 5.000000e-01 : f32
    %91 = vector.broadcast %cst_49 : f32 to vector<64x128xf32>
    %92 = arith.mulf %91, %90 : vector<64x128xf32>
    %93 = arith.addf %40, %44 : vector<64x128xf32>
    %cst_50 = arith.constant 5.000000e-01 : f32
    %94 = vector.broadcast %cst_50 : f32 to vector<64x128xf32>
    %95 = arith.mulf %94, %93 : vector<64x128xf32>
    %96 = arith.addf %43, %45 : vector<64x128xf32>
    %cst_51 = arith.constant 5.000000e-01 : f32
    %97 = vector.broadcast %cst_51 : f32 to vector<64x128xf32>
    %98 = arith.mulf %97, %96 : vector<64x128xf32>
    %c0_52 = arith.constant 0 : index
    %c0_53 = arith.constant 0 : index
    %c0_54 = arith.constant 0 : index
    %99 = vector.load %arg3[%c0_52, %c0_53, %c0_54] : memref<6x128x128xf32, #tpu.memory_space<vmem>>, vector<1x128x128xf32>
    %100 = vector.shape_cast %99 : vector<1x128x128xf32> to vector<128x128xf32>
    %cst_55 = arith.constant dense<0.000000e+00> : vector<64x128xf32>
    %101 = tpu.matmul %77, %100, %cst_55 {dimension_numbers = #tpu.dot_dimension_numbers<[1], [0], [0], [1], [0, 0, 1, 1], [], []>} : vector<64x128xf32>, vector<128x128xf32>, vector<64x128xf32> -> vector<64x128xf32>
    %c0_56 = arith.constant 0 : index
    %c0_57 = arith.constant 0 : index
    %102 = vector.load %arg5[%c0_56, %c0_57] : memref<192x128xf32, #tpu.memory_space<vmem>>, vector<64x128xf32>
    tpu.vector_store %arg5[%c0_56, %c0_57], %80 {strides = array<i32>} : memref<192x128xf32, #tpu.memory_space<vmem>>, vector<64x128xf32>,
    %c64 = arith.constant 64 : index
    %c0_58 = arith.constant 0 : index
    %103 = vector.load %arg5[%c64, %c0_58] : memref<192x128xf32, #tpu.memory_space<vmem>>, vector<64x128xf32>
    tpu.vector_store %arg5[%c64, %c0_58], %83 {strides = array<i32>} : memref<192x128xf32, #tpu.memory_space<vmem>>, vector<64x128xf32>,
    %c128 = arith.constant 128 : index
    %c0_59 = arith.constant 0 : index
    %104 = vector.load %arg5[%c128, %c0_59] : memref<192x128xf32, #tpu.memory_space<vmem>>, vector<64x128xf32>
    tpu.vector_store %arg5[%c128, %c0_59], %86 {strides = array<i32>} : memref<192x128xf32, #tpu.memory_space<vmem>>, vector<64x128xf32>,
    %c0_60 = arith.constant 0 : index
    %c0_61 = arith.constant 0 : index
    %105 = vector.load %arg5[%c0_60, %c0_61] : memref<192x128xf32, #tpu.memory_space<vmem>>, vector<192x128xf32>
    %c1_62 = arith.constant 1 : index
    %c0_63 = arith.constant 0 : index
    %c0_64 = arith.constant 0 : index
    %106 = vector.load %arg3[%c1_62, %c0_63, %c0_64] : memref<6x128x128xf32, #tpu.memory_space<vmem>>, vector<1x128x128xf32>
    %107 = vector.shape_cast %106 : vector<1x128x128xf32> to vector<128x128xf32>
    %cst_65 = arith.constant dense<0.000000e+00> : vector<192x128xf32>
    %108 = tpu.matmul %105, %107, %cst_65 {dimension_numbers = #tpu.dot_dimension_numbers<[1], [0], [0], [1], [0, 0, 1, 1], [], []>} : vector<192x128xf32>, vector<128x128xf32>, vector<192x128xf32> -> vector<192x128xf32>
    %109 = vector.extract_strided_slice %108 {offsets = [0, 0], sizes = [64, 128], strides = [1, 1]} : vector<192x128xf32> to vector<64x128xf32>
    %110 = vector.extract_strided_slice %108 {offsets = [64, 0], sizes = [64, 128], strides = [1, 1]} : vector<192x128xf32> to vector<64x128xf32>
    %111 = vector.extract_strided_slice %108 {offsets = [128, 0], sizes = [64, 128], strides = [1, 1]} : vector<192x128xf32> to vector<64x128xf32>
    %c0_66 = arith.constant 0 : index
    %c0_67 = arith.constant 0 : index
    %112 = vector.load %arg6[%c0_66, %c0_67] : memref<384x128xf32, #tpu.memory_space<vmem>>, vector<64x128xf32>
    tpu.vector_store %arg6[%c0_66, %c0_67], %87 {strides = array<i32>} : memref<384x128xf32, #tpu.memory_space<vmem>>, vector<64x128xf32>,
    %c64_68 = arith.constant 64 : index
    %c0_69 = arith.constant 0 : index
    %113 = vector.load %arg6[%c64_68, %c0_69] : memref<384x128xf32, #tpu.memory_space<vmem>>, vector<64x128xf32>
    tpu.vector_store %arg6[%c64_68, %c0_69], %92 {strides = array<i32>} : memref<384x128xf32, #tpu.memory_space<vmem>>, vector<64x128xf32>,
    %c128_70 = arith.constant 128 : index
    %c0_71 = arith.constant 0 : index
    %114 = vector.load %arg6[%c128_70, %c0_71] : memref<384x128xf32, #tpu.memory_space<vmem>>, vector<64x128xf32>
    tpu.vector_store %arg6[%c128_70, %c0_71], %95 {strides = array<i32>} : memref<384x128xf32, #tpu.memory_space<vmem>>, vector<64x128xf32>,
    %c192 = arith.constant 192 : index
    %c0_72 = arith.constant 0 : index
    %115 = vector.load %arg6[%c192, %c0_72] : memref<384x128xf32, #tpu.memory_space<vmem>>, vector<64x128xf32>
    tpu.vector_store %arg6[%c192, %c0_72], %88 {strides = array<i32>} : memref<384x128xf32, #tpu.memory_space<vmem>>, vector<64x128xf32>,
    %c256 = arith.constant 256 : index
    %c0_73 = arith.constant 0 : index
    %116 = vector.load %arg6[%c256, %c0_73] : memref<384x128xf32, #tpu.memory_space<vmem>>, vector<64x128xf32>
    tpu.vector_store %arg6[%c256, %c0_73], %98 {strides = array<i32>} : memref<384x128xf32, #tpu.memory_space<vmem>>, vector<64x128xf32>,
    %c320 = arith.constant 320 : index
    %c0_74 = arith.constant 0 : index
    %117 = vector.load %arg6[%c320, %c0_74] : memref<384x128xf32, #tpu.memory_space<vmem>>, vector<64x128xf32>
    tpu.vector_store %arg6[%c320, %c0_74], %89 {strides = array<i32>} : memref<384x128xf32, #tpu.memory_space<vmem>>, vector<64x128xf32>,
    %c0_75 = arith.constant 0 : index
    %c0_76 = arith.constant 0 : index
    %118 = vector.load %arg6[%c0_75, %c0_76] : memref<384x128xf32, #tpu.memory_space<vmem>>, vector<384x128xf32>
    %c2_77 = arith.constant 2 : index
    %c0_78 = arith.constant 0 : index
    %c0_79 = arith.constant 0 : index
    %119 = vector.load %arg3[%c2_77, %c0_78, %c0_79] : memref<6x128x128xf32, #tpu.memory_space<vmem>>, vector<1x128x128xf32>
    %120 = vector.shape_cast %119 : vector<1x128x128xf32> to vector<128x128xf32>
    %cst_80 = arith.constant dense<0.000000e+00> : vector<384x128xf32>
    %121 = tpu.matmul %118, %120, %cst_80 {dimension_numbers = #tpu.dot_dimension_numbers<[1], [0], [0], [1], [0, 0, 1, 1], [], []>} : vector<384x128xf32>, vector<128x128xf32>, vector<384x128xf32> -> vector<384x128xf32>
    %122 = vector.extract_strided_slice %121 {offsets = [0, 0], sizes = [64, 128], strides = [1, 1]} : vector<384x128xf32> to vector<64x128xf32>
    %123 = vector.extract_strided_slice %121 {offsets = [64, 0], sizes = [64, 128], strides = [1, 1]} : vector<384x128xf32> to vector<64x128xf32>
    %124 = vector.extract_strided_slice %121 {offsets = [128, 0], sizes = [64, 128], strides = [1, 1]} : vector<384x128xf32> to vector<64x128xf32>
    %125 = vector.extract_strided_slice %121 {offsets = [192, 0], sizes = [64, 128], strides = [1, 1]} : vector<384x128xf32> to vector<64x128xf32>
    %126 = vector.extract_strided_slice %121 {offsets = [256, 0], sizes = [64, 128], strides = [1, 1]} : vector<384x128xf32> to vector<64x128xf32>
    %127 = vector.extract_strided_slice %121 {offsets = [320, 0], sizes = [64, 128], strides = [1, 1]} : vector<384x128xf32> to vector<64x128xf32>
    %c0_81 = arith.constant 0 : index
    %c0_82 = arith.constant 0 : index
    %c0_83 = arith.constant 0 : index
    %128 = vector.load %arg2[%c0_81, %c0_82, %c0_83] : memref<3x64x128xf32, #tpu.memory_space<vmem>>, vector<1x64x128xf32>
    %129 = vector.shape_cast %128 : vector<1x64x128xf32> to vector<64x128xf32>
    %c1_84 = arith.constant 1 : index
    %c0_85 = arith.constant 0 : index
    %c0_86 = arith.constant 0 : index
    %130 = vector.load %arg2[%c1_84, %c0_85, %c0_86] : memref<3x64x128xf32, #tpu.memory_space<vmem>>, vector<1x64x128xf32>
    %131 = vector.shape_cast %130 : vector<1x64x128xf32> to vector<64x128xf32>
    %c2_87 = arith.constant 2 : index
    %c0_88 = arith.constant 0 : index
    %c0_89 = arith.constant 0 : index
    %132 = vector.load %arg2[%c2_87, %c0_88, %c0_89] : memref<3x64x128xf32, #tpu.memory_space<vmem>>, vector<1x64x128xf32>
    %133 = vector.shape_cast %132 : vector<1x64x128xf32> to vector<64x128xf32>
    %134 = arith.mulf %129, %101 : vector<64x128xf32>
    %135 = arith.mulf %131, %109 : vector<64x128xf32>
    %136 = arith.mulf %131, %110 : vector<64x128xf32>
    %137 = arith.mulf %131, %111 : vector<64x128xf32>
    %138 = arith.mulf %133, %122 : vector<64x128xf32>
    %139 = arith.mulf %133, %123 : vector<64x128xf32>
    %140 = arith.mulf %133, %124 : vector<64x128xf32>
    %141 = arith.mulf %133, %125 : vector<64x128xf32>
    %142 = arith.mulf %133, %126 : vector<64x128xf32>
    %143 = arith.mulf %133, %127 : vector<64x128xf32>
    %144 = arith.addf %101, %122 : vector<64x128xf32>
    %145 = arith.addf %109, %123 : vector<64x128xf32>
    %146 = arith.addf %110, %124 : vector<64x128xf32>
    %147 = arith.subf %123, %109 : vector<64x128xf32>
    %148 = arith.addf %101, %125 : vector<64x128xf32>
    %149 = arith.addf %111, %126 : vector<64x128xf32>
    %150 = arith.subf %124, %110 : vector<64x128xf32>
    %151 = arith.subf %126, %111 : vector<64x128xf32>
    %152 = arith.addf %101, %127 : vector<64x128xf32>
    %153 = arith.addf %134, %138 : vector<64x128xf32>
    %154 = arith.addf %135, %139 : vector<64x128xf32>
    %155 = arith.addf %136, %140 : vector<64x128xf32>
    %156 = arith.subf %139, %135 : vector<64x128xf32>
    %157 = arith.addf %134, %141 : vector<64x128xf32>
    %158 = arith.addf %137, %142 : vector<64x128xf32>
    %159 = arith.subf %140, %136 : vector<64x128xf32>
    %160 = arith.subf %142, %137 : vector<64x128xf32>
    %161 = arith.addf %134, %143 : vector<64x128xf32>
    %162 = arith.mulf %153, %144 : vector<64x128xf32>
    %163 = arith.mulf %144, %153 : vector<64x128xf32>
    %164 = arith.addf %162, %163 : vector<64x128xf32>
    %165 = arith.mulf %154, %147 : vector<64x128xf32>
    %166 = arith.addf %164, %165 : vector<64x128xf32>
    %167 = arith.mulf %145, %156 : vector<64x128xf32>
    %168 = arith.addf %166, %167 : vector<64x128xf32>
    %169 = arith.mulf %155, %150 : vector<64x128xf32>
    %170 = arith.addf %168, %169 : vector<64x128xf32>
    %171 = arith.mulf %146, %159 : vector<64x128xf32>
    %172 = arith.addf %170, %171 : vector<64x128xf32>
    %173 = arith.mulf %153, %145 : vector<64x128xf32>
    %174 = arith.mulf %144, %154 : vector<64x128xf32>
    %175 = arith.addf %173, %174 : vector<64x128xf32>
    %176 = arith.mulf %154, %148 : vector<64x128xf32>
    %177 = arith.addf %175, %176 : vector<64x128xf32>
    %178 = arith.mulf %145, %157 : vector<64x128xf32>
    %179 = arith.addf %177, %178 : vector<64x128xf32>
    %180 = arith.mulf %155, %151 : vector<64x128xf32>
    %181 = arith.addf %179, %180 : vector<64x128xf32>
    %182 = arith.mulf %146, %160 : vector<64x128xf32>
    %183 = arith.addf %181, %182 : vector<64x128xf32>
    %184 = arith.mulf %153, %146 : vector<64x128xf32>
    %185 = arith.mulf %144, %155 : vector<64x128xf32>
    %186 = arith.addf %184, %185 : vector<64x128xf32>
    %187 = arith.mulf %154, %149 : vector<64x128xf32>
    %188 = arith.addf %186, %187 : vector<64x128xf32>
    %189 = arith.mulf %145, %158 : vector<64x128xf32>
    %190 = arith.addf %188, %189 : vector<64x128xf32>
    %191 = arith.mulf %155, %152 : vector<64x128xf32>
    %192 = arith.addf %190, %191 : vector<64x128xf32>
    %193 = arith.mulf %146, %161 : vector<64x128xf32>
    %194 = arith.addf %192, %193 : vector<64x128xf32>
    %195 = arith.mulf %156, %144 : vector<64x128xf32>
    %196 = arith.mulf %147, %153 : vector<64x128xf32>
    %197 = arith.addf %195, %196 : vector<64x128xf32>
    %198 = arith.mulf %157, %147 : vector<64x128xf32>
    %199 = arith.addf %197, %198 : vector<64x128xf32>
    %200 = arith.mulf %148, %156 : vector<64x128xf32>
    %201 = arith.addf %199, %200 : vector<64x128xf32>
    %202 = arith.mulf %158, %150 : vector<64x128xf32>
    %203 = arith.addf %201, %202 : vector<64x128xf32>
    %204 = arith.mulf %149, %159 : vector<64x128xf32>
    %205 = arith.addf %203, %204 : vector<64x128xf32>
    %206 = arith.mulf %156, %145 : vector<64x128xf32>
    %207 = arith.mulf %147, %154 : vector<64x128xf32>
    %208 = arith.addf %206, %207 : vector<64x128xf32>
    %209 = arith.mulf %157, %148 : vector<64x128xf32>
    %210 = arith.addf %208, %209 : vector<64x128xf32>
    %211 = arith.mulf %148, %157 : vector<64x128xf32>
    %212 = arith.addf %210, %211 : vector<64x128xf32>
    %213 = arith.mulf %158, %151 : vector<64x128xf32>
    %214 = arith.addf %212, %213 : vector<64x128xf32>
    %215 = arith.mulf %149, %160 : vector<64x128xf32>
    %216 = arith.addf %214, %215 : vector<64x128xf32>
    %217 = arith.mulf %156, %146 : vector<64x128xf32>
    %218 = arith.mulf %147, %155 : vector<64x128xf32>
    %219 = arith.addf %217, %218 : vector<64x128xf32>
    %220 = arith.mulf %157, %149 : vector<64x128xf32>
    %221 = arith.addf %219, %220 : vector<64x128xf32>
    %222 = arith.mulf %148, %158 : vector<64x128xf32>
    %223 = arith.addf %221, %222 : vector<64x128xf32>
    %224 = arith.mulf %158, %152 : vector<64x128xf32>
    %225 = arith.addf %223, %224 : vector<64x128xf32>
    %226 = arith.mulf %149, %161 : vector<64x128xf32>
    %227 = arith.addf %225, %226 : vector<64x128xf32>
    %228 = arith.mulf %159, %144 : vector<64x128xf32>
    %229 = arith.mulf %150, %153 : vector<64x128xf32>
    %230 = arith.addf %228, %229 : vector<64x128xf32>
    %231 = arith.mulf %160, %147 : vector<64x128xf32>
    %232 = arith.addf %230, %231 : vector<64x128xf32>
    %233 = arith.mulf %151, %156 : vector<64x128xf32>
    %234 = arith.addf %232, %233 : vector<64x128xf32>
    %235 = arith.mulf %161, %150 : vector<64x128xf32>
    %236 = arith.addf %234, %235 : vector<64x128xf32>
    %237 = arith.mulf %152, %159 : vector<64x128xf32>
    %238 = arith.addf %236, %237 : vector<64x128xf32>
    %239 = arith.mulf %159, %145 : vector<64x128xf32>
    %240 = arith.mulf %150, %154 : vector<64x128xf32>
    %241 = arith.addf %239, %240 : vector<64x128xf32>
    %242 = arith.mulf %160, %148 : vector<64x128xf32>
    %243 = arith.addf %241, %242 : vector<64x128xf32>
    %244 = arith.mulf %151, %157 : vector<64x128xf32>
    %245 = arith.addf %243, %244 : vector<64x128xf32>
    %246 = arith.mulf %161, %151 : vector<64x128xf32>
    %247 = arith.addf %245, %246 : vector<64x128xf32>
    %248 = arith.mulf %152, %160 : vector<64x128xf32>
    %249 = arith.addf %247, %248 : vector<64x128xf32>
    %250 = arith.mulf %159, %146 : vector<64x128xf32>
    %251 = arith.mulf %150, %155 : vector<64x128xf32>
    %252 = arith.addf %250, %251 : vector<64x128xf32>
    %253 = arith.mulf %160, %149 : vector<64x128xf32>
    %254 = arith.addf %252, %253 : vector<64x128xf32>
    %255 = arith.mulf %151, %158 : vector<64x128xf32>
    %256 = arith.addf %254, %255 : vector<64x128xf32>
    %257 = arith.mulf %161, %152 : vector<64x128xf32>
    %258 = arith.addf %256, %257 : vector<64x128xf32>
    %259 = arith.mulf %152, %161 : vector<64x128xf32>
    %260 = arith.addf %258, %259 : vector<64x128xf32>
    %261 = arith.mulf %172, %172 : vector<64x128xf32>
    %262 = arith.mulf %183, %183 : vector<64x128xf32>
    %263 = arith.addf %261, %262 : vector<64x128xf32>
    %264 = arith.mulf %194, %194 : vector<64x128xf32>
    %265 = arith.addf %263, %264 : vector<64x128xf32>
    %266 = arith.mulf %205, %205 : vector<64x128xf32>
    %267 = arith.addf %265, %266 : vector<64x128xf32>
    %268 = arith.mulf %216, %216 : vector<64x128xf32>
    %269 = arith.addf %267, %268 : vector<64x128xf32>
    %270 = arith.mulf %227, %227 : vector<64x128xf32>
    %271 = arith.addf %269, %270 : vector<64x128xf32>
    %272 = arith.mulf %238, %238 : vector<64x128xf32>
    %273 = arith.addf %271, %272 : vector<64x128xf32>
    %274 = arith.mulf %249, %249 : vector<64x128xf32>
    %275 = arith.addf %273, %274 : vector<64x128xf32>
    %276 = arith.mulf %260, %260 : vector<64x128xf32>
    %277 = arith.addf %275, %276 : vector<64x128xf32>
    %cst_90 = arith.constant 1.000000e+00 : f32
    %278 = vector.broadcast %cst_90 : f32 to vector<64x128xf32>
    %279 = arith.addf %277, %278 : vector<64x128xf32>
    %280 = tpu.reciprocal %279 {approx = true} : vector<64x128xf32> -> vector<64x128xf32>
    %281 = arith.addf %172, %216 : vector<64x128xf32>
    %282 = arith.addf %281, %260 : vector<64x128xf32>
    %cst_91 = arith.constant 0.333333343 : f32
    %283 = vector.broadcast %cst_91 : f32 to vector<64x128xf32>
    %284 = arith.mulf %282, %283 : vector<64x128xf32>
    %285 = arith.subf %183, %205 : vector<64x128xf32>
    %cst_92 = arith.constant 5.000000e-01 : f32
    %286 = vector.broadcast %cst_92 : f32 to vector<64x128xf32>
    %287 = arith.mulf %286, %285 : vector<64x128xf32>
    %288 = arith.mulf %287, %280 : vector<64x128xf32>
    %289 = arith.subf %194, %238 : vector<64x128xf32>
    %cst_93 = arith.constant 5.000000e-01 : f32
    %290 = vector.broadcast %cst_93 : f32 to vector<64x128xf32>
    %291 = arith.mulf %290, %289 : vector<64x128xf32>
    %292 = arith.mulf %291, %280 : vector<64x128xf32>
    %293 = arith.subf %227, %249 : vector<64x128xf32>
    %cst_94 = arith.constant 5.000000e-01 : f32
    %294 = vector.broadcast %cst_94 : f32 to vector<64x128xf32>
    %295 = arith.mulf %294, %293 : vector<64x128xf32>
    %296 = arith.mulf %295, %280 : vector<64x128xf32>
    %297 = arith.subf %172, %284 : vector<64x128xf32>
    %298 = arith.mulf %297, %280 : vector<64x128xf32>
    %299 = arith.subf %216, %284 : vector<64x128xf32>
    %300 = arith.mulf %299, %280 : vector<64x128xf32>
    %301 = arith.subf %260, %284 : vector<64x128xf32>
    %302 = arith.mulf %301, %280 : vector<64x128xf32>
    %303 = arith.addf %183, %205 : vector<64x128xf32>
    %cst_95 = arith.constant 5.000000e-01 : f32
    %304 = vector.broadcast %cst_95 : f32 to vector<64x128xf32>
    %305 = arith.mulf %304, %303 : vector<64x128xf32>
    %306 = arith.mulf %305, %280 : vector<64x128xf32>
    %307 = arith.addf %194, %238 : vector<64x128xf32>
    %cst_96 = arith.constant 5.000000e-01 : f32
    %308 = vector.broadcast %cst_96 : f32 to vector<64x128xf32>
    %309 = arith.mulf %308, %307 : vector<64x128xf32>
    %310 = arith.mulf %309, %280 : vector<64x128xf32>
    %311 = arith.addf %227, %249 : vector<64x128xf32>
    %cst_97 = arith.constant 5.000000e-01 : f32
    %312 = vector.broadcast %cst_97 : f32 to vector<64x128xf32>
    %313 = arith.mulf %312, %311 : vector<64x128xf32>
    %314 = arith.mulf %313, %280 : vector<64x128xf32>
    %315 = arith.mulf %284, %280 : vector<64x128xf32>
    %c3_98 = arith.constant 3 : index
    %c0_99 = arith.constant 0 : index
    %c0_100 = arith.constant 0 : index
    %316 = vector.load %arg3[%c3_98, %c0_99, %c0_100] : memref<6x128x128xf32, #tpu.memory_space<vmem>>, vector<1x128x128xf32>
    %317 = vector.shape_cast %316 : vector<1x128x128xf32> to vector<128x128xf32>
    %cst_101 = arith.constant dense<0.000000e+00> : vector<64x128xf32>
    %318 = tpu.matmul %315, %317, %cst_101 {dimension_numbers = #tpu.dot_dimension_numbers<[1], [0], [0], [1], [0, 0, 1, 1], [], []>} : vector<64x128xf32>, vector<128x128xf32>, vector<64x128xf32> -> vector<64x128xf32>
    %c0_102 = arith.constant 0 : index
    %c0_103 = arith.constant 0 : index
    %319 = vector.load %arg5[%c0_102, %c0_103] : memref<192x128xf32, #tpu.memory_space<vmem>>, vector<64x128xf32>
    tpu.vector_store %arg5[%c0_102, %c0_103], %288 {strides = array<i32>} : memref<192x128xf32, #tpu.memory_space<vmem>>, vector<64x128xf32>,
    %c64_104 = arith.constant 64 : index
    %c0_105 = arith.constant 0 : index
    %320 = vector.load %arg5[%c64_104, %c0_105] : memref<192x128xf32, #tpu.memory_space<vmem>>, vector<64x128xf32>
    tpu.vector_store %arg5[%c64_104, %c0_105], %292 {strides = array<i32>} : memref<192x128xf32, #tpu.memory_space<vmem>>, vector<64x128xf32>,
    %c128_106 = arith.constant 128 : index
    %c0_107 = arith.constant 0 : index
    %321 = vector.load %arg5[%c128_106, %c0_107] : memref<192x128xf32, #tpu.memory_space<vmem>>, vector<64x128xf32>
    tpu.vector_store %arg5[%c128_106, %c0_107], %296 {strides = array<i32>} : memref<192x128xf32, #tpu.memory_space<vmem>>, vector<64x128xf32>,
    %c0_108 = arith.constant 0 : index
    %c0_109 = arith.constant 0 : index
    %322 = vector.load %arg5[%c0_108, %c0_109] : memref<192x128xf32, #tpu.memory_space<vmem>>, vector<192x128xf32>
    %c4_110 = arith.constant 4 : index
    %c0_111 = arith.constant 0 : index
    %c0_112 = arith.constant 0 : index
    %323 = vector.load %arg3[%c4_110, %c0_111, %c0_112] : memref<6x128x128xf32, #tpu.memory_space<vmem>>, vector<1x128x128xf32>
    %324 = vector.shape_cast %323 : vector<1x128x128xf32> to vector<128x128xf32>
    %cst_113 = arith.constant dense<0.000000e+00> : vector<192x128xf32>
    %325 = tpu.matmul %322, %324, %cst_113 {dimension_numbers = #tpu.dot_dimension_numbers<[1], [0], [0], [1], [0, 0, 1, 1], [], []>} : vector<192x128xf32>, vector<128x128xf32>, vector<192x128xf32> -> vector<192x128xf32>
    %326 = vector.extract_strided_slice %325 {offsets = [0, 0], sizes = [64, 128], strides = [1, 1]} : vector<192x128xf32> to vector<64x128xf32>
    %327 = vector.extract_strided_slice %325 {offsets = [64, 0], sizes = [64, 128], strides = [1, 1]} : vector<192x128xf32> to vector<64x128xf32>
    %328 = vector.extract_strided_slice %325 {offsets = [128, 0], sizes = [64, 128], strides = [1, 1]} : vector<192x128xf32> to vector<64x128xf32>
    %c0_114 = arith.constant 0 : index
    %c0_115 = arith.constant 0 : index
    %329 = vector.load %arg6[%c0_114, %c0_115] : memref<384x128xf32, #tpu.memory_space<vmem>>, vector<64x128xf32>
    tpu.vector_store %arg6[%c0_114, %c0_115], %298 {strides = array<i32>} : memref<384x128xf32, #tpu.memory_space<vmem>>, vector<64x128xf32>,
    %c64_116 = arith.constant 64 : index
    %c0_117 = arith.constant 0 : index
    %330 = vector.load %arg6[%c64_116, %c0_117] : memref<384x128xf32, #tpu.memory_space<vmem>>, vector<64x128xf32>
    tpu.vector_store %arg6[%c64_116, %c0_117], %306 {strides = array<i32>} : memref<384x128xf32, #tpu.memory_space<vmem>>, vector<64x128xf32>,
    %c128_118 = arith.constant 128 : index
    %c0_119 = arith.constant 0 : index
    %331 = vector.load %arg6[%c128_118, %c0_119] : memref<384x128xf32, #tpu.memory_space<vmem>>, vector<64x128xf32>
    tpu.vector_store %arg6[%c128_118, %c0_119], %310 {strides = array<i32>} : memref<384x128xf32, #tpu.memory_space<vmem>>, vector<64x128xf32>,
    %c192_120 = arith.constant 192 : index
    %c0_121 = arith.constant 0 : index
    %332 = vector.load %arg6[%c192_120, %c0_121] : memref<384x128xf32, #tpu.memory_space<vmem>>, vector<64x128xf32>
    tpu.vector_store %arg6[%c192_120, %c0_121], %300 {strides = array<i32>} : memref<384x128xf32, #tpu.memory_space<vmem>>, vector<64x128xf32>,
    %c256_122 = arith.constant 256 : index
    %c0_123 = arith.constant 0 : index
    %333 = vector.load %arg6[%c256_122, %c0_123] : memref<384x128xf32, #tpu.memory_space<vmem>>, vector<64x128xf32>
    tpu.vector_store %arg6[%c256_122, %c0_123], %314 {strides = array<i32>} : memref<384x128xf32, #tpu.memory_space<vmem>>, vector<64x128xf32>,
    %c320_124 = arith.constant 320 : index
    %c0_125 = arith.constant 0 : index
    %334 = vector.load %arg6[%c320_124, %c0_125] : memref<384x128xf32, #tpu.memory_space<vmem>>, vector<64x128xf32>
    tpu.vector_store %arg6[%c320_124, %c0_125], %302 {strides = array<i32>} : memref<384x128xf32, #tpu.memory_space<vmem>>, vector<64x128xf32>,
    %c0_126 = arith.constant 0 : index
    %c0_127 = arith.constant 0 : index
    %335 = vector.load %arg6[%c0_126, %c0_127] : memref<384x128xf32, #tpu.memory_space<vmem>>, vector<384x128xf32>
    %c5_128 = arith.constant 5 : index
    %c0_129 = arith.constant 0 : index
    %c0_130 = arith.constant 0 : index
    %336 = vector.load %arg3[%c5_128, %c0_129, %c0_130] : memref<6x128x128xf32, #tpu.memory_space<vmem>>, vector<1x128x128xf32>
    %337 = vector.shape_cast %336 : vector<1x128x128xf32> to vector<128x128xf32>
    %cst_131 = arith.constant dense<0.000000e+00> : vector<384x128xf32>
    %338 = tpu.matmul %335, %337, %cst_131 {dimension_numbers = #tpu.dot_dimension_numbers<[1], [0], [0], [1], [0, 0, 1, 1], [], []>} : vector<384x128xf32>, vector<128x128xf32>, vector<384x128xf32> -> vector<384x128xf32>
    %339 = vector.extract_strided_slice %338 {offsets = [0, 0], sizes = [64, 128], strides = [1, 1]} : vector<384x128xf32> to vector<64x128xf32>
    %340 = vector.extract_strided_slice %338 {offsets = [64, 0], sizes = [64, 128], strides = [1, 1]} : vector<384x128xf32> to vector<64x128xf32>
    %341 = vector.extract_strided_slice %338 {offsets = [128, 0], sizes = [64, 128], strides = [1, 1]} : vector<384x128xf32> to vector<64x128xf32>
    %342 = vector.extract_strided_slice %338 {offsets = [192, 0], sizes = [64, 128], strides = [1, 1]} : vector<384x128xf32> to vector<64x128xf32>
    %343 = vector.extract_strided_slice %338 {offsets = [256, 0], sizes = [64, 128], strides = [1, 1]} : vector<384x128xf32> to vector<64x128xf32>
    %344 = vector.extract_strided_slice %338 {offsets = [320, 0], sizes = [64, 128], strides = [1, 1]} : vector<384x128xf32> to vector<64x128xf32>
    %345 = arith.addf %318, %339 : vector<64x128xf32>
    %346 = arith.addf %326, %340 : vector<64x128xf32>
    %347 = arith.addf %327, %341 : vector<64x128xf32>
    %348 = arith.subf %340, %326 : vector<64x128xf32>
    %349 = arith.addf %318, %342 : vector<64x128xf32>
    %350 = arith.addf %328, %343 : vector<64x128xf32>
    %351 = arith.subf %341, %327 : vector<64x128xf32>
    %352 = arith.subf %343, %328 : vector<64x128xf32>
    %353 = arith.addf %318, %344 : vector<64x128xf32>
    %354 = arith.mulf %345, %345 : vector<64x128xf32>
    %355 = arith.mulf %346, %348 : vector<64x128xf32>
    %356 = arith.addf %354, %355 : vector<64x128xf32>
    %357 = arith.mulf %347, %351 : vector<64x128xf32>
    %358 = arith.addf %356, %357 : vector<64x128xf32>
    %c0_132 = arith.constant 0 : index
    %c0_133 = arith.constant 0 : index
    %c0_134 = arith.constant 0 : index
    %359 = vector.load %arg4[%c0_132, %c0_133, %c0_134] : memref<9x64x128xf32, #tpu.memory_space<vmem>>, vector<1x64x128xf32>
    %360 = vector.shape_cast %359 : vector<1x64x128xf32> to vector<64x128xf32>
    %361 = arith.addf %360, %345 : vector<64x128xf32>
    %362 = arith.addf %361, %358 : vector<64x128xf32>
    %c0_135 = arith.constant 0 : index
    %c0_136 = arith.constant 0 : index
    %c0_137 = arith.constant 0 : index
    %363 = vector.load %arg4[%c0_135, %c0_136, %c0_137] : memref<9x64x128xf32, #tpu.memory_space<vmem>>, vector<1x64x128xf32>
    %364 = vector.shape_cast %363 : vector<1x64x128xf32> to vector<64x128xf32>
    %365 = vector.shape_cast %362 : vector<64x128xf32> to vector<1x64x128xf32>
    tpu.vector_store %arg4[%c0_135, %c0_136, %c0_137], %365 {strides = array<i32>} : memref<9x64x128xf32, #tpu.memory_space<vmem>>, vector<1x64x128xf32>,
    %366 = arith.mulf %345, %346 : vector<64x128xf32>
    %367 = arith.mulf %346, %349 : vector<64x128xf32>
    %368 = arith.addf %366, %367 : vector<64x128xf32>
    %369 = arith.mulf %347, %352 : vector<64x128xf32>
    %370 = arith.addf %368, %369 : vector<64x128xf32>
    %c1_138 = arith.constant 1 : index
    %c0_139 = arith.constant 0 : index
    %c0_140 = arith.constant 0 : index
    %371 = vector.load %arg4[%c1_138, %c0_139, %c0_140] : memref<9x64x128xf32, #tpu.memory_space<vmem>>, vector<1x64x128xf32>
    %372 = vector.shape_cast %371 : vector<1x64x128xf32> to vector<64x128xf32>
    %373 = arith.addf %372, %346 : vector<64x128xf32>
    %374 = arith.addf %373, %370 : vector<64x128xf32>
    %c1_141 = arith.constant 1 : index
    %c0_142 = arith.constant 0 : index
    %c0_143 = arith.constant 0 : index
    %375 = vector.load %arg4[%c1_141, %c0_142, %c0_143] : memref<9x64x128xf32, #tpu.memory_space<vmem>>, vector<1x64x128xf32>
    %376 = vector.shape_cast %375 : vector<1x64x128xf32> to vector<64x128xf32>
    %377 = vector.shape_cast %374 : vector<64x128xf32> to vector<1x64x128xf32>
    tpu.vector_store %arg4[%c1_141, %c0_142, %c0_143], %377 {strides = array<i32>} : memref<9x64x128xf32, #tpu.memory_space<vmem>>, vector<1x64x128xf32>,
    %378 = arith.mulf %345, %347 : vector<64x128xf32>
    %379 = arith.mulf %346, %350 : vector<64x128xf32>
    %380 = arith.addf %378, %379 : vector<64x128xf32>
    %381 = arith.mulf %347, %353 : vector<64x128xf32>
    %382 = arith.addf %380, %381 : vector<64x128xf32>
    %c2_144 = arith.constant 2 : index
    %c0_145 = arith.constant 0 : index
    %c0_146 = arith.constant 0 : index
    %383 = vector.load %arg4[%c2_144, %c0_145, %c0_146] : memref<9x64x128xf32, #tpu.memory_space<vmem>>, vector<1x64x128xf32>
    %384 = vector.shape_cast %383 : vector<1x64x128xf32> to vector<64x128xf32>
    %385 = arith.addf %384, %347 : vector<64x128xf32>
    %386 = arith.addf %385, %382 : vector<64x128xf32>
    %c2_147 = arith.constant 2 : index
    %c0_148 = arith.constant 0 : index
    %c0_149 = arith.constant 0 : index
    %387 = vector.load %arg4[%c2_147, %c0_148, %c0_149] : memref<9x64x128xf32, #tpu.memory_space<vmem>>, vector<1x64x128xf32>
    %388 = vector.shape_cast %387 : vector<1x64x128xf32> to vector<64x128xf32>
    %389 = vector.shape_cast %386 : vector<64x128xf32> to vector<1x64x128xf32>
    tpu.vector_store %arg4[%c2_147, %c0_148, %c0_149], %389 {strides = array<i32>} : memref<9x64x128xf32, #tpu.memory_space<vmem>>, vector<1x64x128xf32>,
    %390 = arith.mulf %348, %345 : vector<64x128xf32>
    %391 = arith.mulf %349, %348 : vector<64x128xf32>
    %392 = arith.addf %390, %391 : vector<64x128xf32>
    %393 = arith.mulf %350, %351 : vector<64x128xf32>
    %394 = arith.addf %392, %393 : vector<64x128xf32>
    %c3_150 = arith.constant 3 : index
    %c0_151 = arith.constant 0 : index
    %c0_152 = arith.constant 0 : index
    %395 = vector.load %arg4[%c3_150, %c0_151, %c0_152] : memref<9x64x128xf32, #tpu.memory_space<vmem>>, vector<1x64x128xf32>
    %396 = vector.shape_cast %395 : vector<1x64x128xf32> to vector<64x128xf32>
    %397 = arith.addf %396, %348 : vector<64x128xf32>
    %398 = arith.addf %397, %394 : vector<64x128xf32>
    %c3_153 = arith.constant 3 : index
    %c0_154 = arith.constant 0 : index
    %c0_155 = arith.constant 0 : index
    %399 = vector.load %arg4[%c3_153, %c0_154, %c0_155] : memref<9x64x128xf32, #tpu.memory_space<vmem>>, vector<1x64x128xf32>
    %400 = vector.shape_cast %399 : vector<1x64x128xf32> to vector<64x128xf32>
    %401 = vector.shape_cast %398 : vector<64x128xf32> to vector<1x64x128xf32>
    tpu.vector_store %arg4[%c3_153, %c0_154, %c0_155], %401 {strides = array<i32>} : memref<9x64x128xf32, #tpu.memory_space<vmem>>, vector<1x64x128xf32>,
    %402 = arith.mulf %348, %346 : vector<64x128xf32>
    %403 = arith.mulf %349, %349 : vector<64x128xf32>
    %404 = arith.addf %402, %403 : vector<64x128xf32>
    %405 = arith.mulf %350, %352 : vector<64x128xf32>
    %406 = arith.addf %404, %405 : vector<64x128xf32>
    %c4_156 = arith.constant 4 : index
    %c0_157 = arith.constant 0 : index
    %c0_158 = arith.constant 0 : index
    %407 = vector.load %arg4[%c4_156, %c0_157, %c0_158] : memref<9x64x128xf32, #tpu.memory_space<vmem>>, vector<1x64x128xf32>
    %408 = vector.shape_cast %407 : vector<1x64x128xf32> to vector<64x128xf32>
    %409 = arith.addf %408, %349 : vector<64x128xf32>
    %410 = arith.addf %409, %406 : vector<64x128xf32>
    %c4_159 = arith.constant 4 : index
    %c0_160 = arith.constant 0 : index
    %c0_161 = arith.constant 0 : index
    %411 = vector.load %arg4[%c4_159, %c0_160, %c0_161] : memref<9x64x128xf32, #tpu.memory_space<vmem>>, vector<1x64x128xf32>
    %412 = vector.shape_cast %411 : vector<1x64x128xf32> to vector<64x128xf32>
    %413 = vector.shape_cast %410 : vector<64x128xf32> to vector<1x64x128xf32>
    tpu.vector_store %arg4[%c4_159, %c0_160, %c0_161], %413 {strides = array<i32>} : memref<9x64x128xf32, #tpu.memory_space<vmem>>, vector<1x64x128xf32>,
    %414 = arith.mulf %348, %347 : vector<64x128xf32>
    %415 = arith.mulf %349, %350 : vector<64x128xf32>
    %416 = arith.addf %414, %415 : vector<64x128xf32>
    %417 = arith.mulf %350, %353 : vector<64x128xf32>
    %418 = arith.addf %416, %417 : vector<64x128xf32>
    %c5_162 = arith.constant 5 : index
    %c0_163 = arith.constant 0 : index
    %c0_164 = arith.constant 0 : index
    %419 = vector.load %arg4[%c5_162, %c0_163, %c0_164] : memref<9x64x128xf32, #tpu.memory_space<vmem>>, vector<1x64x128xf32>
    %420 = vector.shape_cast %419 : vector<1x64x128xf32> to vector<64x128xf32>
    %421 = arith.addf %420, %350 : vector<64x128xf32>
    %422 = arith.addf %421, %418 : vector<64x128xf32>
    %c5_165 = arith.constant 5 : index
    %c0_166 = arith.constant 0 : index
    %c0_167 = arith.constant 0 : index
    %423 = vector.load %arg4[%c5_165, %c0_166, %c0_167] : memref<9x64x128xf32, #tpu.memory_space<vmem>>, vector<1x64x128xf32>
    %424 = vector.shape_cast %423 : vector<1x64x128xf32> to vector<64x128xf32>
    %425 = vector.shape_cast %422 : vector<64x128xf32> to vector<1x64x128xf32>
    tpu.vector_store %arg4[%c5_165, %c0_166, %c0_167], %425 {strides = array<i32>} : memref<9x64x128xf32, #tpu.memory_space<vmem>>, vector<1x64x128xf32>,
    %426 = arith.mulf %351, %345 : vector<64x128xf32>
    %427 = arith.mulf %352, %348 : vector<64x128xf32>
    %428 = arith.addf %426, %427 : vector<64x128xf32>
    %429 = arith.mulf %353, %351 : vector<64x128xf32>
    %430 = arith.addf %428, %429 : vector<64x128xf32>
    %c6_168 = arith.constant 6 : index
    %c0_169 = arith.constant 0 : index
    %c0_170 = arith.constant 0 : index
    %431 = vector.load %arg4[%c6_168, %c0_169, %c0_170] : memref<9x64x128xf32, #tpu.memory_space<vmem>>, vector<1x64x128xf32>
    %432 = vector.shape_cast %431 : vector<1x64x128xf32> to vector<64x128xf32>
    %433 = arith.addf %432, %351 : vector<64x128xf32>
    %434 = arith.addf %433, %430 : vector<64x128xf32>
    %c6_171 = arith.constant 6 : index
    %c0_172 = arith.constant 0 : index
    %c0_173 = arith.constant 0 : index
    %435 = vector.load %arg4[%c6_171, %c0_172, %c0_173] : memref<9x64x128xf32, #tpu.memory_space<vmem>>, vector<1x64x128xf32>
    %436 = vector.shape_cast %435 : vector<1x64x128xf32> to vector<64x128xf32>
    %437 = vector.shape_cast %434 : vector<64x128xf32> to vector<1x64x128xf32>
    tpu.vector_store %arg4[%c6_171, %c0_172, %c0_173], %437 {strides = array<i32>} : memref<9x64x128xf32, #tpu.memory_space<vmem>>, vector<1x64x128xf32>,
    %438 = arith.mulf %351, %346 : vector<64x128xf32>
    %439 = arith.mulf %352, %349 : vector<64x128xf32>
    %440 = arith.addf %438, %439 : vector<64x128xf32>
    %441 = arith.mulf %353, %352 : vector<64x128xf32>
    %442 = arith.addf %440, %441 : vector<64x128xf32>
    %c7_174 = arith.constant 7 : index
    %c0_175 = arith.constant 0 : index
    %c0_176 = arith.constant 0 : index
    %443 = vector.load %arg4[%c7_174, %c0_175, %c0_176] : memref<9x64x128xf32, #tpu.memory_space<vmem>>, vector<1x64x128xf32>
    %444 = vector.shape_cast %443 : vector<1x64x128xf32> to vector<64x128xf32>
    %445 = arith.addf %444, %352 : vector<64x128xf32>
    %446 = arith.addf %445, %442 : vector<64x128xf32>
    %c7_177 = arith.constant 7 : index
    %c0_178 = arith.constant 0 : index
    %c0_179 = arith.constant 0 : index
    %447 = vector.load %arg4[%c7_177, %c0_178, %c0_179] : memref<9x64x128xf32, #tpu.memory_space<vmem>>, vector<1x64x128xf32>
    %448 = vector.shape_cast %447 : vector<1x64x128xf32> to vector<64x128xf32>
    %449 = vector.shape_cast %446 : vector<64x128xf32> to vector<1x64x128xf32>
    tpu.vector_store %arg4[%c7_177, %c0_178, %c0_179], %449 {strides = array<i32>} : memref<9x64x128xf32, #tpu.memory_space<vmem>>, vector<1x64x128xf32>,
    %450 = arith.mulf %351, %347 : vector<64x128xf32>
    %451 = arith.mulf %352, %350 : vector<64x128xf32>
    %452 = arith.addf %450, %451 : vector<64x128xf32>
    %453 = arith.mulf %353, %353 : vector<64x128xf32>
    %454 = arith.addf %452, %453 : vector<64x128xf32>
    %c8_180 = arith.constant 8 : index
    %c0_181 = arith.constant 0 : index
    %c0_182 = arith.constant 0 : index
    %455 = vector.load %arg4[%c8_180, %c0_181, %c0_182] : memref<9x64x128xf32, #tpu.memory_space<vmem>>, vector<1x64x128xf32>
    %456 = vector.shape_cast %455 : vector<1x64x128xf32> to vector<64x128xf32>
    %457 = arith.addf %456, %353 : vector<64x128xf32>
    %458 = arith.addf %457, %454 : vector<64x128xf32>
    %c8_183 = arith.constant 8 : index
    %c0_184 = arith.constant 0 : index
    %c0_185 = arith.constant 0 : index
    %459 = vector.load %arg4[%c8_183, %c0_184, %c0_185] : memref<9x64x128xf32, #tpu.memory_space<vmem>>, vector<1x64x128xf32>
    %460 = vector.shape_cast %459 : vector<1x64x128xf32> to vector<64x128xf32>
    %461 = vector.shape_cast %458 : vector<64x128xf32> to vector<1x64x128xf32>
    tpu.vector_store %arg4[%c8_183, %c0_184, %c0_185], %461 {strides = array<i32>} : memref<9x64x128xf32, #tpu.memory_space<vmem>>, vector<1x64x128xf32>,
    return
  }
  func.func @transform_0(%arg0: i32) -> (i32, i32, i32) {
    %c0_i32 = arith.constant 0 : i32
    %c0_i32_0 = arith.constant 0 : i32
    %c0_i32_1 = arith.constant 0 : i32
    return %c0_i32, %arg0, %c0_i32_0 : i32, i32, i32
  }
  func.func @transform_1(%arg0: i32) -> (i32, i32, i32) {
    %c0_i32 = arith.constant 0 : i32
    %c0_i32_0 = arith.constant 0 : i32
    %c0_i32_1 = arith.constant 0 : i32
    return %c0_i32, %arg0, %c0_i32_0 : i32, i32, i32
  }
  func.func @transform_2(%arg0: i32) -> (i32, i32, i32) {
    %c0_i32 = arith.constant 0 : i32
    %c0_i32_0 = arith.constant 0 : i32
    %c0_i32_1 = arith.constant 0 : i32
    %c0_i32_2 = arith.constant 0 : i32
    return %c0_i32, %c0_i32_0, %c0_i32_1 : i32, i32, i32
  }
  func.func @transform_3(%arg0: i32) -> (i32, i32, i32) {
    %c0_i32 = arith.constant 0 : i32
    %c0_i32_0 = arith.constant 0 : i32
    %c0_i32_1 = arith.constant 0 : i32
    return %c0_i32, %arg0, %c0_i32_0 : i32, i32, i32
  }
}

</mosaic_0001>

<llo_original>
// kernel: tensornet_interaction.2
$region0: #{tensornet_interaction.2}
  #allocation0 [shape = 'u32[]', space=smem, size = 0x4, offset = 0x4, fixed_abs, tag = 'smem constant byte address 0x4 - core index']
  #allocation1 [shape = 'u32[144,128]{1,0:T(1,128)}', space=vmem, size = 0x12000, scoped, tag = 'internal scratch']
  %s0 = inlined_call_operand.vmem [shape: f32[128,8], index: 0, kind: input, shape index: {}]
  %s1 = inlined_call_operand.vmem [shape: f32[128,1], index: 1, kind: input, shape index: {}]
  %s2 = inlined_call_operand.vmem [shape: f32[8,128], index: 2, kind: input, shape index: {}]
  %s3 = inlined_call_operand.vmem [shape: f32[1,128], index: 3, kind: input, shape index: {}]
  %s4 = inlined_call_operand.vmem [shape: f32[128,256], index: 4, kind: input, shape index: {}]
  %s5 = inlined_call_operand.vmem [shape: f32[1,256], index: 5, kind: input, shape index: {}]
  %s6 = inlined_call_operand.vmem [shape: f32[256,384], index: 6, kind: input, shape index: {}]
  %s7 = inlined_call_operand.vmem [shape: f32[1,384], index: 7, kind: input, shape index: {}]
  %s8 = inlined_call_operand.vmem [shape: f32[128,384], index: 8, kind: output, shape index: {}]
  %s9 = sld [smem:[#allocation0]]
  $region42: #{tensornet_interaction.2} parent=0
    _
  %s11 = ssub.s32 1, %s9
  %s12 = scalar_select 0, %s11, %s9
  // Predicated region
  $region2: #{tensornet_interaction.2} parent=0 // pred_check
    _
  $region3: #{tensornet_interaction.2} parent=0 // pred_check_branch
    %14 = sbr.rel (0) target = $region5
  $region4: #{tensornet_interaction.2} parent=0 // pred_region
    _
  $region5: #{tensornet_interaction.2} parent=0 // pred_fallthru
    _
  // Predicated region
  $region6: #{tensornet_interaction.2} parent=0 // pred_check
    _
  $region7: #{tensornet_interaction.2} parent=0 // pred_check_branch
    %16 = sbr.rel (0) target = $region9
  $region8: #{tensornet_interaction.2} parent=0 // pred_region
    _
  $region9: #{tensornet_interaction.2} parent=0 // pred_fallthru
    _
  // Predicated region
  $region10: #{tensornet_interaction.2} parent=0 // pred_check
    _
  $region11: #{tensornet_interaction.2} parent=0 // pred_check_branch
    %18 = sbr.rel (0) target = $region13
  $region12: #{tensornet_interaction.2} parent=0 // pred_region
    _
  $region13: #{tensornet_interaction.2} parent=0 // pred_fallthru
    _
  // Predicated region
  $region14: #{tensornet_interaction.2} parent=0 // pred_check
    _
  $region15: #{tensornet_interaction.2} parent=0 // pred_check_branch
    %20 = sbr.rel (0) target = $region17
  $region16: #{tensornet_interaction.2} parent=0 // pred_region
    _
  $region17: #{tensornet_interaction.2} parent=0 // pred_fallthru
    _
  // Predicated region
  $region18: #{tensornet_interaction.2} parent=0 // pred_check
    _
  $region19: #{tensornet_interaction.2} parent=0 // pred_check_branch
    %22 = sbr.rel (0) target = $region21
  $region20: #{tensornet_interaction.2} parent=0 // pred_region
    _
  $region21: #{tensornet_interaction.2} parent=0 // pred_fallthru
    _
  // Predicated region
  $region22: #{tensornet_interaction.2} parent=0 // pred_check
    _
  $region23: #{tensornet_interaction.2} parent=0 // pred_check_branch
    %24 = sbr.rel (0) target = $region25
  $region24: #{tensornet_interaction.2} parent=0 // pred_region
    _
  $region25: #{tensornet_interaction.2} parent=0 // pred_fallthru
    _
  // Predicated region
  $region26: #{tensornet_interaction.2} parent=0 // pred_check
    _
  $region27: #{tensornet_interaction.2} parent=0 // pred_check_branch
    %26 = sbr.rel (0) target = $region29
  $region28: #{tensornet_interaction.2} parent=0 // pred_region
    _
  $region29: #{tensornet_interaction.2} parent=0 // pred_fallthru
    _
  // Predicated region
  $region30: #{tensornet_interaction.2} parent=0 // pred_check
    _
  $region31: #{tensornet_interaction.2} parent=0 // pred_check_branch
    %28 = sbr.rel (0) target = $region33
  $region32: #{tensornet_interaction.2} parent=0 // pred_region
    _
  $region33: #{tensornet_interaction.2} parent=0 // pred_fallthru
    _
  %v29 = vld [vmem:[%s0] sm:$0xff]
  %v30 = vld [vmem:[%s0 + $0x8] sm:$0xff]
  %v31 = vld [vmem:[%s0 + $0x10] sm:$0xff]
  %v32 = vld [vmem:[%s0 + $0x18] sm:$0xff]
  %v33 = vld [vmem:[%s0 + $0x20] sm:$0xff]
  %v34 = vld [vmem:[%s0 + $0x28] sm:$0xff]
  %v35 = vld [vmem:[%s0 + $0x30] sm:$0xff]
  %v36 = vld [vmem:[%s0 + $0x38] sm:$0xff]
  %v37 = vld [vmem:[%s0 + $0x40] sm:$0xff]
  %v38 = vld [vmem:[%s0 + $0x48] sm:$0xff]
  %v39 = vld [vmem:[%s0 + $0x50] sm:$0xff]
  %v40 = vld [vmem:[%s0 + $0x58] sm:$0xff]
  %v41 = vld [vmem:[%s0 + $0x60] sm:$0xff]
  %v42 = vld [vmem:[%s0 + $0x68] sm:$0xff]
  %v43 = vld [vmem:[%s0 + $0x70] sm:$0xff]
  %v44 = vld [vmem:[%s0 + $0x78] sm:$0xff]
  %v45 = vld [vmem:[%s2] sm:$0xff]
  %v46 = vld [vmem:[%s3] sm:$0x1]
  %v48 = vlaneseq
  %v49 = vshrl.u32 %v48, 7
  %v50 = vsub.s32 0, %v49
  %v51 = vrot.slane %v46, %v50
  %vm53 = vcmask 64512
  %v55 = vsel %vm53, %v29, 0
  %v58 = vsel %vm53, %v30, 0
  %v61 = vsel %vm53, %v31, 0
  %v64 = vsel %vm53, %v32, 0
  %v67 = vsel %vm53, %v33, 0
  %v70 = vsel %vm53, %v34, 0
  %v73 = vsel %vm53, %v35, 0
  %v76 = vsel %vm53, %v36, 0
  %v79 = vsel %vm53, %v37, 0
  %v82 = vsel %vm53, %v38, 0
  %v85 = vsel %vm53, %v39, 0
  %v88 = vsel %vm53, %v40, 0
  %v91 = vsel %vm53, %v41, 0
  %v94 = vsel %vm53, %v42, 0
  %v97 = vsel %vm53, %v43, 0
  %v100 = vsel %vm53, %v44, 0
  %102 = vmatprep.subr.mxu0 0.0
  %103 = vmatpush1.msra.mxu0 0.0
  %104 = vmatprep.subr.mxu0 0.0
  %105 = vmatpush1.msra.mxu0 0.0
  %106 = vmatprep.subr.mxu0 0.0
  %107 = vmatpush1.msra.mxu0 0.0
  %108 = vmatprep.subr.mxu0 0.0
  %109 = vmatpush1.msra.mxu0 0.0
  %110 = vmatprep.subr.mxu0 0.0
  %111 = vmatpush1.msra.mxu0 0.0
  %112 = vmatprep.subr.mxu0 0.0
  %113 = vmatpush1.msra.mxu0 0.0
  %114 = vmatprep.subr.mxu0 0.0
  %115 = vmatpush1.msra.mxu0 0.0
  %116 = vmatprep.subr.mxu0 0.0
  %117 = vmatpush1.msra.mxu0 0.0
  %118 = vmatprep.subr.mxu0 0.0
  %119 = vmatpush1.msra.mxu0 0.0
  %120 = vmatprep.subr.mxu0 0.0
  %121 = vmatpush1.msra.mxu0 0.0
  %122 = vmatprep.subr.mxu0 0.0
  %123 = vmatpush1.msra.mxu0 0.0
  %124 = vmatprep.subr.mxu0 0.0
  %125 = vmatpush1.msra.mxu0 0.0
  %126 = vmatprep.subr.mxu0 0.0
  %127 = vmatpush1.msra.mxu0 0.0
  %128 = vmatprep.subr.mxu0 0.0
  %129 = vmatpush1.msra.mxu0 0.0
  %130 = vmatprep.subr.mxu0 0.0
  %131 = vmatpush1.msra.mxu0 0.0
  %132 = vmatprep.subr.mxu0 0.0
  %133 = vmatpush1.msra.mxu0 %v45
  %134 = vmatprep.subr.mxu0 0.0
  %135 = vmatpush2.msra.mxu0 0.0
  %136 = vmatprep.subr.mxu0 0.0
  %137 = vmatpush2.msra.mxu0 0.0
  %138 = vmatprep.subr.mxu0 0.0
  %139 = vmatpush2.msra.mxu0 0.0
  %140 = vmatprep.subr.mxu0 0.0
  %141 = vmatpush2.msra.mxu0 0.0
  %142 = vmatprep.subr.mxu0 0.0
  %143 = vmatpush2.msra.mxu0 0.0
  %144 = vmatprep.subr.mxu0 0.0
  %145 = vmatpush2.msra.mxu0 0.0
  %146 = vmatprep.subr.mxu0 0.0
  %147 = vmatpush2.msra.mxu0 0.0
  %148 = vmatprep.subr.mxu0 0.0
  %149 = vmatpush2.msra.mxu0 0.0
  %150 = vmatprep.subr.mxu0 0.0
  %151 = vmatpush2.msra.mxu0 0.0
  %152 = vmatprep.subr.mxu0 0.0
  %153 = vmatpush2.msra.mxu0 0.0
  %154 = vmatprep.subr.mxu0 0.0
  %155 = vmatpush2.msra.mxu0 0.0
  %156 = vmatprep.subr.mxu0 0.0
  %157 = vmatpush2.msra.mxu0 0.0
  %158 = vmatprep.subr.mxu0 0.0
  %159 = vmatpush2.msra.mxu0 0.0
  %160 = vmatprep.subr.mxu0 0.0
  %161 = vmatpush2.msra.mxu0 0.0
  %162 = vmatprep.subr.mxu0 0.0
  %163 = vmatpush2.msra.mxu0 0.0
  %164 = vmatprep.subr.mxu0 0.0
  %165 = vmatpush2.msra.mxu0 0.0
  %166 = vmatprep.mubr.f32.mxu0 0.0
  %167 = vmatmul.mubr.f32.gmra.mxu0 %v55
  %v168 = vpop.f32.mrf.mxu0
  %v169 = vadd.f32 %v51, %v168
  %v170 = vpop.f32.mrf.mxu0
  %171 = vmatprep.mubr.f32.mxu0 0.0
  %172 = vmatmul.mubr.f32.gmra.mxu0 %v58
  %v173 = vpop.f32.mrf.mxu0
  %v174 = vadd.f32 %v51, %v173
  %v175 = vpop.f32.mrf.mxu0
  %176 = vmatprep.mubr.f32.mxu0 0.0
  %177 = vmatmul.mubr.f32.gmra.mxu0 %v61
  %v178 = vpop.f32.mrf.mxu0
  %v179 = vadd.f32 %v51, %v178
  %v180 = vpop.f32.mrf.mxu0
  %181 = vmatprep.mubr.f32.mxu0 0.0
  %182 = vmatmul.mubr.f32.gmra.mxu0 %v64
  %v183 = vpop.f32.mrf.mxu0
  %v184 = vadd.f32 %v51, %v183
  %v185 = vpop.f32.mrf.mxu0
  %186 = vmatprep.mubr.f32.mxu0 0.0
  %187 = vmatmul.mubr.f32.gmra.mxu0 %v67
  %v188 = vpop.f32.mrf.mxu0
  %v189 = vadd.f32 %v51, %v188
  %v190 = vpop.f32.mrf.mxu0
  %191 = vmatprep.mubr.f32.mxu0 0.0
  %192 = vmatmul.mubr.f32.gmra.mxu0 %v70
  %v193 = vpop.f32.mrf.mxu0
  %v194 = vadd.f32 %v51, %v193
  %v195 = vpop.f32.mrf.mxu0
  %196 = vmatprep.mubr.f32.mxu0 0.0
  %197 = vmatmul.mubr.f32.gmra.mxu0 %v73
  %v198 = vpop.f32.mrf.mxu0
  %v199 = vadd.f32 %v51, %v198
  %v200 = vpop.f32.mrf.mxu0
  %201 = vmatprep.mubr.f32.mxu0 0.0
  %202 = vmatmul.mubr.f32.gmra.mxu0 %v76
  %v203 = vpop.f32.mrf.mxu0
  %v204 = vadd.f32 %v51, %v203
  %v205 = vpop.f32.mrf.mxu0
  %206 = vmatprep.mubr.f32.mxu0 0.0
  %207 = vmatmul.mubr.f32.gmra.mxu0 %v79
  %v208 = vpop.f32.mrf.mxu0
  %v209 = vadd.f32 %v51, %v208
  %v210 = vpop.f32.mrf.mxu0
  %211 = vmatprep.mubr.f32.mxu0 0.0
  %212 = vmatmul.mubr.f32.gmra.mxu0 %v82
  %v213 = vpop.f32.mrf.mxu0
  %v214 = vadd.f32 %v51, %v213
  %v215 = vpop.f32.mrf.mxu0
  %216 = vmatprep.mubr.f32.mxu0 0.0
  %217 = vmatmul.mubr.f32.gmra.mxu0 %v85
  %v218 = vpop.f32.mrf.mxu0
  %v219 = vadd.f32 %v51, %v218
  %v220 = vpop.f32.mrf.mxu0
  %221 = vmatprep.mubr.f32.mxu0 0.0
  %222 = vmatmul.mubr.f32.gmra.mxu0 %v88
  %v223 = vpop.f32.mrf.mxu0
  %v224 = vadd.f32 %v51, %v223
  %v225 = vpop.f32.mrf.mxu0
  %226 = vmatprep.mubr.f32.mxu0 0.0
  %227 = vmatmul.mubr.f32.gmra.mxu0 %v91
  %v228 = vpop.f32.mrf.mxu0
  %v229 = vadd.f32 %v51, %v228
  %v230 = vpop.f32.mrf.mxu0
  %231 = vmatprep.mubr.f32.mxu0 0.0
  %232 = vmatmul.mubr.f32.gmra.mxu0 %v94
  %v233 = vpop.f32.mrf.mxu0
  %v234 = vadd.f32 %v51, %v233
  %v235 = vpop.f32.mrf.mxu0
  %236 = vmatprep.mubr.f32.mxu0 0.0
  %237 = vmatmul.mubr.f32.gmra.mxu0 %v97
  %v238 = vpop.f32.mrf.mxu0
  %v239 = vadd.f32 %v51, %v238
  %v240 = vpop.f32.mrf.mxu0
  %241 = vmatprep.mubr.f32.mxu0 0.0
  %242 = vmatmul.mubr.f32.gmra.mxu0 %v100
  %v243 = vpop.f32.mrf.mxu0
  %v244 = vadd.f32 %v51, %v243
  %v245 = vpop.f32.mrf.mxu0
  %246 = vdwg.mxu0
  %v247 = vsub.f32 0.0, %v169
  %v248 = vsub.f32 0.0, %v174
  %v249 = vsub.f32 0.0, %v179
  %v250 = vsub.f32 0.0, %v184
  %v251 = vsub.f32 0.0, %v189
  %v252 = vsub.f32 0.0, %v194
  %v253 = vsub.f32 0.0, %v199
  %v254 = vsub.f32 0.0, %v204
  %v255 = vsub.f32 0.0, %v209
  %v256 = vsub.f32 0.0, %v214
  %v257 = vsub.f32 0.0, %v219
  %v258 = vsub.f32 0.0, %v224
  %v259 = vsub.f32 0.0, %v229
  %v260 = vsub.f32 0.0, %v234
  %v261 = vsub.f32 0.0, %v239
  %v262 = vsub.f32 0.0, %v244
  %v263 = vmul.f32 %v247, 1.442695
  %v264 = vpow.pop %v263
  %v265 = vmul.f32 %v248, 1.442695
  %v266 = vpow.pop %v265
  %v267 = vmul.f32 %v249, 1.442695
  %v268 = vpow.pop %v267
  %v269 = vmul.f32 %v250, 1.442695
  %v270 = vpow.pop %v269
  %v271 = vmul.f32 %v251, 1.442695
  %v272 = vpow.pop %v271
  %v273 = vmul.f32 %v252, 1.442695
  %v274 = vpow.pop %v273
  %v275 = vmul.f32 %v253, 1.442695
  %v276 = vpow.pop %v275
  %v277 = vmul.f32 %v254, 1.442695
  %v278 = vpow.pop %v277
  %v279 = vmul.f32 %v255, 1.442695
  %v280 = vpow.pop %v279
  %v281 = vmul.f32 %v256, 1.442695
  %v282 = vpow.pop %v281
  %v283 = vmul.f32 %v257, 1.442695
  %v284 = vpow.pop %v283
  %v285 = vmul.f32 %v258, 1.442695
  %v286 = vpow.pop %v285
  %v287 = vmul.f32 %v259, 1.442695
  %v288 = vpow.pop %v287
  %v289 = vmul.f32 %v260, 1.442695
  %v290 = vpow.pop %v289
  %v291 = vmul.f32 %v261, 1.442695
  %v292 = vpow.pop %v291
  %v293 = vmul.f32 %v262, 1.442695
  %v294 = vpow.pop %v293
  %v295 = vadd.f32 %v264, 1.0
  %v296 = vadd.f32 %v266, 1.0
  %v297 = vadd.f32 %v268, 1.0
  %v298 = vadd.f32 %v270, 1.0
  %v299 = vadd.f32 %v272, 1.0
  %v300 = vadd.f32 %v274, 1.0
  %v301 = vadd.f32 %v276, 1.0
  %v302 = vadd.f32 %v278, 1.0
  %v303 = vadd.f32 %v280, 1.0
  %v304 = vadd.f32 %v282, 1.0
  %v305 = vadd.f32 %v284, 1.0
  %v306 = vadd.f32 %v286, 1.0
  %v307 = vadd.f32 %v288, 1.0
  %v308 = vadd.f32 %v290, 1.0
  %v309 = vadd.f32 %v292, 1.0
  %v310 = vadd.f32 %v294, 1.0
  %v311 = vrcp.pop %v295
  %v312 = vrcp.pop %v296
  %v313 = vrcp.pop %v297
  %v314 = vrcp.pop %v298
  %v315 = vrcp.pop %v299
  %v316 = vrcp.pop %v300
  %v317 = vrcp.pop %v301
  %v318 = vrcp.pop %v302
  %v319 = vrcp.pop %v303
  %v320 = vrcp.pop %v304
  %v321 = vrcp.pop %v305
  %v322 = vrcp.pop %v306
  %v323 = vrcp.pop %v307
  %v324 = vrcp.pop %v308
  %v325 = vrcp.pop %v309
  %v326 = vrcp.pop %v310
  %v327 = vmul.f32 %v169, %v311
  %v328 = vmul.f32 %v174, %v312
  %v329 = vmul.f32 %v179, %v313
  %v330 = vmul.f32 %v184, %v314
  %v331 = vmul.f32 %v189, %v315
  %v332 = vmul.f32 %v194, %v316
  %v333 = vmul.f32 %v199, %v317
  %v334 = vmul.f32 %v204, %v318
  %v335 = vmul.f32 %v209, %v319
  %v336 = vmul.f32 %v214, %v320
  %v337 = vmul.f32 %v219, %v321
  %v338 = vmul.f32 %v224, %v322
  %v339 = vmul.f32 %v229, %v323
  %v340 = vmul.f32 %v234, %v324
  %v341 = vmul.f32 %v239, %v325
  %v342 = vmul.f32 %v244, %v326
  %v343 = vld [vmem:[%s4] sm:$0xff]
  %v344 = vld [vmem:[%s4 + $0x8] sm:$0xff]
  %v345 = vld [vmem:[%s4 + $0x10] sm:$0xff]
  %v346 = vld [vmem:[%s4 + $0x18] sm:$0xff]
  %v347 = vld [vmem:[%s4 + $0x20] sm:$0xff]
  %v348 = vld [vmem:[%s4 + $0x28] sm:$0xff]
  %v349 = vld [vmem:[%s4 + $0x30] sm:$0xff]
  %v350 = vld [vmem:[%s4 + $0x38] sm:$0xff]
  %v351 = vld [vmem:[%s4 + $0x40] sm:$0xff]
  %v352 = vld [vmem:[%s4 + $0x48] sm:$0xff]
  %v353 = vld [vmem:[%s4 + $0x50] sm:$0xff]
  %v354 = vld [vmem:[%s4 + $0x58] sm:$0xff]
  %v355 = vld [vmem:[%s4 + $0x60] sm:$0xff]
  %v356 = vld [vmem:[%s4 + $0x68] sm:$0xff]
  %v357 = vld [vmem:[%s4 + $0x70] sm:$0xff]
  %v358 = vld [vmem:[%s4 + $0x78] sm:$0xff]
  %v359 = vld [vmem:[%s4 + $0x80] sm:$0xff]
  %v360 = vld [vmem:[%s4 + $0x88] sm:$0xff]
  %v361 = vld [vmem:[%s4 + $0x90] sm:$0xff]
  %v362 = vld [vmem:[%s4 + $0x98] sm:$0xff]
  %v363 = vld [vmem:[%s4 + $0xa0] sm:$0xff]
  %v364 = vld [vmem:[%s4 + $0xa8] sm:$0xff]
  %v365 = vld [vmem:[%s4 + $0xb0] sm:$0xff]
  %v366 = vld [vmem:[%s4 + $0xb8] sm:$0xff]
  %v367 = vld [vmem:[%s4 + $0xc0] sm:$0xff]
  %v368 = vld [vmem:[%s4 + $0xc8] sm:$0xff]
  %v369 = vld [vmem:[%s4 + $0xd0] sm:$0xff]
  %v370 = vld [vmem:[%s4 + $0xd8] sm:$0xff]
  %v371 = vld [vmem:[%s4 + $0xe0] sm:$0xff]
  %v372 = vld [vmem:[%s4 + $0xe8] sm:$0xff]
  %v373 = vld [vmem:[%s4 + $0xf0] sm:$0xff]
  %v374 = vld [vmem:[%s4 + $0xf8] sm:$0xff]
  %v375 = vld [vmem:[%s5] sm:$0x3]
  %v377 = vlaneseq
  %v378 = vshrl.u32 %v377, 7
  %v379 = vsub.s32 0, %v378
  %v380 = vrot.slane %v375, %v379
  %v381 = vlaneseq
  %v382 = vshrl.u32 %v381, 7
  %v383 = vsub.s32 1, %v382
  %v384 = vrot.slane %v375, %v383
  %387 = vmatprep.subr.mxu0 %v374
  %388 = vmatpush1.msra.mxu0 %v373
  %389 = vmatprep.subr.mxu0 %v372
  %390 = vmatpush1.msra.mxu0 %v371
  %391 = vmatprep.subr.mxu0 %v370
  %392 = vmatpush1.msra.mxu0 %v369
  %393 = vmatprep.subr.mxu0 %v368
  %394 = vmatpush1.msra.mxu0 %v367
  %395 = vmatprep.subr.mxu0 %v366
  %396 = vmatpush1.msra.mxu0 %v365
  %397 = vmatprep.subr.mxu0 %v364
  %398 = vmatpush1.msra.mxu0 %v363
  %399 = vmatprep.subr.mxu0 %v362
  %400 = vmatpush1.msra.mxu0 %v361
  %401 = vmatprep.subr.mxu0 %v360
  %402 = vmatpush1.msra.mxu0 %v359
  %403 = vmatprep.subr.mxu0 %v358
  %404 = vmatpush1.msra.mxu0 %v357
  %405 = vmatprep.subr.mxu0 %v356
  %406 = vmatpush1.msra.mxu0 %v355
  %407 = vmatprep.subr.mxu0 %v354
  %408 = vmatpush1.msra.mxu0 %v353
  %409 = vmatprep.subr.mxu0 %v352
  %410 = vmatpush1.msra.mxu0 %v351
  %411 = vmatprep.subr.mxu0 %v350
  %412 = vmatpush1.msra.mxu0 %v349
  %413 = vmatprep.subr.mxu0 %v348
  %414 = vmatpush1.msra.mxu0 %v347
  %415 = vmatprep.subr.mxu0 %v346
  %416 = vmatpush1.msra.mxu0 %v345
  %417 = vmatprep.subr.mxu0 %v344
  %418 = vmatpush1.msra.mxu0 %v343
  %419 = vmatprep.subr.mxu0 0.0
  %420 = vmatpush2.msra.mxu0 0.0
  %421 = vmatprep.subr.mxu0 0.0
  %422 = vmatpush2.msra.mxu0 0.0
  %423 = vmatprep.subr.mxu0 0.0
  %424 = vmatpush2.msra.mxu0 0.0
  %425 = vmatprep.subr.mxu0 0.0
  %426 = vmatpush2.msra.mxu0 0.0
  %427 = vmatprep.subr.mxu0 0.0
  %428 = vmatpush2.msra.mxu0 0.0
  %429 = vmatprep.subr.mxu0 0.0
  %430 = vmatpush2.msra.mxu0 0.0
  %431 = vmatprep.subr.mxu0 0.0
  %432 = vmatpush2.msra.mxu0 0.0
  %433 = vmatprep.subr.mxu0 0.0
  %434 = vmatpush2.msra.mxu0 0.0
  %435 = vmatprep.subr.mxu0 0.0
  %436 = vmatpush2.msra.mxu0 0.0
  %437 = vmatprep.subr.mxu0 0.0
  %438 = vmatpush2.msra.mxu0 0.0
  %439 = vmatprep.subr.mxu0 0.0
  %440 = vmatpush2.msra.mxu0 0.0
  %441 = vmatprep.subr.mxu0 0.0
  %442 = vmatpush2.msra.mxu0 0.0
  %443 = vmatprep.subr.mxu0 0.0
  %444 = vmatpush2.msra.mxu0 0.0
  %445 = vmatprep.subr.mxu0 0.0
  %446 = vmatpush2.msra.mxu0 0.0
  %447 = vmatprep.subr.mxu0 0.0
  %448 = vmatpush2.msra.mxu0 0.0
  %449 = vmatprep.subr.mxu0 0.0
  %450 = vmatpush2.msra.mxu0 0.0
  %451 = vmatprep.mubr.f32.mxu0 0.0
  %452 = vmatmul.mubr.f32.gmra.mxu0 %v327
  %v453 = vpop.f32.mrf.mxu0
  %v454 = vadd.f32 %v380, %v453
  %v455 = vpop.f32.mrf.mxu0
  %v456 = vadd.f32 %v384, %v455
  %457 = vmatprep.mubr.f32.mxu0 0.0
  %458 = vmatmul.mubr.f32.gmra.mxu0 %v328
  %v459 = vpop.f32.mrf.mxu0
  %v460 = vadd.f32 %v380, %v459
  %v461 = vpop.f32.mrf.mxu0
  %v462 = vadd.f32 %v384, %v461
  %463 = vmatprep.mubr.f32.mxu0 0.0
  %464 = vmatmul.mubr.f32.gmra.mxu0 %v329
  %v465 = vpop.f32.mrf.mxu0
  %v466 = vadd.f32 %v380, %v465
  %v467 = vpop.f32.mrf.mxu0
  %v468 = vadd.f32 %v384, %v467
  %469 = vmatprep.mubr.f32.mxu0 0.0
  %470 = vmatmul.mubr.f32.gmra.mxu0 %v330
  %v471 = vpop.f32.mrf.mxu0
  %v472 = vadd.f32 %v380, %v471
  %v473 = vpop.f32.mrf.mxu0
  %v474 = vadd.f32 %v384, %v473
  %475 = vmatprep.mubr.f32.mxu0 0.0
  %476 = vmatmul.mubr.f32.gmra.mxu0 %v331
  %v477 = vpop.f32.mrf.mxu0
  %v478 = vadd.f32 %v380, %v477
  %v479 = vpop.f32.mrf.mxu0
  %v480 = vadd.f32 %v384, %v479
  %481 = vmatprep.mubr.f32.mxu0 0.0
  %482 = vmatmul.mubr.f32.gmra.mxu0 %v332
  %v483 = vpop.f32.mrf.mxu0
  %v484 = vadd.f32 %v380, %v483
  %v485 = vpop.f32.mrf.mxu0
  %v486 = vadd.f32 %v384, %v485
  %487 = vmatprep.mubr.f32.mxu0 0.0
  %488 = vmatmul.mubr.f32.gmra.mxu0 %v333
  %v489 = vpop.f32.mrf.mxu0
  %v490 = vadd.f32 %v380, %v489
  %v491 = vpop.f32.mrf.mxu0
  %v492 = vadd.f32 %v384, %v491
  %493 = vmatprep.mubr.f32.mxu0 0.0
  %494 = vmatmul.mubr.f32.gmra.mxu0 %v334
  %v495 = vpop.f32.mrf.mxu0
  %v496 = vadd.f32 %v380, %v495
  %v497 = vpop.f32.mrf.mxu0
  %v498 = vadd.f32 %v384, %v497
  %499 = vmatprep.mubr.f32.mxu0 0.0
  %500 = vmatmul.mubr.f32.gmra.mxu0 %v335
  %v501 = vpop.f32.mrf.mxu0
  %v502 = vadd.f32 %v380, %v501
  %v503 = vpop.f32.mrf.mxu0
  %v504 = vadd.f32 %v384, %v503
  %505 = vmatprep.mubr.f32.mxu0 0.0
  %506 = vmatmul.mubr.f32.gmra.mxu0 %v336
  %v507 = vpop.f32.mrf.mxu0
  %v508 = vadd.f32 %v380, %v507
  %v509 = vpop.f32.mrf.mxu0
  %v510 = vadd.f32 %v384, %v509
  %511 = vmatprep.mubr.f32.mxu0 0.0
  %512 = vmatmul.mubr.f32.gmra.mxu0 %v337
  %v513 = vpop.f32.mrf.mxu0
  %v514 = vadd.f32 %v380, %v513
  %v515 = vpop.f32.mrf.mxu0
  %v516 = vadd.f32 %v384, %v515
  %517 = vmatprep.mubr.f32.mxu0 0.0
  %518 = vmatmul.mubr.f32.gmra.mxu0 %v338
  %v519 = vpop.f32.mrf.mxu0
  %v520 = vadd.f32 %v380, %v519
  %v521 = vpop.f32.mrf.mxu0
  %v522 = vadd.f32 %v384, %v521
  %523 = vmatprep.mubr.f32.mxu0 0.0
  %524 = vmatmul.mubr.f32.gmra.mxu0 %v339
  %v525 = vpop.f32.mrf.mxu0
  %v526 = vadd.f32 %v380, %v525
  %v527 = vpop.f32.mrf.mxu0
  %v528 = vadd.f32 %v384, %v527
  %529 = vmatprep.mubr.f32.mxu0 0.0
  %530 = vmatmul.mubr.f32.gmra.mxu0 %v340
  %v531 = vpop.f32.mrf.mxu0
  %v532 = vadd.f32 %v380, %v531
  %v533 = vpop.f32.mrf.mxu0
  %v534 = vadd.f32 %v384, %v533
  %535 = vmatprep.mubr.f32.mxu0 0.0
  %536 = vmatmul.mubr.f32.gmra.mxu0 %v341
  %v537 = vpop.f32.mrf.mxu0
  %v538 = vadd.f32 %v380, %v537
  %v539 = vpop.f32.mrf.mxu0
  %v540 = vadd.f32 %v384, %v539
  %541 = vmatprep.mubr.f32.mxu0 0.0
  %542 = vmatmul.mubr.f32.gmra.mxu0 %v342
  %v543 = vpop.f32.mrf.mxu0
  %v544 = vadd.f32 %v380, %v543
  %v545 = vpop.f32.mrf.mxu0
  %v546 = vadd.f32 %v384, %v545
  %547 = vdwg.mxu0
  %v548 = vsub.f32 0.0, %v454
  %v549 = vsub.f32 0.0, %v456
  %v550 = vsub.f32 0.0, %v460
  %v551 = vsub.f32 0.0, %v462
  %v552 = vsub.f32 0.0, %v466
  %v553 = vsub.f32 0.0, %v468
  %v554 = vsub.f32 0.0, %v472
  %v555 = vsub.f32 0.0, %v474
  %v556 = vsub.f32 0.0, %v478
  %v557 = vsub.f32 0.0, %v480
  %v558 = vsub.f32 0.0, %v484
  %v559 = vsub.f32 0.0, %v486
  %v560 = vsub.f32 0.0, %v490
  %v561 = vsub.f32 0.0, %v492
  %v562 = vsub.f32 0.0, %v496
  %v563 = vsub.f32 0.0, %v498
  %v564 = vsub.f32 0.0, %v502
  %v565 = vsub.f32 0.0, %v504
  %v566 = vsub.f32 0.0, %v508
  %v567 = vsub.f32 0.0, %v510
  %v568 = vsub.f32 0.0, %v514
  %v569 = vsub.f32 0.0, %v516
  %v570 = vsub.f32 0.0, %v520
  %v571 = vsub.f32 0.0, %v522
  %v572 = vsub.f32 0.0, %v526
  %v573 = vsub.f32 0.0, %v528
  %v574 = vsub.f32 0.0, %v532
  %v575 = vsub.f32 0.0, %v534
  %v576 = vsub.f32 0.0, %v538
  %v577 = vsub.f32 0.0, %v540
  %v578 = vsub.f32 0.0, %v544
  %v579 = vsub.f32 0.0, %v546
  %v580 = vmul.f32 %v548, 1.442695
  %v581 = vpow.pop %v580
  %v582 = vmul.f32 %v549, 1.442695
  %v583 = vpow.pop %v582
  %v584 = vmul.f32 %v550, 1.442695
  %v585 = vpow.pop %v584
  %v586 = vmul.f32 %v551, 1.442695
  %v587 = vpow.pop %v586
  %v588 = vmul.f32 %v552, 1.442695
  %v589 = vpow.pop %v588
  %v590 = vmul.f32 %v553, 1.442695
  %v591 = vpow.pop %v590
  %v592 = vmul.f32 %v554, 1.442695
  %v593 = vpow.pop %v592
  %v594 = vmul.f32 %v555, 1.442695
  %v595 = vpow.pop %v594
  %v596 = vmul.f32 %v556, 1.442695
  %v597 = vpow.pop %v596
  %v598 = vmul.f32 %v557, 1.442695
  %v599 = vpow.pop %v598
  %v600 = vmul.f32 %v558, 1.442695
  %v601 = vpow.pop %v600
  %v602 = vmul.f32 %v559, 1.442695
  %v603 = vpow.pop %v602
  %v604 = vmul.f32 %v560, 1.442695
  %v605 = vpow.pop %v604
  %v606 = vmul.f32 %v561, 1.442695
  %v607 = vpow.pop %v606
  %v608 = vmul.f32 %v562, 1.442695
  %v609 = vpow.pop %v608
  %v610 = vmul.f32 %v563, 1.442695
  %v611 = vpow.pop %v610
  %v612 = vmul.f32 %v564, 1.442695
  %v613 = vpow.pop %v612
  %v614 = vmul.f32 %v565, 1.442695
  %v615 = vpow.pop %v614
  %v616 = vmul.f32 %v566, 1.442695
  %v617 = vpow.pop %v616
  %v618 = vmul.f32 %v567, 1.442695
  %v619 = vpow.pop %v618
  %v620 = vmul.f32 %v568, 1.442695
  %v621 = vpow.pop %v620
  %v622 = vmul.f32 %v569, 1.442695
  %v623 = vpow.pop %v622
  %v624 = vmul.f32 %v570, 1.442695
  %v625 = vpow.pop %v624
  %v626 = vmul.f32 %v571, 1.442695
  %v627 = vpow.pop %v626
  %v628 = vmul.f32 %v572, 1.442695
  %v629 = vpow.pop %v628
  %v630 = vmul.f32 %v573, 1.442695
  %v631 = vpow.pop %v630
  %v632 = vmul.f32 %v574, 1.442695
  %v633 = vpow.pop %v632
  %v634 = vmul.f32 %v575, 1.442695
  %v635 = vpow.pop %v634
  %v636 = vmul.f32 %v576, 1.442695
  %v637 = vpow.pop %v636
  %v638 = vmul.f32 %v577, 1.442695
  %v639 = vpow.pop %v638
  %v640 = vmul.f32 %v578, 1.442695
  %v641 = vpow.pop %v640
  %v642 = vmul.f32 %v579, 1.442695
  %v643 = vpow.pop %v642
  %v644 = vadd.f32 %v581, 1.0
  %v645 = vadd.f32 %v583, 1.0
  %v646 = vadd.f32 %v585, 1.0
  %v647 = vadd.f32 %v587, 1.0
  %v648 = vadd.f32 %v589, 1.0
  %v649 = vadd.f32 %v591, 1.0
  %v650 = vadd.f32 %v593, 1.0
  %v651 = vadd.f32 %v595, 1.0
  %v652 = vadd.f32 %v597, 1.0
  %v653 = vadd.f32 %v599, 1.0
  %v654 = vadd.f32 %v601, 1.0
  %v655 = vadd.f32 %v603, 1.0
  %v656 = vadd.f32 %v605, 1.0
  %v657 = vadd.f32 %v607, 1.0
  %v658 = vadd.f32 %v609, 1.0
  %v659 = vadd.f32 %v611, 1.0
  %v660 = vadd.f32 %v613, 1.0
  %v661 = vadd.f32 %v615, 1.0
  %v662 = vadd.f32 %v617, 1.0
  %v663 = vadd.f32 %v619, 1.0
  %v664 = vadd.f32 %v621, 1.0
  %v665 = vadd.f32 %v623, 1.0
  %v666 = vadd.f32 %v625, 1.0
  %v667 = vadd.f32 %v627, 1.0
  %v668 = vadd.f32 %v629, 1.0
  %v669 = vadd.f32 %v631, 1.0
  %v670 = vadd.f32 %v633, 1.0
  %v671 = vadd.f32 %v635, 1.0
  %v672 = vadd.f32 %v637, 1.0
  %v673 = vadd.f32 %v639, 1.0
  %v674 = vadd.f32 %v641, 1.0
  %v675 = vadd.f32 %v643, 1.0
  %v676 = vrcp.pop %v644
  %v677 = vrcp.pop %v645
  %v678 = vrcp.pop %v646
  %v679 = vrcp.pop %v647
  %v680 = vrcp.pop %v648
  %v681 = vrcp.pop %v649
  %v682 = vrcp.pop %v650
  %v683 = vrcp.pop %v651
  %v684 = vrcp.pop %v652
  %v685 = vrcp.pop %v653
  %v686 = vrcp.pop %v654
  %v687 = vrcp.pop %v655
  %v688 = vrcp.pop %v656
  %v689 = vrcp.pop %v657
  %v690 = vrcp.pop %v658
  %v691 = vrcp.pop %v659
  %v692 = vrcp.pop %v660
  %v693 = vrcp.pop %v661
  %v694 = vrcp.pop %v662
  %v695 = vrcp.pop %v663
  %v696 = vrcp.pop %v664
  %v697 = vrcp.pop %v665
  %v698 = vrcp.pop %v666
  %v699 = vrcp.pop %v667
  %v700 = vrcp.pop %v668
  %v701 = vrcp.pop %v669
  %v702 = vrcp.pop %v670
  %v703 = vrcp.pop %v671
  %v704 = vrcp.pop %v672
  %v705 = vrcp.pop %v673
  %v706 = vrcp.pop %v674
  %v707 = vrcp.pop %v675
  %v708 = vmul.f32 %v454, %v676
  %v709 = vmul.f32 %v456, %v677
  %v710 = vmul.f32 %v460, %v678
  %v711 = vmul.f32 %v462, %v679
  %v712 = vmul.f32 %v466, %v680
  %v713 = vmul.f32 %v468, %v681
  %v714 = vmul.f32 %v472, %v682
  %v715 = vmul.f32 %v474, %v683
  %v716 = vmul.f32 %v478, %v684
  %v717 = vmul.f32 %v480, %v685
  %v718 = vmul.f32 %v484, %v686
  %v719 = vmul.f32 %v486, %v687
  %v720 = vmul.f32 %v490, %v688
  %v721 = vmul.f32 %v492, %v689
  %v722 = vmul.f32 %v496, %v690
  %v723 = vmul.f32 %v498, %v691
  %v724 = vmul.f32 %v502, %v692
  %v725 = vmul.f32 %v504, %v693
  %v726 = vmul.f32 %v508, %v694
  %v727 = vmul.f32 %v510, %v695
  %v728 = vmul.f32 %v514, %v696
  %v729 = vmul.f32 %v516, %v697
  %v730 = vmul.f32 %v520, %v698
  %v731 = vmul.f32 %v522, %v699
  %v732 = vmul.f32 %v526, %v700
  %v733 = vmul.f32 %v528, %v701
  %v734 = vmul.f32 %v532, %v702
  %v735 = vmul.f32 %v534, %v703
  %v736 = vmul.f32 %v538, %v704
  %v737 = vmul.f32 %v540, %v705
  %v738 = vmul.f32 %v544, %v706
  %v739 = vmul.f32 %v546, %v707
  %v740 = vld [vmem:[%s6] sm:$0xff]
  %v741 = vld [vmem:[%s6 + $0x8] sm:$0xff]
  %v742 = vld [vmem:[%s6 + $0x10] sm:$0xff]
  %v743 = vld [vmem:[%s6 + $0x18] sm:$0xff]
  %v744 = vld [vmem:[%s6 + $0x20] sm:$0xff]
  %v745 = vld [vmem:[%s6 + $0x28] sm:$0xff]
  %v746 = vld [vmem:[%s6 + $0x30] sm:$0xff]
  %v747 = vld [vmem:[%s6 + $0x38] sm:$0xff]
  %v748 = vld [vmem:[%s6 + $0x40] sm:$0xff]
  %v749 = vld [vmem:[%s6 + $0x48] sm:$0xff]
  %v750 = vld [vmem:[%s6 + $0x50] sm:$0xff]
  %v751 = vld [vmem:[%s6 + $0x58] sm:$0xff]
  %v752 = vld [vmem:[%s6 + $0x60] sm:$0xff]
  %v753 = vld [vmem:[%s6 + $0x68] sm:$0xff]
  %v754 = vld [vmem:[%s6 + $0x70] sm:$0xff]
  %v755 = vld [vmem:[%s6 + $0x78] sm:$0xff]
  %v756 = vld [vmem:[%s6 + $0x80] sm:$0xff]
  %v757 = vld [vmem:[%s6 + $0x88] sm:$0xff]
  %v758 = vld [vmem:[%s6 + $0x90] sm:$0xff]
  %v759 = vld [vmem:[%s6 + $0x98] sm:$0xff]
  %v760 = vld [vmem:[%s6 + $0xa0] sm:$0xff]
  %v761 = vld [vmem:[%s6 + $0xa8] sm:$0xff]
  %v762 = vld [vmem:[%s6 + $0xb0] sm:$0xff]
  %v763 = vld [vmem:[%s6 + $0xb8] sm:$0xff]
  %v764 = vld [vmem:[%s6 + $0xc0] sm:$0xff]
  %v765 = vld [vmem:[%s6 + $0xc8] sm:$0xff]
  %v766 = vld [vmem:[%s6 + $0xd0] sm:$0xff]
  %v767 = vld [vmem:[%s6 + $0xd8] sm:$0xff]
  %v768 = vld [vmem:[%s6 + $0xe0] sm:$0xff]
  %v769 = vld [vmem:[%s6 + $0xe8] sm:$0xff]
  %v770 = vld [vmem:[%s6 + $0xf0] sm:$0xff]
  %v771 = vld [vmem:[%s6 + $0xf8] sm:$0xff]
  %v772 = vld [vmem:[%s6 + $0x100] sm:$0xff]
  %v773 = vld [vmem:[%s6 + $0x108] sm:$0xff]
  %v774 = vld [vmem:[%s6 + $0x110] sm:$0xff]
  %v775 = vld [vmem:[%s6 + $0x118] sm:$0xff]
  %v776 = vld [vmem:[%s6 + $0x120] sm:$0xff]
  %v777 = vld [vmem:[%s6 + $0x128] sm:$0xff]
  %v778 = vld [vmem:[%s6 + $0x130] sm:$0xff]
  %v779 = vld [vmem:[%s6 + $0x138] sm:$0xff]
  %v780 = vld [vmem:[%s6 + $0x140] sm:$0xff]
  %v781 = vld [vmem:[%s6 + $0x148] sm:$0xff]
  %v782 = vld [vmem:[%s6 + $0x150] sm:$0xff]
  %v783 = vld [vmem:[%s6 + $0x158] sm:$0xff]
  %v784 = vld [vmem:[%s6 + $0x160] sm:$0xff]
  %v785 = vld [vmem:[%s6 + $0x168] sm:$0xff]
  %v786 = vld [vmem:[%s6 + $0x170] sm:$0xff]
  %v787 = vld [vmem:[%s6 + $0x178] sm:$0xff]
  %v788 = vld [vmem:[%s6 + $0x180] sm:$0xff]
  %v789 = vld [vmem:[%s6 + $0x188] sm:$0xff]
  %v790 = vld [vmem:[%s6 + $0x190] sm:$0xff]
  %v791 = vld [vmem:[%s6 + $0x198] sm:$0xff]
  %v792 = vld [vmem:[%s6 + $0x1a0] sm:$0xff]
  %v793 = vld [vmem:[%s6 + $0x1a8] sm:$0xff]
  %v794 = vld [vmem:[%s6 + $0x1b0] sm:$0xff]
  %v795 = vld [vmem:[%s6 + $0x1b8] sm:$0xff]
  %v796 = vld [vmem:[%s6 + $0x1c0] sm:$0xff]
  %v797 = vld [vmem:[%s6 + $0x1c8] sm:$0xff]
  %v798 = vld [vmem:[%s6 + $0x1d0] sm:$0xff]
  %v799 = vld [vmem:[%s6 + $0x1d8] sm:$0xff]
  %v800 = vld [vmem:[%s6 + $0x1e0] sm:$0xff]
  %v801 = vld [vmem:[%s6 + $0x1e8] sm:$0xff]
  %v802 = vld [vmem:[%s6 + $0x1f0] sm:$0xff]
  %v803 = vld [vmem:[%s6 + $0x1f8] sm:$0xff]
  %v804 = vld [vmem:[%s6 + $0x200] sm:$0xff]
  %v805 = vld [vmem:[%s6 + $0x208] sm:$0xff]
  %v806 = vld [vmem:[%s6 + $0x210] sm:$0xff]
  %v807 = vld [vmem:[%s6 + $0x218] sm:$0xff]
  %v808 = vld [vmem:[%s6 + $0x220] sm:$0xff]
  %v809 = vld [vmem:[%s6 + $0x228] sm:$0xff]
  %v810 = vld [vmem:[%s6 + $0x230] sm:$0xff]
  %v811 = vld [vmem:[%s6 + $0x238] sm:$0xff]
  %v812 = vld [vmem:[%s6 + $0x240] sm:$0xff]
  %v813 = vld [vmem:[%s6 + $0x248] sm:$0xff]
  %v814 = vld [vmem:[%s6 + $0x250] sm:$0xff]
  %v815 = vld [vmem:[%s6 + $0x258] sm:$0xff]
  %v816 = vld [vmem:[%s6 + $0x260] sm:$0xff]
  %v817 = vld [vmem:[%s6 + $0x268] sm:$0xff]
  %v818 = vld [vmem:[%s6 + $0x270] sm:$0xff]
  %v819 = vld [vmem:[%s6 + $0x278] sm:$0xff]
  %v820 = vld [vmem:[%s6 + $0x280] sm:$0xff]
  %v821 = vld [vmem:[%s6 + $0x288] sm:$0xff]
  %v822 = vld [vmem:[%s6 + $0x290] sm:$0xff]
  %v823 = vld [vmem:[%s6 + $0x298] sm:$0xff]
  %v824 = vld [vmem:[%s6 + $0x2a0] sm:$0xff]
  %v825 = vld [vmem:[%s6 + $0x2a8] sm:$0xff]
  %v826 = vld [vmem:[%s6 + $0x2b0] sm:$0xff]
  %v827 = vld [vmem:[%s6 + $0x2b8] sm:$0xff]
  %v828 = vld [vmem:[%s6 + $0x2c0] sm:$0xff]
  %v829 = vld [vmem:[%s6 + $0x2c8] sm:$0xff]
  %v830 = vld [vmem:[%s6 + $0x2d0] sm:$0xff]
  %v831 = vld [vmem:[%s6 + $0x2d8] sm:$0xff]
  %v832 = vld [vmem:[%s6 + $0x2e0] sm:$0xff]
  %v833 = vld [vmem:[%s6 + $0x2e8] sm:$0xff]
  %v834 = vld [vmem:[%s6 + $0x2f0] sm:$0xff]
  %v835 = vld [vmem:[%s6 + $0x2f8] sm:$0xff]
  %v836 = vld [vmem:[%s7] sm:$0x7]
  %v838 = vlaneseq
  %v839 = vshrl.u32 %v838, 7
  %v840 = vsub.s32 0, %v839
  %v841 = vrot.slane %v836, %v840
  %v842 = vlaneseq
  %v843 = vshrl.u32 %v842, 7
  %v844 = vsub.s32 1, %v843
  %v845 = vrot.slane %v836, %v844
  %v846 = vlaneseq
  %v847 = vshrl.u32 %v846, 7
  %v848 = vsub.s32 2, %v847
  %v849 = vrot.slane %v836, %v848
  %853 = vmatprep.subr.mxu0 %v786
  %854 = vmatpush1.msra.mxu0 %v785
  %855 = vmatprep.subr.mxu0 %v783
  %856 = vmatpush1.msra.mxu0 %v782
  %857 = vmatprep.subr.mxu0 %v780
  %858 = vmatpush1.msra.mxu0 %v779
  %859 = vmatprep.subr.mxu0 %v777
  %860 = vmatpush1.msra.mxu0 %v776
  %861 = vmatprep.subr.mxu0 %v774
  %862 = vmatpush1.msra.mxu0 %v773
  %863 = vmatprep.subr.mxu0 %v771
  %864 = vmatpush1.msra.mxu0 %v770
  %865 = vmatprep.subr.mxu0 %v768
  %866 = vmatpush1.msra.mxu0 %v767
  %867 = vmatprep.subr.mxu0 %v765
  %868 = vmatpush1.msra.mxu0 %v764
  %869 = vmatprep.subr.mxu0 %v762
  %870 = vmatpush1.msra.mxu0 %v761
  %871 = vmatprep.subr.mxu0 %v759
  %872 = vmatpush1.msra.mxu0 %v758
  %873 = vmatprep.subr.mxu0 %v756
  %874 = vmatpush1.msra.mxu0 %v755
  %875 = vmatprep.subr.mxu0 %v753
  %876 = vmatpush1.msra.mxu0 %v752
  %877 = vmatprep.subr.mxu0 %v750
  %878 = vmatpush1.msra.mxu0 %v749
  %879 = vmatprep.subr.mxu0 %v747
  %880 = vmatpush1.msra.mxu0 %v746
  %881 = vmatprep.subr.mxu0 %v744
  %882 = vmatpush1.msra.mxu0 %v743
  %883 = vmatprep.subr.mxu0 %v741
  %884 = vmatpush1.msra.mxu0 %v740
  %885 = vmatprep.subr.mxu0 %v834
  %886 = vmatpush2.msra.mxu0 %v833
  %887 = vmatprep.subr.mxu0 %v831
  %888 = vmatpush2.msra.mxu0 %v830
  %889 = vmatprep.subr.mxu0 %v828
  %890 = vmatpush2.msra.mxu0 %v827
  %891 = vmatprep.subr.mxu0 %v825
  %892 = vmatpush2.msra.mxu0 %v824
  %893 = vmatprep.subr.mxu0 %v822
  %894 = vmatpush2.msra.mxu0 %v821
  %895 = vmatprep.subr.mxu0 %v819
  %896 = vmatpush2.msra.mxu0 %v818
  %897 = vmatprep.subr.mxu0 %v816
  %898 = vmatpush2.msra.mxu0 %v815
  %899 = vmatprep.subr.mxu0 %v813
  %900 = vmatpush2.msra.mxu0 %v812
  %901 = vmatprep.subr.mxu0 %v810
  %902 = vmatpush2.msra.mxu0 %v809
  %903 = vmatprep.subr.mxu0 %v807
  %904 = vmatpush2.msra.mxu0 %v806
  %905 = vmatprep.subr.mxu0 %v804
  %906 = vmatpush2.msra.mxu0 %v803
  %907 = vmatprep.subr.mxu0 %v801
  %908 = vmatpush2.msra.mxu0 %v800
  %909 = vmatprep.subr.mxu0 %v798
  %910 = vmatpush2.msra.mxu0 %v797
  %911 = vmatprep.subr.mxu0 %v795
  %912 = vmatpush2.msra.mxu0 %v794
  %913 = vmatprep.subr.mxu0 %v792
  %914 = vmatpush2.msra.mxu0 %v791
  %915 = vmatprep.subr.mxu0 %v789
  %916 = vmatpush2.msra.mxu0 %v788
  %917 = vmatprep.mubr.f32.mxu0 %v709
  %918 = vmatmul.mubr.f32.gmra.mxu0 %v708
  %v919 = vpop.f32.mrf.mxu0
  %v920 = vadd.f32 %v841, %v919
  %v921 = vpop.f32.mrf.mxu0
  %v922 = vadd.f32 %v845, %v921
  %923 = vmatprep.mubr.f32.mxu0 %v711
  %924 = vmatmul.mubr.f32.gmra.mxu0 %v710
  %v925 = vpop.f32.mrf.mxu0
  %v926 = vadd.f32 %v841, %v925
  %v927 = vpop.f32.mrf.mxu0
  %v928 = vadd.f32 %v845, %v927
  %929 = vmatprep.mubr.f32.mxu0 %v713
  %930 = vmatmul.mubr.f32.gmra.mxu0 %v712
  %v931 = vpop.f32.mrf.mxu0
  %v932 = vadd.f32 %v841, %v931
  %v933 = vpop.f32.mrf.mxu0
  %v934 = vadd.f32 %v845, %v933
  %935 = vmatprep.mubr.f32.mxu0 %v715
  %936 = vmatmul.mubr.f32.gmra.mxu0 %v714
  %v937 = vpop.f32.mrf.mxu0
  %v938 = vadd.f32 %v841, %v937
  %v939 = vpop.f32.mrf.mxu0
  %v940 = vadd.f32 %v845, %v939
  %941 = vmatprep.mubr.f32.mxu0 %v717
  %942 = vmatmul.mubr.f32.gmra.mxu0 %v716
  %v943 = vpop.f32.mrf.mxu0
  %v944 = vadd.f32 %v841, %v943
  %v945 = vpop.f32.mrf.mxu0
  %v946 = vadd.f32 %v845, %v945
  %947 = vmatprep.mubr.f32.mxu0 %v719
  %948 = vmatmul.mubr.f32.gmra.mxu0 %v718
  %v949 = vpop.f32.mrf.mxu0
  %v950 = vadd.f32 %v841, %v949
  %v951 = vpop.f32.mrf.mxu0
  %v952 = vadd.f32 %v845, %v951
  %953 = vmatprep.mubr.f32.mxu0 %v721
  %954 = vmatmul.mubr.f32.gmra.mxu0 %v720
  %v955 = vpop.f32.mrf.mxu0
  %v956 = vadd.f32 %v841, %v955
  %v957 = vpop.f32.mrf.mxu0
  %v958 = vadd.f32 %v845, %v957
  %959 = vmatprep.mubr.f32.mxu0 %v723
  %960 = vmatmul.mubr.f32.gmra.mxu0 %v722
  %v961 = vpop.f32.mrf.mxu0
  %v962 = vadd.f32 %v841, %v961
  %v963 = vpop.f32.mrf.mxu0
  %v964 = vadd.f32 %v845, %v963
  %965 = vmatprep.mubr.f32.mxu0 %v725
  %966 = vmatmul.mubr.f32.gmra.mxu0 %v724
  %v967 = vpop.f32.mrf.mxu0
  %v968 = vadd.f32 %v841, %v967
  %v969 = vpop.f32.mrf.mxu0
  %v970 = vadd.f32 %v845, %v969
  %971 = vmatprep.mubr.f32.mxu0 %v727
  %972 = vmatmul.mubr.f32.gmra.mxu0 %v726
  %v973 = vpop.f32.mrf.mxu0
  %v974 = vadd.f32 %v841, %v973
  %v975 = vpop.f32.mrf.mxu0
  %v976 = vadd.f32 %v845, %v975
  %977 = vmatprep.mubr.f32.mxu0 %v729
  %978 = vmatmul.mubr.f32.gmra.mxu0 %v728
  %v979 = vpop.f32.mrf.mxu0
  %v980 = vadd.f32 %v841, %v979
  %v981 = vpop.f32.mrf.mxu0
  %v982 = vadd.f32 %v845, %v981
  %983 = vmatprep.mubr.f32.mxu0 %v731
  %984 = vmatmul.mubr.f32.gmra.mxu0 %v730
  %v985 = vpop.f32.mrf.mxu0
  %v986 = vadd.f32 %v841, %v985
  %v987 = vpop.f32.mrf.mxu0
  %v988 = vadd.f32 %v845, %v987
  %989 = vmatprep.mubr.f32.mxu0 %v733
  %990 = vmatmul.mubr.f32.gmra.mxu0 %v732
  %v991 = vpop.f32.mrf.mxu0
  %v992 = vadd.f32 %v841, %v991
  %v993 = vpop.f32.mrf.mxu0
  %v994 = vadd.f32 %v845, %v993
  %995 = vmatprep.mubr.f32.mxu0 %v735
  %996 = vmatmul.mubr.f32.gmra.mxu0 %v734
  %v997 = vpop.f32.mrf.mxu0
  %v998 = vadd.f32 %v841, %v997
  %v999 = vpop.f32.mrf.mxu0
  %v1000 = vadd.f32 %v845, %v999
  %1001 = vmatprep.mubr.f32.mxu0 %v737
  %1002 = vmatmul.mubr.f32.gmra.mxu0 %v736
  %v1003 = vpop.f32.mrf.mxu0
  %v1004 = vadd.f32 %v841, %v1003
  %v1005 = vpop.f32.mrf.mxu0
  %v1006 = vadd.f32 %v845, %v1005
  %1007 = vmatprep.mubr.f32.mxu0 %v739
  %1008 = vmatmul.mubr.f32.gmra.mxu0 %v738
  %v1009 = vpop.f32.mrf.mxu0
  %v1010 = vadd.f32 %v841, %v1009
  %v1011 = vpop.f32.mrf.mxu0
  %v1012 = vadd.f32 %v845, %v1011
  %1013 = vdwg.mxu0
  %1014 = vmatprep.subr.mxu0 0.0
  %1015 = vmatpush1.msra.mxu0 %v787
  %1016 = vmatprep.subr.mxu0 0.0
  %1017 = vmatpush1.msra.mxu0 %v784
  %1018 = vmatprep.subr.mxu0 0.0
  %1019 = vmatpush1.msra.mxu0 %v781
  %1020 = vmatprep.subr.mxu0 0.0
  %1021 = vmatpush1.msra.mxu0 %v778
  %1022 = vmatprep.subr.mxu0 0.0
  %1023 = vmatpush1.msra.mxu0 %v775
  %1024 = vmatprep.subr.mxu0 0.0
  %1025 = vmatpush1.msra.mxu0 %v772
  %1026 = vmatprep.subr.mxu0 0.0
  %1027 = vmatpush1.msra.mxu0 %v769
  %1028 = vmatprep.subr.mxu0 0.0
  %1029 = vmatpush1.msra.mxu0 %v766
  %1030 = vmatprep.subr.mxu0 0.0
  %1031 = vmatpush1.msra.mxu0 %v763
  %1032 = vmatprep.subr.mxu0 0.0
  %1033 = vmatpush1.msra.mxu0 %v760
  %1034 = vmatprep.subr.mxu0 0.0
  %1035 = vmatpush1.msra.mxu0 %v757
  %1036 = vmatprep.subr.mxu0 0.0
  %1037 = vmatpush1.msra.mxu0 %v754
  %1038 = vmatprep.subr.mxu0 0.0
  %1039 = vmatpush1.msra.mxu0 %v751
  %1040 = vmatprep.subr.mxu0 0.0
  %1041 = vmatpush1.msra.mxu0 %v748
  %1042 = vmatprep.subr.mxu0 0.0
  %1043 = vmatpush1.msra.mxu0 %v745
  %1044 = vmatprep.subr.mxu0 0.0
  %1045 = vmatpush1.msra.mxu0 %v742
  %1046 = vmatprep.subr.mxu0 0.0
  %1047 = vmatpush2.msra.mxu0 %v835
  %1048 = vmatprep.subr.mxu0 0.0
  %1049 = vmatpush2.msra.mxu0 %v832
  %1050 = vmatprep.subr.mxu0 0.0
  %1051 = vmatpush2.msra.mxu0 %v829
  %1052 = vmatprep.subr.mxu0 0.0
  %1053 = vmatpush2.msra.mxu0 %v826
  %1054 = vmatprep.subr.mxu0 0.0
  %1055 = vmatpush2.msra.mxu0 %v823
  %1056 = vmatprep.subr.mxu0 0.0
  %1057 = vmatpush2.msra.mxu0 %v820
  %1058 = vmatprep.subr.mxu0 0.0
  %1059 = vmatpush2.msra.mxu0 %v817
  %1060 = vmatprep.subr.mxu0 0.0
  %1061 = vmatpush2.msra.mxu0 %v814
  %1062 = vmatprep.subr.mxu0 0.0
  %1063 = vmatpush2.msra.mxu0 %v811
  %1064 = vmatprep.subr.mxu0 0.0
  %1065 = vmatpush2.msra.mxu0 %v808
  %1066 = vmatprep.subr.mxu0 0.0
  %1067 = vmatpush2.msra.mxu0 %v805
  %1068 = vmatprep.subr.mxu0 0.0
  %1069 = vmatpush2.msra.mxu0 %v802
  %1070 = vmatprep.subr.mxu0 0.0
  %1071 = vmatpush2.msra.mxu0 %v799
  %1072 = vmatprep.subr.mxu0 0.0
  %1073 = vmatpush2.msra.mxu0 %v796
  %1074 = vmatprep.subr.mxu0 0.0
  %1075 = vmatpush2.msra.mxu0 %v793
  %1076 = vmatprep.subr.mxu0 0.0
  %1077 = vmatpush2.msra.mxu0 %v790
  %1078 = vmatprep.mubr.f32.mxu0 %v709
  %1079 = vmatmul.mubr.f32.gmra.mxu0 %v708
  %v1080 = vpop.f32.mrf.mxu0
  %v1081 = vadd.f32 %v849, %v1080
  %v1082 = vpop.f32.mrf.mxu0
  %1083 = vmatprep.mubr.f32.mxu0 %v711
  %1084 = vmatmul.mubr.f32.gmra.mxu0 %v710
  %v1085 = vpop.f32.mrf.mxu0
  %v1086 = vadd.f32 %v849, %v1085
  %v1087 = vpop.f32.mrf.mxu0
  %1088 = vmatprep.mubr.f32.mxu0 %v713
  %1089 = vmatmul.mubr.f32.gmra.mxu0 %v712
  %v1090 = vpop.f32.mrf.mxu0
  %v1091 = vadd.f32 %v849, %v1090
  %v1092 = vpop.f32.mrf.mxu0
  %1093 = vmatprep.mubr.f32.mxu0 %v715
  %1094 = vmatmul.mubr.f32.gmra.mxu0 %v714
  %v1095 = vpop.f32.mrf.mxu0
  %v1096 = vadd.f32 %v849, %v1095
  %v1097 = vpop.f32.mrf.mxu0
  %1098 = vmatprep.mubr.f32.mxu0 %v717
  %1099 = vmatmul.mubr.f32.gmra.mxu0 %v716
  %v1100 = vpop.f32.mrf.mxu0
  %v1101 = vadd.f32 %v849, %v1100
  %v1102 = vpop.f32.mrf.mxu0
  %1103 = vmatprep.mubr.f32.mxu0 %v719
  %1104 = vmatmul.mubr.f32.gmra.mxu0 %v718
  %v1105 = vpop.f32.mrf.mxu0
  %v1106 = vadd.f32 %v849, %v1105
  %v1107 = vpop.f32.mrf.mxu0
  %1108 = vmatprep.mubr.f32.mxu0 %v721
  %1109 = vmatmul.mubr.f32.gmra.mxu0 %v720
  %v1110 = vpop.f32.mrf.mxu0
  %v1111 = vadd.f32 %v849, %v1110
  %v1112 = vpop.f32.mrf.mxu0
  %1113 = vmatprep.mubr.f32.mxu0 %v723
  %1114 = vmatmul.mubr.f32.gmra.mxu0 %v722
  %v1115 = vpop.f32.mrf.mxu0
  %v1116 = vadd.f32 %v849, %v1115
  %v1117 = vpop.f32.mrf.mxu0
  %1118 = vmatprep.mubr.f32.mxu0 %v725
  %1119 = vmatmul.mubr.f32.gmra.mxu0 %v724
  %v1120 = vpop.f32.mrf.mxu0
  %v1121 = vadd.f32 %v849, %v1120
  %v1122 = vpop.f32.mrf.mxu0
  %1123 = vmatprep.mubr.f32.mxu0 %v727
  %1124 = vmatmul.mubr.f32.gmra.mxu0 %v726
  %v1125 = vpop.f32.mrf.mxu0
  %v1126 = vadd.f32 %v849, %v1125
  %v1127 = vpop.f32.mrf.mxu0
  %1128 = vmatprep.mubr.f32.mxu0 %v729
  %1129 = vmatmul.mubr.f32.gmra.mxu0 %v728
  %v1130 = vpop.f32.mrf.mxu0
  %v1131 = vadd.f32 %v849, %v1130
  %v1132 = vpop.f32.mrf.mxu0
  %1133 = vmatprep.mubr.f32.mxu0 %v731
  %1134 = vmatmul.mubr.f32.gmra.mxu0 %v730
  %v1135 = vpop.f32.mrf.mxu0
  %v1136 = vadd.f32 %v849, %v1135
  %v1137 = vpop.f32.mrf.mxu0
  %1138 = vmatprep.mubr.f32.mxu0 %v733
  %1139 = vmatmul.mubr.f32.gmra.mxu0 %v732
  %v1140 = vpop.f32.mrf.mxu0
  %v1141 = vadd.f32 %v849, %v1140
  %v1142 = vpop.f32.mrf.mxu0
  %1143 = vmatprep.mubr.f32.mxu0 %v735
  %1144 = vmatmul.mubr.f32.gmra.mxu0 %v734
  %v1145 = vpop.f32.mrf.mxu0
  %v1146 = vadd.f32 %v849, %v1145
  %v1147 = vpop.f32.mrf.mxu0
  %1148 = vmatprep.mubr.f32.mxu0 %v737
  %1149 = vmatmul.mubr.f32.gmra.mxu0 %v736
  %v1150 = vpop.f32.mrf.mxu0
  %v1151 = vadd.f32 %v849, %v1150
  %v1152 = vpop.f32.mrf.mxu0
  %1153 = vmatprep.mubr.f32.mxu0 %v739
  %1154 = vmatmul.mubr.f32.gmra.mxu0 %v738
  %v1155 = vpop.f32.mrf.mxu0
  %v1156 = vadd.f32 %v849, %v1155
  %v1157 = vpop.f32.mrf.mxu0
  %1158 = vdwg.mxu0
  %v1159 = vsub.f32 0.0, %v920
  %v1160 = vsub.f32 0.0, %v922
  %v1161 = vsub.f32 0.0, %v1081
  %v1162 = vsub.f32 0.0, %v926
  %v1163 = vsub.f32 0.0, %v928
  %v1164 = vsub.f32 0.0, %v1086
  %v1165 = vsub.f32 0.0, %v932
  %v1166 = vsub.f32 0.0, %v934
  %v1167 = vsub.f32 0.0, %v1091
  %v1168 = vsub.f32 0.0, %v938
  %v1169 = vsub.f32 0.0, %v940
  %v1170 = vsub.f32 0.0, %v1096
  %v1171 = vsub.f32 0.0, %v944
  %v1172 = vsub.f32 0.0, %v946
  %v1173 = vsub.f32 0.0, %v1101
  %v1174 = vsub.f32 0.0, %v950
  %v1175 = vsub.f32 0.0, %v952
  %v1176 = vsub.f32 0.0, %v1106
  %v1177 = vsub.f32 0.0, %v956
  %v1178 = vsub.f32 0.0, %v958
  %v1179 = vsub.f32 0.0, %v1111
  %v1180 = vsub.f32 0.0, %v962
  %v1181 = vsub.f32 0.0, %v964
  %v1182 = vsub.f32 0.0, %v1116
  %v1183 = vsub.f32 0.0, %v968
  %v1184 = vsub.f32 0.0, %v970
  %v1185 = vsub.f32 0.0, %v1121
  %v1186 = vsub.f32 0.0, %v974
  %v1187 = vsub.f32 0.0, %v976
  %v1188 = vsub.f32 0.0, %v1126
  %v1189 = vsub.f32 0.0, %v980
  %v1190 = vsub.f32 0.0, %v982
  %v1191 = vsub.f32 0.0, %v1131
  %v1192 = vsub.f32 0.0, %v986
  %v1193 = vsub.f32 0.0, %v988
  %v1194 = vsub.f32 0.0, %v1136
  %v1195 = vsub.f32 0.0, %v992
  %v1196 = vsub.f32 0.0, %v994
  %v1197 = vsub.f32 0.0, %v1141
  %v1198 = vsub.f32 0.0, %v998
  %v1199 = vsub.f32 0.0, %v1000
  %v1200 = vsub.f32 0.0, %v1146
  %v1201 = vsub.f32 0.0, %v1004
  %v1202 = vsub.f32 0.0, %v1006
  %v1203 = vsub.f32 0.0, %v1151
  %v1204 = vsub.f32 0.0, %v1010
  %v1205 = vsub.f32 0.0, %v1012
  %v1206 = vsub.f32 0.0, %v1156
  %v1207 = vmul.f32 %v1159, 1.442695
  %v1208 = vpow.pop %v1207
  %v1209 = vmul.f32 %v1160, 1.442695
  %v1210 = vpow.pop %v1209
  %v1211 = vmul.f32 %v1161, 1.442695
  %v1212 = vpow.pop %v1211
  %v1213 = vmul.f32 %v1162, 1.442695
  %v1214 = vpow.pop %v1213
  %v1215 = vmul.f32 %v1163, 1.442695
  %v1216 = vpow.pop %v1215
  %v1217 = vmul.f32 %v1164, 1.442695
  %v1218 = vpow.pop %v1217
  %v1219 = vmul.f32 %v1165, 1.442695
  %v1220 = vpow.pop %v1219
  %v1221 = vmul.f32 %v1166, 1.442695
  %v1222 = vpow.pop %v1221
  %v1223 = vmul.f32 %v1167, 1.442695
  %v1224 = vpow.pop %v1223
  %v1225 = vmul.f32 %v1168, 1.442695
  %v1226 = vpow.pop %v1225
  %v1227 = vmul.f32 %v1169, 1.442695
  %v1228 = vpow.pop %v1227
  %v1229 = vmul.f32 %v1170, 1.442695
  %v1230 = vpow.pop %v1229
  %v1231 = vmul.f32 %v1171, 1.442695
  %v1232 = vpow.pop %v1231
  %v1233 = vmul.f32 %v1172, 1.442695
  %v1234 = vpow.pop %v1233
  %v1235 = vmul.f32 %v1173, 1.442695
  %v1236 = vpow.pop %v1235
  %v1237 = vmul.f32 %v1174, 1.442695
  %v1238 = vpow.pop %v1237
  %v1239 = vmul.f32 %v1175, 1.442695
  %v1240 = vpow.pop %v1239
  %v1241 = vmul.f32 %v1176, 1.442695
  %v1242 = vpow.pop %v1241
  %v1243 = vmul.f32 %v1177, 1.442695
  %v1244 = vpow.pop %v1243
  %v1245 = vmul.f32 %v1178, 1.442695
  %v1246 = vpow.pop %v1245
  %v1247 = vmul.f32 %v1179, 1.442695
  %v1248 = vpow.pop %v1247
  %v1249 = vmul.f32 %v1180, 1.442695
  %v1250 = vpow.pop %v1249
  %v1251 = vmul.f32 %v1181, 1.442695
  %v1252 = vpow.pop %v1251
  %v1253 = vmul.f32 %v1182, 1.442695
  %v1254 = vpow.pop %v1253
  %v1255 = vmul.f32 %v1183, 1.442695
  %v1256 = vpow.pop %v1255
  %v1257 = vmul.f32 %v1184, 1.442695
  %v1258 = vpow.pop %v1257
  %v1259 = vmul.f32 %v1185, 1.442695
  %v1260 = vpow.pop %v1259
  %v1261 = vmul.f32 %v1186, 1.442695
  %v1262 = vpow.pop %v1261
  %v1263 = vmul.f32 %v1187, 1.442695
  %v1264 = vpow.pop %v1263
  %v1265 = vmul.f32 %v1188, 1.442695
  %v1266 = vpow.pop %v1265
  %v1267 = vmul.f32 %v1189, 1.442695
  %v1268 = vpow.pop %v1267
  %v1269 = vmul.f32 %v1190, 1.442695
  %v1270 = vpow.pop %v1269
  %v1271 = vmul.f32 %v1191, 1.442695
  %v1272 = vpow.pop %v1271
  %v1273 = vmul.f32 %v1192, 1.442695
  %v1274 = vpow.pop %v1273
  %v1275 = vmul.f32 %v1193, 1.442695
  %v1276 = vpow.pop %v1275
  %v1277 = vmul.f32 %v1194, 1.442695
  %v1278 = vpow.pop %v1277
  %v1279 = vmul.f32 %v1195, 1.442695
  %v1280 = vpow.pop %v1279
  %v1281 = vmul.f32 %v1196, 1.442695
  %v1282 = vpow.pop %v1281
  %v1283 = vmul.f32 %v1197, 1.442695
  %v1284 = vpow.pop %v1283
  %v1285 = vmul.f32 %v1198, 1.442695
  %v1286 = vpow.pop %v1285
  %v1287 = vmul.f32 %v1199, 1.442695
  %v1288 = vpow.pop %v1287
  %v1289 = vmul.f32 %v1200, 1.442695
  %v1290 = vpow.pop %v1289
  %v1291 = vmul.f32 %v1201, 1.442695
  %v1292 = vpow.pop %v1291
  %v1293 = vmul.f32 %v1202, 1.442695
  %v1294 = vpow.pop %v1293
  %v1295 = vmul.f32 %v1203, 1.442695
  %v1296 = vpow.pop %v1295
  %v1297 = vmul.f32 %v1204, 1.442695
  %v1298 = vpow.pop %v1297
  %v1299 = vmul.f32 %v1205, 1.442695
  %v1300 = vpow.pop %v1299
  %v1301 = vmul.f32 %v1206, 1.442695
  %v1302 = vpow.pop %v1301
  %v1303 = vadd.f32 %v1208, 1.0
  %v1304 = vadd.f32 %v1210, 1.0
  %v1305 = vadd.f32 %v1212, 1.0
  %v1306 = vadd.f32 %v1214, 1.0
  %v1307 = vadd.f32 %v1216, 1.0
  %v1308 = vadd.f32 %v1218, 1.0
  %v1309 = vadd.f32 %v1220, 1.0
  %v1310 = vadd.f32 %v1222, 1.0
  %v1311 = vadd.f32 %v1224, 1.0
  %v1312 = vadd.f32 %v1226, 1.0
  %v1313 = vadd.f32 %v1228, 1.0
  %v1314 = vadd.f32 %v1230, 1.0
  %v1315 = vadd.f32 %v1232, 1.0
  %v1316 = vadd.f32 %v1234, 1.0
  %v1317 = vadd.f32 %v1236, 1.0
  %v1318 = vadd.f32 %v1238, 1.0
  %v1319 = vadd.f32 %v1240, 1.0
  %v1320 = vadd.f32 %v1242, 1.0
  %v1321 = vadd.f32 %v1244, 1.0
  %v1322 = vadd.f32 %v1246, 1.0
  %v1323 = vadd.f32 %v1248, 1.0
  %v1324 = vadd.f32 %v1250, 1.0
  %v1325 = vadd.f32 %v1252, 1.0
  %v1326 = vadd.f32 %v1254, 1.0
  %v1327 = vadd.f32 %v1256, 1.0
  %v1328 = vadd.f32 %v1258, 1.0
  %v1329 = vadd.f32 %v1260, 1.0
  %v1330 = vadd.f32 %v1262, 1.0
  %v1331 = vadd.f32 %v1264, 1.0
  %v1332 = vadd.f32 %v1266, 1.0
  %v1333 = vadd.f32 %v1268, 1.0
  %v1334 = vadd.f32 %v1270, 1.0
  %v1335 = vadd.f32 %v1272, 1.0
  %v1336 = vadd.f32 %v1274, 1.0
  %v1337 = vadd.f32 %v1276, 1.0
  %v1338 = vadd.f32 %v1278, 1.0
  %v1339 = vadd.f32 %v1280, 1.0
  %v1340 = vadd.f32 %v1282, 1.0
  %v1341 = vadd.f32 %v1284, 1.0
  %v1342 = vadd.f32 %v1286, 1.0
  %v1343 = vadd.f32 %v1288, 1.0
  %v1344 = vadd.f32 %v1290, 1.0
  %v1345 = vadd.f32 %v1292, 1.0
  %v1346 = vadd.f32 %v1294, 1.0
  %v1347 = vadd.f32 %v1296, 1.0
  %v1348 = vadd.f32 %v1298, 1.0
  %v1349 = vadd.f32 %v1300, 1.0
  %v1350 = vadd.f32 %v1302, 1.0
  %v1351 = vrcp.pop %v1303
  %v1352 = vrcp.pop %v1304
  %v1353 = vrcp.pop %v1305
  %v1354 = vrcp.pop %v1306
  %v1355 = vrcp.pop %v1307
  %v1356 = vrcp.pop %v1308
  %v1357 = vrcp.pop %v1309
  %v1358 = vrcp.pop %v1310
  %v1359 = vrcp.pop %v1311
  %v1360 = vrcp.pop %v1312
  %v1361 = vrcp.pop %v1313
  %v1362 = vrcp.pop %v1314
  %v1363 = vrcp.pop %v1315
  %v1364 = vrcp.pop %v1316
  %v1365 = vrcp.pop %v1317
  %v1366 = vrcp.pop %v1318
  %v1367 = vrcp.pop %v1319
  %v1368 = vrcp.pop %v1320
  %v1369 = vrcp.pop %v1321
  %v1370 = vrcp.pop %v1322
  %v1371 = vrcp.pop %v1323
  %v1372 = vrcp.pop %v1324
  %v1373 = vrcp.pop %v1325
  %v1374 = vrcp.pop %v1326
  %v1375 = vrcp.pop %v1327
  %v1376 = vrcp.pop %v1328
  %v1377 = vrcp.pop %v1329
  %v1378 = vrcp.pop %v1330
  %v1379 = vrcp.pop %v1331
  %v1380 = vrcp.pop %v1332
  %v1381 = vrcp.pop %v1333
  %v1382 = vrcp.pop %v1334
  %v1383 = vrcp.pop %v1335
  %v1384 = vrcp.pop %v1336
  %v1385 = vrcp.pop %v1337
  %v1386 = vrcp.pop %v1338
  %v1387 = vrcp.pop %v1339
  %v1388 = vrcp.pop %v1340
  %v1389 = vrcp.pop %v1341
  %v1390 = vrcp.pop %v1342
  %v1391 = vrcp.pop %v1343
  %v1392 = vrcp.pop %v1344
  %v1393 = vrcp.pop %v1345
  %v1394 = vrcp.pop %v1346
  %v1395 = vrcp.pop %v1347
  %v1396 = vrcp.pop %v1348
  %v1397 = vrcp.pop %v1349
  %v1398 = vrcp.pop %v1350
  %v1399 = vmul.f32 %v920, %v1351
  %v1400 = vmul.f32 %v922, %v1352
  %v1401 = vmul.f32 %v1081, %v1353
  %v1402 = vmul.f32 %v926, %v1354
  %v1403 = vmul.f32 %v928, %v1355
  %v1404 = vmul.f32 %v1086, %v1356
  %v1405 = vmul.f32 %v932, %v1357
  %v1406 = vmul.f32 %v934, %v1358
  %v1407 = vmul.f32 %v1091, %v1359
  %v1408 = vmul.f32 %v938, %v1360
  %v1409 = vmul.f32 %v940, %v1361
  %v1410 = vmul.f32 %v1096, %v1362
  %v1411 = vmul.f32 %v944, %v1363
  %v1412 = vmul.f32 %v946, %v1364
  %v1413 = vmul.f32 %v1101, %v1365
  %v1414 = vmul.f32 %v950, %v1366
  %v1415 = vmul.f32 %v952, %v1367
  %v1416 = vmul.f32 %v1106, %v1368
  %v1417 = vmul.f32 %v956, %v1369
  %v1418 = vmul.f32 %v958, %v1370
  %v1419 = vmul.f32 %v1111, %v1371
  %v1420 = vmul.f32 %v962, %v1372
  %v1421 = vmul.f32 %v964, %v1373
  %v1422 = vmul.f32 %v1116, %v1374
  %v1423 = vmul.f32 %v968, %v1375
  %v1424 = vmul.f32 %v970, %v1376
  %v1425 = vmul.f32 %v1121, %v1377
  %v1426 = vmul.f32 %v974, %v1378
  %v1427 = vmul.f32 %v976, %v1379
  %v1428 = vmul.f32 %v1126, %v1380
  %v1429 = vmul.f32 %v980, %v1381
  %v1430 = vmul.f32 %v982, %v1382
  %v1431 = vmul.f32 %v1131, %v1383
  %v1432 = vmul.f32 %v986, %v1384
  %v1433 = vmul.f32 %v988, %v1385
  %v1434 = vmul.f32 %v1136, %v1386
  %v1435 = vmul.f32 %v992, %v1387
  %v1436 = vmul.f32 %v994, %v1388
  %v1437 = vmul.f32 %v1141, %v1389
  %v1438 = vmul.f32 %v998, %v1390
  %v1439 = vmul.f32 %v1000, %v1391
  %v1440 = vmul.f32 %v1146, %v1392
  %v1441 = vmul.f32 %v1004, %v1393
  %v1442 = vmul.f32 %v1006, %v1394
  %v1443 = vmul.f32 %v1151, %v1395
  %v1444 = vmul.f32 %v1010, %v1396
  %v1445 = vmul.f32 %v1012, %v1397
  %v1446 = vmul.f32 %v1156, %v1398
  %v1447 = vld [vmem:[%s1] sm:$0xff]
  %v1448 = vld [vmem:[%s1 + $0x8] sm:$0xff]
  %v1449 = vld [vmem:[%s1 + $0x10] sm:$0xff]
  %v1450 = vld [vmem:[%s1 + $0x18] sm:$0xff]
  %v1451 = vld [vmem:[%s1 + $0x20] sm:$0xff]
  %v1452 = vld [vmem:[%s1 + $0x28] sm:$0xff]
  %v1453 = vld [vmem:[%s1 + $0x30] sm:$0xff]
  %v1454 = vld [vmem:[%s1 + $0x38] sm:$0xff]
  %v1455 = vld [vmem:[%s1 + $0x40] sm:$0xff]
  %v1456 = vld [vmem:[%s1 + $0x48] sm:$0xff]
  %v1457 = vld [vmem:[%s1 + $0x50] sm:$0xff]
  %v1458 = vld [vmem:[%s1 + $0x58] sm:$0xff]
  %v1459 = vld [vmem:[%s1 + $0x60] sm:$0xff]
  %v1460 = vld [vmem:[%s1 + $0x68] sm:$0xff]
  %v1461 = vld [vmem:[%s1 + $0x70] sm:$0xff]
  %v1462 = vld [vmem:[%s1 + $0x78] sm:$0xff]
  %v1463 = vmul.f32 %v1447, 3.1415927
  %v1464 = vmul.f32 %v1448, 3.1415927
  %v1465 = vmul.f32 %v1449, 3.1415927
  %v1466 = vmul.f32 %v1450, 3.1415927
  %v1467 = vmul.f32 %v1451, 3.1415927
  %v1468 = vmul.f32 %v1452, 3.1415927
  %v1469 = vmul.f32 %v1453, 3.1415927
  %v1470 = vmul.f32 %v1454, 3.1415927
  %v1471 = vmul.f32 %v1455, 3.1415927
  %v1472 = vmul.f32 %v1456, 3.1415927
  %v1473 = vmul.f32 %v1457, 3.1415927
  %v1474 = vmul.f32 %v1458, 3.1415927
  %v1475 = vmul.f32 %v1459, 3.1415927
  %v1476 = vmul.f32 %v1460, 3.1415927
  %v1477 = vmul.f32 %v1461, 3.1415927
  %v1478 = vmul.f32 %v1462, 3.1415927
  %v1479 = vrcp.pop 5.0
  %v1480 = vmul.f32 %v1463, %v1479
  %v1481 = vmul.f32 %v1464, %v1479
  %v1482 = vmul.f32 %v1465, %v1479
  %v1483 = vmul.f32 %v1466, %v1479
  %v1484 = vmul.f32 %v1467, %v1479
  %v1485 = vmul.f32 %v1468, %v1479
  %v1486 = vmul.f32 %v1469, %v1479
  %v1487 = vmul.f32 %v1470, %v1479
  %v1488 = vmul.f32 %v1471, %v1479
  %v1489 = vmul.f32 %v1472, %v1479
  %v1490 = vmul.f32 %v1473, %v1479
  %v1491 = vmul.f32 %v1474, %v1479
  %v1492 = vmul.f32 %v1475, %v1479
  %v1493 = vmul.f32 %v1476, %v1479
  %v1494 = vmul.f32 %v1477, %v1479
  %v1495 = vmul.f32 %v1478, %v1479
  %v1496 = vand.u32 2147483647, %v1480
  %vm1497 = vcmp.le.f32.partialorder %v1496, 0.7853982
  %vm1498 = vcmp.lt.s32.totalorder %v1480, 0
  %v1499 = vand.u32 %v1480, 2139095040
  %v1500 = vshrl.u32 %v1499, 23
  %v1501 = vsub.s32 %v1500, 127
  %v1502 = vand.u32 2147483647, %v1480
  %v1503 = vand.u32 %v1502, 8388607
  %v1504 = vor.u32 %v1503, 8388608
  %v1505 = vsub.s32 0, %v1504
  %v1506 = vadd.s32 %v1501, 1
  %vm1507 = vcmp.gt.s32.totalorder %v1506, 0
  %v1508 = vsel %vm1507, %v1506, 0
  %v1509 = vshrl.u32 %v1508, 5
  %v1510 = vand.u32 %v1508, 31
  %v1511 = vsub.s32 32, %v1510
  %v1512 = vshrl.u32 683565275, %v1511
  %v1513 = vshll.u32 683565275, %v1510
  %v1514 = vshrl.u32 2475754826, %v1511
  %v1515 = vor.u32 %v1513, %v1514
  %v1516 = vshll.u32 2475754826, %v1510
  %v1517 = vshrl.u32 2131351028, %v1511
  %v1518 = vor.u32 %v1516, %v1517
  %v1519 = vshll.u32 2131351028, %v1510
  %v1520 = vshrl.u32 2102212464, %v1511
  %v1521 = vor.u32 %v1519, %v1520
  %v1522 = vshll.u32 2102212464, %v1510
  %v1523 = vshrl.u32 920167782, %v1511
  %v1524 = vor.u32 %v1522, %v1523
  %v1525 = vshll.u32 920167782, %v1510
  %v1526 = vshrl.u32 1326507024, %v1511
  %v1527 = vor.u32 %v1525, %v1526
  %vm1528 = vcmp.lt.s32.totalorder %v1509, 1
  %vm1529 = vcmp.lt.s32.totalorder %v1509, 2
  %vm1530 = vcmp.lt.s32.totalorder %v1509, 3
  %vm1531 = vcmp.lt.s32.totalorder %v1509, 4
  %v1532 = vsel %vm1528, %v1512, %v1515
  %v1533 = vsel %vm1531, %v1521, 2102212464
  %v1534 = vsel %vm1530, %v1518, %v1533
  %v1535 = vsel %vm1529, %v1532, %v1534
  %v1536 = vsel %vm1528, %v1515, %v1518
  %v1537 = vsel %vm1531, %v1524, 920167782
  %v1538 = vsel %vm1530, %v1521, %v1537
  %v1539 = vsel %vm1529, %v1536, %v1538
  %v1540 = vsel %vm1528, %v1518, %v1521
  %v1541 = vsel %vm1531, %v1527, 1326507024
  %v1542 = vsel %vm1530, %v1524, %v1541
  %v1543 = vsel %vm1529, %v1540, %v1542
  %v1544 = vshll.u32 %v1504, 8
  %v1545 = vmul.u32.u64.compose %v1544, %v1543
  %v1546 = vextract.low.u32 %v1545
  %v1547 = vextract.high.u32 %v1545
  %v1548 = vmul.u32.u64.compose %v1544, %v1539
  %v1549 = vextract.low.u32 %v1548
  %v1550 = vextract.high.u32 %v1548
  %v1551 = vmul.u32 %v1544, %v1535
  %v1552 = vadd.s32 %v1547, %v1549
  %vm1553 = vc.u32 %v1547, %v1549
  %v1554 = vadd.s32 %v1550, 1
  %v1555 = vsel %vm1553, %v1554, %v1550
  %v1556 = vadd.s32 %v1551, %v1555
  %v1557 = vadd.s32 %v1556, 536870912
  %v1558 = vshrl.u32 %v1557, 30
  %v1559 = vshll.u32 %v1558, 30
  %v1560 = vsub.s32 %v1556, %v1559
  %vm1561 = vcmp.lt.s32.totalorder %v1560, 0
  %v1562 = vsub.s32 0, %v1560
  %v1563 = vsel %vm1561, %v1562, %v1560
  %v1564 = vclz %v1563
  %v1565 = vsub.s32 %v1564, 2
  %vm1566 = vcmp.gt.s32.totalorder 0, %v1565
  %v1567 = vsel %vm1566, 0, %v1565
  %v1568 = vsub.s32 32, %v1567
  %v1569 = vshll.u32 %v1560, %v1567
  %v1570 = vshrl.u32 %v1552, %v1568
  %v1571 = vor.u32 %v1569, %v1570
  %v1572 = vsub.s32 4294967266, %v1567
  %v1573 = vadd.s32 %v1572, 127
  %v1574 = vshll.u32 %v1573, 23
  %v1575 = vor.u32 4788187, %v1574
  %v1576 = vand.u32 2147483647, %v1575
  %v1578 = vcvt.s32.f32 %v1571
  %v1579 = vmul.f32 %v1578, %v1576
  %v1580 = vxor.u32 %v1579, 2147483648
  %v1581 = vsel %vm1498, %v1580, %v1579
  %v1582 = vsub.s32 4, %v1558
  %v1583 = vsel %vm1498, %v1582, %v1558
  %v1584 = vsel %vm1497, %v1480, %v1581
  %v1585 = vsel %vm1497, 0, %v1583
  %v1586 = vcosq.f32.pop %v1584
  %v1587 = vsinq.f32.pop %v1584
  %vm1588 = vweird.f32 %v1480
  %v1589 = vand.u32 %v1585, 3
  %vm1590 = vcmp.lt.s32.totalorder %v1589, 2
  %vm1591 = vcmp.eq.s32.totalorder %v1589, 0
  %v1592 = vxor.u32 %v1587, 2147483648
  %v1593 = vsel %vm1591, %v1586, %v1592
  %vm1594 = vcmp.eq.s32.totalorder %v1589, 2
  %v1595 = vxor.u32 %v1586, 2147483648
  %v1596 = vsel %vm1594, %v1595, %v1587
  %v1597 = vsel %vm1590, %v1593, %v1596
  %v1598 = vsel %vm1588, nan, %v1597
  %v1599 = vand.u32 2147483647, %v1481
  %vm1600 = vcmp.le.f32.partialorder %v1599, 0.7853982
  %vm1601 = vcmp.lt.s32.totalorder %v1481, 0
  %v1602 = vand.u32 %v1481, 2139095040
  %v1603 = vshrl.u32 %v1602, 23
  %v1604 = vsub.s32 %v1603, 127
  %v1605 = vand.u32 2147483647, %v1481
  %v1606 = vand.u32 %v1605, 8388607
  %v1607 = vor.u32 %v1606, 8388608
  %v1608 = vsub.s32 0, %v1607
  %v1609 = vadd.s32 %v1604, 1
  %vm1610 = vcmp.gt.s32.totalorder %v1609, 0
  %v1611 = vsel %vm1610, %v1609, 0
  %v1612 = vshrl.u32 %v1611, 5
  %v1613 = vand.u32 %v1611, 31
  %v1614 = vsub.s32 32, %v1613
  %v1615 = vshrl.u32 683565275, %v1614
  %v1616 = vshll.u32 683565275, %v1613
  %v1617 = vshrl.u32 2475754826, %v1614
  %v1618 = vor.u32 %v1616, %v1617
  %v1619 = vshll.u32 2475754826, %v1613
  %v1620 = vshrl.u32 2131351028, %v1614
  %v1621 = vor.u32 %v1619, %v1620
  %v1622 = vshll.u32 2131351028, %v1613
  %v1623 = vshrl.u32 2102212464, %v1614
  %v1624 = vor.u32 %v1622, %v1623
  %v1625 = vshll.u32 2102212464, %v1613
  %v1626 = vshrl.u32 920167782, %v1614
  %v1627 = vor.u32 %v1625, %v1626
  %v1628 = vshll.u32 920167782, %v1613
  %v1629 = vshrl.u32 1326507024, %v1614
  %v1630 = vor.u32 %v1628, %v1629
  %vm1631 = vcmp.lt.s32.totalorder %v1612, 1
  %vm1632 = vcmp.lt.s32.totalorder %v1612, 2
  %vm1633 = vcmp.lt.s32.totalorder %v1612, 3
  %vm1634 = vcmp.lt.s32.totalorder %v1612, 4
  %v1635 = vsel %vm1631, %v1615, %v1618
  %v1636 = vsel %vm1634, %v1624, 2102212464
  %v1637 = vsel %vm1633, %v1621, %v1636
  %v1638 = vsel %vm1632, %v1635, %v1637
  %v1639 = vsel %vm1631, %v1618, %v1621
  %v1640 = vsel %vm1634, %v1627, 920167782
  %v1641 = vsel %vm1633, %v1624, %v1640
  %v1642 = vsel %vm1632, %v1639, %v1641
  %v1643 = vsel %vm1631, %v1621, %v1624
  %v1644 = vsel %vm1634, %v1630, 1326507024
  %v1645 = vsel %vm1633, %v1627, %v1644
  %v1646 = vsel %vm1632, %v1643, %v1645
  %v1647 = vshll.u32 %v1607, 8
  %v1648 = vmul.u32.u64.compose %v1647, %v1646
  %v1649 = vextract.low.u32 %v1648
  %v1650 = vextract.high.u32 %v1648
  %v1651 = vmul.u32.u64.compose %v1647, %v1642
  %v1652 = vextract.low.u32 %v1651
  %v1653 = vextract.high.u32 %v1651
  %v1654 = vmul.u32 %v1647, %v1638
  %v1655 = vadd.s32 %v1650, %v1652
  %vm1656 = vc.u32 %v1650, %v1652
  %v1657 = vadd.s32 %v1653, 1
  %v1658 = vsel %vm1656, %v1657, %v1653
  %v1659 = vadd.s32 %v1654, %v1658
  %v1660 = vadd.s32 %v1659, 536870912
  %v1661 = vshrl.u32 %v1660, 30
  %v1662 = vshll.u32 %v1661, 30
  %v1663 = vsub.s32 %v1659, %v1662
  %vm1664 = vcmp.lt.s32.totalorder %v1663, 0
  %v1665 = vsub.s32 0, %v1663
  %v1666 = vsel %vm1664, %v1665, %v1663
  %v1667 = vclz %v1666
  %v1668 = vsub.s32 %v1667, 2
  %vm1669 = vcmp.gt.s32.totalorder 0, %v1668
  %v1670 = vsel %vm1669, 0, %v1668
  %v1671 = vsub.s32 32, %v1670
  %v1672 = vshll.u32 %v1663, %v1670
  %v1673 = vshrl.u32 %v1655, %v1671
  %v1674 = vor.u32 %v1672, %v1673
  %v1675 = vsub.s32 4294967266, %v1670
  %v1676 = vadd.s32 %v1675, 127
  %v1677 = vshll.u32 %v1676, 23
  %v1678 = vor.u32 4788187, %v1677
  %v1679 = vand.u32 2147483647, %v1678
  %v1681 = vcvt.s32.f32 %v1674
  %v1682 = vmul.f32 %v1681, %v1679
  %v1683 = vxor.u32 %v1682, 2147483648
  %v1684 = vsel %vm1601, %v1683, %v1682
  %v1685 = vsub.s32 4, %v1661
  %v1686 = vsel %vm1601, %v1685, %v1661
  %v1687 = vsel %vm1600, %v1481, %v1684
  %v1688 = vsel %vm1600, 0, %v1686
  %v1689 = vcosq.f32.pop %v1687
  %v1690 = vsinq.f32.pop %v1687
  %vm1691 = vweird.f32 %v1481
  %v1692 = vand.u32 %v1688, 3
  %vm1693 = vcmp.lt.s32.totalorder %v1692, 2
  %vm1694 = vcmp.eq.s32.totalorder %v1692, 0
  %v1695 = vxor.u32 %v1690, 2147483648
  %v1696 = vsel %vm1694, %v1689, %v1695
  %vm1697 = vcmp.eq.s32.totalorder %v1692, 2
  %v1698 = vxor.u32 %v1689, 2147483648
  %v1699 = vsel %vm1697, %v1698, %v1690
  %v1700 = vsel %vm1693, %v1696, %v1699
  %v1701 = vsel %vm1691, nan, %v1700
  %v1702 = vand.u32 2147483647, %v1482
  %vm1703 = vcmp.le.f32.partialorder %v1702, 0.7853982
  %vm1704 = vcmp.lt.s32.totalorder %v1482, 0
  %v1705 = vand.u32 %v1482, 2139095040
  %v1706 = vshrl.u32 %v1705, 23
  %v1707 = vsub.s32 %v1706, 127
  %v1708 = vand.u32 2147483647, %v1482
  %v1709 = vand.u32 %v1708, 8388607
  %v1710 = vor.u32 %v1709, 8388608
  %v1711 = vsub.s32 0, %v1710
  %v1712 = vadd.s32 %v1707, 1
  %vm1713 = vcmp.gt.s32.totalorder %v1712, 0
  %v1714 = vsel %vm1713, %v1712, 0
  %v1715 = vshrl.u32 %v1714, 5
  %v1716 = vand.u32 %v1714, 31
  %v1717 = vsub.s32 32, %v1716
  %v1718 = vshrl.u32 683565275, %v1717
  %v1719 = vshll.u32 683565275, %v1716
  %v1720 = vshrl.u32 2475754826, %v1717
  %v1721 = vor.u32 %v1719, %v1720
  %v1722 = vshll.u32 2475754826, %v1716
  %v1723 = vshrl.u32 2131351028, %v1717
  %v1724 = vor.u32 %v1722, %v1723
  %v1725 = vshll.u32 2131351028, %v1716
  %v1726 = vshrl.u32 2102212464, %v1717
  %v1727 = vor.u32 %v1725, %v1726
  %v1728 = vshll.u32 2102212464, %v1716
  %v1729 = vshrl.u32 920167782, %v1717
  %v1730 = vor.u32 %v1728, %v1729
  %v1731 = vshll.u32 920167782, %v1716
  %v1732 = vshrl.u32 1326507024, %v1717
  %v1733 = vor.u32 %v1731, %v1732
  %vm1734 = vcmp.lt.s32.totalorder %v1715, 1
  %vm1735 = vcmp.lt.s32.totalorder %v1715, 2
  %vm1736 = vcmp.lt.s32.totalorder %v1715, 3
  %vm1737 = vcmp.lt.s32.totalorder %v1715, 4
  %v1738 = vsel %vm1734, %v1718, %v1721
  %v1739 = vsel %vm1737, %v1727, 2102212464
  %v1740 = vsel %vm1736, %v1724, %v1739
  %v1741 = vsel %vm1735, %v1738, %v1740
  %v1742 = vsel %vm1734, %v1721, %v1724
  %v1743 = vsel %vm1737, %v1730, 920167782
  %v1744 = vsel %vm1736, %v1727, %v1743
  %v1745 = vsel %vm1735, %v1742, %v1744
  %v1746 = vsel %vm1734, %v1724, %v1727
  %v1747 = vsel %vm1737, %v1733, 1326507024
  %v1748 = vsel %vm1736, %v1730, %v1747
  %v1749 = vsel %vm1735, %v1746, %v1748
  %v1750 = vshll.u32 %v1710, 8
  %v1751 = vmul.u32.u64.compose %v1750, %v1749
  %v1752 = vextract.low.u32 %v1751
  %v1753 = vextract.high.u32 %v1751
  %v1754 = vmul.u32.u64.compose %v1750, %v1745
  %v1755 = vextract.low.u32 %v1754
  %v1756 = vextract.high.u32 %v1754
  %v1757 = vmul.u32 %v1750, %v1741
  %v1758 = vadd.s32 %v1753, %v1755
  %vm1759 = vc.u32 %v1753, %v1755
  %v1760 = vadd.s32 %v1756, 1
  %v1761 = vsel %vm1759, %v1760, %v1756
  %v1762 = vadd.s32 %v1757, %v1761
  %v1763 = vadd.s32 %v1762, 536870912
  %v1764 = vshrl.u32 %v1763, 30
  %v1765 = vshll.u32 %v1764, 30
  %v1766 = vsub.s32 %v1762, %v1765
  %vm1767 = vcmp.lt.s32.totalorder %v1766, 0
  %v1768 = vsub.s32 0, %v1766
  %v1769 = vsel %vm1767, %v1768, %v1766
  %v1770 = vclz %v1769
  %v1771 = vsub.s32 %v1770, 2
  %vm1772 = vcmp.gt.s32.totalorder 0, %v1771
  %v1773 = vsel %vm1772, 0, %v1771
  %v1774 = vsub.s32 32, %v1773
  %v1775 = vshll.u32 %v1766, %v1773
  %v1776 = vshrl.u32 %v1758, %v1774
  %v1777 = vor.u32 %v1775, %v1776
  %v1778 = vsub.s32 4294967266, %v1773
  %v1779 = vadd.s32 %v1778, 127
  %v1780 = vshll.u32 %v1779, 23
  %v1781 = vor.u32 4788187, %v1780
  %v1782 = vand.u32 2147483647, %v1781
  %v1784 = vcvt.s32.f32 %v1777
  %v1785 = vmul.f32 %v1784, %v1782
  %v1786 = vxor.u32 %v1785, 2147483648
  %v1787 = vsel %vm1704, %v1786, %v1785
  %v1788 = vsub.s32 4, %v1764
  %v1789 = vsel %vm1704, %v1788, %v1764
  %v1790 = vsel %vm1703, %v1482, %v1787
  %v1791 = vsel %vm1703, 0, %v1789
  %v1792 = vcosq.f32.pop %v1790
  %v1793 = vsinq.f32.pop %v1790
  %vm1794 = vweird.f32 %v1482
  %v1795 = vand.u32 %v1791, 3
  %vm1796 = vcmp.lt.s32.totalorder %v1795, 2
  %vm1797 = vcmp.eq.s32.totalorder %v1795, 0
  %v1798 = vxor.u32 %v1793, 2147483648
  %v1799 = vsel %vm1797, %v1792, %v1798
  %vm1800 = vcmp.eq.s32.totalorder %v1795, 2
  %v1801 = vxor.u32 %v1792, 2147483648
  %v1802 = vsel %vm1800, %v1801, %v1793
  %v1803 = vsel %vm1796, %v1799, %v1802
  %v1804 = vsel %vm1794, nan, %v1803
  %v1805 = vand.u32 2147483647, %v1483
  %vm1806 = vcmp.le.f32.partialorder %v1805, 0.7853982
  %vm1807 = vcmp.lt.s32.totalorder %v1483, 0
  %v1808 = vand.u32 %v1483, 2139095040
  %v1809 = vshrl.u32 %v1808, 23
  %v1810 = vsub.s32 %v1809, 127
  %v1811 = vand.u32 2147483647, %v1483
  %v1812 = vand.u32 %v1811, 8388607
  %v1813 = vor.u32 %v1812, 8388608
  %v1814 = vsub.s32 0, %v1813
  %v1815 = vadd.s32 %v1810, 1
  %vm1816 = vcmp.gt.s32.totalorder %v1815, 0
  %v1817 = vsel %vm1816, %v1815, 0
  %v1818 = vshrl.u32 %v1817, 5
  %v1819 = vand.u32 %v1817, 31
  %v1820 = vsub.s32 32, %v1819
  %v1821 = vshrl.u32 683565275, %v1820
  %v1822 = vshll.u32 683565275, %v1819
  %v1823 = vshrl.u32 2475754826, %v1820
  %v1824 = vor.u32 %v1822, %v1823
  %v1825 = vshll.u32 2475754826, %v1819
  %v1826 = vshrl.u32 2131351028, %v1820
  %v1827 = vor.u32 %v1825, %v1826
  %v1828 = vshll.u32 2131351028, %v1819
  %v1829 = vshrl.u32 2102212464, %v1820
  %v1830 = vor.u32 %v1828, %v1829
  %v1831 = vshll.u32 2102212464, %v1819
  %v1832 = vshrl.u32 920167782, %v1820
  %v1833 = vor.u32 %v1831, %v1832
  %v1834 = vshll.u32 920167782, %v1819
  %v1835 = vshrl.u32 1326507024, %v1820
  %v1836 = vor.u32 %v1834, %v1835
  %vm1837 = vcmp.lt.s32.totalorder %v1818, 1
  %vm1838 = vcmp.lt.s32.totalorder %v1818, 2
  %vm1839 = vcmp.lt.s32.totalorder %v1818, 3
  %vm1840 = vcmp.lt.s32.totalorder %v1818, 4
  %v1841 = vsel %vm1837, %v1821, %v1824
  %v1842 = vsel %vm1840, %v1830, 2102212464
  %v1843 = vsel %vm1839, %v1827, %v1842
  %v1844 = vsel %vm1838, %v1841, %v1843
  %v1845 = vsel %vm1837, %v1824, %v1827
  %v1846 = vsel %vm1840, %v1833, 920167782
  %v1847 = vsel %vm1839, %v1830, %v1846
  %v1848 = vsel %vm1838, %v1845, %v1847
  %v1849 = vsel %vm1837, %v1827, %v1830
  %v1850 = vsel %vm1840, %v1836, 1326507024
  %v1851 = vsel %vm1839, %v1833, %v1850
  %v1852 = vsel %vm1838, %v1849, %v1851
  %v1853 = vshll.u32 %v1813, 8
  %v1854 = vmul.u32.u64.compose %v1853, %v1852
  %v1855 = vextract.low.u32 %v1854
  %v1856 = vextract.high.u32 %v1854
  %v1857 = vmul.u32.u64.compose %v1853, %v1848
  %v1858 = vextract.low.u32 %v1857
  %v1859 = vextract.high.u32 %v1857
  %v1860 = vmul.u32 %v1853, %v1844
  %v1861 = vadd.s32 %v1856, %v1858
  %vm1862 = vc.u32 %v1856, %v1858
  %v1863 = vadd.s32 %v1859, 1
  %v1864 = vsel %vm1862, %v1863, %v1859
  %v1865 = vadd.s32 %v1860, %v1864
  %v1866 = vadd.s32 %v1865, 536870912
  %v1867 = vshrl.u32 %v1866, 30
  %v1868 = vshll.u32 %v1867, 30
  %v1869 = vsub.s32 %v1865, %v1868
  %vm1870 = vcmp.lt.s32.totalorder %v1869, 0
  %v1871 = vsub.s32 0, %v1869
  %v1872 = vsel %vm1870, %v1871, %v1869
  %v1873 = vclz %v1872
  %v1874 = vsub.s32 %v1873, 2
  %vm1875 = vcmp.gt.s32.totalorder 0, %v1874
  %v1876 = vsel %vm1875, 0, %v1874
  %v1877 = vsub.s32 32, %v1876
  %v1878 = vshll.u32 %v1869, %v1876
  %v1879 = vshrl.u32 %v1861, %v1877
  %v1880 = vor.u32 %v1878, %v1879
  %v1881 = vsub.s32 4294967266, %v1876
  %v1882 = vadd.s32 %v1881, 127
  %v1883 = vshll.u32 %v1882, 23
  %v1884 = vor.u32 4788187, %v1883
  %v1885 = vand.u32 2147483647, %v1884
  %v1887 = vcvt.s32.f32 %v1880
  %v1888 = vmul.f32 %v1887, %v1885
  %v1889 = vxor.u32 %v1888, 2147483648
  %v1890 = vsel %vm1807, %v1889, %v1888
  %v1891 = vsub.s32 4, %v1867
  %v1892 = vsel %vm1807, %v1891, %v1867
  %v1893 = vsel %vm1806, %v1483, %v1890
  %v1894 = vsel %vm1806, 0, %v1892
  %v1895 = vcosq.f32.pop %v1893
  %v1896 = vsinq.f32.pop %v1893
  %vm1897 = vweird.f32 %v1483
  %v1898 = vand.u32 %v1894, 3
  %vm1899 = vcmp.lt.s32.totalorder %v1898, 2
  %vm1900 = vcmp.eq.s32.totalorder %v1898, 0
  %v1901 = vxor.u32 %v1896, 2147483648
  %v1902 = vsel %vm1900, %v1895, %v1901
  %vm1903 = vcmp.eq.s32.totalorder %v1898, 2
  %v1904 = vxor.u32 %v1895, 2147483648
  %v1905 = vsel %vm1903, %v1904, %v1896
  %v1906 = vsel %vm1899, %v1902, %v1905
  %v1907 = vsel %vm1897, nan, %v1906
  %v1908 = vand.u32 2147483647, %v1484
  %vm1909 = vcmp.le.f32.partialorder %v1908, 0.7853982
  %vm1910 = vcmp.lt.s32.totalorder %v1484, 0
  %v1911 = vand.u32 %v1484, 2139095040
  %v1912 = vshrl.u32 %v1911, 23
  %v1913 = vsub.s32 %v1912, 127
  %v1914 = vand.u32 2147483647, %v1484
  %v1915 = vand.u32 %v1914, 8388607
  %v1916 = vor.u32 %v1915, 8388608
  %v1917 = vsub.s32 0, %v1916
  %v1918 = vadd.s32 %v1913, 1
  %vm1919 = vcmp.gt.s32.totalorder %v1918, 0
  %v1920 = vsel %vm1919, %v1918, 0
  %v1921 = vshrl.u32 %v1920, 5
  %v1922 = vand.u32 %v1920, 31
  %v1923 = vsub.s32 32, %v1922
  %v1924 = vshrl.u32 683565275, %v1923
  %v1925 = vshll.u32 683565275, %v1922
  %v1926 = vshrl.u32 2475754826, %v1923
  %v1927 = vor.u32 %v1925, %v1926
  %v1928 = vshll.u32 2475754826, %v1922
  %v1929 = vshrl.u32 2131351028, %v1923
  %v1930 = vor.u32 %v1928, %v1929
  %v1931 = vshll.u32 2131351028, %v1922
  %v1932 = vshrl.u32 2102212464, %v1923
  %v1933 = vor.u32 %v1931, %v1932
  %v1934 = vshll.u32 2102212464, %v1922
  %v1935 = vshrl.u32 920167782, %v1923
  %v1936 = vor.u32 %v1934, %v1935
  %v1937 = vshll.u32 920167782, %v1922
  %v1938 = vshrl.u32 1326507024, %v1923
  %v1939 = vor.u32 %v1937, %v1938
  %vm1940 = vcmp.lt.s32.totalorder %v1921, 1
  %vm1941 = vcmp.lt.s32.totalorder %v1921, 2
  %vm1942 = vcmp.lt.s32.totalorder %v1921, 3
  %vm1943 = vcmp.lt.s32.totalorder %v1921, 4
  %v1944 = vsel %vm1940, %v1924, %v1927
  %v1945 = vsel %vm1943, %v1933, 2102212464
  %v1946 = vsel %vm1942, %v1930, %v1945
  %v1947 = vsel %vm1941, %v1944, %v1946
  %v1948 = vsel %vm1940, %v1927, %v1930
  %v1949 = vsel %vm1943, %v1936, 920167782
  %v1950 = vsel %vm1942, %v1933, %v1949
  %v1951 = vsel %vm1941, %v1948, %v1950
  %v1952 = vsel %vm1940, %v1930, %v1933
  %v1953 = vsel %vm1943, %v1939, 1326507024
  %v1954 = vsel %vm1942, %v1936, %v1953
  %v1955 = vsel %vm1941, %v1952, %v1954
  %v1956 = vshll.u32 %v1916, 8
  %v1957 = vmul.u32.u64.compose %v1956, %v1955
  %v1958 = vextract.low.u32 %v1957
  %v1959 = vextract.high.u32 %v1957
  %v1960 = vmul.u32.u64.compose %v1956, %v1951
  %v1961 = vextract.low.u32 %v1960
  %v1962 = vextract.high.u32 %v1960
  %v1963 = vmul.u32 %v1956, %v1947
  %v1964 = vadd.s32 %v1959, %v1961
  %vm1965 = vc.u32 %v1959, %v1961
  %v1966 = vadd.s32 %v1962, 1
  %v1967 = vsel %vm1965, %v1966, %v1962
  %v1968 = vadd.s32 %v1963, %v1967
  %v1969 = vadd.s32 %v1968, 536870912
  %v1970 = vshrl.u32 %v1969, 30
  %v1971 = vshll.u32 %v1970, 30
  %v1972 = vsub.s32 %v1968, %v1971
  %vm1973 = vcmp.lt.s32.totalorder %v1972, 0
  %v1974 = vsub.s32 0, %v1972
  %v1975 = vsel %vm1973, %v1974, %v1972
  %v1976 = vclz %v1975
  %v1977 = vsub.s32 %v1976, 2
  %vm1978 = vcmp.gt.s32.totalorder 0, %v1977
  %v1979 = vsel %vm1978, 0, %v1977
  %v1980 = vsub.s32 32, %v1979
  %v1981 = vshll.u32 %v1972, %v1979
  %v1982 = vshrl.u32 %v1964, %v1980
  %v1983 = vor.u32 %v1981, %v1982
  %v1984 = vsub.s32 4294967266, %v1979
  %v1985 = vadd.s32 %v1984, 127
  %v1986 = vshll.u32 %v1985, 23
  %v1987 = vor.u32 4788187, %v1986
  %v1988 = vand.u32 2147483647, %v1987
  %v1990 = vcvt.s32.f32 %v1983
  %v1991 = vmul.f32 %v1990, %v1988
  %v1992 = vxor.u32 %v1991, 2147483648
  %v1993 = vsel %vm1910, %v1992, %v1991
  %v1994 = vsub.s32 4, %v1970
  %v1995 = vsel %vm1910, %v1994, %v1970
  %v1996 = vsel %vm1909, %v1484, %v1993
  %v1997 = vsel %vm1909, 0, %v1995
  %v1998 = vcosq.f32.pop %v1996
  %v1999 = vsinq.f32.pop %v1996
  %vm2000 = vweird.f32 %v1484
  %v2001 = vand.u32 %v1997, 3
  %vm2002 = vcmp.lt.s32.totalorder %v2001, 2
  %vm2003 = vcmp.eq.s32.totalorder %v2001, 0
  %v2004 = vxor.u32 %v1999, 2147483648
  %v2005 = vsel %vm2003, %v1998, %v2004
  %vm2006 = vcmp.eq.s32.totalorder %v2001, 2
  %v2007 = vxor.u32 %v1998, 2147483648
  %v2008 = vsel %vm2006, %v2007, %v1999
  %v2009 = vsel %vm2002, %v2005, %v2008
  %v2010 = vsel %vm2000, nan, %v2009
  %v2011 = vand.u32 2147483647, %v1485
  %vm2012 = vcmp.le.f32.partialorder %v2011, 0.7853982
  %vm2013 = vcmp.lt.s32.totalorder %v1485, 0
  %v2014 = vand.u32 %v1485, 2139095040
  %v2015 = vshrl.u32 %v2014, 23
  %v2016 = vsub.s32 %v2015, 127
  %v2017 = vand.u32 2147483647, %v1485
  %v2018 = vand.u32 %v2017, 8388607
  %v2019 = vor.u32 %v2018, 8388608
  %v2020 = vsub.s32 0, %v2019
  %v2021 = vadd.s32 %v2016, 1
  %vm2022 = vcmp.gt.s32.totalorder %v2021, 0
  %v2023 = vsel %vm2022, %v2021, 0
  %v2024 = vshrl.u32 %v2023, 5
  %v2025 = vand.u32 %v2023, 31
  %v2026 = vsub.s32 32, %v2025
  %v2027 = vshrl.u32 683565275, %v2026
  %v2028 = vshll.u32 683565275, %v2025
  %v2029 = vshrl.u32 2475754826, %v2026
  %v2030 = vor.u32 %v2028, %v2029
  %v2031 = vshll.u32 2475754826, %v2025
  %v2032 = vshrl.u32 2131351028, %v2026
  %v2033 = vor.u32 %v2031, %v2032
  %v2034 = vshll.u32 2131351028, %v2025
  %v2035 = vshrl.u32 2102212464, %v2026
  %v2036 = vor.u32 %v2034, %v2035
  %v2037 = vshll.u32 2102212464, %v2025
  %v2038 = vshrl.u32 920167782, %v2026
  %v2039 = vor.u32 %v2037, %v2038
  %v2040 = vshll.u32 920167782, %v2025
  %v2041 = vshrl.u32 1326507024, %v2026
  %v2042 = vor.u32 %v2040, %v2041
  %vm2043 = vcmp.lt.s32.totalorder %v2024, 1
  %vm2044 = vcmp.lt.s32.totalorder %v2024, 2
  %vm2045 = vcmp.lt.s32.totalorder %v2024, 3
  %vm2046 = vcmp.lt.s32.totalorder %v2024, 4
  %v2047 = vsel %vm2043, %v2027, %v2030
  %v2048 = vsel %vm2046, %v2036, 2102212464
  %v2049 = vsel %vm2045, %v2033, %v2048
  %v2050 = vsel %vm2044, %v2047, %v2049
  %v2051 = vsel %vm2043, %v2030, %v2033
  %v2052 = vsel %vm2046, %v2039, 920167782
  %v2053 = vsel %vm2045, %v2036, %v2052
  %v2054 = vsel %vm2044, %v2051, %v2053
  %v2055 = vsel %vm2043, %v2033, %v2036
  %v2056 = vsel %vm2046, %v2042, 1326507024
  %v2057 = vsel %vm2045, %v2039, %v2056
  %v2058 = vsel %vm2044, %v2055, %v2057
  %v2059 = vshll.u32 %v2019, 8
  %v2060 = vmul.u32.u64.compose %v2059, %v2058
  %v2061 = vextract.low.u32 %v2060
  %v2062 = vextract.high.u32 %v2060
  %v2063 = vmul.u32.u64.compose %v2059, %v2054
  %v2064 = vextract.low.u32 %v2063
  %v2065 = vextract.high.u32 %v2063
  %v2066 = vmul.u32 %v2059, %v2050
  %v2067 = vadd.s32 %v2062, %v2064
  %vm2068 = vc.u32 %v2062, %v2064
  %v2069 = vadd.s32 %v2065, 1
  %v2070 = vsel %vm2068, %v2069, %v2065
  %v2071 = vadd.s32 %v2066, %v2070
  %v2072 = vadd.s32 %v2071, 536870912
  %v2073 = vshrl.u32 %v2072, 30
  %v2074 = vshll.u32 %v2073, 30
  %v2075 = vsub.s32 %v2071, %v2074
  %vm2076 = vcmp.lt.s32.totalorder %v2075, 0
  %v2077 = vsub.s32 0, %v2075
  %v2078 = vsel %vm2076, %v2077, %v2075
  %v2079 = vclz %v2078
  %v2080 = vsub.s32 %v2079, 2
  %vm2081 = vcmp.gt.s32.totalorder 0, %v2080
  %v2082 = vsel %vm2081, 0, %v2080
  %v2083 = vsub.s32 32, %v2082
  %v2084 = vshll.u32 %v2075, %v2082
  %v2085 = vshrl.u32 %v2067, %v2083
  %v2086 = vor.u32 %v2084, %v2085
  %v2087 = vsub.s32 4294967266, %v2082
  %v2088 = vadd.s32 %v2087, 127
  %v2089 = vshll.u32 %v2088, 23
  %v2090 = vor.u32 4788187, %v2089
  %v2091 = vand.u32 2147483647, %v2090
  %v2093 = vcvt.s32.f32 %v2086
  %v2094 = vmul.f32 %v2093, %v2091
  %v2095 = vxor.u32 %v2094, 2147483648
  %v2096 = vsel %vm2013, %v2095, %v2094
  %v2097 = vsub.s32 4, %v2073
  %v2098 = vsel %vm2013, %v2097, %v2073
  %v2099 = vsel %vm2012, %v1485, %v2096
  %v2100 = vsel %vm2012, 0, %v2098
  %v2101 = vcosq.f32.pop %v2099
  %v2102 = vsinq.f32.pop %v2099
  %vm2103 = vweird.f32 %v1485
  %v2104 = vand.u32 %v2100, 3
  %vm2105 = vcmp.lt.s32.totalorder %v2104, 2
  %vm2106 = vcmp.eq.s32.totalorder %v2104, 0
  %v2107 = vxor.u32 %v2102, 2147483648
  %v2108 = vsel %vm2106, %v2101, %v2107
  %vm2109 = vcmp.eq.s32.totalorder %v2104, 2
  %v2110 = vxor.u32 %v2101, 2147483648
  %v2111 = vsel %vm2109, %v2110, %v2102
  %v2112 = vsel %vm2105, %v2108, %v2111
  %v2113 = vsel %vm2103, nan, %v2112
  %v2114 = vand.u32 2147483647, %v1486
  %vm2115 = vcmp.le.f32.partialorder %v2114, 0.7853982
  %vm2116 = vcmp.lt.s32.totalorder %v1486, 0
  %v2117 = vand.u32 %v1486, 2139095040
  %v2118 = vshrl.u32 %v2117, 23
  %v2119 = vsub.s32 %v2118, 127
  %v2120 = vand.u32 2147483647, %v1486
  %v2121 = vand.u32 %v2120, 8388607
  %v2122 = vor.u32 %v2121, 8388608
  %v2123 = vsub.s32 0, %v2122
  %v2124 = vadd.s32 %v2119, 1
  %vm2125 = vcmp.gt.s32.totalorder %v2124, 0
  %v2126 = vsel %vm2125, %v2124, 0
  %v2127 = vshrl.u32 %v2126, 5
  %v2128 = vand.u32 %v2126, 31
  %v2129 = vsub.s32 32, %v2128
  %v2130 = vshrl.u32 683565275, %v2129
  %v2131 = vshll.u32 683565275, %v2128
  %v2132 = vshrl.u32 2475754826, %v2129
  %v2133 = vor.u32 %v2131, %v2132
  %v2134 = vshll.u32 2475754826, %v2128
  %v2135 = vshrl.u32 2131351028, %v2129
  %v2136 = vor.u32 %v2134, %v2135
  %v2137 = vshll.u32 2131351028, %v2128
  %v2138 = vshrl.u32 2102212464, %v2129
  %v2139 = vor.u32 %v2137, %v2138
  %v2140 = vshll.u32 2102212464, %v2128
  %v2141 = vshrl.u32 920167782, %v2129
  %v2142 = vor.u32 %v2140, %v2141
  %v2143 = vshll.u32 920167782, %v2128
  %v2144 = vshrl.u32 1326507024, %v2129
  %v2145 = vor.u32 %v2143, %v2144
  %vm2146 = vcmp.lt.s32.totalorder %v2127, 1
  %vm2147 = vcmp.lt.s32.totalorder %v2127, 2
  %vm2148 = vcmp.lt.s32.totalorder %v2127, 3
  %vm2149 = vcmp.lt.s32.totalorder %v2127, 4
  %v2150 = vsel %vm2146, %v2130, %v2133
  %v2151 = vsel %vm2149, %v2139, 2102212464
  %v2152 = vsel %vm2148, %v2136, %v2151
  %v2153 = vsel %vm2147, %v2150, %v2152
  %v2154 = vsel %vm2146, %v2133, %v2136
  %v2155 = vsel %vm2149, %v2142, 920167782
  %v2156 = vsel %vm2148, %v2139, %v2155
  %v2157 = vsel %vm2147, %v2154, %v2156
  %v2158 = vsel %vm2146, %v2136, %v2139
  %v2159 = vsel %vm2149, %v2145, 1326507024
  %v2160 = vsel %vm2148, %v2142, %v2159
  %v2161 = vsel %vm2147, %v2158, %v2160
  %v2162 = vshll.u32 %v2122, 8
  %v2163 = vmul.u32.u64.compose %v2162, %v2161
  %v2164 = vextract.low.u32 %v2163
  %v2165 = vextract.high.u32 %v2163
  %v2166 = vmul.u32.u64.compose %v2162, %v2157
  %v2167 = vextract.low.u32 %v2166
  %v2168 = vextract.high.u32 %v2166
  %v2169 = vmul.u32 %v2162, %v2153
  %v2170 = vadd.s32 %v2165, %v2167
  %vm2171 = vc.u32 %v2165, %v2167
  %v2172 = vadd.s32 %v2168, 1
  %v2173 = vsel %vm2171, %v2172, %v2168
  %v2174 = vadd.s32 %v2169, %v2173
  %v2175 = vadd.s32 %v2174, 536870912
  %v2176 = vshrl.u32 %v2175, 30
  %v2177 = vshll.u32 %v2176, 30
  %v2178 = vsub.s32 %v2174, %v2177
  %vm2179 = vcmp.lt.s32.totalorder %v2178, 0
  %v2180 = vsub.s32 0, %v2178
  %v2181 = vsel %vm2179, %v2180, %v2178
  %v2182 = vclz %v2181
  %v2183 = vsub.s32 %v2182, 2
  %vm2184 = vcmp.gt.s32.totalorder 0, %v2183
  %v2185 = vsel %vm2184, 0, %v2183
  %v2186 = vsub.s32 32, %v2185
  %v2187 = vshll.u32 %v2178, %v2185
  %v2188 = vshrl.u32 %v2170, %v2186
  %v2189 = vor.u32 %v2187, %v2188
  %v2190 = vsub.s32 4294967266, %v2185
  %v2191 = vadd.s32 %v2190, 127
  %v2192 = vshll.u32 %v2191, 23
  %v2193 = vor.u32 4788187, %v2192
  %v2194 = vand.u32 2147483647, %v2193
  %v2196 = vcvt.s32.f32 %v2189
  %v2197 = vmul.f32 %v2196, %v2194
  %v2198 = vxor.u32 %v2197, 2147483648
  %v2199 = vsel %vm2116, %v2198, %v2197
  %v2200 = vsub.s32 4, %v2176
  %v2201 = vsel %vm2116, %v2200, %v2176
  %v2202 = vsel %vm2115, %v1486, %v2199
  %v2203 = vsel %vm2115, 0, %v2201
  %v2204 = vcosq.f32.pop %v2202
  %v2205 = vsinq.f32.pop %v2202
  %vm2206 = vweird.f32 %v1486
  %v2207 = vand.u32 %v2203, 3
  %vm2208 = vcmp.lt.s32.totalorder %v2207, 2
  %vm2209 = vcmp.eq.s32.totalorder %v2207, 0
  %v2210 = vxor.u32 %v2205, 2147483648
  %v2211 = vsel %vm2209, %v2204, %v2210
  %vm2212 = vcmp.eq.s32.totalorder %v2207, 2
  %v2213 = vxor.u32 %v2204, 2147483648
  %v2214 = vsel %vm2212, %v2213, %v2205
  %v2215 = vsel %vm2208, %v2211, %v2214
  %v2216 = vsel %vm2206, nan, %v2215
  %v2217 = vand.u32 2147483647, %v1487
  %vm2218 = vcmp.le.f32.partialorder %v2217, 0.7853982
  %vm2219 = vcmp.lt.s32.totalorder %v1487, 0
  %v2220 = vand.u32 %v1487, 2139095040
  %v2221 = vshrl.u32 %v2220, 23
  %v2222 = vsub.s32 %v2221, 127
  %v2223 = vand.u32 2147483647, %v1487
  %v2224 = vand.u32 %v2223, 8388607
  %v2225 = vor.u32 %v2224, 8388608
  %v2226 = vsub.s32 0, %v2225
  %v2227 = vadd.s32 %v2222, 1
  %vm2228 = vcmp.gt.s32.totalorder %v2227, 0
  %v2229 = vsel %vm2228, %v2227, 0
  %v2230 = vshrl.u32 %v2229, 5
  %v2231 = vand.u32 %v2229, 31
  %v2232 = vsub.s32 32, %v2231
  %v2233 = vshrl.u32 683565275, %v2232
  %v2234 = vshll.u32 683565275, %v2231
  %v2235 = vshrl.u32 2475754826, %v2232
  %v2236 = vor.u32 %v2234, %v2235
  %v2237 = vshll.u32 2475754826, %v2231
  %v2238 = vshrl.u32 2131351028, %v2232
  %v2239 = vor.u32 %v2237, %v2238
  %v2240 = vshll.u32 2131351028, %v2231
  %v2241 = vshrl.u32 2102212464, %v2232
  %v2242 = vor.u32 %v2240, %v2241
  %v2243 = vshll.u32 2102212464, %v2231
  %v2244 = vshrl.u32 920167782, %v2232
  %v2245 = vor.u32 %v2243, %v2244
  %v2246 = vshll.u32 920167782, %v2231
  %v2247 = vshrl.u32 1326507024, %v2232
  %v2248 = vor.u32 %v2246, %v2247
  %vm2249 = vcmp.lt.s32.totalorder %v2230, 1
  %vm2250 = vcmp.lt.s32.totalorder %v2230, 2
  %vm2251 = vcmp.lt.s32.totalorder %v2230, 3
  %vm2252 = vcmp.lt.s32.totalorder %v2230, 4
  %v2253 = vsel %vm2249, %v2233, %v2236
  %v2254 = vsel %vm2252, %v2242, 2102212464
  %v2255 = vsel %vm2251, %v2239, %v2254
  %v2256 = vsel %vm2250, %v2253, %v2255
  %v2257 = vsel %vm2249, %v2236, %v2239
  %v2258 = vsel %vm2252, %v2245, 920167782
  %v2259 = vsel %vm2251, %v2242, %v2258
  %v2260 = vsel %vm2250, %v2257, %v2259
  %v2261 = vsel %vm2249, %v2239, %v2242
  %v2262 = vsel %vm2252, %v2248, 1326507024
  %v2263 = vsel %vm2251, %v2245, %v2262
  %v2264 = vsel %vm2250, %v2261, %v2263
  %v2265 = vshll.u32 %v2225, 8
  %v2266 = vmul.u32.u64.compose %v2265, %v2264
  %v2267 = vextract.low.u32 %v2266
  %v2268 = vextract.high.u32 %v2266
  %v2269 = vmul.u32.u64.compose %v2265, %v2260
  %v2270 = vextract.low.u32 %v2269
  %v2271 = vextract.high.u32 %v2269
  %v2272 = vmul.u32 %v2265, %v2256
  %v2273 = vadd.s32 %v2268, %v2270
  %vm2274 = vc.u32 %v2268, %v2270
  %v2275 = vadd.s32 %v2271, 1
  %v2276 = vsel %vm2274, %v2275, %v2271
  %v2277 = vadd.s32 %v2272, %v2276
  %v2278 = vadd.s32 %v2277, 536870912
  %v2279 = vshrl.u32 %v2278, 30
  %v2280 = vshll.u32 %v2279, 30
  %v2281 = vsub.s32 %v2277, %v2280
  %vm2282 = vcmp.lt.s32.totalorder %v2281, 0
  %v2283 = vsub.s32 0, %v2281
  %v2284 = vsel %vm2282, %v2283, %v2281
  %v2285 = vclz %v2284
  %v2286 = vsub.s32 %v2285, 2
  %vm2287 = vcmp.gt.s32.totalorder 0, %v2286
  %v2288 = vsel %vm2287, 0, %v2286
  %v2289 = vsub.s32 32, %v2288
  %v2290 = vshll.u32 %v2281, %v2288
  %v2291 = vshrl.u32 %v2273, %v2289
  %v2292 = vor.u32 %v2290, %v2291
  %v2293 = vsub.s32 4294967266, %v2288
  %v2294 = vadd.s32 %v2293, 127
  %v2295 = vshll.u32 %v2294, 23
  %v2296 = vor.u32 4788187, %v2295
  %v2297 = vand.u32 2147483647, %v2296
  %v2299 = vcvt.s32.f32 %v2292
  %v2300 = vmul.f32 %v2299, %v2297
  %v2301 = vxor.u32 %v2300, 2147483648
  %v2302 = vsel %vm2219, %v2301, %v2300
  %v2303 = vsub.s32 4, %v2279
  %v2304 = vsel %vm2219, %v2303, %v2279
  %v2305 = vsel %vm2218, %v1487, %v2302
  %v2306 = vsel %vm2218, 0, %v2304
  %v2307 = vcosq.f32.pop %v2305
  %v2308 = vsinq.f32.pop %v2305
  %vm2309 = vweird.f32 %v1487
  %v2310 = vand.u32 %v2306, 3
  %vm2311 = vcmp.lt.s32.totalorder %v2310, 2
  %vm2312 = vcmp.eq.s32.totalorder %v2310, 0
  %v2313 = vxor.u32 %v2308, 2147483648
  %v2314 = vsel %vm2312, %v2307, %v2313
  %vm2315 = vcmp.eq.s32.totalorder %v2310, 2
  %v2316 = vxor.u32 %v2307, 2147483648
  %v2317 = vsel %vm2315, %v2316, %v2308
  %v2318 = vsel %vm2311, %v2314, %v2317
  %v2319 = vsel %vm2309, nan, %v2318
  %v2320 = vand.u32 2147483647, %v1488
  %vm2321 = vcmp.le.f32.partialorder %v2320, 0.7853982
  %vm2322 = vcmp.lt.s32.totalorder %v1488, 0
  %v2323 = vand.u32 %v1488, 2139095040
  %v2324 = vshrl.u32 %v2323, 23
  %v2325 = vsub.s32 %v2324, 127
  %v2326 = vand.u32 2147483647, %v1488
  %v2327 = vand.u32 %v2326, 8388607
  %v2328 = vor.u32 %v2327, 8388608
  %v2329 = vsub.s32 0, %v2328
  %v2330 = vadd.s32 %v2325, 1
  %vm2331 = vcmp.gt.s32.totalorder %v2330, 0
  %v2332 = vsel %vm2331, %v2330, 0
  %v2333 = vshrl.u32 %v2332, 5
  %v2334 = vand.u32 %v2332, 31
  %v2335 = vsub.s32 32, %v2334
  %v2336 = vshrl.u32 683565275, %v2335
  %v2337 = vshll.u32 683565275, %v2334
  %v2338 = vshrl.u32 2475754826, %v2335
  %v2339 = vor.u32 %v2337, %v2338
  %v2340 = vshll.u32 2475754826, %v2334
  %v2341 = vshrl.u32 2131351028, %v2335
  %v2342 = vor.u32 %v2340, %v2341
  %v2343 = vshll.u32 2131351028, %v2334
  %v2344 = vshrl.u32 2102212464, %v2335
  %v2345 = vor.u32 %v2343, %v2344
  %v2346 = vshll.u32 2102212464, %v2334
  %v2347 = vshrl.u32 920167782, %v2335
  %v2348 = vor.u32 %v2346, %v2347
  %v2349 = vshll.u32 920167782, %v2334
  %v2350 = vshrl.u32 1326507024, %v2335
  %v2351 = vor.u32 %v2349, %v2350
  %vm2352 = vcmp.lt.s32.totalorder %v2333, 1
  %vm2353 = vcmp.lt.s32.totalorder %v2333, 2
  %vm2354 = vcmp.lt.s32.totalorder %v2333, 3
  %vm2355 = vcmp.lt.s32.totalorder %v2333, 4
  %v2356 = vsel %vm2352, %v2336, %v2339
  %v2357 = vsel %vm2355, %v2345, 2102212464
  %v2358 = vsel %vm2354, %v2342, %v2357
  %v2359 = vsel %vm2353, %v2356, %v2358
  %v2360 = vsel %vm2352, %v2339, %v2342
  %v2361 = vsel %vm2355, %v2348, 920167782
  %v2362 = vsel %vm2354, %v2345, %v2361
  %v2363 = vsel %vm2353, %v2360, %v2362
  %v2364 = vsel %vm2352, %v2342, %v2345
  %v2365 = vsel %vm2355, %v2351, 1326507024
  %v2366 = vsel %vm2354, %v2348, %v2365
  %v2367 = vsel %vm2353, %v2364, %v2366
  %v2368 = vshll.u32 %v2328, 8
  %v2369 = vmul.u32.u64.compose %v2368, %v2367
  %v2370 = vextract.low.u32 %v2369
  %v2371 = vextract.high.u32 %v2369
  %v2372 = vmul.u32.u64.compose %v2368, %v2363
  %v2373 = vextract.low.u32 %v2372
  %v2374 = vextract.high.u32 %v2372
  %v2375 = vmul.u32 %v2368, %v2359
  %v2376 = vadd.s32 %v2371, %v2373
  %vm2377 = vc.u32 %v2371, %v2373
  %v2378 = vadd.s32 %v2374, 1
  %v2379 = vsel %vm2377, %v2378, %v2374
  %v2380 = vadd.s32 %v2375, %v2379
  %v2381 = vadd.s32 %v2380, 536870912
  %v2382 = vshrl.u32 %v2381, 30
  %v2383 = vshll.u32 %v2382, 30
  %v2384 = vsub.s32 %v2380, %v2383
  %vm2385 = vcmp.lt.s32.totalorder %v2384, 0
  %v2386 = vsub.s32 0, %v2384
  %v2387 = vsel %vm2385, %v2386, %v2384
  %v2388 = vclz %v2387
  %v2389 = vsub.s32 %v2388, 2
  %vm2390 = vcmp.gt.s32.totalorder 0, %v2389
  %v2391 = vsel %vm2390, 0, %v2389
  %v2392 = vsub.s32 32, %v2391
  %v2393 = vshll.u32 %v2384, %v2391
  %v2394 = vshrl.u32 %v2376, %v2392
  %v2395 = vor.u32 %v2393, %v2394
  %v2396 = vsub.s32 4294967266, %v2391
  %v2397 = vadd.s32 %v2396, 127
  %v2398 = vshll.u32 %v2397, 23
  %v2399 = vor.u32 4788187, %v2398
  %v2400 = vand.u32 2147483647, %v2399
  %v2402 = vcvt.s32.f32 %v2395
  %v2403 = vmul.f32 %v2402, %v2400
  %v2404 = vxor.u32 %v2403, 2147483648
  %v2405 = vsel %vm2322, %v2404, %v2403
  %v2406 = vsub.s32 4, %v2382
  %v2407 = vsel %vm2322, %v2406, %v2382
  %v2408 = vsel %vm2321, %v1488, %v2405
  %v2409 = vsel %vm2321, 0, %v2407
  %v2410 = vcosq.f32.pop %v2408
  %v2411 = vsinq.f32.pop %v2408
  %vm2412 = vweird.f32 %v1488
  %v2413 = vand.u32 %v2409, 3
  %vm2414 = vcmp.lt.s32.totalorder %v2413, 2
  %vm2415 = vcmp.eq.s32.totalorder %v2413, 0
  %v2416 = vxor.u32 %v2411, 2147483648
  %v2417 = vsel %vm2415, %v2410, %v2416
  %vm2418 = vcmp.eq.s32.totalorder %v2413, 2
  %v2419 = vxor.u32 %v2410, 2147483648
  %v2420 = vsel %vm2418, %v2419, %v2411
  %v2421 = vsel %vm2414, %v2417, %v2420
  %v2422 = vsel %vm2412, nan, %v2421
  %v2423 = vand.u32 2147483647, %v1489
  %vm2424 = vcmp.le.f32.partialorder %v2423, 0.7853982
  %vm2425 = vcmp.lt.s32.totalorder %v1489, 0
  %v2426 = vand.u32 %v1489, 2139095040
  %v2427 = vshrl.u32 %v2426, 23
  %v2428 = vsub.s32 %v2427, 127
  %v2429 = vand.u32 2147483647, %v1489
  %v2430 = vand.u32 %v2429, 8388607
  %v2431 = vor.u32 %v2430, 8388608
  %v2432 = vsub.s32 0, %v2431
  %v2433 = vadd.s32 %v2428, 1
  %vm2434 = vcmp.gt.s32.totalorder %v2433, 0
  %v2435 = vsel %vm2434, %v2433, 0
  %v2436 = vshrl.u32 %v2435, 5
  %v2437 = vand.u32 %v2435, 31
  %v2438 = vsub.s32 32, %v2437
  %v2439 = vshrl.u32 683565275, %v2438
  %v2440 = vshll.u32 683565275, %v2437
  %v2441 = vshrl.u32 2475754826, %v2438
  %v2442 = vor.u32 %v2440, %v2441
  %v2443 = vshll.u32 2475754826, %v2437
  %v2444 = vshrl.u32 2131351028, %v2438
  %v2445 = vor.u32 %v2443, %v2444
  %v2446 = vshll.u32 2131351028, %v2437
  %v2447 = vshrl.u32 2102212464, %v2438
  %v2448 = vor.u32 %v2446, %v2447
  %v2449 = vshll.u32 2102212464, %v2437
  %v2450 = vshrl.u32 920167782, %v2438
  %v2451 = vor.u32 %v2449, %v2450
  %v2452 = vshll.u32 920167782, %v2437
  %v2453 = vshrl.u32 1326507024, %v2438
  %v2454 = vor.u32 %v2452, %v2453
  %vm2455 = vcmp.lt.s32.totalorder %v2436, 1
  %vm2456 = vcmp.lt.s32.totalorder %v2436, 2
  %vm2457 = vcmp.lt.s32.totalorder %v2436, 3
  %vm2458 = vcmp.lt.s32.totalorder %v2436, 4
  %v2459 = vsel %vm2455, %v2439, %v2442
  %v2460 = vsel %vm2458, %v2448, 2102212464
  %v2461 = vsel %vm2457, %v2445, %v2460
  %v2462 = vsel %vm2456, %v2459, %v2461
  %v2463 = vsel %vm2455, %v2442, %v2445
  %v2464 = vsel %vm2458, %v2451, 920167782
  %v2465 = vsel %vm2457, %v2448, %v2464
  %v2466 = vsel %vm2456, %v2463, %v2465
  %v2467 = vsel %vm2455, %v2445, %v2448
  %v2468 = vsel %vm2458, %v2454, 1326507024
  %v2469 = vsel %vm2457, %v2451, %v2468
  %v2470 = vsel %vm2456, %v2467, %v2469
  %v2471 = vshll.u32 %v2431, 8
  %v2472 = vmul.u32.u64.compose %v2471, %v2470
  %v2473 = vextract.low.u32 %v2472
  %v2474 = vextract.high.u32 %v2472
  %v2475 = vmul.u32.u64.compose %v2471, %v2466
  %v2476 = vextract.low.u32 %v2475
  %v2477 = vextract.high.u32 %v2475
  %v2478 = vmul.u32 %v2471, %v2462
  %v2479 = vadd.s32 %v2474, %v2476
  %vm2480 = vc.u32 %v2474, %v2476
  %v2481 = vadd.s32 %v2477, 1
  %v2482 = vsel %vm2480, %v2481, %v2477
  %v2483 = vadd.s32 %v2478, %v2482
  %v2484 = vadd.s32 %v2483, 536870912
  %v2485 = vshrl.u32 %v2484, 30
  %v2486 = vshll.u32 %v2485, 30
  %v2487 = vsub.s32 %v2483, %v2486
  %vm2488 = vcmp.lt.s32.totalorder %v2487, 0
  %v2489 = vsub.s32 0, %v2487
  %v2490 = vsel %vm2488, %v2489, %v2487
  %v2491 = vclz %v2490
  %v2492 = vsub.s32 %v2491, 2
  %vm2493 = vcmp.gt.s32.totalorder 0, %v2492
  %v2494 = vsel %vm2493, 0, %v2492
  %v2495 = vsub.s32 32, %v2494
  %v2496 = vshll.u32 %v2487, %v2494
  %v2497 = vshrl.u32 %v2479, %v2495
  %v2498 = vor.u32 %v2496, %v2497
  %v2499 = vsub.s32 4294967266, %v2494
  %v2500 = vadd.s32 %v2499, 127
  %v2501 = vshll.u32 %v2500, 23
  %v2502 = vor.u32 4788187, %v2501
  %v2503 = vand.u32 2147483647, %v2502
  %v2505 = vcvt.s32.f32 %v2498
  %v2506 = vmul.f32 %v2505, %v2503
  %v2507 = vxor.u32 %v2506, 2147483648
  %v2508 = vsel %vm2425, %v2507, %v2506
  %v2509 = vsub.s32 4, %v2485
  %v2510 = vsel %vm2425, %v2509, %v2485
  %v2511 = vsel %vm2424, %v1489, %v2508
  %v2512 = vsel %vm2424, 0, %v2510
  %v2513 = vcosq.f32.pop %v2511
  %v2514 = vsinq.f32.pop %v2511
  %vm2515 = vweird.f32 %v1489
  %v2516 = vand.u32 %v2512, 3
  %vm2517 = vcmp.lt.s32.totalorder %v2516, 2
  %vm2518 = vcmp.eq.s32.totalorder %v2516, 0
  %v2519 = vxor.u32 %v2514, 2147483648
  %v2520 = vsel %vm2518, %v2513, %v2519
  %vm2521 = vcmp.eq.s32.totalorder %v2516, 2
  %v2522 = vxor.u32 %v2513, 2147483648
  %v2523 = vsel %vm2521, %v2522, %v2514
  %v2524 = vsel %vm2517, %v2520, %v2523
  %v2525 = vsel %vm2515, nan, %v2524
  %v2526 = vand.u32 2147483647, %v1490
  %vm2527 = vcmp.le.f32.partialorder %v2526, 0.7853982
  %vm2528 = vcmp.lt.s32.totalorder %v1490, 0
  %v2529 = vand.u32 %v1490, 2139095040
  %v2530 = vshrl.u32 %v2529, 23
  %v2531 = vsub.s32 %v2530, 127
  %v2532 = vand.u32 2147483647, %v1490
  %v2533 = vand.u32 %v2532, 8388607
  %v2534 = vor.u32 %v2533, 8388608
  %v2535 = vsub.s32 0, %v2534
  %v2536 = vadd.s32 %v2531, 1
  %vm2537 = vcmp.gt.s32.totalorder %v2536, 0
  %v2538 = vsel %vm2537, %v2536, 0
  %v2539 = vshrl.u32 %v2538, 5
  %v2540 = vand.u32 %v2538, 31
  %v2541 = vsub.s32 32, %v2540
  %v2542 = vshrl.u32 683565275, %v2541
  %v2543 = vshll.u32 683565275, %v2540
  %v2544 = vshrl.u32 2475754826, %v2541
  %v2545 = vor.u32 %v2543, %v2544
  %v2546 = vshll.u32 2475754826, %v2540
  %v2547 = vshrl.u32 2131351028, %v2541
  %v2548 = vor.u32 %v2546, %v2547
  %v2549 = vshll.u32 2131351028, %v2540
  %v2550 = vshrl.u32 2102212464, %v2541
  %v2551 = vor.u32 %v2549, %v2550
  %v2552 = vshll.u32 2102212464, %v2540
  %v2553 = vshrl.u32 920167782, %v2541
  %v2554 = vor.u32 %v2552, %v2553
  %v2555 = vshll.u32 920167782, %v2540
  %v2556 = vshrl.u32 1326507024, %v2541
  %v2557 = vor.u32 %v2555, %v2556
  %vm2558 = vcmp.lt.s32.totalorder %v2539, 1
  %vm2559 = vcmp.lt.s32.totalorder %v2539, 2
  %vm2560 = vcmp.lt.s32.totalorder %v2539, 3
  %vm2561 = vcmp.lt.s32.totalorder %v2539, 4
  %v2562 = vsel %vm2558, %v2542, %v2545
  %v2563 = vsel %vm2561, %v2551, 2102212464
  %v2564 = vsel %vm2560, %v2548, %v2563
  %v2565 = vsel %vm2559, %v2562, %v2564
  %v2566 = vsel %vm2558, %v2545, %v2548
  %v2567 = vsel %vm2561, %v2554, 920167782
  %v2568 = vsel %vm2560, %v2551, %v2567
  %v2569 = vsel %vm2559, %v2566, %v2568
  %v2570 = vsel %vm2558, %v2548, %v2551
  %v2571 = vsel %vm2561, %v2557, 1326507024
  %v2572 = vsel %vm2560, %v2554, %v2571
  %v2573 = vsel %vm2559, %v2570, %v2572
  %v2574 = vshll.u32 %v2534, 8
  %v2575 = vmul.u32.u64.compose %v2574, %v2573
  %v2576 = vextract.low.u32 %v2575
  %v2577 = vextract.high.u32 %v2575
  %v2578 = vmul.u32.u64.compose %v2574, %v2569
  %v2579 = vextract.low.u32 %v2578
  %v2580 = vextract.high.u32 %v2578
  %v2581 = vmul.u32 %v2574, %v2565
  %v2582 = vadd.s32 %v2577, %v2579
  %vm2583 = vc.u32 %v2577, %v2579
  %v2584 = vadd.s32 %v2580, 1
  %v2585 = vsel %vm2583, %v2584, %v2580
  %v2586 = vadd.s32 %v2581, %v2585
  %v2587 = vadd.s32 %v2586, 536870912
  %v2588 = vshrl.u32 %v2587, 30
  %v2589 = vshll.u32 %v2588, 30
  %v2590 = vsub.s32 %v2586, %v2589
  %vm2591 = vcmp.lt.s32.totalorder %v2590, 0
  %v2592 = vsub.s32 0, %v2590
  %v2593 = vsel %vm2591, %v2592, %v2590
  %v2594 = vclz %v2593
  %v2595 = vsub.s32 %v2594, 2
  %vm2596 = vcmp.gt.s32.totalorder 0, %v2595
  %v2597 = vsel %vm2596, 0, %v2595
  %v2598 = vsub.s32 32, %v2597
  %v2599 = vshll.u32 %v2590, %v2597
  %v2600 = vshrl.u32 %v2582, %v2598
  %v2601 = vor.u32 %v2599, %v2600
  %v2602 = vsub.s32 4294967266, %v2597
  %v2603 = vadd.s32 %v2602, 127
  %v2604 = vshll.u32 %v2603, 23
  %v2605 = vor.u32 4788187, %v2604
  %v2606 = vand.u32 2147483647, %v2605
  %v2608 = vcvt.s32.f32 %v2601
  %v2609 = vmul.f32 %v2608, %v2606
  %v2610 = vxor.u32 %v2609, 2147483648
  %v2611 = vsel %vm2528, %v2610, %v2609
  %v2612 = vsub.s32 4, %v2588
  %v2613 = vsel %vm2528, %v2612, %v2588
  %v2614 = vsel %vm2527, %v1490, %v2611
  %v2615 = vsel %vm2527, 0, %v2613
  %v2616 = vcosq.f32.pop %v2614
  %v2617 = vsinq.f32.pop %v2614
  %vm2618 = vweird.f32 %v1490
  %v2619 = vand.u32 %v2615, 3
  %vm2620 = vcmp.lt.s32.totalorder %v2619, 2
  %vm2621 = vcmp.eq.s32.totalorder %v2619, 0
  %v2622 = vxor.u32 %v2617, 2147483648
  %v2623 = vsel %vm2621, %v2616, %v2622
  %vm2624 = vcmp.eq.s32.totalorder %v2619, 2
  %v2625 = vxor.u32 %v2616, 2147483648
  %v2626 = vsel %vm2624, %v2625, %v2617
  %v2627 = vsel %vm2620, %v2623, %v2626
  %v2628 = vsel %vm2618, nan, %v2627
  %v2629 = vand.u32 2147483647, %v1491
  %vm2630 = vcmp.le.f32.partialorder %v2629, 0.7853982
  %vm2631 = vcmp.lt.s32.totalorder %v1491, 0
  %v2632 = vand.u32 %v1491, 2139095040
  %v2633 = vshrl.u32 %v2632, 23
  %v2634 = vsub.s32 %v2633, 127
  %v2635 = vand.u32 2147483647, %v1491
  %v2636 = vand.u32 %v2635, 8388607
  %v2637 = vor.u32 %v2636, 8388608
  %v2638 = vsub.s32 0, %v2637
  %v2639 = vadd.s32 %v2634, 1
  %vm2640 = vcmp.gt.s32.totalorder %v2639, 0
  %v2641 = vsel %vm2640, %v2639, 0
  %v2642 = vshrl.u32 %v2641, 5
  %v2643 = vand.u32 %v2641, 31
  %v2644 = vsub.s32 32, %v2643
  %v2645 = vshrl.u32 683565275, %v2644
  %v2646 = vshll.u32 683565275, %v2643
  %v2647 = vshrl.u32 2475754826, %v2644
  %v2648 = vor.u32 %v2646, %v2647
  %v2649 = vshll.u32 2475754826, %v2643
  %v2650 = vshrl.u32 2131351028, %v2644
  %v2651 = vor.u32 %v2649, %v2650
  %v2652 = vshll.u32 2131351028, %v2643
  %v2653 = vshrl.u32 2102212464, %v2644
  %v2654 = vor.u32 %v2652, %v2653
  %v2655 = vshll.u32 2102212464, %v2643
  %v2656 = vshrl.u32 920167782, %v2644
  %v2657 = vor.u32 %v2655, %v2656
  %v2658 = vshll.u32 920167782, %v2643
  %v2659 = vshrl.u32 1326507024, %v2644
  %v2660 = vor.u32 %v2658, %v2659
  %vm2661 = vcmp.lt.s32.totalorder %v2642, 1
  %vm2662 = vcmp.lt.s32.totalorder %v2642, 2
  %vm2663 = vcmp.lt.s32.totalorder %v2642, 3
  %vm2664 = vcmp.lt.s32.totalorder %v2642, 4
  %v2665 = vsel %vm2661, %v2645, %v2648
  %v2666 = vsel %vm2664, %v2654, 2102212464
  %v2667 = vsel %vm2663, %v2651, %v2666
  %v2668 = vsel %vm2662, %v2665, %v2667
  %v2669 = vsel %vm2661, %v2648, %v2651
  %v2670 = vsel %vm2664, %v2657, 920167782
  %v2671 = vsel %vm2663, %v2654, %v2670
  %v2672 = vsel %vm2662, %v2669, %v2671
  %v2673 = vsel %vm2661, %v2651, %v2654
  %v2674 = vsel %vm2664, %v2660, 1326507024
  %v2675 = vsel %vm2663, %v2657, %v2674
  %v2676 = vsel %vm2662, %v2673, %v2675
  %v2677 = vshll.u32 %v2637, 8
  %v2678 = vmul.u32.u64.compose %v2677, %v2676
  %v2679 = vextract.low.u32 %v2678
  %v2680 = vextract.high.u32 %v2678
  %v2681 = vmul.u32.u64.compose %v2677, %v2672
  %v2682 = vextract.low.u32 %v2681
  %v2683 = vextract.high.u32 %v2681
  %v2684 = vmul.u32 %v2677, %v2668
  %v2685 = vadd.s32 %v2680, %v2682
  %vm2686 = vc.u32 %v2680, %v2682
  %v2687 = vadd.s32 %v2683, 1
  %v2688 = vsel %vm2686, %v2687, %v2683
  %v2689 = vadd.s32 %v2684, %v2688
  %v2690 = vadd.s32 %v2689, 536870912
  %v2691 = vshrl.u32 %v2690, 30
  %v2692 = vshll.u32 %v2691, 30
  %v2693 = vsub.s32 %v2689, %v2692
  %vm2694 = vcmp.lt.s32.totalorder %v2693, 0
  %v2695 = vsub.s32 0, %v2693
  %v2696 = vsel %vm2694, %v2695, %v2693
  %v2697 = vclz %v2696
  %v2698 = vsub.s32 %v2697, 2
  %vm2699 = vcmp.gt.s32.totalorder 0, %v2698
  %v2700 = vsel %vm2699, 0, %v2698
  %v2701 = vsub.s32 32, %v2700
  %v2702 = vshll.u32 %v2693, %v2700
  %v2703 = vshrl.u32 %v2685, %v2701
  %v2704 = vor.u32 %v2702, %v2703
  %v2705 = vsub.s32 4294967266, %v2700
  %v2706 = vadd.s32 %v2705, 127
  %v2707 = vshll.u32 %v2706, 23
  %v2708 = vor.u32 4788187, %v2707
  %v2709 = vand.u32 2147483647, %v2708
  %v2711 = vcvt.s32.f32 %v2704
  %v2712 = vmul.f32 %v2711, %v2709
  %v2713 = vxor.u32 %v2712, 2147483648
  %v2714 = vsel %vm2631, %v2713, %v2712
  %v2715 = vsub.s32 4, %v2691
  %v2716 = vsel %vm2631, %v2715, %v2691
  %v2717 = vsel %vm2630, %v1491, %v2714
  %v2718 = vsel %vm2630, 0, %v2716
  %v2719 = vcosq.f32.pop %v2717
  %v2720 = vsinq.f32.pop %v2717
  %vm2721 = vweird.f32 %v1491
  %v2722 = vand.u32 %v2718, 3
  %vm2723 = vcmp.lt.s32.totalorder %v2722, 2
  %vm2724 = vcmp.eq.s32.totalorder %v2722, 0
  %v2725 = vxor.u32 %v2720, 2147483648
  %v2726 = vsel %vm2724, %v2719, %v2725
  %vm2727 = vcmp.eq.s32.totalorder %v2722, 2
  %v2728 = vxor.u32 %v2719, 2147483648
  %v2729 = vsel %vm2727, %v2728, %v2720
  %v2730 = vsel %vm2723, %v2726, %v2729
  %v2731 = vsel %vm2721, nan, %v2730
  %v2732 = vand.u32 2147483647, %v1492
  %vm2733 = vcmp.le.f32.partialorder %v2732, 0.7853982
  %vm2734 = vcmp.lt.s32.totalorder %v1492, 0
  %v2735 = vand.u32 %v1492, 2139095040
  %v2736 = vshrl.u32 %v2735, 23
  %v2737 = vsub.s32 %v2736, 127
  %v2738 = vand.u32 2147483647, %v1492
  %v2739 = vand.u32 %v2738, 8388607
  %v2740 = vor.u32 %v2739, 8388608
  %v2741 = vsub.s32 0, %v2740
  %v2742 = vadd.s32 %v2737, 1
  %vm2743 = vcmp.gt.s32.totalorder %v2742, 0
  %v2744 = vsel %vm2743, %v2742, 0
  %v2745 = vshrl.u32 %v2744, 5
  %v2746 = vand.u32 %v2744, 31
  %v2747 = vsub.s32 32, %v2746
  %v2748 = vshrl.u32 683565275, %v2747
  %v2749 = vshll.u32 683565275, %v2746
  %v2750 = vshrl.u32 2475754826, %v2747
  %v2751 = vor.u32 %v2749, %v2750
  %v2752 = vshll.u32 2475754826, %v2746
  %v2753 = vshrl.u32 2131351028, %v2747
  %v2754 = vor.u32 %v2752, %v2753
  %v2755 = vshll.u32 2131351028, %v2746
  %v2756 = vshrl.u32 2102212464, %v2747
  %v2757 = vor.u32 %v2755, %v2756
  %v2758 = vshll.u32 2102212464, %v2746
  %v2759 = vshrl.u32 920167782, %v2747
  %v2760 = vor.u32 %v2758, %v2759
  %v2761 = vshll.u32 920167782, %v2746
  %v2762 = vshrl.u32 1326507024, %v2747
  %v2763 = vor.u32 %v2761, %v2762
  %vm2764 = vcmp.lt.s32.totalorder %v2745, 1
  %vm2765 = vcmp.lt.s32.totalorder %v2745, 2
  %vm2766 = vcmp.lt.s32.totalorder %v2745, 3
  %vm2767 = vcmp.lt.s32.totalorder %v2745, 4
  %v2768 = vsel %vm2764, %v2748, %v2751
  %v2769 = vsel %vm2767, %v2757, 2102212464
  %v2770 = vsel %vm2766, %v2754, %v2769
  %v2771 = vsel %vm2765, %v2768, %v2770
  %v2772 = vsel %vm2764, %v2751, %v2754
  %v2773 = vsel %vm2767, %v2760, 920167782
  %v2774 = vsel %vm2766, %v2757, %v2773
  %v2775 = vsel %vm2765, %v2772, %v2774
  %v2776 = vsel %vm2764, %v2754, %v2757
  %v2777 = vsel %vm2767, %v2763, 1326507024
  %v2778 = vsel %vm2766, %v2760, %v2777
  %v2779 = vsel %vm2765, %v2776, %v2778
  %v2780 = vshll.u32 %v2740, 8
  %v2781 = vmul.u32.u64.compose %v2780, %v2779
  %v2782 = vextract.low.u32 %v2781
  %v2783 = vextract.high.u32 %v2781
  %v2784 = vmul.u32.u64.compose %v2780, %v2775
  %v2785 = vextract.low.u32 %v2784
  %v2786 = vextract.high.u32 %v2784
  %v2787 = vmul.u32 %v2780, %v2771
  %v2788 = vadd.s32 %v2783, %v2785
  %vm2789 = vc.u32 %v2783, %v2785
  %v2790 = vadd.s32 %v2786, 1
  %v2791 = vsel %vm2789, %v2790, %v2786
  %v2792 = vadd.s32 %v2787, %v2791
  %v2793 = vadd.s32 %v2792, 536870912
  %v2794 = vshrl.u32 %v2793, 30
  %v2795 = vshll.u32 %v2794, 30
  %v2796 = vsub.s32 %v2792, %v2795
  %vm2797 = vcmp.lt.s32.totalorder %v2796, 0
  %v2798 = vsub.s32 0, %v2796
  %v2799 = vsel %vm2797, %v2798, %v2796
  %v2800 = vclz %v2799
  %v2801 = vsub.s32 %v2800, 2
  %vm2802 = vcmp.gt.s32.totalorder 0, %v2801
  %v2803 = vsel %vm2802, 0, %v2801
  %v2804 = vsub.s32 32, %v2803
  %v2805 = vshll.u32 %v2796, %v2803
  %v2806 = vshrl.u32 %v2788, %v2804
  %v2807 = vor.u32 %v2805, %v2806
  %v2808 = vsub.s32 4294967266, %v2803
  %v2809 = vadd.s32 %v2808, 127
  %v2810 = vshll.u32 %v2809, 23
  %v2811 = vor.u32 4788187, %v2810
  %v2812 = vand.u32 2147483647, %v2811
  %v2814 = vcvt.s32.f32 %v2807
  %v2815 = vmul.f32 %v2814, %v2812
  %v2816 = vxor.u32 %v2815, 2147483648
  %v2817 = vsel %vm2734, %v2816, %v2815
  %v2818 = vsub.s32 4, %v2794
  %v2819 = vsel %vm2734, %v2818, %v2794
  %v2820 = vsel %vm2733, %v1492, %v2817
  %v2821 = vsel %vm2733, 0, %v2819
  %v2822 = vcosq.f32.pop %v2820
  %v2823 = vsinq.f32.pop %v2820
  %vm2824 = vweird.f32 %v1492
  %v2825 = vand.u32 %v2821, 3
  %vm2826 = vcmp.lt.s32.totalorder %v2825, 2
  %vm2827 = vcmp.eq.s32.totalorder %v2825, 0
  %v2828 = vxor.u32 %v2823, 2147483648
  %v2829 = vsel %vm2827, %v2822, %v2828
  %vm2830 = vcmp.eq.s32.totalorder %v2825, 2
  %v2831 = vxor.u32 %v2822, 2147483648
  %v2832 = vsel %vm2830, %v2831, %v2823
  %v2833 = vsel %vm2826, %v2829, %v2832
  %v2834 = vsel %vm2824, nan, %v2833
  %v2835 = vand.u32 2147483647, %v1493
  %vm2836 = vcmp.le.f32.partialorder %v2835, 0.7853982
  %vm2837 = vcmp.lt.s32.totalorder %v1493, 0
  %v2838 = vand.u32 %v1493, 2139095040
  %v2839 = vshrl.u32 %v2838, 23
  %v2840 = vsub.s32 %v2839, 127
  %v2841 = vand.u32 2147483647, %v1493
  %v2842 = vand.u32 %v2841, 8388607
  %v2843 = vor.u32 %v2842, 8388608
  %v2844 = vsub.s32 0, %v2843
  %v2845 = vadd.s32 %v2840, 1
  %vm2846 = vcmp.gt.s32.totalorder %v2845, 0
  %v2847 = vsel %vm2846, %v2845, 0
  %v2848 = vshrl.u32 %v2847, 5
  %v2849 = vand.u32 %v2847, 31
  %v2850 = vsub.s32 32, %v2849
  %v2851 = vshrl.u32 683565275, %v2850
  %v2852 = vshll.u32 683565275, %v2849
  %v2853 = vshrl.u32 2475754826, %v2850
  %v2854 = vor.u32 %v2852, %v2853
  %v2855 = vshll.u32 2475754826, %v2849
  %v2856 = vshrl.u32 2131351028, %v2850
  %v2857 = vor.u32 %v2855, %v2856
  %v2858 = vshll.u32 2131351028, %v2849
  %v2859 = vshrl.u32 2102212464, %v2850
  %v2860 = vor.u32 %v2858, %v2859
  %v2861 = vshll.u32 2102212464, %v2849
  %v2862 = vshrl.u32 920167782, %v2850
  %v2863 = vor.u32 %v2861, %v2862
  %v2864 = vshll.u32 920167782, %v2849
  %v2865 = vshrl.u32 1326507024, %v2850
  %v2866 = vor.u32 %v2864, %v2865
  %vm2867 = vcmp.lt.s32.totalorder %v2848, 1
  %vm2868 = vcmp.lt.s32.totalorder %v2848, 2
  %vm2869 = vcmp.lt.s32.totalorder %v2848, 3
  %vm2870 = vcmp.lt.s32.totalorder %v2848, 4
  %v2871 = vsel %vm2867, %v2851, %v2854
  %v2872 = vsel %vm2870, %v2860, 2102212464
  %v2873 = vsel %vm2869, %v2857, %v2872
  %v2874 = vsel %vm2868, %v2871, %v2873
  %v2875 = vsel %vm2867, %v2854, %v2857
  %v2876 = vsel %vm2870, %v2863, 920167782
  %v2877 = vsel %vm2869, %v2860, %v2876
  %v2878 = vsel %vm2868, %v2875, %v2877
  %v2879 = vsel %vm2867, %v2857, %v2860
  %v2880 = vsel %vm2870, %v2866, 1326507024
  %v2881 = vsel %vm2869, %v2863, %v2880
  %v2882 = vsel %vm2868, %v2879, %v2881
  %v2883 = vshll.u32 %v2843, 8
  %v2884 = vmul.u32.u64.compose %v2883, %v2882
  %v2885 = vextract.low.u32 %v2884
  %v2886 = vextract.high.u32 %v2884
  %v2887 = vmul.u32.u64.compose %v2883, %v2878
  %v2888 = vextract.low.u32 %v2887
  %v2889 = vextract.high.u32 %v2887
  %v2890 = vmul.u32 %v2883, %v2874
  %v2891 = vadd.s32 %v2886, %v2888
  %vm2892 = vc.u32 %v2886, %v2888
  %v2893 = vadd.s32 %v2889, 1
  %v2894 = vsel %vm2892, %v2893, %v2889
  %v2895 = vadd.s32 %v2890, %v2894
  %v2896 = vadd.s32 %v2895, 536870912
  %v2897 = vshrl.u32 %v2896, 30
  %v2898 = vshll.u32 %v2897, 30
  %v2899 = vsub.s32 %v2895, %v2898
  %vm2900 = vcmp.lt.s32.totalorder %v2899, 0
  %v2901 = vsub.s32 0, %v2899
  %v2902 = vsel %vm2900, %v2901, %v2899
  %v2903 = vclz %v2902
  %v2904 = vsub.s32 %v2903, 2
  %vm2905 = vcmp.gt.s32.totalorder 0, %v2904
  %v2906 = vsel %vm2905, 0, %v2904
  %v2907 = vsub.s32 32, %v2906
  %v2908 = vshll.u32 %v2899, %v2906
  %v2909 = vshrl.u32 %v2891, %v2907
  %v2910 = vor.u32 %v2908, %v2909
  %v2911 = vsub.s32 4294967266, %v2906
  %v2912 = vadd.s32 %v2911, 127
  %v2913 = vshll.u32 %v2912, 23
  %v2914 = vor.u32 4788187, %v2913
  %v2915 = vand.u32 2147483647, %v2914
  %v2917 = vcvt.s32.f32 %v2910
  %v2918 = vmul.f32 %v2917, %v2915
  %v2919 = vxor.u32 %v2918, 2147483648
  %v2920 = vsel %vm2837, %v2919, %v2918
  %v2921 = vsub.s32 4, %v2897
  %v2922 = vsel %vm2837, %v2921, %v2897
  %v2923 = vsel %vm2836, %v1493, %v2920
  %v2924 = vsel %vm2836, 0, %v2922
  %v2925 = vcosq.f32.pop %v2923
  %v2926 = vsinq.f32.pop %v2923
  %vm2927 = vweird.f32 %v1493
  %v2928 = vand.u32 %v2924, 3
  %vm2929 = vcmp.lt.s32.totalorder %v2928, 2
  %vm2930 = vcmp.eq.s32.totalorder %v2928, 0
  %v2931 = vxor.u32 %v2926, 2147483648
  %v2932 = vsel %vm2930, %v2925, %v2931
  %vm2933 = vcmp.eq.s32.totalorder %v2928, 2
  %v2934 = vxor.u32 %v2925, 2147483648
  %v2935 = vsel %vm2933, %v2934, %v2926
  %v2936 = vsel %vm2929, %v2932, %v2935
  %v2937 = vsel %vm2927, nan, %v2936
  %v2938 = vand.u32 2147483647, %v1494
  %vm2939 = vcmp.le.f32.partialorder %v2938, 0.7853982
  %vm2940 = vcmp.lt.s32.totalorder %v1494, 0
  %v2941 = vand.u32 %v1494, 2139095040
  %v2942 = vshrl.u32 %v2941, 23
  %v2943 = vsub.s32 %v2942, 127
  %v2944 = vand.u32 2147483647, %v1494
  %v2945 = vand.u32 %v2944, 8388607
  %v2946 = vor.u32 %v2945, 8388608
  %v2947 = vsub.s32 0, %v2946
  %v2948 = vadd.s32 %v2943, 1
  %vm2949 = vcmp.gt.s32.totalorder %v2948, 0
  %v2950 = vsel %vm2949, %v2948, 0
  %v2951 = vshrl.u32 %v2950, 5
  %v2952 = vand.u32 %v2950, 31
  %v2953 = vsub.s32 32, %v2952
  %v2954 = vshrl.u32 683565275, %v2953
  %v2955 = vshll.u32 683565275, %v2952
  %v2956 = vshrl.u32 2475754826, %v2953
  %v2957 = vor.u32 %v2955, %v2956
  %v2958 = vshll.u32 2475754826, %v2952
  %v2959 = vshrl.u32 2131351028, %v2953
  %v2960 = vor.u32 %v2958, %v2959
  %v2961 = vshll.u32 2131351028, %v2952
  %v2962 = vshrl.u32 2102212464, %v2953
  %v2963 = vor.u32 %v2961, %v2962
  %v2964 = vshll.u32 2102212464, %v2952
  %v2965 = vshrl.u32 920167782, %v2953
  %v2966 = vor.u32 %v2964, %v2965
  %v2967 = vshll.u32 920167782, %v2952
  %v2968 = vshrl.u32 1326507024, %v2953
  %v2969 = vor.u32 %v2967, %v2968
  %vm2970 = vcmp.lt.s32.totalorder %v2951, 1
  %vm2971 = vcmp.lt.s32.totalorder %v2951, 2
  %vm2972 = vcmp.lt.s32.totalorder %v2951, 3
  %vm2973 = vcmp.lt.s32.totalorder %v2951, 4
  %v2974 = vsel %vm2970, %v2954, %v2957
  %v2975 = vsel %vm2973, %v2963, 2102212464
  %v2976 = vsel %vm2972, %v2960, %v2975
  %v2977 = vsel %vm2971, %v2974, %v2976
  %v2978 = vsel %vm2970, %v2957, %v2960
  %v2979 = vsel %vm2973, %v2966, 920167782
  %v2980 = vsel %vm2972, %v2963, %v2979
  %v2981 = vsel %vm2971, %v2978, %v2980
  %v2982 = vsel %vm2970, %v2960, %v2963
  %v2983 = vsel %vm2973, %v2969, 1326507024
  %v2984 = vsel %vm2972, %v2966, %v2983
  %v2985 = vsel %vm2971, %v2982, %v2984
  %v2986 = vshll.u32 %v2946, 8
  %v2987 = vmul.u32.u64.compose %v2986, %v2985
  %v2988 = vextract.low.u32 %v2987
  %v2989 = vextract.high.u32 %v2987
  %v2990 = vmul.u32.u64.compose %v2986, %v2981
  %v2991 = vextract.low.u32 %v2990
  %v2992 = vextract.high.u32 %v2990
  %v2993 = vmul.u32 %v2986, %v2977
  %v2994 = vadd.s32 %v2989, %v2991
  %vm2995 = vc.u32 %v2989, %v2991
  %v2996 = vadd.s32 %v2992, 1
  %v2997 = vsel %vm2995, %v2996, %v2992
  %v2998 = vadd.s32 %v2993, %v2997
  %v2999 = vadd.s32 %v2998, 536870912
  %v3000 = vshrl.u32 %v2999, 30
  %v3001 = vshll.u32 %v3000, 30
  %v3002 = vsub.s32 %v2998, %v3001
  %vm3003 = vcmp.lt.s32.totalorder %v3002, 0
  %v3004 = vsub.s32 0, %v3002
  %v3005 = vsel %vm3003, %v3004, %v3002
  %v3006 = vclz %v3005
  %v3007 = vsub.s32 %v3006, 2
  %vm3008 = vcmp.gt.s32.totalorder 0, %v3007
  %v3009 = vsel %vm3008, 0, %v3007
  %v3010 = vsub.s32 32, %v3009
  %v3011 = vshll.u32 %v3002, %v3009
  %v3012 = vshrl.u32 %v2994, %v3010
  %v3013 = vor.u32 %v3011, %v3012
  %v3014 = vsub.s32 4294967266, %v3009
  %v3015 = vadd.s32 %v3014, 127
  %v3016 = vshll.u32 %v3015, 23
  %v3017 = vor.u32 4788187, %v3016
  %v3018 = vand.u32 2147483647, %v3017
  %v3020 = vcvt.s32.f32 %v3013
  %v3021 = vmul.f32 %v3020, %v3018
  %v3022 = vxor.u32 %v3021, 2147483648
  %v3023 = vsel %vm2940, %v3022, %v3021
  %v3024 = vsub.s32 4, %v3000
  %v3025 = vsel %vm2940, %v3024, %v3000
  %v3026 = vsel %vm2939, %v1494, %v3023
  %v3027 = vsel %vm2939, 0, %v3025
  %v3028 = vcosq.f32.pop %v3026
  %v3029 = vsinq.f32.pop %v3026
  %vm3030 = vweird.f32 %v1494
  %v3031 = vand.u32 %v3027, 3
  %vm3032 = vcmp.lt.s32.totalorder %v3031, 2
  %vm3033 = vcmp.eq.s32.totalorder %v3031, 0
  %v3034 = vxor.u32 %v3029, 2147483648
  %v3035 = vsel %vm3033, %v3028, %v3034
  %vm3036 = vcmp.eq.s32.totalorder %v3031, 2
  %v3037 = vxor.u32 %v3028, 2147483648
  %v3038 = vsel %vm3036, %v3037, %v3029
  %v3039 = vsel %vm3032, %v3035, %v3038
  %v3040 = vsel %vm3030, nan, %v3039
  %v3041 = vand.u32 2147483647, %v1495
  %vm3042 = vcmp.le.f32.partialorder %v3041, 0.7853982
  %vm3043 = vcmp.lt.s32.totalorder %v1495, 0
  %v3044 = vand.u32 %v1495, 2139095040
  %v3045 = vshrl.u32 %v3044, 23
  %v3046 = vsub.s32 %v3045, 127
  %v3047 = vand.u32 2147483647, %v1495
  %v3048 = vand.u32 %v3047, 8388607
  %v3049 = vor.u32 %v3048, 8388608
  %v3050 = vsub.s32 0, %v3049
  %v3051 = vadd.s32 %v3046, 1
  %vm3052 = vcmp.gt.s32.totalorder %v3051, 0
  %v3053 = vsel %vm3052, %v3051, 0
  %v3054 = vshrl.u32 %v3053, 5
  %v3055 = vand.u32 %v3053, 31
  %v3056 = vsub.s32 32, %v3055
  %v3057 = vshrl.u32 683565275, %v3056
  %v3058 = vshll.u32 683565275, %v3055
  %v3059 = vshrl.u32 2475754826, %v3056
  %v3060 = vor.u32 %v3058, %v3059
  %v3061 = vshll.u32 2475754826, %v3055
  %v3062 = vshrl.u32 2131351028, %v3056
  %v3063 = vor.u32 %v3061, %v3062
  %v3064 = vshll.u32 2131351028, %v3055
  %v3065 = vshrl.u32 2102212464, %v3056
  %v3066 = vor.u32 %v3064, %v3065
  %v3067 = vshll.u32 2102212464, %v3055
  %v3068 = vshrl.u32 920167782, %v3056
  %v3069 = vor.u32 %v3067, %v3068
  %v3070 = vshll.u32 920167782, %v3055
  %v3071 = vshrl.u32 1326507024, %v3056
  %v3072 = vor.u32 %v3070, %v3071
  %vm3073 = vcmp.lt.s32.totalorder %v3054, 1
  %vm3074 = vcmp.lt.s32.totalorder %v3054, 2
  %vm3075 = vcmp.lt.s32.totalorder %v3054, 3
  %vm3076 = vcmp.lt.s32.totalorder %v3054, 4
  %v3077 = vsel %vm3073, %v3057, %v3060
  %v3078 = vsel %vm3076, %v3066, 2102212464
  %v3079 = vsel %vm3075, %v3063, %v3078
  %v3080 = vsel %vm3074, %v3077, %v3079
  %v3081 = vsel %vm3073, %v3060, %v3063
  %v3082 = vsel %vm3076, %v3069, 920167782
  %v3083 = vsel %vm3075, %v3066, %v3082
  %v3084 = vsel %vm3074, %v3081, %v3083
  %v3085 = vsel %vm3073, %v3063, %v3066
  %v3086 = vsel %vm3076, %v3072, 1326507024
  %v3087 = vsel %vm3075, %v3069, %v3086
  %v3088 = vsel %vm3074, %v3085, %v3087
  %v3089 = vshll.u32 %v3049, 8
  %v3090 = vmul.u32.u64.compose %v3089, %v3088
  %v3091 = vextract.low.u32 %v3090
  %v3092 = vextract.high.u32 %v3090
  %v3093 = vmul.u32.u64.compose %v3089, %v3084
  %v3094 = vextract.low.u32 %v3093
  %v3095 = vextract.high.u32 %v3093
  %v3096 = vmul.u32 %v3089, %v3080
  %v3097 = vadd.s32 %v3092, %v3094
  %vm3098 = vc.u32 %v3092, %v3094
  %v3099 = vadd.s32 %v3095, 1
  %v3100 = vsel %vm3098, %v3099, %v3095
  %v3101 = vadd.s32 %v3096, %v3100
  %v3102 = vadd.s32 %v3101, 536870912
  %v3103 = vshrl.u32 %v3102, 30
  %v3104 = vshll.u32 %v3103, 30
  %v3105 = vsub.s32 %v3101, %v3104
  %vm3106 = vcmp.lt.s32.totalorder %v3105, 0
  %v3107 = vsub.s32 0, %v3105
  %v3108 = vsel %vm3106, %v3107, %v3105
  %v3109 = vclz %v3108
  %v3110 = vsub.s32 %v3109, 2
  %vm3111 = vcmp.gt.s32.totalorder 0, %v3110
  %v3112 = vsel %vm3111, 0, %v3110
  %v3113 = vsub.s32 32, %v3112
  %v3114 = vshll.u32 %v3105, %v3112
  %v3115 = vshrl.u32 %v3097, %v3113
  %v3116 = vor.u32 %v3114, %v3115
  %v3117 = vsub.s32 4294967266, %v3112
  %v3118 = vadd.s32 %v3117, 127
  %v3119 = vshll.u32 %v3118, 23
  %v3120 = vor.u32 4788187, %v3119
  %v3121 = vand.u32 2147483647, %v3120
  %v3123 = vcvt.s32.f32 %v3116
  %v3124 = vmul.f32 %v3123, %v3121
  %v3125 = vxor.u32 %v3124, 2147483648
  %v3126 = vsel %vm3043, %v3125, %v3124
  %v3127 = vsub.s32 4, %v3103
  %v3128 = vsel %vm3043, %v3127, %v3103
  %v3129 = vsel %vm3042, %v1495, %v3126
  %v3130 = vsel %vm3042, 0, %v3128
  %v3131 = vcosq.f32.pop %v3129
  %v3132 = vsinq.f32.pop %v3129
  %vm3133 = vweird.f32 %v1495
  %v3134 = vand.u32 %v3130, 3
  %vm3135 = vcmp.lt.s32.totalorder %v3134, 2
  %vm3136 = vcmp.eq.s32.totalorder %v3134, 0
  %v3137 = vxor.u32 %v3132, 2147483648
  %v3138 = vsel %vm3136, %v3131, %v3137
  %vm3139 = vcmp.eq.s32.totalorder %v3134, 2
  %v3140 = vxor.u32 %v3131, 2147483648
  %v3141 = vsel %vm3139, %v3140, %v3132
  %v3142 = vsel %vm3135, %v3138, %v3141
  %v3143 = vsel %vm3133, nan, %v3142
  %v3144 = vadd.f32 %v1598, 1.0
  %v3145 = vadd.f32 %v1701, 1.0
  %v3146 = vadd.f32 %v1804, 1.0
  %v3147 = vadd.f32 %v1907, 1.0
  %v3148 = vadd.f32 %v2010, 1.0
  %v3149 = vadd.f32 %v2113, 1.0
  %v3150 = vadd.f32 %v2216, 1.0
  %v3151 = vadd.f32 %v2319, 1.0
  %v3152 = vadd.f32 %v2422, 1.0
  %v3153 = vadd.f32 %v2525, 1.0
  %v3154 = vadd.f32 %v2628, 1.0
  %v3155 = vadd.f32 %v2731, 1.0
  %v3156 = vadd.f32 %v2834, 1.0
  %v3157 = vadd.f32 %v2937, 1.0
  %v3158 = vadd.f32 %v3040, 1.0
  %v3159 = vadd.f32 %v3143, 1.0
  %v3160 = vmul.f32 %v3144, 0.5
  %v3161 = vmul.f32 %v3145, 0.5
  %v3162 = vmul.f32 %v3146, 0.5
  %v3163 = vmul.f32 %v3147, 0.5
  %v3164 = vmul.f32 %v3148, 0.5
  %v3165 = vmul.f32 %v3149, 0.5
  %v3166 = vmul.f32 %v3150, 0.5
  %v3167 = vmul.f32 %v3151, 0.5
  %v3168 = vmul.f32 %v3152, 0.5
  %v3169 = vmul.f32 %v3153, 0.5
  %v3170 = vmul.f32 %v3154, 0.5
  %v3171 = vmul.f32 %v3155, 0.5
  %v3172 = vmul.f32 %v3156, 0.5
  %v3173 = vmul.f32 %v3157, 0.5
  %v3174 = vmul.f32 %v3158, 0.5
  %v3175 = vmul.f32 %v3159, 0.5
  %vm3176 = vcmp.lt.f32.partialorder %v1447, 5.0
  %vm3177 = vcmp.lt.f32.partialorder %v1448, 5.0
  %vm3178 = vcmp.lt.f32.partialorder %v1449, 5.0
  %vm3179 = vcmp.lt.f32.partialorder %v1450, 5.0
  %vm3180 = vcmp.lt.f32.partialorder %v1451, 5.0
  %vm3181 = vcmp.lt.f32.partialorder %v1452, 5.0
  %vm3182 = vcmp.lt.f32.partialorder %v1453, 5.0
  %vm3183 = vcmp.lt.f32.partialorder %v1454, 5.0
  %vm3184 = vcmp.lt.f32.partialorder %v1455, 5.0
  %vm3185 = vcmp.lt.f32.partialorder %v1456, 5.0
  %vm3186 = vcmp.lt.f32.partialorder %v1457, 5.0
  %vm3187 = vcmp.lt.f32.partialorder %v1458, 5.0
  %vm3188 = vcmp.lt.f32.partialorder %v1459, 5.0
  %vm3189 = vcmp.lt.f32.partialorder %v1460, 5.0
  %vm3190 = vcmp.lt.f32.partialorder %v1461, 5.0
  %vm3191 = vcmp.lt.f32.partialorder %v1462, 5.0
  %v3192 = vsel %vm3176, 1, 0
  %v3193 = vsel %vm3177, 1, 0
  %v3194 = vsel %vm3178, 1, 0
  %v3195 = vsel %vm3179, 1, 0
  %v3196 = vsel %vm3180, 1, 0
  %v3197 = vsel %vm3181, 1, 0
  %v3198 = vsel %vm3182, 1, 0
  %v3199 = vsel %vm3183, 1, 0
  %v3200 = vsel %vm3184, 1, 0
  %v3201 = vsel %vm3185, 1, 0
  %v3202 = vsel %vm3186, 1, 0
  %v3203 = vsel %vm3187, 1, 0
  %v3204 = vsel %vm3188, 1, 0
  %v3205 = vsel %vm3189, 1, 0
  %v3206 = vsel %vm3190, 1, 0
  %v3207 = vsel %vm3191, 1, 0
  %v3208 = vcvt.s32.f32 %v3192
  %v3209 = vcvt.s32.f32 %v3193
  %v3210 = vcvt.s32.f32 %v3194
  %v3211 = vcvt.s32.f32 %v3195
  %v3212 = vcvt.s32.f32 %v3196
  %v3213 = vcvt.s32.f32 %v3197
  %v3214 = vcvt.s32.f32 %v3198
  %v3215 = vcvt.s32.f32 %v3199
  %v3216 = vcvt.s32.f32 %v3200
  %v3217 = vcvt.s32.f32 %v3201
  %v3218 = vcvt.s32.f32 %v3202
  %v3219 = vcvt.s32.f32 %v3203
  %v3220 = vcvt.s32.f32 %v3204
  %v3221 = vcvt.s32.f32 %v3205
  %v3222 = vcvt.s32.f32 %v3206
  %v3223 = vcvt.s32.f32 %v3207
  %v3224 = vmul.f32 %v3160, %v3208
  %v3225 = vmul.f32 %v3161, %v3209
  %v3226 = vmul.f32 %v3162, %v3210
  %v3227 = vmul.f32 %v3163, %v3211
  %v3228 = vmul.f32 %v3164, %v3212
  %v3229 = vmul.f32 %v3165, %v3213
  %v3230 = vmul.f32 %v3166, %v3214
  %v3231 = vmul.f32 %v3167, %v3215
  %v3232 = vmul.f32 %v3168, %v3216
  %v3233 = vmul.f32 %v3169, %v3217
  %v3234 = vmul.f32 %v3170, %v3218
  %v3235 = vmul.f32 %v3171, %v3219
  %v3236 = vmul.f32 %v3172, %v3220
  %v3237 = vmul.f32 %v3173, %v3221
  %v3238 = vmul.f32 %v3174, %v3222
  %v3239 = vmul.f32 %v3175, %v3223
  %3241 = vset.pattern.permute.xlu0 0
  %3242 = vperm.xlu0 %3241, %v3224
  %v3243 = vpop.permute.xlu0 %3242
  %3246 = vset.pattern.permute.xlu0 0
  %3247 = vperm.xlu0 %3246, %v3225
  %v3248 = vpop.permute.xlu0 %3247
  %3251 = vset.pattern.permute.xlu0 0
  %3252 = vperm.xlu0 %3251, %v3226
  %v3253 = vpop.permute.xlu0 %3252
  %3256 = vset.pattern.permute.xlu0 0
  %3257 = vperm.xlu0 %3256, %v3227
  %v3258 = vpop.permute.xlu0 %3257
  %3261 = vset.pattern.permute.xlu0 0
  %3262 = vperm.xlu0 %3261, %v3228
  %v3263 = vpop.permute.xlu0 %3262
  %3266 = vset.pattern.permute.xlu0 0
  %3267 = vperm.xlu0 %3266, %v3229
  %v3268 = vpop.permute.xlu0 %3267
  %3271 = vset.pattern.permute.xlu0 0
  %3272 = vperm.xlu0 %3271, %v3230
  %v3273 = vpop.permute.xlu0 %3272
  %3276 = vset.pattern.permute.xlu0 0
  %3277 = vperm.xlu0 %3276, %v3231
  %v3278 = vpop.permute.xlu0 %3277
  %3281 = vset.pattern.permute.xlu0 0
  %3282 = vperm.xlu0 %3281, %v3232
  %v3283 = vpop.permute.xlu0 %3282
  %3286 = vset.pattern.permute.xlu0 0
  %3287 = vperm.xlu0 %3286, %v3233
  %v3288 = vpop.permute.xlu0 %3287
  %3291 = vset.pattern.permute.xlu0 0
  %3292 = vperm.xlu0 %3291, %v3234
  %v3293 = vpop.permute.xlu0 %3292
  %3296 = vset.pattern.permute.xlu0 0
  %3297 = vperm.xlu0 %3296, %v3235
  %v3298 = vpop.permute.xlu0 %3297
  %3301 = vset.pattern.permute.xlu0 0
  %3302 = vperm.xlu0 %3301, %v3236
  %v3303 = vpop.permute.xlu0 %3302
  %3306 = vset.pattern.permute.xlu0 0
  %3307 = vperm.xlu0 %3306, %v3237
  %v3308 = vpop.permute.xlu0 %3307
  %3311 = vset.pattern.permute.xlu0 0
  %3312 = vperm.xlu0 %3311, %v3238
  %v3313 = vpop.permute.xlu0 %3312
  %3316 = vset.pattern.permute.xlu0 0
  %3317 = vperm.xlu0 %3316, %v3239
  %v3318 = vpop.permute.xlu0 %3317
  %v3320 = vmul.f32 %v1399, %v3243
  %v3321 = vmul.f32 %v1400, %v3243
  %v3322 = vmul.f32 %v1401, %v3243
  %v3323 = vmul.f32 %v1402, %v3248
  %v3324 = vmul.f32 %v1403, %v3248
  %v3325 = vmul.f32 %v1404, %v3248
  %v3326 = vmul.f32 %v1405, %v3253
  %v3327 = vmul.f32 %v1406, %v3253
  %v3328 = vmul.f32 %v1407, %v3253
  %v3329 = vmul.f32 %v1408, %v3258
  %v3330 = vmul.f32 %v1409, %v3258
  %v3331 = vmul.f32 %v1410, %v3258
  %v3332 = vmul.f32 %v1411, %v3263
  %v3333 = vmul.f32 %v1412, %v3263
  %v3334 = vmul.f32 %v1413, %v3263
  %v3335 = vmul.f32 %v1414, %v3268
  %v3336 = vmul.f32 %v1415, %v3268
  %v3337 = vmul.f32 %v1416, %v3268
  %v3338 = vmul.f32 %v1417, %v3273
  %v3339 = vmul.f32 %v1418, %v3273
  %v3340 = vmul.f32 %v1419, %v3273
  %v3341 = vmul.f32 %v1420, %v3278
  %v3342 = vmul.f32 %v1421, %v3278
  %v3343 = vmul.f32 %v1422, %v3278
  %v3344 = vmul.f32 %v1423, %v3283
  %v3345 = vmul.f32 %v1424, %v3283
  %v3346 = vmul.f32 %v1425, %v3283
  %v3347 = vmul.f32 %v1426, %v3288
  %v3348 = vmul.f32 %v1427, %v3288
  %v3349 = vmul.f32 %v1428, %v3288
  %v3350 = vmul.f32 %v1429, %v3293
  %v3351 = vmul.f32 %v1430, %v3293
  %v3352 = vmul.f32 %v1431, %v3293
  %v3353 = vmul.f32 %v1432, %v3298
  %v3354 = vmul.f32 %v1433, %v3298
  %v3355 = vmul.f32 %v1434, %v3298
  %v3356 = vmul.f32 %v1435, %v3303
  %v3357 = vmul.f32 %v1436, %v3303
  %v3358 = vmul.f32 %v1437, %v3303
  %v3359 = vmul.f32 %v1438, %v3308
  %v3360 = vmul.f32 %v1439, %v3308
  %v3361 = vmul.f32 %v1440, %v3308
  %v3362 = vmul.f32 %v1441, %v3313
  %v3363 = vmul.f32 %v1442, %v3313
  %v3364 = vmul.f32 %v1443, %v3313
  %v3365 = vmul.f32 %v1444, %v3318
  %v3366 = vmul.f32 %v1445, %v3318
  %v3367 = vmul.f32 %v1446, %v3318
  %3368 = vst [vmem:[%s8] sm:$0xff] %v3320
  %3369 = vst [vmem:[%s8 + $0x8] sm:$0xff] %v3321
  %3370 = vst [vmem:[%s8 + $0x10] sm:$0xff] %v3322
  %3371 = vst [vmem:[%s8 + $0x18] sm:$0xff] %v3323
  %3372 = vst [vmem:[%s8 + $0x20] sm:$0xff] %v3324
  %3373 = vst [vmem:[%s8 + $0x28] sm:$0xff] %v3325
  %3374 = vst [vmem:[%s8 + $0x30] sm:$0xff] %v3326
  %3375 = vst [vmem:[%s8 + $0x38] sm:$0xff] %v3327
  %3376 = vst [vmem:[%s8 + $0x40] sm:$0xff] %v3328
  %3377 = vst [vmem:[%s8 + $0x48] sm:$0xff] %v3329
  %3378 = vst [vmem:[%s8 + $0x50] sm:$0xff] %v3330
  %3379 = vst [vmem:[%s8 + $0x58] sm:$0xff] %v3331
  %3380 = vst [vmem:[%s8 + $0x60] sm:$0xff] %v3332
  %3381 = vst [vmem:[%s8 + $0x68] sm:$0xff] %v3333
  %3382 = vst [vmem:[%s8 + $0x70] sm:$0xff] %v3334
  %3383 = vst [vmem:[%s8 + $0x78] sm:$0xff] %v3335
  %3384 = vst [vmem:[%s8 + $0x80] sm:$0xff] %v3336
  %3385 = vst [vmem:[%s8 + $0x88] sm:$0xff] %v3337
  %3386 = vst [vmem:[%s8 + $0x90] sm:$0xff] %v3338
  %3387 = vst [vmem:[%s8 + $0x98] sm:$0xff] %v3339
  %3388 = vst [vmem:[%s8 + $0xa0] sm:$0xff] %v3340
  %3389 = vst [vmem:[%s8 + $0xa8] sm:$0xff] %v3341
  %3390 = vst [vmem:[%s8 + $0xb0] sm:$0xff] %v3342
  %3391 = vst [vmem:[%s8 + $0xb8] sm:$0xff] %v3343
  %3392 = vst [vmem:[%s8 + $0xc0] sm:$0xff] %v3344
  %3393 = vst [vmem:[%s8 + $0xc8] sm:$0xff] %v3345
  %3394 = vst [vmem:[%s8 + $0xd0] sm:$0xff] %v3346
  %3395 = vst [vmem:[%s8 + $0xd8] sm:$0xff] %v3347
  %3396 = vst [vmem:[%s8 + $0xe0] sm:$0xff] %v3348
  %3397 = vst [vmem:[%s8 + $0xe8] sm:$0xff] %v3349
  %3398 = vst [vmem:[%s8 + $0xf0] sm:$0xff] %v3350
  %3399 = vst [vmem:[%s8 + $0xf8] sm:$0xff] %v3351
  %3400 = vst [vmem:[%s8 + $0x100] sm:$0xff] %v3352
  %3401 = vst [vmem:[%s8 + $0x108] sm:$0xff] %v3353
  %3402 = vst [vmem:[%s8 + $0x110] sm:$0xff] %v3354
  %3403 = vst [vmem:[%s8 + $0x118] sm:$0xff] %v3355
  %3404 = vst [vmem:[%s8 + $0x120] sm:$0xff] %v3356
  %3405 = vst [vmem:[%s8 + $0x128] sm:$0xff] %v3357
  %3406 = vst [vmem:[%s8 + $0x130] sm:$0xff] %v3358
  %3407 = vst [vmem:[%s8 + $0x138] sm:$0xff] %v3359
  %3408 = vst [vmem:[%s8 + $0x140] sm:$0xff] %v3360
  %3409 = vst [vmem:[%s8 + $0x148] sm:$0xff] %v3361
  %3410 = vst [vmem:[%s8 + $0x150] sm:$0xff] %v3362
  %3411 = vst [vmem:[%s8 + $0x158] sm:$0xff] %v3363
  %3412 = vst [vmem:[%s8 + $0x160] sm:$0xff] %v3364
  %3413 = vst [vmem:[%s8 + $0x168] sm:$0xff] %v3365
  %3414 = vst [vmem:[%s8 + $0x170] sm:$0xff] %v3366
  %3415 = vst [vmem:[%s8 + $0x178] sm:$0xff] %v3367
  // Predicated region
  $region34: #{tensornet_interaction.2} parent=0 // pred_check
    _
  $region35: #{tensornet_interaction.2} parent=0 // pred_check_branch
    %3417 = sbr.rel (0) target = $region37
  $region36: #{tensornet_interaction.2} parent=0 // pred_region
    _
  $region37: #{tensornet_interaction.2} parent=0 // pred_fallthru
    _
  // Predicated region
  $region38: #{tensornet_interaction.2} parent=0 // pred_check
    _
  $region39: #{tensornet_interaction.2} parent=0 // pred_check_branch
    %3419 = sbr.rel (0) target = $region41
  $region40: #{tensornet_interaction.2} parent=0 // pred_region
    _
  $region41: #{tensornet_interaction.2} parent=0 // pred_fallthru
    _

// kernel: tensornet_interaction.3
$region0: #{tensornet_interaction.3}
  #allocation0 [shape = 'u32[]', space=smem, size = 0x4, offset = 0x4, fixed_abs, tag = 'smem constant byte address 0x4 - core index']
  #allocation1 [shape = 'u32[144,128]{1,0:T(1,128)}', space=vmem, size = 0x12000, scoped, tag = 'internal scratch']
  #allocation2 [shape = 'f32[192,128]{1,0:T(8,128)}', space=vmem, size = 0x18000, scoped, tag = 'scratch operand']
  #allocation3 [shape = 'f32[384,128]{1,0:T(8,128)}', space=vmem, size = 0x30000, scoped, tag = 'scratch operand']
  %s0 = inlined_call_operand.vmem [shape: f32[9,64,128], index: 0, kind: input, shape index: {}]
  %s1 = inlined_call_operand.vmem [shape: f32[3,64,128], index: 1, kind: input, shape index: {}]
  %s2 = inlined_call_operand.vmem [shape: f32[6,128,128], index: 2, kind: input, shape index: {}]
  %s3 = inlined_call_operand.vmem [shape: f32[9,64,128], index: 3, kind: output, shape index: {}]
  %s4 = sld [smem:[#allocation0]]
  $region22: #{tensornet_interaction.3} parent=0
    _
  %s6 = ssub.s32 1, %s4
  %s7 = scalar_select 0, %s6, %s4
  // Predicated region
  $region2: #{tensornet_interaction.3} parent=0 // pred_check
    _
  $region3: #{tensornet_interaction.3} parent=0 // pred_check_branch
    %9 = sbr.rel (0) target = $region5
  $region4: #{tensornet_interaction.3} parent=0 // pred_region
    _
  $region5: #{tensornet_interaction.3} parent=0 // pred_fallthru
    _
  // Predicated region
  $region6: #{tensornet_interaction.3} parent=0 // pred_check
    _
  $region7: #{tensornet_interaction.3} parent=0 // pred_check_branch
    %11 = sbr.rel (0) target = $region9
  $region8: #{tensornet_interaction.3} parent=0 // pred_region
    _
  $region9: #{tensornet_interaction.3} parent=0 // pred_fallthru
    _
  // Predicated region
  $region10: #{tensornet_interaction.3} parent=0 // pred_check
    _
  $region11: #{tensornet_interaction.3} parent=0 // pred_check_branch
    %13 = sbr.rel (0) target = $region13
  $region12: #{tensornet_interaction.3} parent=0 // pred_region
    _
  $region13: #{tensornet_interaction.3} parent=0 // pred_fallthru
    _
  %v14 = vld [vmem:[%s0] sm:$0xff]
  %v15 = vld [vmem:[%s0 + $0x8] sm:$0xff]
  %v16 = vld [vmem:[%s0 + $0x10] sm:$0xff]
  %v17 = vld [vmem:[%s0 + $0x18] sm:$0xff]
  %v18 = vld [vmem:[%s0 + $0x20] sm:$0xff]
  %v19 = vld [vmem:[%s0 + $0x28] sm:$0xff]
  %v20 = vld [vmem:[%s0 + $0x30] sm:$0xff]
  %v21 = vld [vmem:[%s0 + $0x38] sm:$0xff]
  %s22 = scalar_lea.vmem %s0, 64
  %v23 = vld [vmem:[%s22] sm:$0xff]
  %v24 = vld [vmem:[%s22 + $0x8] sm:$0xff]
  %v25 = vld [vmem:[%s22 + $0x10] sm:$0xff]
  %v26 = vld [vmem:[%s22 + $0x18] sm:$0xff]
  %v27 = vld [vmem:[%s22 + $0x20] sm:$0xff]
  %v28 = vld [vmem:[%s22 + $0x28] sm:$0xff]
  %v29 = vld [vmem:[%s22 + $0x30] sm:$0xff]
  %v30 = vld [vmem:[%s22 + $0x38] sm:$0xff]
  %s31 = scalar_lea.vmem %s0, 128
  %v32 = vld [vmem:[%s31] sm:$0xff]
  %v33 = vld [vmem:[%s31 + $0x8] sm:$0xff]
  %v34 = vld [vmem:[%s31 + $0x10] sm:$0xff]
  %v35 = vld [vmem:[%s31 + $0x18] sm:$0xff]
  %v36 = vld [vmem:[%s31 + $0x20] sm:$0xff]
  %v37 = vld [vmem:[%s31 + $0x28] sm:$0xff]
  %v38 = vld [vmem:[%s31 + $0x30] sm:$0xff]
  %v39 = vld [vmem:[%s31 + $0x38] sm:$0xff]
  %s40 = scalar_lea.vmem %s0, 192
  %v41 = vld [vmem:[%s40] sm:$0xff]
  %v42 = vld [vmem:[%s40 + $0x8] sm:$0xff]
  %v43 = vld [vmem:[%s40 + $0x10] sm:$0xff]
  %v44 = vld [vmem:[%s40 + $0x18] sm:$0xff]
  %v45 = vld [vmem:[%s40 + $0x20] sm:$0xff]
  %v46 = vld [vmem:[%s40 + $0x28] sm:$0xff]
  %v47 = vld [vmem:[%s40 + $0x30] sm:$0xff]
  %v48 = vld [vmem:[%s40 + $0x38] sm:$0xff]
  %s49 = scalar_lea.vmem %s0, 256
  %v50 = vld [vmem:[%s49] sm:$0xff]
  %v51 = vld [vmem:[%s49 + $0x8] sm:$0xff]
  %v52 = vld [vmem:[%s49 + $0x10] sm:$0xff]
  %v53 = vld [vmem:[%s49 + $0x18] sm:$0xff]
  %v54 = vld [vmem:[%s49 + $0x20] sm:$0xff]
  %v55 = vld [vmem:[%s49 + $0x28] sm:$0xff]
  %v56 = vld [vmem:[%s49 + $0x30] sm:$0xff]
  %v57 = vld [vmem:[%s49 + $0x38] sm:$0xff]
  %s58 = scalar_lea.vmem %s0, 320
  %v59 = vld [vmem:[%s58] sm:$0xff]
  %v60 = vld [vmem:[%s58 + $0x8] sm:$0xff]
  %v61 = vld [vmem:[%s58 + $0x10] sm:$0xff]
  %v62 = vld [vmem:[%s58 + $0x18] sm:$0xff]
  %v63 = vld [vmem:[%s58 + $0x20] sm:$0xff]
  %v64 = vld [vmem:[%s58 + $0x28] sm:$0xff]
  %v65 = vld [vmem:[%s58 + $0x30] sm:$0xff]
  %v66 = vld [vmem:[%s58 + $0x38] sm:$0xff]
  %s67 = scalar_lea.vmem %s0, 384
  %v68 = vld [vmem:[%s67] sm:$0xff]
  %v69 = vld [vmem:[%s67 + $0x8] sm:$0xff]
  %v70 = vld [vmem:[%s67 + $0x10] sm:$0xff]
  %v71 = vld [vmem:[%s67 + $0x18] sm:$0xff]
  %v72 = vld [vmem:[%s67 + $0x20] sm:$0xff]
  %v73 = vld [vmem:[%s67 + $0x28] sm:$0xff]
  %v74 = vld [vmem:[%s67 + $0x30] sm:$0xff]
  %v75 = vld [vmem:[%s67 + $0x38] sm:$0xff]
  %s76 = scalar_lea.vmem %s0, 448
  %v77 = vld [vmem:[%s76] sm:$0xff]
  %v78 = vld [vmem:[%s76 + $0x8] sm:$0xff]
  %v79 = vld [vmem:[%s76 + $0x10] sm:$0xff]
  %v80 = vld [vmem:[%s76 + $0x18] sm:$0xff]
  %v81 = vld [vmem:[%s76 + $0x20] sm:$0xff]
  %v82 = vld [vmem:[%s76 + $0x28] sm:$0xff]
  %v83 = vld [vmem:[%s76 + $0x30] sm:$0xff]
  %v84 = vld [vmem:[%s76 + $0x38] sm:$0xff]
  %s85 = scalar_lea.vmem %s0, 512
  %v86 = vld [vmem:[%s85] sm:$0xff]
  %v87 = vld [vmem:[%s85 + $0x8] sm:$0xff]
  %v88 = vld [vmem:[%s85 + $0x10] sm:$0xff]
  %v89 = vld [vmem:[%s85 + $0x18] sm:$0xff]
  %v90 = vld [vmem:[%s85 + $0x20] sm:$0xff]
  %v91 = vld [vmem:[%s85 + $0x28] sm:$0xff]
  %v92 = vld [vmem:[%s85 + $0x30] sm:$0xff]
  %v93 = vld [vmem:[%s85 + $0x38] sm:$0xff]
  %v94 = vmul.f32 %v14, %v14
  %v95 = vmul.f32 %v15, %v15
  %v96 = vmul.f32 %v16, %v16
  %v97 = vmul.f32 %v17, %v17
  %v98 = vmul.f32 %v18, %v18
  %v99 = vmul.f32 %v19, %v19
  %v100 = vmul.f32 %v20, %v20
  %v101 = vmul.f32 %v21, %v21
  %v102 = vmul.f32 %v23, %v23
  %v103 = vmul.f32 %v24, %v24
  %v104 = vmul.f32 %v25, %v25
  %v105 = vmul.f32 %v26, %v26
  %v106 = vmul.f32 %v27, %v27
  %v107 = vmul.f32 %v28, %v28
  %v108 = vmul.f32 %v29, %v29
  %v109 = vmul.f32 %v30, %v30
  %v110 = vadd.f32 %v94, %v102
  %v111 = vadd.f32 %v95, %v103
  %v112 = vadd.f32 %v96, %v104
  %v113 = vadd.f32 %v97, %v105
  %v114 = vadd.f32 %v98, %v106
  %v115 = vadd.f32 %v99, %v107
  %v116 = vadd.f32 %v100, %v108
  %v117 = vadd.f32 %v101, %v109
  %v118 = vmul.f32 %v32, %v32
  %v119 = vmul.f32 %v33, %v33
  %v120 = vmul.f32 %v34, %v34
  %v121 = vmul.f32 %v35, %v35
  %v122 = vmul.f32 %v36, %v36
  %v123 = vmul.f32 %v37, %v37
  %v124 = vmul.f32 %v38, %v38
  %v125 = vmul.f32 %v39, %v39
  %v126 = vadd.f32 %v110, %v118
  %v127 = vadd.f32 %v111, %v119
  %v128 = vadd.f32 %v112, %v120
  %v129 = vadd.f32 %v113, %v121
  %v130 = vadd.f32 %v114, %v122
  %v131 = vadd.f32 %v115, %v123
  %v132 = vadd.f32 %v116, %v124
  %v133 = vadd.f32 %v117, %v125
  %v134 = vmul.f32 %v41, %v41
  %v135 = vmul.f32 %v42, %v42
  %v136 = vmul.f32 %v43, %v43
  %v137 = vmul.f32 %v44, %v44
  %v138 = vmul.f32 %v45, %v45
  %v139 = vmul.f32 %v46, %v46
  %v140 = vmul.f32 %v47, %v47
  %v141 = vmul.f32 %v48, %v48
  %v142 = vadd.f32 %v126, %v134
  %v143 = vadd.f32 %v127, %v135
  %v144 = vadd.f32 %v128, %v136
  %v145 = vadd.f32 %v129, %v137
  %v146 = vadd.f32 %v130, %v138
  %v147 = vadd.f32 %v131, %v139
  %v148 = vadd.f32 %v132, %v140
  %v149 = vadd.f32 %v133, %v141
  %v150 = vmul.f32 %v50, %v50
  %v151 = vmul.f32 %v51, %v51
  %v152 = vmul.f32 %v52, %v52
  %v153 = vmul.f32 %v53, %v53
  %v154 = vmul.f32 %v54, %v54
  %v155 = vmul.f32 %v55, %v55
  %v156 = vmul.f32 %v56, %v56
  %v157 = vmul.f32 %v57, %v57
  %v158 = vadd.f32 %v142, %v150
  %v159 = vadd.f32 %v143, %v151
  %v160 = vadd.f32 %v144, %v152
  %v161 = vadd.f32 %v145, %v153
  %v162 = vadd.f32 %v146, %v154
  %v163 = vadd.f32 %v147, %v155
  %v164 = vadd.f32 %v148, %v156
  %v165 = vadd.f32 %v149, %v157
  %v166 = vmul.f32 %v59, %v59
  %v167 = vmul.f32 %v60, %v60
  %v168 = vmul.f32 %v61, %v61
  %v169 = vmul.f32 %v62, %v62
  %v170 = vmul.f32 %v63, %v63
  %v171 = vmul.f32 %v64, %v64
  %v172 = vmul.f32 %v65, %v65
  %v173 = vmul.f32 %v66, %v66
  %v174 = vadd.f32 %v158, %v166
  %v175 = vadd.f32 %v159, %v167
  %v176 = vadd.f32 %v160, %v168
  %v177 = vadd.f32 %v161, %v169
  %v178 = vadd.f32 %v162, %v170
  %v179 = vadd.f32 %v163, %v171
  %v180 = vadd.f32 %v164, %v172
  %v181 = vadd.f32 %v165, %v173
  %v182 = vmul.f32 %v68, %v68
  %v183 = vmul.f32 %v69, %v69
  %v184 = vmul.f32 %v70, %v70
  %v185 = vmul.f32 %v71, %v71
  %v186 = vmul.f32 %v72, %v72
  %v187 = vmul.f32 %v73, %v73
  %v188 = vmul.f32 %v74, %v74
  %v189 = vmul.f32 %v75, %v75
  %v190 = vadd.f32 %v174, %v182
  %v191 = vadd.f32 %v175, %v183
  %v192 = vadd.f32 %v176, %v184
  %v193 = vadd.f32 %v177, %v185
  %v194 = vadd.f32 %v178, %v186
  %v195 = vadd.f32 %v179, %v187
  %v196 = vadd.f32 %v180, %v188
  %v197 = vadd.f32 %v181, %v189
  %v198 = vmul.f32 %v77, %v77
  %v199 = vmul.f32 %v78, %v78
  %v200 = vmul.f32 %v79, %v79
  %v201 = vmul.f32 %v80, %v80
  %v202 = vmul.f32 %v81, %v81
  %v203 = vmul.f32 %v82, %v82
  %v204 = vmul.f32 %v83, %v83
  %v205 = vmul.f32 %v84, %v84
  %v206 = vadd.f32 %v190, %v198
  %v207 = vadd.f32 %v191, %v199
  %v208 = vadd.f32 %v192, %v200
  %v209 = vadd.f32 %v193, %v201
  %v210 = vadd.f32 %v194, %v202
  %v211 = vadd.f32 %v195, %v203
  %v212 = vadd.f32 %v196, %v204
  %v213 = vadd.f32 %v197, %v205
  %v214 = vmul.f32 %v86, %v86
  %v215 = vmul.f32 %v87, %v87
  %v216 = vmul.f32 %v88, %v88
  %v217 = vmul.f32 %v89, %v89
  %v218 = vmul.f32 %v90, %v90
  %v219 = vmul.f32 %v91, %v91
  %v220 = vmul.f32 %v92, %v92
  %v221 = vmul.f32 %v93, %v93
  %v222 = vadd.f32 %v206, %v214
  %v223 = vadd.f32 %v207, %v215
  %v224 = vadd.f32 %v208, %v216
  %v225 = vadd.f32 %v209, %v217
  %v226 = vadd.f32 %v210, %v218
  %v227 = vadd.f32 %v211, %v219
  %v228 = vadd.f32 %v212, %v220
  %v229 = vadd.f32 %v213, %v221
  %v230 = vadd.f32 %v222, 1.0
  %v231 = vadd.f32 %v223, 1.0
  %v232 = vadd.f32 %v224, 1.0
  %v233 = vadd.f32 %v225, 1.0
  %v234 = vadd.f32 %v226, 1.0
  %v235 = vadd.f32 %v227, 1.0
  %v236 = vadd.f32 %v228, 1.0
  %v237 = vadd.f32 %v229, 1.0
  %v238 = vrcp.pop %v230
  %v239 = vrcp.pop %v231
  %v240 = vrcp.pop %v232
  %v241 = vrcp.pop %v233
  %v242 = vrcp.pop %v234
  %v243 = vrcp.pop %v235
  %v244 = vrcp.pop %v236
  %v245 = vrcp.pop %v237
  %v246 = vmul.f32 %v14, %v238
  %v247 = vmul.f32 %v15, %v239
  %v248 = vmul.f32 %v16, %v240
  %v249 = vmul.f32 %v17, %v241
  %v250 = vmul.f32 %v18, %v242
  %v251 = vmul.f32 %v19, %v243
  %v252 = vmul.f32 %v20, %v244
  %v253 = vmul.f32 %v21, %v245
  %v254 = vmul.f32 %v23, %v238
  %v255 = vmul.f32 %v24, %v239
  %v256 = vmul.f32 %v25, %v240
  %v257 = vmul.f32 %v26, %v241
  %v258 = vmul.f32 %v27, %v242
  %v259 = vmul.f32 %v28, %v243
  %v260 = vmul.f32 %v29, %v244
  %v261 = vmul.f32 %v30, %v245
  %v262 = vmul.f32 %v32, %v238
  %v263 = vmul.f32 %v33, %v239
  %v264 = vmul.f32 %v34, %v240
  %v265 = vmul.f32 %v35, %v241
  %v266 = vmul.f32 %v36, %v242
  %v267 = vmul.f32 %v37, %v243
  %v268 = vmul.f32 %v38, %v244
  %v269 = vmul.f32 %v39, %v245
  %v270 = vmul.f32 %v41, %v238
  %v271 = vmul.f32 %v42, %v239
  %v272 = vmul.f32 %v43, %v240
  %v273 = vmul.f32 %v44, %v241
  %v274 = vmul.f32 %v45, %v242
  %v275 = vmul.f32 %v46, %v243
  %v276 = vmul.f32 %v47, %v244
  %v277 = vmul.f32 %v48, %v245
  %v278 = vmul.f32 %v50, %v238
  %v279 = vmul.f32 %v51, %v239
  %v280 = vmul.f32 %v52, %v240
  %v281 = vmul.f32 %v53, %v241
  %v282 = vmul.f32 %v54, %v242
  %v283 = vmul.f32 %v55, %v243
  %v284 = vmul.f32 %v56, %v244
  %v285 = vmul.f32 %v57, %v245
  %v286 = vmul.f32 %v59, %v238
  %v287 = vmul.f32 %v60, %v239
  %v288 = vmul.f32 %v61, %v240
  %v289 = vmul.f32 %v62, %v241
  %v290 = vmul.f32 %v63, %v242
  %v291 = vmul.f32 %v64, %v243
  %v292 = vmul.f32 %v65, %v244
  %v293 = vmul.f32 %v66, %v245
  %v294 = vmul.f32 %v68, %v238
  %v295 = vmul.f32 %v69, %v239
  %v296 = vmul.f32 %v70, %v240
  %v297 = vmul.f32 %v71, %v241
  %v298 = vmul.f32 %v72, %v242
  %v299 = vmul.f32 %v73, %v243
  %v300 = vmul.f32 %v74, %v244
  %v301 = vmul.f32 %v75, %v245
  %v302 = vmul.f32 %v77, %v238
  %v303 = vmul.f32 %v78, %v239
  %v304 = vmul.f32 %v79, %v240
  %v305 = vmul.f32 %v80, %v241
  %v306 = vmul.f32 %v81, %v242
  %v307 = vmul.f32 %v82, %v243
  %v308 = vmul.f32 %v83, %v244
  %v309 = vmul.f32 %v84, %v245
  %v310 = vmul.f32 %v86, %v238
  %v311 = vmul.f32 %v87, %v239
  %v312 = vmul.f32 %v88, %v240
  %v313 = vmul.f32 %v89, %v241
  %v314 = vmul.f32 %v90, %v242
  %v315 = vmul.f32 %v91, %v243
  %v316 = vmul.f32 %v92, %v244
  %v317 = vmul.f32 %v93, %v245
  %318 = vst [vmem:[%s3] sm:$0xff] %v246
  %319 = vst [vmem:[%s3 + $0x8] sm:$0xff] %v247
  %320 = vst [vmem:[%s3 + $0x10] sm:$0xff] %v248
  %321 = vst [vmem:[%s3 + $0x18] sm:$0xff] %v249
  %322 = vst [vmem:[%s3 + $0x20] sm:$0xff] %v250
  %323 = vst [vmem:[%s3 + $0x28] sm:$0xff] %v251
  %324 = vst [vmem:[%s3 + $0x30] sm:$0xff] %v252
  %325 = vst [vmem:[%s3 + $0x38] sm:$0xff] %v253
  %s326 = scalar_lea.vmem %s3, 64
  %327 = vst [vmem:[%s326] sm:$0xff] %v254
  %328 = vst [vmem:[%s326 + $0x8] sm:$0xff] %v255
  %329 = vst [vmem:[%s326 + $0x10] sm:$0xff] %v256
  %330 = vst [vmem:[%s326 + $0x18] sm:$0xff] %v257
  %331 = vst [vmem:[%s326 + $0x20] sm:$0xff] %v258
  %332 = vst [vmem:[%s326 + $0x28] sm:$0xff] %v259
  %333 = vst [vmem:[%s326 + $0x30] sm:$0xff] %v260
  %334 = vst [vmem:[%s326 + $0x38] sm:$0xff] %v261
  %s335 = scalar_lea.vmem %s3, 128
  %336 = vst [vmem:[%s335] sm:$0xff] %v262
  %337 = vst [vmem:[%s335 + $0x8] sm:$0xff] %v263
  %338 = vst [vmem:[%s335 + $0x10] sm:$0xff] %v264
  %339 = vst [vmem:[%s335 + $0x18] sm:$0xff] %v265
  %340 = vst [vmem:[%s335 + $0x20] sm:$0xff] %v266
  %341 = vst [vmem:[%s335 + $0x28] sm:$0xff] %v267
  %342 = vst [vmem:[%s335 + $0x30] sm:$0xff] %v268
  %343 = vst [vmem:[%s335 + $0x38] sm:$0xff] %v269
  %s344 = scalar_lea.vmem %s3, 192
  %345 = vst [vmem:[%s344] sm:$0xff] %v270
  %346 = vst [vmem:[%s344 + $0x8] sm:$0xff] %v271
  %347 = vst [vmem:[%s344 + $0x10] sm:$0xff] %v272
  %348 = vst [vmem:[%s344 + $0x18] sm:$0xff] %v273
  %349 = vst [vmem:[%s344 + $0x20] sm:$0xff] %v274
  %350 = vst [vmem:[%s344 + $0x28] sm:$0xff] %v275
  %351 = vst [vmem:[%s344 + $0x30] sm:$0xff] %v276
  %352 = vst [vmem:[%s344 + $0x38] sm:$0xff] %v277
  %s353 = scalar_lea.vmem %s3, 256
  %354 = vst [vmem:[%s353] sm:$0xff] %v278
  %355 = vst [vmem:[%s353 + $0x8] sm:$0xff] %v279
  %356 = vst [vmem:[%s353 + $0x10] sm:$0xff] %v280
  %357 = vst [vmem:[%s353 + $0x18] sm:$0xff] %v281
  %358 = vst [vmem:[%s353 + $0x20] sm:$0xff] %v282
  %359 = vst [vmem:[%s353 + $0x28] sm:$0xff] %v283
  %360 = vst [vmem:[%s353 + $0x30] sm:$0xff] %v284
  %361 = vst [vmem:[%s353 + $0x38] sm:$0xff] %v285
  %s362 = scalar_lea.vmem %s3, 320
  %363 = vst [vmem:[%s362] sm:$0xff] %v286
  %364 = vst [vmem:[%s362 + $0x8] sm:$0xff] %v287
  %365 = vst [vmem:[%s362 + $0x10] sm:$0xff] %v288
  %366 = vst [vmem:[%s362 + $0x18] sm:$0xff] %v289
  %367 = vst [vmem:[%s362 + $0x20] sm:$0xff] %v290
  %368 = vst [vmem:[%s362 + $0x28] sm:$0xff] %v291
  %369 = vst [vmem:[%s362 + $0x30] sm:$0xff] %v292
  %370 = vst [vmem:[%s362 + $0x38] sm:$0xff] %v293
  %s371 = scalar_lea.vmem %s3, 384
  %372 = vst [vmem:[%s371] sm:$0xff] %v294
  %373 = vst [vmem:[%s371 + $0x8] sm:$0xff] %v295
  %374 = vst [vmem:[%s371 + $0x10] sm:$0xff] %v296
  %375 = vst [vmem:[%s371 + $0x18] sm:$0xff] %v297
  %376 = vst [vmem:[%s371 + $0x20] sm:$0xff] %v298
  %377 = vst [vmem:[%s371 + $0x28] sm:$0xff] %v299
  %378 = vst [vmem:[%s371 + $0x30] sm:$0xff] %v300
  %379 = vst [vmem:[%s371 + $0x38] sm:$0xff] %v301
  %s380 = scalar_lea.vmem %s3, 448
  %381 = vst [vmem:[%s380] sm:$0xff] %v302
  %382 = vst [vmem:[%s380 + $0x8] sm:$0xff] %v303
  %383 = vst [vmem:[%s380 + $0x10] sm:$0xff] %v304
  %384 = vst [vmem:[%s380 + $0x18] sm:$0xff] %v305
  %385 = vst [vmem:[%s380 + $0x20] sm:$0xff] %v306
  %386 = vst [vmem:[%s380 + $0x28] sm:$0xff] %v307
  %387 = vst [vmem:[%s380 + $0x30] sm:$0xff] %v308
  %388 = vst [vmem:[%s380 + $0x38] sm:$0xff] %v309
  %s389 = scalar_lea.vmem %s3, 512
  %390 = vst [vmem:[%s389] sm:$0xff] %v310
  %391 = vst [vmem:[%s389 + $0x8] sm:$0xff] %v311
  %392 = vst [vmem:[%s389 + $0x10] sm:$0xff] %v312
  %393 = vst [vmem:[%s389 + $0x18] sm:$0xff] %v313
  %394 = vst [vmem:[%s389 + $0x20] sm:$0xff] %v314
  %395 = vst [vmem:[%s389 + $0x28] sm:$0xff] %v315
  %396 = vst [vmem:[%s389 + $0x30] sm:$0xff] %v316
  %397 = vst [vmem:[%s389 + $0x38] sm:$0xff] %v317
  %v398 = vadd.f32 %v246, %v278
  %v399 = vadd.f32 %v247, %v279
  %v400 = vadd.f32 %v248, %v280
  %v401 = vadd.f32 %v249, %v281
  %v402 = vadd.f32 %v250, %v282
  %v403 = vadd.f32 %v251, %v283
  %v404 = vadd.f32 %v252, %v284
  %v405 = vadd.f32 %v253, %v285
  %v406 = vadd.f32 %v398, %v310
  %v407 = vadd.f32 %v399, %v311
  %v408 = vadd.f32 %v400, %v312
  %v409 = vadd.f32 %v401, %v313
  %v410 = vadd.f32 %v402, %v314
  %v411 = vadd.f32 %v403, %v315
  %v412 = vadd.f32 %v404, %v316
  %v413 = vadd.f32 %v405, %v317
  %v414 = vmul.f32 %v406, 0.33333334
  %v415 = vmul.f32 %v407, 0.33333334
  %v416 = vmul.f32 %v408, 0.33333334
  %v417 = vmul.f32 %v409, 0.33333334
  %v418 = vmul.f32 %v410, 0.33333334
  %v419 = vmul.f32 %v411, 0.33333334
  %v420 = vmul.f32 %v412, 0.33333334
  %v421 = vmul.f32 %v413, 0.33333334
  %v422 = vsub.f32 %v254, %v270
  %v423 = vsub.f32 %v255, %v271
  %v424 = vsub.f32 %v256, %v272
  %v425 = vsub.f32 %v257, %v273
  %v426 = vsub.f32 %v258, %v274
  %v427 = vsub.f32 %v259, %v275
  %v428 = vsub.f32 %v260, %v276
  %v429 = vsub.f32 %v261, %v277
  %v430 = vmul.f32 %v422, 0.5
  %v431 = vmul.f32 %v423, 0.5
  %v432 = vmul.f32 %v424, 0.5
  %v433 = vmul.f32 %v425, 0.5
  %v434 = vmul.f32 %v426, 0.5
  %v435 = vmul.f32 %v427, 0.5
  %v436 = vmul.f32 %v428, 0.5
  %v437 = vmul.f32 %v429, 0.5
  %v438 = vsub.f32 %v262, %v294
  %v439 = vsub.f32 %v263, %v295
  %v440 = vsub.f32 %v264, %v296
  %v441 = vsub.f32 %v265, %v297
  %v442 = vsub.f32 %v266, %v298
  %v443 = vsub.f32 %v267, %v299
  %v444 = vsub.f32 %v268, %v300
  %v445 = vsub.f32 %v269, %v301
  %v446 = vmul.f32 %v438, 0.5
  %v447 = vmul.f32 %v439, 0.5
  %v448 = vmul.f32 %v440, 0.5
  %v449 = vmul.f32 %v441, 0.5
  %v450 = vmul.f32 %v442, 0.5
  %v451 = vmul.f32 %v443, 0.5
  %v452 = vmul.f32 %v444, 0.5
  %v453 = vmul.f32 %v445, 0.5
  %v454 = vsub.f32 %v286, %v302
  %v455 = vsub.f32 %v287, %v303
  %v456 = vsub.f32 %v288, %v304
  %v457 = vsub.f32 %v289, %v305
  %v458 = vsub.f32 %v290, %v306
  %v459 = vsub.f32 %v291, %v307
  %v460 = vsub.f32 %v292, %v308
  %v461 = vsub.f32 %v293, %v309
  %v462 = vmul.f32 %v454, 0.5
  %v463 = vmul.f32 %v455, 0.5
  %v464 = vmul.f32 %v456, 0.5
  %v465 = vmul.f32 %v457, 0.5
  %v466 = vmul.f32 %v458, 0.5
  %v467 = vmul.f32 %v459, 0.5
  %v468 = vmul.f32 %v460, 0.5
  %v469 = vmul.f32 %v461, 0.5
  %v470 = vsub.f32 %v246, %v414
  %v471 = vsub.f32 %v247, %v415
  %v472 = vsub.f32 %v248, %v416
  %v473 = vsub.f32 %v249, %v417
  %v474 = vsub.f32 %v250, %v418
  %v475 = vsub.f32 %v251, %v419
  %v476 = vsub.f32 %v252, %v420
  %v477 = vsub.f32 %v253, %v421
  %v478 = vsub.f32 %v278, %v414
  %v479 = vsub.f32 %v279, %v415
  %v480 = vsub.f32 %v280, %v416
  %v481 = vsub.f32 %v281, %v417
  %v482 = vsub.f32 %v282, %v418
  %v483 = vsub.f32 %v283, %v419
  %v484 = vsub.f32 %v284, %v420
  %v485 = vsub.f32 %v285, %v421
  %v486 = vsub.f32 %v310, %v414
  %v487 = vsub.f32 %v311, %v415
  %v488 = vsub.f32 %v312, %v416
  %v489 = vsub.f32 %v313, %v417
  %v490 = vsub.f32 %v314, %v418
  %v491 = vsub.f32 %v315, %v419
  %v492 = vsub.f32 %v316, %v420
  %v493 = vsub.f32 %v317, %v421
  %v494 = vadd.f32 %v254, %v270
  %v495 = vadd.f32 %v255, %v271
  %v496 = vadd.f32 %v256, %v272
  %v497 = vadd.f32 %v257, %v273
  %v498 = vadd.f32 %v258, %v274
  %v499 = vadd.f32 %v259, %v275
  %v500 = vadd.f32 %v260, %v276
  %v501 = vadd.f32 %v261, %v277
  %v502 = vmul.f32 %v494, 0.5
  %v503 = vmul.f32 %v495, 0.5
  %v504 = vmul.f32 %v496, 0.5
  %v505 = vmul.f32 %v497, 0.5
  %v506 = vmul.f32 %v498, 0.5
  %v507 = vmul.f32 %v499, 0.5
  %v508 = vmul.f32 %v500, 0.5
  %v509 = vmul.f32 %v501, 0.5
  %v510 = vadd.f32 %v262, %v294
  %v511 = vadd.f32 %v263, %v295
  %v512 = vadd.f32 %v264, %v296
  %v513 = vadd.f32 %v265, %v297
  %v514 = vadd.f32 %v266, %v298
  %v515 = vadd.f32 %v267, %v299
  %v516 = vadd.f32 %v268, %v300
  %v517 = vadd.f32 %v269, %v301
  %v518 = vmul.f32 %v510, 0.5
  %v519 = vmul.f32 %v511, 0.5
  %v520 = vmul.f32 %v512, 0.5
  %v521 = vmul.f32 %v513, 0.5
  %v522 = vmul.f32 %v514, 0.5
  %v523 = vmul.f32 %v515, 0.5
  %v524 = vmul.f32 %v516, 0.5
  %v525 = vmul.f32 %v517, 0.5
  %v526 = vadd.f32 %v286, %v302
  %v527 = vadd.f32 %v287, %v303
  %v528 = vadd.f32 %v288, %v304
  %v529 = vadd.f32 %v289, %v305
  %v530 = vadd.f32 %v290, %v306
  %v531 = vadd.f32 %v291, %v307
  %v532 = vadd.f32 %v292, %v308
  %v533 = vadd.f32 %v293, %v309
  %v534 = vmul.f32 %v526, 0.5
  %v535 = vmul.f32 %v527, 0.5
  %v536 = vmul.f32 %v528, 0.5
  %v537 = vmul.f32 %v529, 0.5
  %v538 = vmul.f32 %v530, 0.5
  %v539 = vmul.f32 %v531, 0.5
  %v540 = vmul.f32 %v532, 0.5
  %v541 = vmul.f32 %v533, 0.5
  %v542 = vld [vmem:[%s2] sm:$0xff]
  %v543 = vld [vmem:[%s2 + $0x8] sm:$0xff]
  %v544 = vld [vmem:[%s2 + $0x10] sm:$0xff]
  %v545 = vld [vmem:[%s2 + $0x18] sm:$0xff]
  %v546 = vld [vmem:[%s2 + $0x20] sm:$0xff]
  %v547 = vld [vmem:[%s2 + $0x28] sm:$0xff]
  %v548 = vld [vmem:[%s2 + $0x30] sm:$0xff]
  %v549 = vld [vmem:[%s2 + $0x38] sm:$0xff]
  %v550 = vld [vmem:[%s2 + $0x40] sm:$0xff]
  %v551 = vld [vmem:[%s2 + $0x48] sm:$0xff]
  %v552 = vld [vmem:[%s2 + $0x50] sm:$0xff]
  %v553 = vld [vmem:[%s2 + $0x58] sm:$0xff]
  %v554 = vld [vmem:[%s2 + $0x60] sm:$0xff]
  %v555 = vld [vmem:[%s2 + $0x68] sm:$0xff]
  %v556 = vld [vmem:[%s2 + $0x70] sm:$0xff]
  %v557 = vld [vmem:[%s2 + $0x78] sm:$0xff]
  %558 = vmatprep.subr.mxu0 0.0
  %559 = vmatpush1.msra.mxu0 %v557
  %560 = vmatprep.subr.mxu0 0.0
  %561 = vmatpush1.msra.mxu0 %v556
  %562 = vmatprep.subr.mxu0 0.0
  %563 = vmatpush1.msra.mxu0 %v555
  %564 = vmatprep.subr.mxu0 0.0
  %565 = vmatpush1.msra.mxu0 %v554
  %566 = vmatprep.subr.mxu0 0.0
  %567 = vmatpush1.msra.mxu0 %v553
  %568 = vmatprep.subr.mxu0 0.0
  %569 = vmatpush1.msra.mxu0 %v552
  %570 = vmatprep.subr.mxu0 0.0
  %571 = vmatpush1.msra.mxu0 %v551
  %572 = vmatprep.subr.mxu0 0.0
  %573 = vmatpush1.msra.mxu0 %v550
  %574 = vmatprep.subr.mxu0 0.0
  %575 = vmatpush1.msra.mxu0 %v549
  %576 = vmatprep.subr.mxu0 0.0
  %577 = vmatpush1.msra.mxu0 %v548
  %578 = vmatprep.subr.mxu0 0.0
  %579 = vmatpush1.msra.mxu0 %v547
  %580 = vmatprep.subr.mxu0 0.0
  %581 = vmatpush1.msra.mxu0 %v546
  %582 = vmatprep.subr.mxu0 0.0
  %583 = vmatpush1.msra.mxu0 %v545
  %584 = vmatprep.subr.mxu0 0.0
  %585 = vmatpush1.msra.mxu0 %v544
  %586 = vmatprep.subr.mxu0 0.0
  %587 = vmatpush1.msra.mxu0 %v543
  %588 = vmatprep.subr.mxu0 0.0
  %589 = vmatpush1.msra.mxu0 %v542
  %590 = vmatprep.subr.mxu0 0.0
  %591 = vmatpush2.msra.mxu0 0.0
  %592 = vmatprep.subr.mxu0 0.0
  %593 = vmatpush2.msra.mxu0 0.0
  %594 = vmatprep.subr.mxu0 0.0
  %595 = vmatpush2.msra.mxu0 0.0
  %596 = vmatprep.subr.mxu0 0.0
  %597 = vmatpush2.msra.mxu0 0.0
  %598 = vmatprep.subr.mxu0 0.0
  %599 = vmatpush2.msra.mxu0 0.0
  %600 = vmatprep.subr.mxu0 0.0
  %601 = vmatpush2.msra.mxu0 0.0
  %602 = vmatprep.subr.mxu0 0.0
  %603 = vmatpush2.msra.mxu0 0.0
  %604 = vmatprep.subr.mxu0 0.0
  %605 = vmatpush2.msra.mxu0 0.0
  %606 = vmatprep.subr.mxu0 0.0
  %607 = vmatpush2.msra.mxu0 0.0
  %608 = vmatprep.subr.mxu0 0.0
  %609 = vmatpush2.msra.mxu0 0.0
  %610 = vmatprep.subr.mxu0 0.0
  %611 = vmatpush2.msra.mxu0 0.0
  %612 = vmatprep.subr.mxu0 0.0
  %613 = vmatpush2.msra.mxu0 0.0
  %614 = vmatprep.subr.mxu0 0.0
  %615 = vmatpush2.msra.mxu0 0.0
  %616 = vmatprep.subr.mxu0 0.0
  %617 = vmatpush2.msra.mxu0 0.0
  %618 = vmatprep.subr.mxu0 0.0
  %619 = vmatpush2.msra.mxu0 0.0
  %620 = vmatprep.subr.mxu0 0.0
  %621 = vmatpush2.msra.mxu0 0.0
  %622 = vmatprep.mubr.f32.mxu0 0.0
  %623 = vmatmul.mubr.f32.gmra.mxu0 %v414
  %v624 = vpop.f32.mrf.mxu0
  %v625 = vadd.f32 0.0, %v624
  %v626 = vpop.f32.mrf.mxu0
  %627 = vmatprep.mubr.f32.mxu0 0.0
  %628 = vmatmul.mubr.f32.gmra.mxu0 %v415
  %v629 = vpop.f32.mrf.mxu0
  %v630 = vadd.f32 0.0, %v629
  %v631 = vpop.f32.mrf.mxu0
  %632 = vmatprep.mubr.f32.mxu0 0.0
  %633 = vmatmul.mubr.f32.gmra.mxu0 %v416
  %v634 = vpop.f32.mrf.mxu0
  %v635 = vadd.f32 0.0, %v634
  %v636 = vpop.f32.mrf.mxu0
  %637 = vmatprep.mubr.f32.mxu0 0.0
  %638 = vmatmul.mubr.f32.gmra.mxu0 %v417
  %v639 = vpop.f32.mrf.mxu0
  %v640 = vadd.f32 0.0, %v639
  %v641 = vpop.f32.mrf.mxu0
  %642 = vmatprep.mubr.f32.mxu0 0.0
  %643 = vmatmul.mubr.f32.gmra.mxu0 %v418
  %v644 = vpop.f32.mrf.mxu0
  %v645 = vadd.f32 0.0, %v644
  %v646 = vpop.f32.mrf.mxu0
  %647 = vmatprep.mubr.f32.mxu0 0.0
  %648 = vmatmul.mubr.f32.gmra.mxu0 %v419
  %v649 = vpop.f32.mrf.mxu0
  %v650 = vadd.f32 0.0, %v649
  %v651 = vpop.f32.mrf.mxu0
  %652 = vmatprep.mubr.f32.mxu0 0.0
  %653 = vmatmul.mubr.f32.gmra.mxu0 %v420
  %v654 = vpop.f32.mrf.mxu0
  %v655 = vadd.f32 0.0, %v654
  %v656 = vpop.f32.mrf.mxu0
  %657 = vmatprep.mubr.f32.mxu0 0.0
  %658 = vmatmul.mubr.f32.gmra.mxu0 %v421
  %v659 = vpop.f32.mrf.mxu0
  %v660 = vadd.f32 0.0, %v659
  %v661 = vpop.f32.mrf.mxu0
  %662 = vdwg.mxu0
  %663 = vst [vmem:[#allocation2] sm:$0xff] %v430
  %664 = vst [vmem:[#allocation2 + $0x8] sm:$0xff] %v431
  %665 = vst [vmem:[#allocation2 + $0x10] sm:$0xff] %v432
  %666 = vst [vmem:[#allocation2 + $0x18] sm:$0xff] %v433
  %667 = vst [vmem:[#allocation2 + $0x20] sm:$0xff] %v434
  %668 = vst [vmem:[#allocation2 + $0x28] sm:$0xff] %v435
  %669 = vst [vmem:[#allocation2 + $0x30] sm:$0xff] %v436
  %670 = vst [vmem:[#allocation2 + $0x38] sm:$0xff] %v437
  %671 = vst [vmem:[#allocation2 + $0x40] sm:$0xff] %v446
  %672 = vst [vmem:[#allocation2 + $0x48] sm:$0xff] %v447
  %673 = vst [vmem:[#allocation2 + $0x50] sm:$0xff] %v448
  %674 = vst [vmem:[#allocation2 + $0x58] sm:$0xff] %v449
  %675 = vst [vmem:[#allocation2 + $0x60] sm:$0xff] %v450
  %676 = vst [vmem:[#allocation2 + $0x68] sm:$0xff] %v451
  %677 = vst [vmem:[#allocation2 + $0x70] sm:$0xff] %v452
  %678 = vst [vmem:[#allocation2 + $0x78] sm:$0xff] %v453
  %679 = vst [vmem:[#allocation2 + $0x80] sm:$0xff] %v462
  %680 = vst [vmem:[#allocation2 + $0x88] sm:$0xff] %v463
  %681 = vst [vmem:[#allocation2 + $0x90] sm:$0xff] %v464
  %682 = vst [vmem:[#allocation2 + $0x98] sm:$0xff] %v465
  %683 = vst [vmem:[#allocation2 + $0xa0] sm:$0xff] %v466
  %684 = vst [vmem:[#allocation2 + $0xa8] sm:$0xff] %v467
  %685 = vst [vmem:[#allocation2 + $0xb0] sm:$0xff] %v468
  %686 = vst [vmem:[#allocation2 + $0xb8] sm:$0xff] %v469
  %v687 = vld [vmem:[#allocation2] sm:$0xff]
  %v688 = vld [vmem:[#allocation2 + $0x8] sm:$0xff]
  %v689 = vld [vmem:[#allocation2 + $0x10] sm:$0xff]
  %v690 = vld [vmem:[#allocation2 + $0x18] sm:$0xff]
  %v691 = vld [vmem:[#allocation2 + $0x20] sm:$0xff]
  %v692 = vld [vmem:[#allocation2 + $0x28] sm:$0xff]
  %v693 = vld [vmem:[#allocation2 + $0x30] sm:$0xff]
  %v694 = vld [vmem:[#allocation2 + $0x38] sm:$0xff]
  %v695 = vld [vmem:[#allocation2 + $0x40] sm:$0xff]
  %v696 = vld [vmem:[#allocation2 + $0x48] sm:$0xff]
  %v697 = vld [vmem:[#allocation2 + $0x50] sm:$0xff]
  %v698 = vld [vmem:[#allocation2 + $0x58] sm:$0xff]
  %v699 = vld [vmem:[#allocation2 + $0x60] sm:$0xff]
  %v700 = vld [vmem:[#allocation2 + $0x68] sm:$0xff]
  %v701 = vld [vmem:[#allocation2 + $0x70] sm:$0xff]
  %v702 = vld [vmem:[#allocation2 + $0x78] sm:$0xff]
  %v703 = vld [vmem:[#allocation2 + $0x80] sm:$0xff]
  %v704 = vld [vmem:[#allocation2 + $0x88] sm:$0xff]
  %v705 = vld [vmem:[#allocation2 + $0x90] sm:$0xff]
  %v706 = vld [vmem:[#allocation2 + $0x98] sm:$0xff]
  %v707 = vld [vmem:[#allocation2 + $0xa0] sm:$0xff]
  %v708 = vld [vmem:[#allocation2 + $0xa8] sm:$0xff]
  %v709 = vld [vmem:[#allocation2 + $0xb0] sm:$0xff]
  %v710 = vld [vmem:[#allocation2 + $0xb8] sm:$0xff]
  %s711 = scalar_lea.vmem %s2, 128
  %v712 = vld [vmem:[%s711] sm:$0xff]
  %v713 = vld [vmem:[%s711 + $0x8] sm:$0xff]
  %v714 = vld [vmem:[%s711 + $0x10] sm:$0xff]
  %v715 = vld [vmem:[%s711 + $0x18] sm:$0xff]
  %v716 = vld [vmem:[%s711 + $0x20] sm:$0xff]
  %v717 = vld [vmem:[%s711 + $0x28] sm:$0xff]
  %v718 = vld [vmem:[%s711 + $0x30] sm:$0xff]
  %v719 = vld [vmem:[%s711 + $0x38] sm:$0xff]
  %v720 = vld [vmem:[%s711 + $0x40] sm:$0xff]
  %v721 = vld [vmem:[%s711 + $0x48] sm:$0xff]
  %v722 = vld [vmem:[%s711 + $0x50] sm:$0xff]
  %v723 = vld [vmem:[%s711 + $0x58] sm:$0xff]
  %v724 = vld [vmem:[%s711 + $0x60] sm:$0xff]
  %v725 = vld [vmem:[%s711 + $0x68] sm:$0xff]
  %v726 = vld [vmem:[%s711 + $0x70] sm:$0xff]
  %v727 = vld [vmem:[%s711 + $0x78] sm:$0xff]
  %728 = vmatprep.subr.mxu0 0.0
  %729 = vmatpush1.msra.mxu0 %v727
  %730 = vmatprep.subr.mxu0 0.0
  %731 = vmatpush1.msra.mxu0 %v726
  %732 = vmatprep.subr.mxu0 0.0
  %733 = vmatpush1.msra.mxu0 %v725
  %734 = vmatprep.subr.mxu0 0.0
  %735 = vmatpush1.msra.mxu0 %v724
  %736 = vmatprep.subr.mxu0 0.0
  %737 = vmatpush1.msra.mxu0 %v723
  %738 = vmatprep.subr.mxu0 0.0
  %739 = vmatpush1.msra.mxu0 %v722
  %740 = vmatprep.subr.mxu0 0.0
  %741 = vmatpush1.msra.mxu0 %v721
  %742 = vmatprep.subr.mxu0 0.0
  %743 = vmatpush1.msra.mxu0 %v720
  %744 = vmatprep.subr.mxu0 0.0
  %745 = vmatpush1.msra.mxu0 %v719
  %746 = vmatprep.subr.mxu0 0.0
  %747 = vmatpush1.msra.mxu0 %v718
  %748 = vmatprep.subr.mxu0 0.0
  %749 = vmatpush1.msra.mxu0 %v717
  %750 = vmatprep.subr.mxu0 0.0
  %751 = vmatpush1.msra.mxu0 %v716
  %752 = vmatprep.subr.mxu0 0.0
  %753 = vmatpush1.msra.mxu0 %v715
  %754 = vmatprep.subr.mxu0 0.0
  %755 = vmatpush1.msra.mxu0 %v714
  %756 = vmatprep.subr.mxu0 0.0
  %757 = vmatpush1.msra.mxu0 %v713
  %758 = vmatprep.subr.mxu0 0.0
  %759 = vmatpush1.msra.mxu0 %v712
  %760 = vmatprep.subr.mxu0 0.0
  %761 = vmatpush2.msra.mxu0 0.0
  %762 = vmatprep.subr.mxu0 0.0
  %763 = vmatpush2.msra.mxu0 0.0
  %764 = vmatprep.subr.mxu0 0.0
  %765 = vmatpush2.msra.mxu0 0.0
  %766 = vmatprep.subr.mxu0 0.0
  %767 = vmatpush2.msra.mxu0 0.0
  %768 = vmatprep.subr.mxu0 0.0
  %769 = vmatpush2.msra.mxu0 0.0
  %770 = vmatprep.subr.mxu0 0.0
  %771 = vmatpush2.msra.mxu0 0.0
  %772 = vmatprep.subr.mxu0 0.0
  %773 = vmatpush2.msra.mxu0 0.0
  %774 = vmatprep.subr.mxu0 0.0
  %775 = vmatpush2.msra.mxu0 0.0
  %776 = vmatprep.subr.mxu0 0.0
  %777 = vmatpush2.msra.mxu0 0.0
  %778 = vmatprep.subr.mxu0 0.0
  %779 = vmatpush2.msra.mxu0 0.0
  %780 = vmatprep.subr.mxu0 0.0
  %781 = vmatpush2.msra.mxu0 0.0
  %782 = vmatprep.subr.mxu0 0.0
  %783 = vmatpush2.msra.mxu0 0.0
  %784 = vmatprep.subr.mxu0 0.0
  %785 = vmatpush2.msra.mxu0 0.0
  %786 = vmatprep.subr.mxu0 0.0
  %787 = vmatpush2.msra.mxu0 0.0
  %788 = vmatprep.subr.mxu0 0.0
  %789 = vmatpush2.msra.mxu0 0.0
  %790 = vmatprep.subr.mxu0 0.0
  %791 = vmatpush2.msra.mxu0 0.0
  %792 = vmatprep.mubr.f32.mxu0 0.0
  %793 = vmatmul.mubr.f32.gmra.mxu0 %v687
  %v794 = vpop.f32.mrf.mxu0
  %v795 = vadd.f32 0.0, %v794
  %v796 = vpop.f32.mrf.mxu0
  %797 = vmatprep.mubr.f32.mxu0 0.0
  %798 = vmatmul.mubr.f32.gmra.mxu0 %v688
  %v799 = vpop.f32.mrf.mxu0
  %v800 = vadd.f32 0.0, %v799
  %v801 = vpop.f32.mrf.mxu0
  %802 = vmatprep.mubr.f32.mxu0 0.0
  %803 = vmatmul.mubr.f32.gmra.mxu0 %v689
  %v804 = vpop.f32.mrf.mxu0
  %v805 = vadd.f32 0.0, %v804
  %v806 = vpop.f32.mrf.mxu0
  %807 = vmatprep.mubr.f32.mxu0 0.0
  %808 = vmatmul.mubr.f32.gmra.mxu0 %v690
  %v809 = vpop.f32.mrf.mxu0
  %v810 = vadd.f32 0.0, %v809
  %v811 = vpop.f32.mrf.mxu0
  %812 = vmatprep.mubr.f32.mxu0 0.0
  %813 = vmatmul.mubr.f32.gmra.mxu0 %v691
  %v814 = vpop.f32.mrf.mxu0
  %v815 = vadd.f32 0.0, %v814
  %v816 = vpop.f32.mrf.mxu0
  %817 = vmatprep.mubr.f32.mxu0 0.0
  %818 = vmatmul.mubr.f32.gmra.mxu0 %v692
  %v819 = vpop.f32.mrf.mxu0
  %v820 = vadd.f32 0.0, %v819
  %v821 = vpop.f32.mrf.mxu0
  %822 = vmatprep.mubr.f32.mxu0 0.0
  %823 = vmatmul.mubr.f32.gmra.mxu0 %v693
  %v824 = vpop.f32.mrf.mxu0
  %v825 = vadd.f32 0.0, %v824
  %v826 = vpop.f32.mrf.mxu0
  %827 = vmatprep.mubr.f32.mxu0 0.0
  %828 = vmatmul.mubr.f32.gmra.mxu0 %v694
  %v829 = vpop.f32.mrf.mxu0
  %v830 = vadd.f32 0.0, %v829
  %v831 = vpop.f32.mrf.mxu0
  %832 = vmatprep.mubr.f32.mxu0 0.0
  %833 = vmatmul.mubr.f32.gmra.mxu0 %v695
  %v834 = vpop.f32.mrf.mxu0
  %v835 = vadd.f32 0.0, %v834
  %v836 = vpop.f32.mrf.mxu0
  %837 = vmatprep.mubr.f32.mxu0 0.0
  %838 = vmatmul.mubr.f32.gmra.mxu0 %v696
  %v839 = vpop.f32.mrf.mxu0
  %v840 = vadd.f32 0.0, %v839
  %v841 = vpop.f32.mrf.mxu0
  %842 = vmatprep.mubr.f32.mxu0 0.0
  %843 = vmatmul.mubr.f32.gmra.mxu0 %v697
  %v844 = vpop.f32.mrf.mxu0
  %v845 = vadd.f32 0.0, %v844
  %v846 = vpop.f32.mrf.mxu0
  %847 = vmatprep.mubr.f32.mxu0 0.0
  %848 = vmatmul.mubr.f32.gmra.mxu0 %v698
  %v849 = vpop.f32.mrf.mxu0
  %v850 = vadd.f32 0.0, %v849
  %v851 = vpop.f32.mrf.mxu0
  %852 = vmatprep.mubr.f32.mxu0 0.0
  %853 = vmatmul.mubr.f32.gmra.mxu0 %v699
  %v854 = vpop.f32.mrf.mxu0
  %v855 = vadd.f32 0.0, %v854
  %v856 = vpop.f32.mrf.mxu0
  %857 = vmatprep.mubr.f32.mxu0 0.0
  %858 = vmatmul.mubr.f32.gmra.mxu0 %v700
  %v859 = vpop.f32.mrf.mxu0
  %v860 = vadd.f32 0.0, %v859
  %v861 = vpop.f32.mrf.mxu0
  %862 = vmatprep.mubr.f32.mxu0 0.0
  %863 = vmatmul.mubr.f32.gmra.mxu0 %v701
  %v864 = vpop.f32.mrf.mxu0
  %v865 = vadd.f32 0.0, %v864
  %v866 = vpop.f32.mrf.mxu0
  %867 = vmatprep.mubr.f32.mxu0 0.0
  %868 = vmatmul.mubr.f32.gmra.mxu0 %v702
  %v869 = vpop.f32.mrf.mxu0
  %v870 = vadd.f32 0.0, %v869
  %v871 = vpop.f32.mrf.mxu0
  %872 = vmatprep.mubr.f32.mxu0 0.0
  %873 = vmatmul.mubr.f32.gmra.mxu0 %v703
  %v874 = vpop.f32.mrf.mxu0
  %v875 = vadd.f32 0.0, %v874
  %v876 = vpop.f32.mrf.mxu0
  %877 = vmatprep.mubr.f32.mxu0 0.0
  %878 = vmatmul.mubr.f32.gmra.mxu0 %v704
  %v879 = vpop.f32.mrf.mxu0
  %v880 = vadd.f32 0.0, %v879
  %v881 = vpop.f32.mrf.mxu0
  %882 = vmatprep.mubr.f32.mxu0 0.0
  %883 = vmatmul.mubr.f32.gmra.mxu0 %v705
  %v884 = vpop.f32.mrf.mxu0
  %v885 = vadd.f32 0.0, %v884
  %v886 = vpop.f32.mrf.mxu0
  %887 = vmatprep.mubr.f32.mxu0 0.0
  %888 = vmatmul.mubr.f32.gmra.mxu0 %v706
  %v889 = vpop.f32.mrf.mxu0
  %v890 = vadd.f32 0.0, %v889
  %v891 = vpop.f32.mrf.mxu0
  %892 = vmatprep.mubr.f32.mxu0 0.0
  %893 = vmatmul.mubr.f32.gmra.mxu0 %v707
  %v894 = vpop.f32.mrf.mxu0
  %v895 = vadd.f32 0.0, %v894
  %v896 = vpop.f32.mrf.mxu0
  %897 = vmatprep.mubr.f32.mxu0 0.0
  %898 = vmatmul.mubr.f32.gmra.mxu0 %v708
  %v899 = vpop.f32.mrf.mxu0
  %v900 = vadd.f32 0.0, %v899
  %v901 = vpop.f32.mrf.mxu0
  %902 = vmatprep.mubr.f32.mxu0 0.0
  %903 = vmatmul.mubr.f32.gmra.mxu0 %v709
  %v904 = vpop.f32.mrf.mxu0
  %v905 = vadd.f32 0.0, %v904
  %v906 = vpop.f32.mrf.mxu0
  %907 = vmatprep.mubr.f32.mxu0 0.0
  %908 = vmatmul.mubr.f32.gmra.mxu0 %v710
  %v909 = vpop.f32.mrf.mxu0
  %v910 = vadd.f32 0.0, %v909
  %v911 = vpop.f32.mrf.mxu0
  %912 = vdwg.mxu0
  %913 = vst [vmem:[#allocation3] sm:$0xff] %v470
  %914 = vst [vmem:[#allocation3 + $0x8] sm:$0xff] %v471
  %915 = vst [vmem:[#allocation3 + $0x10] sm:$0xff] %v472
  %916 = vst [vmem:[#allocation3 + $0x18] sm:$0xff] %v473
  %917 = vst [vmem:[#allocation3 + $0x20] sm:$0xff] %v474
  %918 = vst [vmem:[#allocation3 + $0x28] sm:$0xff] %v475
  %919 = vst [vmem:[#allocation3 + $0x30] sm:$0xff] %v476
  %920 = vst [vmem:[#allocation3 + $0x38] sm:$0xff] %v477
  %921 = vst [vmem:[#allocation3 + $0x40] sm:$0xff] %v502
  %922 = vst [vmem:[#allocation3 + $0x48] sm:$0xff] %v503
  %923 = vst [vmem:[#allocation3 + $0x50] sm:$0xff] %v504
  %924 = vst [vmem:[#allocation3 + $0x58] sm:$0xff] %v505
  %925 = vst [vmem:[#allocation3 + $0x60] sm:$0xff] %v506
  %926 = vst [vmem:[#allocation3 + $0x68] sm:$0xff] %v507
  %927 = vst [vmem:[#allocation3 + $0x70] sm:$0xff] %v508
  %928 = vst [vmem:[#allocation3 + $0x78] sm:$0xff] %v509
  %929 = vst [vmem:[#allocation3 + $0x80] sm:$0xff] %v518
  %930 = vst [vmem:[#allocation3 + $0x88] sm:$0xff] %v519
  %931 = vst [vmem:[#allocation3 + $0x90] sm:$0xff] %v520
  %932 = vst [vmem:[#allocation3 + $0x98] sm:$0xff] %v521
  %933 = vst [vmem:[#allocation3 + $0xa0] sm:$0xff] %v522
  %934 = vst [vmem:[#allocation3 + $0xa8] sm:$0xff] %v523
  %935 = vst [vmem:[#allocation3 + $0xb0] sm:$0xff] %v524
  %936 = vst [vmem:[#allocation3 + $0xb8] sm:$0xff] %v525
  %937 = vst [vmem:[#allocation3 + $0xc0] sm:$0xff] %v478
  %938 = vst [vmem:[#allocation3 + $0xc8] sm:$0xff] %v479
  %939 = vst [vmem:[#allocation3 + $0xd0] sm:$0xff] %v480
  %940 = vst [vmem:[#allocation3 + $0xd8] sm:$0xff] %v481
  %941 = vst [vmem:[#allocation3 + $0xe0] sm:$0xff] %v482
  %942 = vst [vmem:[#allocation3 + $0xe8] sm:$0xff] %v483
  %943 = vst [vmem:[#allocation3 + $0xf0] sm:$0xff] %v484
  %944 = vst [vmem:[#allocation3 + $0xf8] sm:$0xff] %v485
  %945 = vst [vmem:[#allocation3 + $0x100] sm:$0xff] %v534
  %946 = vst [vmem:[#allocation3 + $0x108] sm:$0xff] %v535
  %947 = vst [vmem:[#allocation3 + $0x110] sm:$0xff] %v536
  %948 = vst [vmem:[#allocation3 + $0x118] sm:$0xff] %v537
  %949 = vst [vmem:[#allocation3 + $0x120] sm:$0xff] %v538
  %950 = vst [vmem:[#allocation3 + $0x128] sm:$0xff] %v539
  %951 = vst [vmem:[#allocation3 + $0x130] sm:$0xff] %v540
  %952 = vst [vmem:[#allocation3 + $0x138] sm:$0xff] %v541
  %953 = vst [vmem:[#allocation3 + $0x140] sm:$0xff] %v486
  %954 = vst [vmem:[#allocation3 + $0x148] sm:$0xff] %v487
  %955 = vst [vmem:[#allocation3 + $0x150] sm:$0xff] %v488
  %956 = vst [vmem:[#allocation3 + $0x158] sm:$0xff] %v489
  %957 = vst [vmem:[#allocation3 + $0x160] sm:$0xff] %v490
  %958 = vst [vmem:[#allocation3 + $0x168] sm:$0xff] %v491
  %959 = vst [vmem:[#allocation3 + $0x170] sm:$0xff] %v492
  %960 = vst [vmem:[#allocation3 + $0x178] sm:$0xff] %v493
  %v961 = vld [vmem:[#allocation3] sm:$0xff]
  %v962 = vld [vmem:[#allocation3 + $0x8] sm:$0xff]
  %v963 = vld [vmem:[#allocation3 + $0x10] sm:$0xff]
  %v964 = vld [vmem:[#allocation3 + $0x18] sm:$0xff]
  %v965 = vld [vmem:[#allocation3 + $0x20] sm:$0xff]
  %v966 = vld [vmem:[#allocation3 + $0x28] sm:$0xff]
  %v967 = vld [vmem:[#allocation3 + $0x30] sm:$0xff]
  %v968 = vld [vmem:[#allocation3 + $0x38] sm:$0xff]
  %v969 = vld [vmem:[#allocation3 + $0x40] sm:$0xff]
  %v970 = vld [vmem:[#allocation3 + $0x48] sm:$0xff]
  %v971 = vld [vmem:[#allocation3 + $0x50] sm:$0xff]
  %v972 = vld [vmem:[#allocation3 + $0x58] sm:$0xff]
  %v973 = vld [vmem:[#allocation3 + $0x60] sm:$0xff]
  %v974 = vld [vmem:[#allocation3 + $0x68] sm:$0xff]
  %v975 = vld [vmem:[#allocation3 + $0x70] sm:$0xff]
  %v976 = vld [vmem:[#allocation3 + $0x78] sm:$0xff]
  %v977 = vld [vmem:[#allocation3 + $0x80] sm:$0xff]
  %v978 = vld [vmem:[#allocation3 + $0x88] sm:$0xff]
  %v979 = vld [vmem:[#allocation3 + $0x90] sm:$0xff]
  %v980 = vld [vmem:[#allocation3 + $0x98] sm:$0xff]
  %v981 = vld [vmem:[#allocation3 + $0xa0] sm:$0xff]
  %v982 = vld [vmem:[#allocation3 + $0xa8] sm:$0xff]
  %v983 = vld [vmem:[#allocation3 + $0xb0] sm:$0xff]
  %v984 = vld [vmem:[#allocation3 + $0xb8] sm:$0xff]
  %v985 = vld [vmem:[#allocation3 + $0xc0] sm:$0xff]
  %v986 = vld [vmem:[#allocation3 + $0xc8] sm:$0xff]
  %v987 = vld [vmem:[#allocation3 + $0xd0] sm:$0xff]
  %v988 = vld [vmem:[#allocation3 + $0xd8] sm:$0xff]
  %v989 = vld [vmem:[#allocation3 + $0xe0] sm:$0xff]
  %v990 = vld [vmem:[#allocation3 + $0xe8] sm:$0xff]
  %v991 = vld [vmem:[#allocation3 + $0xf0] sm:$0xff]
  %v992 = vld [vmem:[#allocation3 + $0xf8] sm:$0xff]
  %v993 = vld [vmem:[#allocation3 + $0x100] sm:$0xff]
  %v994 = vld [vmem:[#allocation3 + $0x108] sm:$0xff]
  %v995 = vld [vmem:[#allocation3 + $0x110] sm:$0xff]
  %v996 = vld [vmem:[#allocation3 + $0x118] sm:$0xff]
  %v997 = vld [vmem:[#allocation3 + $0x120] sm:$0xff]
  %v998 = vld [vmem:[#allocation3 + $0x128] sm:$0xff]
  %v999 = vld [vmem:[#allocation3 + $0x130] sm:$0xff]
  %v1000 = vld [vmem:[#allocation3 + $0x138] sm:$0xff]
  %v1001 = vld [vmem:[#allocation3 + $0x140] sm:$0xff]
  %v1002 = vld [vmem:[#allocation3 + $0x148] sm:$0xff]
  %v1003 = vld [vmem:[#allocation3 + $0x150] sm:$0xff]
  %v1004 = vld [vmem:[#allocation3 + $0x158] sm:$0xff]
  %v1005 = vld [vmem:[#allocation3 + $0x160] sm:$0xff]
  %v1006 = vld [vmem:[#allocation3 + $0x168] sm:$0xff]
  %v1007 = vld [vmem:[#allocation3 + $0x170] sm:$0xff]
  %v1008 = vld [vmem:[#allocation3 + $0x178] sm:$0xff]
  %s1009 = scalar_lea.vmem %s2, 256
  %v1010 = vld [vmem:[%s1009] sm:$0xff]
  %v1011 = vld [vmem:[%s1009 + $0x8] sm:$0xff]
  %v1012 = vld [vmem:[%s1009 + $0x10] sm:$0xff]
  %v1013 = vld [vmem:[%s1009 + $0x18] sm:$0xff]
  %v1014 = vld [vmem:[%s1009 + $0x20] sm:$0xff]
  %v1015 = vld [vmem:[%s1009 + $0x28] sm:$0xff]
  %v1016 = vld [vmem:[%s1009 + $0x30] sm:$0xff]
  %v1017 = vld [vmem:[%s1009 + $0x38] sm:$0xff]
  %v1018 = vld [vmem:[%s1009 + $0x40] sm:$0xff]
  %v1019 = vld [vmem:[%s1009 + $0x48] sm:$0xff]
  %v1020 = vld [vmem:[%s1009 + $0x50] sm:$0xff]
  %v1021 = vld [vmem:[%s1009 + $0x58] sm:$0xff]
  %v1022 = vld [vmem:[%s1009 + $0x60] sm:$0xff]
  %v1023 = vld [vmem:[%s1009 + $0x68] sm:$0xff]
  %v1024 = vld [vmem:[%s1009 + $0x70] sm:$0xff]
  %v1025 = vld [vmem:[%s1009 + $0x78] sm:$0xff]
  %1026 = vmatprep.subr.mxu0 0.0
  %1027 = vmatpush1.msra.mxu0 %v1025
  %1028 = vmatprep.subr.mxu0 0.0
  %1029 = vmatpush1.msra.mxu0 %v1024
  %1030 = vmatprep.subr.mxu0 0.0
  %1031 = vmatpush1.msra.mxu0 %v1023
  %1032 = vmatprep.subr.mxu0 0.0
  %1033 = vmatpush1.msra.mxu0 %v1022
  %1034 = vmatprep.subr.mxu0 0.0
  %1035 = vmatpush1.msra.mxu0 %v1021
  %1036 = vmatprep.subr.mxu0 0.0
  %1037 = vmatpush1.msra.mxu0 %v1020
  %1038 = vmatprep.subr.mxu0 0.0
  %1039 = vmatpush1.msra.mxu0 %v1019
  %1040 = vmatprep.subr.mxu0 0.0
  %1041 = vmatpush1.msra.mxu0 %v1018
  %1042 = vmatprep.subr.mxu0 0.0
  %1043 = vmatpush1.msra.mxu0 %v1017
  %1044 = vmatprep.subr.mxu0 0.0
  %1045 = vmatpush1.msra.mxu0 %v1016
  %1046 = vmatprep.subr.mxu0 0.0
  %1047 = vmatpush1.msra.mxu0 %v1015
  %1048 = vmatprep.subr.mxu0 0.0
  %1049 = vmatpush1.msra.mxu0 %v1014
  %1050 = vmatprep.subr.mxu0 0.0
  %1051 = vmatpush1.msra.mxu0 %v1013
  %1052 = vmatprep.subr.mxu0 0.0
  %1053 = vmatpush1.msra.mxu0 %v1012
  %1054 = vmatprep.subr.mxu0 0.0
  %1055 = vmatpush1.msra.mxu0 %v1011
  %1056 = vmatprep.subr.mxu0 0.0
  %1057 = vmatpush1.msra.mxu0 %v1010
  %1058 = vmatprep.subr.mxu0 0.0
  %1059 = vmatpush2.msra.mxu0 0.0
  %1060 = vmatprep.subr.mxu0 0.0
  %1061 = vmatpush2.msra.mxu0 0.0
  %1062 = vmatprep.subr.mxu0 0.0
  %1063 = vmatpush2.msra.mxu0 0.0
  %1064 = vmatprep.subr.mxu0 0.0
  %1065 = vmatpush2.msra.mxu0 0.0
  %1066 = vmatprep.subr.mxu0 0.0
  %1067 = vmatpush2.msra.mxu0 0.0
  %1068 = vmatprep.subr.mxu0 0.0
  %1069 = vmatpush2.msra.mxu0 0.0
  %1070 = vmatprep.subr.mxu0 0.0
  %1071 = vmatpush2.msra.mxu0 0.0
  %1072 = vmatprep.subr.mxu0 0.0
  %1073 = vmatpush2.msra.mxu0 0.0
  %1074 = vmatprep.subr.mxu0 0.0
  %1075 = vmatpush2.msra.mxu0 0.0
  %1076 = vmatprep.subr.mxu0 0.0
  %1077 = vmatpush2.msra.mxu0 0.0
  %1078 = vmatprep.subr.mxu0 0.0
  %1079 = vmatpush2.msra.mxu0 0.0
  %1080 = vmatprep.subr.mxu0 0.0
  %1081 = vmatpush2.msra.mxu0 0.0
  %1082 = vmatprep.subr.mxu0 0.0
  %1083 = vmatpush2.msra.mxu0 0.0
  %1084 = vmatprep.subr.mxu0 0.0
  %1085 = vmatpush2.msra.mxu0 0.0
  %1086 = vmatprep.subr.mxu0 0.0
  %1087 = vmatpush2.msra.mxu0 0.0
  %1088 = vmatprep.subr.mxu0 0.0
  %1089 = vmatpush2.msra.mxu0 0.0
  %1090 = vmatprep.mubr.f32.mxu0 0.0
  %1091 = vmatmul.mubr.f32.gmra.mxu0 %v961
  %v1092 = vpop.f32.mrf.mxu0
  %v1093 = vadd.f32 0.0, %v1092
  %v1094 = vpop.f32.mrf.mxu0
  %1095 = vmatprep.mubr.f32.mxu0 0.0
  %1096 = vmatmul.mubr.f32.gmra.mxu0 %v962
  %v1097 = vpop.f32.mrf.mxu0
  %v1098 = vadd.f32 0.0, %v1097
  %v1099 = vpop.f32.mrf.mxu0
  %1100 = vmatprep.mubr.f32.mxu0 0.0
  %1101 = vmatmul.mubr.f32.gmra.mxu0 %v963
  %v1102 = vpop.f32.mrf.mxu0
  %v1103 = vadd.f32 0.0, %v1102
  %v1104 = vpop.f32.mrf.mxu0
  %1105 = vmatprep.mubr.f32.mxu0 0.0
  %1106 = vmatmul.mubr.f32.gmra.mxu0 %v964
  %v1107 = vpop.f32.mrf.mxu0
  %v1108 = vadd.f32 0.0, %v1107
  %v1109 = vpop.f32.mrf.mxu0
  %1110 = vmatprep.mubr.f32.mxu0 0.0
  %1111 = vmatmul.mubr.f32.gmra.mxu0 %v965
  %v1112 = vpop.f32.mrf.mxu0
  %v1113 = vadd.f32 0.0, %v1112
  %v1114 = vpop.f32.mrf.mxu0
  %1115 = vmatprep.mubr.f32.mxu0 0.0
  %1116 = vmatmul.mubr.f32.gmra.mxu0 %v966
  %v1117 = vpop.f32.mrf.mxu0
  %v1118 = vadd.f32 0.0, %v1117
  %v1119 = vpop.f32.mrf.mxu0
  %1120 = vmatprep.mubr.f32.mxu0 0.0
  %1121 = vmatmul.mubr.f32.gmra.mxu0 %v967
  %v1122 = vpop.f32.mrf.mxu0
  %v1123 = vadd.f32 0.0, %v1122
  %v1124 = vpop.f32.mrf.mxu0
  %1125 = vmatprep.mubr.f32.mxu0 0.0
  %1126 = vmatmul.mubr.f32.gmra.mxu0 %v968
  %v1127 = vpop.f32.mrf.mxu0
  %v1128 = vadd.f32 0.0, %v1127
  %v1129 = vpop.f32.mrf.mxu0
  %1130 = vmatprep.mubr.f32.mxu0 0.0
  %1131 = vmatmul.mubr.f32.gmra.mxu0 %v969
  %v1132 = vpop.f32.mrf.mxu0
  %v1133 = vadd.f32 0.0, %v1132
  %v1134 = vpop.f32.mrf.mxu0
  %1135 = vmatprep.mubr.f32.mxu0 0.0
  %1136 = vmatmul.mubr.f32.gmra.mxu0 %v970
  %v1137 = vpop.f32.mrf.mxu0
  %v1138 = vadd.f32 0.0, %v1137
  %v1139 = vpop.f32.mrf.mxu0
  %1140 = vmatprep.mubr.f32.mxu0 0.0
  %1141 = vmatmul.mubr.f32.gmra.mxu0 %v971
  %v1142 = vpop.f32.mrf.mxu0
  %v1143 = vadd.f32 0.0, %v1142
  %v1144 = vpop.f32.mrf.mxu0
  %1145 = vmatprep.mubr.f32.mxu0 0.0
  %1146 = vmatmul.mubr.f32.gmra.mxu0 %v972
  %v1147 = vpop.f32.mrf.mxu0
  %v1148 = vadd.f32 0.0, %v1147
  %v1149 = vpop.f32.mrf.mxu0
  %1150 = vmatprep.mubr.f32.mxu0 0.0
  %1151 = vmatmul.mubr.f32.gmra.mxu0 %v973
  %v1152 = vpop.f32.mrf.mxu0
  %v1153 = vadd.f32 0.0, %v1152
  %v1154 = vpop.f32.mrf.mxu0
  %1155 = vmatprep.mubr.f32.mxu0 0.0
  %1156 = vmatmul.mubr.f32.gmra.mxu0 %v974
  %v1157 = vpop.f32.mrf.mxu0
  %v1158 = vadd.f32 0.0, %v1157
  %v1159 = vpop.f32.mrf.mxu0
  %1160 = vmatprep.mubr.f32.mxu0 0.0
  %1161 = vmatmul.mubr.f32.gmra.mxu0 %v975
  %v1162 = vpop.f32.mrf.mxu0
  %v1163 = vadd.f32 0.0, %v1162
  %v1164 = vpop.f32.mrf.mxu0
  %1165 = vmatprep.mubr.f32.mxu0 0.0
  %1166 = vmatmul.mubr.f32.gmra.mxu0 %v976
  %v1167 = vpop.f32.mrf.mxu0
  %v1168 = vadd.f32 0.0, %v1167
  %v1169 = vpop.f32.mrf.mxu0
  %1170 = vmatprep.mubr.f32.mxu0 0.0
  %1171 = vmatmul.mubr.f32.gmra.mxu0 %v977
  %v1172 = vpop.f32.mrf.mxu0
  %v1173 = vadd.f32 0.0, %v1172
  %v1174 = vpop.f32.mrf.mxu0
  %1175 = vmatprep.mubr.f32.mxu0 0.0
  %1176 = vmatmul.mubr.f32.gmra.mxu0 %v978
  %v1177 = vpop.f32.mrf.mxu0
  %v1178 = vadd.f32 0.0, %v1177
  %v1179 = vpop.f32.mrf.mxu0
  %1180 = vmatprep.mubr.f32.mxu0 0.0
  %1181 = vmatmul.mubr.f32.gmra.mxu0 %v979
  %v1182 = vpop.f32.mrf.mxu0
  %v1183 = vadd.f32 0.0, %v1182
  %v1184 = vpop.f32.mrf.mxu0
  %1185 = vmatprep.mubr.f32.mxu0 0.0
  %1186 = vmatmul.mubr.f32.gmra.mxu0 %v980
  %v1187 = vpop.f32.mrf.mxu0
  %v1188 = vadd.f32 0.0, %v1187
  %v1189 = vpop.f32.mrf.mxu0
  %1190 = vmatprep.mubr.f32.mxu0 0.0
  %1191 = vmatmul.mubr.f32.gmra.mxu0 %v981
  %v1192 = vpop.f32.mrf.mxu0
  %v1193 = vadd.f32 0.0, %v1192
  %v1194 = vpop.f32.mrf.mxu0
  %1195 = vmatprep.mubr.f32.mxu0 0.0
  %1196 = vmatmul.mubr.f32.gmra.mxu0 %v982
  %v1197 = vpop.f32.mrf.mxu0
  %v1198 = vadd.f32 0.0, %v1197
  %v1199 = vpop.f32.mrf.mxu0
  %1200 = vmatprep.mubr.f32.mxu0 0.0
  %1201 = vmatmul.mubr.f32.gmra.mxu0 %v983
  %v1202 = vpop.f32.mrf.mxu0
  %v1203 = vadd.f32 0.0, %v1202
  %v1204 = vpop.f32.mrf.mxu0
  %1205 = vmatprep.mubr.f32.mxu0 0.0
  %1206 = vmatmul.mubr.f32.gmra.mxu0 %v984
  %v1207 = vpop.f32.mrf.mxu0
  %v1208 = vadd.f32 0.0, %v1207
  %v1209 = vpop.f32.mrf.mxu0
  %1210 = vmatprep.mubr.f32.mxu0 0.0
  %1211 = vmatmul.mubr.f32.gmra.mxu0 %v985
  %v1212 = vpop.f32.mrf.mxu0
  %v1213 = vadd.f32 0.0, %v1212
  %v1214 = vpop.f32.mrf.mxu0
  %1215 = vmatprep.mubr.f32.mxu0 0.0
  %1216 = vmatmul.mubr.f32.gmra.mxu0 %v986
  %v1217 = vpop.f32.mrf.mxu0
  %v1218 = vadd.f32 0.0, %v1217
  %v1219 = vpop.f32.mrf.mxu0
  %1220 = vmatprep.mubr.f32.mxu0 0.0
  %1221 = vmatmul.mubr.f32.gmra.mxu0 %v987
  %v1222 = vpop.f32.mrf.mxu0
  %v1223 = vadd.f32 0.0, %v1222
  %v1224 = vpop.f32.mrf.mxu0
  %1225 = vmatprep.mubr.f32.mxu0 0.0
  %1226 = vmatmul.mubr.f32.gmra.mxu0 %v988
  %v1227 = vpop.f32.mrf.mxu0
  %v1228 = vadd.f32 0.0, %v1227
  %v1229 = vpop.f32.mrf.mxu0
  %1230 = vmatprep.mubr.f32.mxu0 0.0
  %1231 = vmatmul.mubr.f32.gmra.mxu0 %v989
  %v1232 = vpop.f32.mrf.mxu0
  %v1233 = vadd.f32 0.0, %v1232
  %v1234 = vpop.f32.mrf.mxu0
  %1235 = vmatprep.mubr.f32.mxu0 0.0
  %1236 = vmatmul.mubr.f32.gmra.mxu0 %v990
  %v1237 = vpop.f32.mrf.mxu0
  %v1238 = vadd.f32 0.0, %v1237
  %v1239 = vpop.f32.mrf.mxu0
  %1240 = vmatprep.mubr.f32.mxu0 0.0
  %1241 = vmatmul.mubr.f32.gmra.mxu0 %v991
  %v1242 = vpop.f32.mrf.mxu0
  %v1243 = vadd.f32 0.0, %v1242
  %v1244 = vpop.f32.mrf.mxu0
  %1245 = vmatprep.mubr.f32.mxu0 0.0
  %1246 = vmatmul.mubr.f32.gmra.mxu0 %v992
  %v1247 = vpop.f32.mrf.mxu0
  %v1248 = vadd.f32 0.0, %v1247
  %v1249 = vpop.f32.mrf.mxu0
  %1250 = vmatprep.mubr.f32.mxu0 0.0
  %1251 = vmatmul.mubr.f32.gmra.mxu0 %v993
  %v1252 = vpop.f32.mrf.mxu0
  %v1253 = vadd.f32 0.0, %v1252
  %v1254 = vpop.f32.mrf.mxu0
  %1255 = vmatprep.mubr.f32.mxu0 0.0
  %1256 = vmatmul.mubr.f32.gmra.mxu0 %v994
  %v1257 = vpop.f32.mrf.mxu0
  %v1258 = vadd.f32 0.0, %v1257
  %v1259 = vpop.f32.mrf.mxu0
  %1260 = vmatprep.mubr.f32.mxu0 0.0
  %1261 = vmatmul.mubr.f32.gmra.mxu0 %v995
  %v1262 = vpop.f32.mrf.mxu0
  %v1263 = vadd.f32 0.0, %v1262
  %v1264 = vpop.f32.mrf.mxu0
  %1265 = vmatprep.mubr.f32.mxu0 0.0
  %1266 = vmatmul.mubr.f32.gmra.mxu0 %v996
  %v1267 = vpop.f32.mrf.mxu0
  %v1268 = vadd.f32 0.0, %v1267
  %v1269 = vpop.f32.mrf.mxu0
  %1270 = vmatprep.mubr.f32.mxu0 0.0
  %1271 = vmatmul.mubr.f32.gmra.mxu0 %v997
  %v1272 = vpop.f32.mrf.mxu0
  %v1273 = vadd.f32 0.0, %v1272
  %v1274 = vpop.f32.mrf.mxu0
  %1275 = vmatprep.mubr.f32.mxu0 0.0
  %1276 = vmatmul.mubr.f32.gmra.mxu0 %v998
  %v1277 = vpop.f32.mrf.mxu0
  %v1278 = vadd.f32 0.0, %v1277
  %v1279 = vpop.f32.mrf.mxu0
  %1280 = vmatprep.mubr.f32.mxu0 0.0
  %1281 = vmatmul.mubr.f32.gmra.mxu0 %v999
  %v1282 = vpop.f32.mrf.mxu0
  %v1283 = vadd.f32 0.0, %v1282
  %v1284 = vpop.f32.mrf.mxu0
  %1285 = vmatprep.mubr.f32.mxu0 0.0
  %1286 = vmatmul.mubr.f32.gmra.mxu0 %v1000
  %v1287 = vpop.f32.mrf.mxu0
  %v1288 = vadd.f32 0.0, %v1287
  %v1289 = vpop.f32.mrf.mxu0
  %1290 = vmatprep.mubr.f32.mxu0 0.0
  %1291 = vmatmul.mubr.f32.gmra.mxu0 %v1001
  %v1292 = vpop.f32.mrf.mxu0
  %v1293 = vadd.f32 0.0, %v1292
  %v1294 = vpop.f32.mrf.mxu0
  %1295 = vmatprep.mubr.f32.mxu0 0.0
  %1296 = vmatmul.mubr.f32.gmra.mxu0 %v1002
  %v1297 = vpop.f32.mrf.mxu0
  %v1298 = vadd.f32 0.0, %v1297
  %v1299 = vpop.f32.mrf.mxu0
  %1300 = vmatprep.mubr.f32.mxu0 0.0
  %1301 = vmatmul.mubr.f32.gmra.mxu0 %v1003
  %v1302 = vpop.f32.mrf.mxu0
  %v1303 = vadd.f32 0.0, %v1302
  %v1304 = vpop.f32.mrf.mxu0
  %1305 = vmatprep.mubr.f32.mxu0 0.0
  %1306 = vmatmul.mubr.f32.gmra.mxu0 %v1004
  %v1307 = vpop.f32.mrf.mxu0
  %v1308 = vadd.f32 0.0, %v1307
  %v1309 = vpop.f32.mrf.mxu0
  %1310 = vmatprep.mubr.f32.mxu0 0.0
  %1311 = vmatmul.mubr.f32.gmra.mxu0 %v1005
  %v1312 = vpop.f32.mrf.mxu0
  %v1313 = vadd.f32 0.0, %v1312
  %v1314 = vpop.f32.mrf.mxu0
  %1315 = vmatprep.mubr.f32.mxu0 0.0
  %1316 = vmatmul.mubr.f32.gmra.mxu0 %v1006
  %v1317 = vpop.f32.mrf.mxu0
  %v1318 = vadd.f32 0.0, %v1317
  %v1319 = vpop.f32.mrf.mxu0
  %1320 = vmatprep.mubr.f32.mxu0 0.0
  %1321 = vmatmul.mubr.f32.gmra.mxu0 %v1007
  %v1322 = vpop.f32.mrf.mxu0
  %v1323 = vadd.f32 0.0, %v1322
  %v1324 = vpop.f32.mrf.mxu0
  %1325 = vmatprep.mubr.f32.mxu0 0.0
  %1326 = vmatmul.mubr.f32.gmra.mxu0 %v1008
  %v1327 = vpop.f32.mrf.mxu0
  %v1328 = vadd.f32 0.0, %v1327
  %v1329 = vpop.f32.mrf.mxu0
  %1330 = vdwg.mxu0
  %v1331 = vld [vmem:[%s1] sm:$0xff]
  %v1332 = vld [vmem:[%s1 + $0x8] sm:$0xff]
  %v1333 = vld [vmem:[%s1 + $0x10] sm:$0xff]
  %v1334 = vld [vmem:[%s1 + $0x18] sm:$0xff]
  %v1335 = vld [vmem:[%s1 + $0x20] sm:$0xff]
  %v1336 = vld [vmem:[%s1 + $0x28] sm:$0xff]
  %v1337 = vld [vmem:[%s1 + $0x30] sm:$0xff]
  %v1338 = vld [vmem:[%s1 + $0x38] sm:$0xff]
  %s1339 = scalar_lea.vmem %s1, 64
  %v1340 = vld [vmem:[%s1339] sm:$0xff]
  %v1341 = vld [vmem:[%s1339 + $0x8] sm:$0xff]
  %v1342 = vld [vmem:[%s1339 + $0x10] sm:$0xff]
  %v1343 = vld [vmem:[%s1339 + $0x18] sm:$0xff]
  %v1344 = vld [vmem:[%s1339 + $0x20] sm:$0xff]
  %v1345 = vld [vmem:[%s1339 + $0x28] sm:$0xff]
  %v1346 = vld [vmem:[%s1339 + $0x30] sm:$0xff]
  %v1347 = vld [vmem:[%s1339 + $0x38] sm:$0xff]
  %s1348 = scalar_lea.vmem %s1, 128
  %v1349 = vld [vmem:[%s1348] sm:$0xff]
  %v1350 = vld [vmem:[%s1348 + $0x8] sm:$0xff]
  %v1351 = vld [vmem:[%s1348 + $0x10] sm:$0xff]
  %v1352 = vld [vmem:[%s1348 + $0x18] sm:$0xff]
  %v1353 = vld [vmem:[%s1348 + $0x20] sm:$0xff]
  %v1354 = vld [vmem:[%s1348 + $0x28] sm:$0xff]
  %v1355 = vld [vmem:[%s1348 + $0x30] sm:$0xff]
  %v1356 = vld [vmem:[%s1348 + $0x38] sm:$0xff]
  %v1357 = vmul.f32 %v1331, %v625
  %v1358 = vmul.f32 %v1332, %v630
  %v1359 = vmul.f32 %v1333, %v635
  %v1360 = vmul.f32 %v1334, %v640
  %v1361 = vmul.f32 %v1335, %v645
  %v1362 = vmul.f32 %v1336, %v650
  %v1363 = vmul.f32 %v1337, %v655
  %v1364 = vmul.f32 %v1338, %v660
  %v1365 = vmul.f32 %v1340, %v795
  %v1366 = vmul.f32 %v1341, %v800
  %v1367 = vmul.f32 %v1342, %v805
  %v1368 = vmul.f32 %v1343, %v810
  %v1369 = vmul.f32 %v1344, %v815
  %v1370 = vmul.f32 %v1345, %v820
  %v1371 = vmul.f32 %v1346, %v825
  %v1372 = vmul.f32 %v1347, %v830
  %v1373 = vmul.f32 %v1340, %v835
  %v1374 = vmul.f32 %v1341, %v840
  %v1375 = vmul.f32 %v1342, %v845
  %v1376 = vmul.f32 %v1343, %v850
  %v1377 = vmul.f32 %v1344, %v855
  %v1378 = vmul.f32 %v1345, %v860
  %v1379 = vmul.f32 %v1346, %v865
  %v1380 = vmul.f32 %v1347, %v870
  %v1381 = vmul.f32 %v1340, %v875
  %v1382 = vmul.f32 %v1341, %v880
  %v1383 = vmul.f32 %v1342, %v885
  %v1384 = vmul.f32 %v1343, %v890
  %v1385 = vmul.f32 %v1344, %v895
  %v1386 = vmul.f32 %v1345, %v900
  %v1387 = vmul.f32 %v1346, %v905
  %v1388 = vmul.f32 %v1347, %v910
  %v1389 = vmul.f32 %v1349, %v1093
  %v1390 = vmul.f32 %v1350, %v1098
  %v1391 = vmul.f32 %v1351, %v1103
  %v1392 = vmul.f32 %v1352, %v1108
  %v1393 = vmul.f32 %v1353, %v1113
  %v1394 = vmul.f32 %v1354, %v1118
  %v1395 = vmul.f32 %v1355, %v1123
  %v1396 = vmul.f32 %v1356, %v1128
  %v1397 = vmul.f32 %v1349, %v1133
  %v1398 = vmul.f32 %v1350, %v1138
  %v1399 = vmul.f32 %v1351, %v1143
  %v1400 = vmul.f32 %v1352, %v1148
  %v1401 = vmul.f32 %v1353, %v1153
  %v1402 = vmul.f32 %v1354, %v1158
  %v1403 = vmul.f32 %v1355, %v1163
  %v1404 = vmul.f32 %v1356, %v1168
  %v1405 = vmul.f32 %v1349, %v1173
  %v1406 = vmul.f32 %v1350, %v1178
  %v1407 = vmul.f32 %v1351, %v1183
  %v1408 = vmul.f32 %v1352, %v1188
  %v1409 = vmul.f32 %v1353, %v1193
  %v1410 = vmul.f32 %v1354, %v1198
  %v1411 = vmul.f32 %v1355, %v1203
  %v1412 = vmul.f32 %v1356, %v1208
  %v1413 = vmul.f32 %v1349, %v1213
  %v1414 = vmul.f32 %v1350, %v1218
  %v1415 = vmul.f32 %v1351, %v1223
  %v1416 = vmul.f32 %v1352, %v1228
  %v1417 = vmul.f32 %v1353, %v1233
  %v1418 = vmul.f32 %v1354, %v1238
  %v1419 = vmul.f32 %v1355, %v1243
  %v1420 = vmul.f32 %v1356, %v1248
  %v1421 = vmul.f32 %v1349, %v1253
  %v1422 = vmul.f32 %v1350, %v1258
  %v1423 = vmul.f32 %v1351, %v1263
  %v1424 = vmul.f32 %v1352, %v1268
  %v1425 = vmul.f32 %v1353, %v1273
  %v1426 = vmul.f32 %v1354, %v1278
  %v1427 = vmul.f32 %v1355, %v1283
  %v1428 = vmul.f32 %v1356, %v1288
  %v1429 = vmul.f32 %v1349, %v1293
  %v1430 = vmul.f32 %v1350, %v1298
  %v1431 = vmul.f32 %v1351, %v1303
  %v1432 = vmul.f32 %v1352, %v1308
  %v1433 = vmul.f32 %v1353, %v1313
  %v1434 = vmul.f32 %v1354, %v1318
  %v1435 = vmul.f32 %v1355, %v1323
  %v1436 = vmul.f32 %v1356, %v1328
  %v1437 = vadd.f32 %v625, %v1093
  %v1438 = vadd.f32 %v630, %v1098
  %v1439 = vadd.f32 %v635, %v1103
  %v1440 = vadd.f32 %v640, %v1108
  %v1441 = vadd.f32 %v645, %v1113
  %v1442 = vadd.f32 %v650, %v1118
  %v1443 = vadd.f32 %v655, %v1123
  %v1444 = vadd.f32 %v660, %v1128
  %v1445 = vadd.f32 %v795, %v1133
  %v1446 = vadd.f32 %v800, %v1138
  %v1447 = vadd.f32 %v805, %v1143
  %v1448 = vadd.f32 %v810, %v1148
  %v1449 = vadd.f32 %v815, %v1153
  %v1450 = vadd.f32 %v820, %v1158
  %v1451 = vadd.f32 %v825, %v1163
  %v1452 = vadd.f32 %v830, %v1168
  %v1453 = vadd.f32 %v835, %v1173
  %v1454 = vadd.f32 %v840, %v1178
  %v1455 = vadd.f32 %v845, %v1183
  %v1456 = vadd.f32 %v850, %v1188
  %v1457 = vadd.f32 %v855, %v1193
  %v1458 = vadd.f32 %v860, %v1198
  %v1459 = vadd.f32 %v865, %v1203
  %v1460 = vadd.f32 %v870, %v1208
  %v1461 = vsub.f32 %v1133, %v795
  %v1462 = vsub.f32 %v1138, %v800
  %v1463 = vsub.f32 %v1143, %v805
  %v1464 = vsub.f32 %v1148, %v810
  %v1465 = vsub.f32 %v1153, %v815
  %v1466 = vsub.f32 %v1158, %v820
  %v1467 = vsub.f32 %v1163, %v825
  %v1468 = vsub.f32 %v1168, %v830
  %v1469 = vadd.f32 %v625, %v1213
  %v1470 = vadd.f32 %v630, %v1218
  %v1471 = vadd.f32 %v635, %v1223
  %v1472 = vadd.f32 %v640, %v1228
  %v1473 = vadd.f32 %v645, %v1233
  %v1474 = vadd.f32 %v650, %v1238
  %v1475 = vadd.f32 %v655, %v1243
  %v1476 = vadd.f32 %v660, %v1248
  %v1477 = vadd.f32 %v875, %v1253
  %v1478 = vadd.f32 %v880, %v1258
  %v1479 = vadd.f32 %v885, %v1263
  %v1480 = vadd.f32 %v890, %v1268
  %v1481 = vadd.f32 %v895, %v1273
  %v1482 = vadd.f32 %v900, %v1278
  %v1483 = vadd.f32 %v905, %v1283
  %v1484 = vadd.f32 %v910, %v1288
  %v1485 = vsub.f32 %v1173, %v835
  %v1486 = vsub.f32 %v1178, %v840
  %v1487 = vsub.f32 %v1183, %v845
  %v1488 = vsub.f32 %v1188, %v850
  %v1489 = vsub.f32 %v1193, %v855
  %v1490 = vsub.f32 %v1198, %v860
  %v1491 = vsub.f32 %v1203, %v865
  %v1492 = vsub.f32 %v1208, %v870
  %v1493 = vsub.f32 %v1253, %v875
  %v1494 = vsub.f32 %v1258, %v880
  %v1495 = vsub.f32 %v1263, %v885
  %v1496 = vsub.f32 %v1268, %v890
  %v1497 = vsub.f32 %v1273, %v895
  %v1498 = vsub.f32 %v1278, %v900
  %v1499 = vsub.f32 %v1283, %v905
  %v1500 = vsub.f32 %v1288, %v910
  %v1501 = vadd.f32 %v625, %v1293
  %v1502 = vadd.f32 %v630, %v1298
  %v1503 = vadd.f32 %v635, %v1303
  %v1504 = vadd.f32 %v640, %v1308
  %v1505 = vadd.f32 %v645, %v1313
  %v1506 = vadd.f32 %v650, %v1318
  %v1507 = vadd.f32 %v655, %v1323
  %v1508 = vadd.f32 %v660, %v1328
  %v1509 = vadd.f32 %v1357, %v1389
  %v1510 = vadd.f32 %v1358, %v1390
  %v1511 = vadd.f32 %v1359, %v1391
  %v1512 = vadd.f32 %v1360, %v1392
  %v1513 = vadd.f32 %v1361, %v1393
  %v1514 = vadd.f32 %v1362, %v1394
  %v1515 = vadd.f32 %v1363, %v1395
  %v1516 = vadd.f32 %v1364, %v1396
  %v1517 = vadd.f32 %v1365, %v1397
  %v1518 = vadd.f32 %v1366, %v1398
  %v1519 = vadd.f32 %v1367, %v1399
  %v1520 = vadd.f32 %v1368, %v1400
  %v1521 = vadd.f32 %v1369, %v1401
  %v1522 = vadd.f32 %v1370, %v1402
  %v1523 = vadd.f32 %v1371, %v1403
  %v1524 = vadd.f32 %v1372, %v1404
  %v1525 = vadd.f32 %v1373, %v1405
  %v1526 = vadd.f32 %v1374, %v1406
  %v1527 = vadd.f32 %v1375, %v1407
  %v1528 = vadd.f32 %v1376, %v1408
  %v1529 = vadd.f32 %v1377, %v1409
  %v1530 = vadd.f32 %v1378, %v1410
  %v1531 = vadd.f32 %v1379, %v1411
  %v1532 = vadd.f32 %v1380, %v1412
  %v1533 = vsub.f32 %v1397, %v1365
  %v1534 = vsub.f32 %v1398, %v1366
  %v1535 = vsub.f32 %v1399, %v1367
  %v1536 = vsub.f32 %v1400, %v1368
  %v1537 = vsub.f32 %v1401, %v1369
  %v1538 = vsub.f32 %v1402, %v1370
  %v1539 = vsub.f32 %v1403, %v1371
  %v1540 = vsub.f32 %v1404, %v1372
  %v1541 = vadd.f32 %v1357, %v1413
  %v1542 = vadd.f32 %v1358, %v1414
  %v1543 = vadd.f32 %v1359, %v1415
  %v1544 = vadd.f32 %v1360, %v1416
  %v1545 = vadd.f32 %v1361, %v1417
  %v1546 = vadd.f32 %v1362, %v1418
  %v1547 = vadd.f32 %v1363, %v1419
  %v1548 = vadd.f32 %v1364, %v1420
  %v1549 = vadd.f32 %v1381, %v1421
  %v1550 = vadd.f32 %v1382, %v1422
  %v1551 = vadd.f32 %v1383, %v1423
  %v1552 = vadd.f32 %v1384, %v1424
  %v1553 = vadd.f32 %v1385, %v1425
  %v1554 = vadd.f32 %v1386, %v1426
  %v1555 = vadd.f32 %v1387, %v1427
  %v1556 = vadd.f32 %v1388, %v1428
  %v1557 = vsub.f32 %v1405, %v1373
  %v1558 = vsub.f32 %v1406, %v1374
  %v1559 = vsub.f32 %v1407, %v1375
  %v1560 = vsub.f32 %v1408, %v1376
  %v1561 = vsub.f32 %v1409, %v1377
  %v1562 = vsub.f32 %v1410, %v1378
  %v1563 = vsub.f32 %v1411, %v1379
  %v1564 = vsub.f32 %v1412, %v1380
  %v1565 = vsub.f32 %v1421, %v1381
  %v1566 = vsub.f32 %v1422, %v1382
  %v1567 = vsub.f32 %v1423, %v1383
  %v1568 = vsub.f32 %v1424, %v1384
  %v1569 = vsub.f32 %v1425, %v1385
  %v1570 = vsub.f32 %v1426, %v1386
  %v1571 = vsub.f32 %v1427, %v1387
  %v1572 = vsub.f32 %v1428, %v1388
  %v1573 = vadd.f32 %v1357, %v1429
  %v1574 = vadd.f32 %v1358, %v1430
  %v1575 = vadd.f32 %v1359, %v1431
  %v1576 = vadd.f32 %v1360, %v1432
  %v1577 = vadd.f32 %v1361, %v1433
  %v1578 = vadd.f32 %v1362, %v1434
  %v1579 = vadd.f32 %v1363, %v1435
  %v1580 = vadd.f32 %v1364, %v1436
  %v1581 = vmul.f32 %v1509, %v1437
  %v1582 = vmul.f32 %v1510, %v1438
  %v1583 = vmul.f32 %v1511, %v1439
  %v1584 = vmul.f32 %v1512, %v1440
  %v1585 = vmul.f32 %v1513, %v1441
  %v1586 = vmul.f32 %v1514, %v1442
  %v1587 = vmul.f32 %v1515, %v1443
  %v1588 = vmul.f32 %v1516, %v1444
  %v1589 = vadd.f32 %v1581, %v1581
  %v1590 = vadd.f32 %v1582, %v1582
  %v1591 = vadd.f32 %v1583, %v1583
  %v1592 = vadd.f32 %v1584, %v1584
  %v1593 = vadd.f32 %v1585, %v1585
  %v1594 = vadd.f32 %v1586, %v1586
  %v1595 = vadd.f32 %v1587, %v1587
  %v1596 = vadd.f32 %v1588, %v1588
  %v1597 = vmul.f32 %v1517, %v1461
  %v1598 = vmul.f32 %v1518, %v1462
  %v1599 = vmul.f32 %v1519, %v1463
  %v1600 = vmul.f32 %v1520, %v1464
  %v1601 = vmul.f32 %v1521, %v1465
  %v1602 = vmul.f32 %v1522, %v1466
  %v1603 = vmul.f32 %v1523, %v1467
  %v1604 = vmul.f32 %v1524, %v1468
  %v1605 = vadd.f32 %v1589, %v1597
  %v1606 = vadd.f32 %v1590, %v1598
  %v1607 = vadd.f32 %v1591, %v1599
  %v1608 = vadd.f32 %v1592, %v1600
  %v1609 = vadd.f32 %v1593, %v1601
  %v1610 = vadd.f32 %v1594, %v1602
  %v1611 = vadd.f32 %v1595, %v1603
  %v1612 = vadd.f32 %v1596, %v1604
  %v1613 = vmul.f32 %v1445, %v1533
  %v1614 = vmul.f32 %v1446, %v1534
  %v1615 = vmul.f32 %v1447, %v1535
  %v1616 = vmul.f32 %v1448, %v1536
  %v1617 = vmul.f32 %v1449, %v1537
  %v1618 = vmul.f32 %v1450, %v1538
  %v1619 = vmul.f32 %v1451, %v1539
  %v1620 = vmul.f32 %v1452, %v1540
  %v1621 = vadd.f32 %v1605, %v1613
  %v1622 = vadd.f32 %v1606, %v1614
  %v1623 = vadd.f32 %v1607, %v1615
  %v1624 = vadd.f32 %v1608, %v1616
  %v1625 = vadd.f32 %v1609, %v1617
  %v1626 = vadd.f32 %v1610, %v1618
  %v1627 = vadd.f32 %v1611, %v1619
  %v1628 = vadd.f32 %v1612, %v1620
  %v1629 = vmul.f32 %v1525, %v1485
  %v1630 = vmul.f32 %v1526, %v1486
  %v1631 = vmul.f32 %v1527, %v1487
  %v1632 = vmul.f32 %v1528, %v1488
  %v1633 = vmul.f32 %v1529, %v1489
  %v1634 = vmul.f32 %v1530, %v1490
  %v1635 = vmul.f32 %v1531, %v1491
  %v1636 = vmul.f32 %v1532, %v1492
  %v1637 = vadd.f32 %v1621, %v1629
  %v1638 = vadd.f32 %v1622, %v1630
  %v1639 = vadd.f32 %v1623, %v1631
  %v1640 = vadd.f32 %v1624, %v1632
  %v1641 = vadd.f32 %v1625, %v1633
  %v1642 = vadd.f32 %v1626, %v1634
  %v1643 = vadd.f32 %v1627, %v1635
  %v1644 = vadd.f32 %v1628, %v1636
  %v1645 = vmul.f32 %v1453, %v1557
  %v1646 = vmul.f32 %v1454, %v1558
  %v1647 = vmul.f32 %v1455, %v1559
  %v1648 = vmul.f32 %v1456, %v1560
  %v1649 = vmul.f32 %v1457, %v1561
  %v1650 = vmul.f32 %v1458, %v1562
  %v1651 = vmul.f32 %v1459, %v1563
  %v1652 = vmul.f32 %v1460, %v1564
  %v1653 = vadd.f32 %v1637, %v1645
  %v1654 = vadd.f32 %v1638, %v1646
  %v1655 = vadd.f32 %v1639, %v1647
  %v1656 = vadd.f32 %v1640, %v1648
  %v1657 = vadd.f32 %v1641, %v1649
  %v1658 = vadd.f32 %v1642, %v1650
  %v1659 = vadd.f32 %v1643, %v1651
  %v1660 = vadd.f32 %v1644, %v1652
  %v1661 = vmul.f32 %v1509, %v1445
  %v1662 = vmul.f32 %v1510, %v1446
  %v1663 = vmul.f32 %v1511, %v1447
  %v1664 = vmul.f32 %v1512, %v1448
  %v1665 = vmul.f32 %v1513, %v1449
  %v1666 = vmul.f32 %v1514, %v1450
  %v1667 = vmul.f32 %v1515, %v1451
  %v1668 = vmul.f32 %v1516, %v1452
  %v1669 = vmul.f32 %v1437, %v1517
  %v1670 = vmul.f32 %v1438, %v1518
  %v1671 = vmul.f32 %v1439, %v1519
  %v1672 = vmul.f32 %v1440, %v1520
  %v1673 = vmul.f32 %v1441, %v1521
  %v1674 = vmul.f32 %v1442, %v1522
  %v1675 = vmul.f32 %v1443, %v1523
  %v1676 = vmul.f32 %v1444, %v1524
  %v1677 = vadd.f32 %v1661, %v1669
  %v1678 = vadd.f32 %v1662, %v1670
  %v1679 = vadd.f32 %v1663, %v1671
  %v1680 = vadd.f32 %v1664, %v1672
  %v1681 = vadd.f32 %v1665, %v1673
  %v1682 = vadd.f32 %v1666, %v1674
  %v1683 = vadd.f32 %v1667, %v1675
  %v1684 = vadd.f32 %v1668, %v1676
  %v1685 = vmul.f32 %v1517, %v1469
  %v1686 = vmul.f32 %v1518, %v1470
  %v1687 = vmul.f32 %v1519, %v1471
  %v1688 = vmul.f32 %v1520, %v1472
  %v1689 = vmul.f32 %v1521, %v1473
  %v1690 = vmul.f32 %v1522, %v1474
  %v1691 = vmul.f32 %v1523, %v1475
  %v1692 = vmul.f32 %v1524, %v1476
  %v1693 = vadd.f32 %v1677, %v1685
  %v1694 = vadd.f32 %v1678, %v1686
  %v1695 = vadd.f32 %v1679, %v1687
  %v1696 = vadd.f32 %v1680, %v1688
  %v1697 = vadd.f32 %v1681, %v1689
  %v1698 = vadd.f32 %v1682, %v1690
  %v1699 = vadd.f32 %v1683, %v1691
  %v1700 = vadd.f32 %v1684, %v1692
  %v1701 = vmul.f32 %v1445, %v1541
  %v1702 = vmul.f32 %v1446, %v1542
  %v1703 = vmul.f32 %v1447, %v1543
  %v1704 = vmul.f32 %v1448, %v1544
  %v1705 = vmul.f32 %v1449, %v1545
  %v1706 = vmul.f32 %v1450, %v1546
  %v1707 = vmul.f32 %v1451, %v1547
  %v1708 = vmul.f32 %v1452, %v1548
  %v1709 = vadd.f32 %v1693, %v1701
  %v1710 = vadd.f32 %v1694, %v1702
  %v1711 = vadd.f32 %v1695, %v1703
  %v1712 = vadd.f32 %v1696, %v1704
  %v1713 = vadd.f32 %v1697, %v1705
  %v1714 = vadd.f32 %v1698, %v1706
  %v1715 = vadd.f32 %v1699, %v1707
  %v1716 = vadd.f32 %v1700, %v1708
  %v1717 = vmul.f32 %v1525, %v1493
  %v1718 = vmul.f32 %v1526, %v1494
  %v1719 = vmul.f32 %v1527, %v1495
  %v1720 = vmul.f32 %v1528, %v1496
  %v1721 = vmul.f32 %v1529, %v1497
  %v1722 = vmul.f32 %v1530, %v1498
  %v1723 = vmul.f32 %v1531, %v1499
  %v1724 = vmul.f32 %v1532, %v1500
  %v1725 = vadd.f32 %v1709, %v1717
  %v1726 = vadd.f32 %v1710, %v1718
  %v1727 = vadd.f32 %v1711, %v1719
  %v1728 = vadd.f32 %v1712, %v1720
  %v1729 = vadd.f32 %v1713, %v1721
  %v1730 = vadd.f32 %v1714, %v1722
  %v1731 = vadd.f32 %v1715, %v1723
  %v1732 = vadd.f32 %v1716, %v1724
  %v1733 = vmul.f32 %v1453, %v1565
  %v1734 = vmul.f32 %v1454, %v1566
  %v1735 = vmul.f32 %v1455, %v1567
  %v1736 = vmul.f32 %v1456, %v1568
  %v1737 = vmul.f32 %v1457, %v1569
  %v1738 = vmul.f32 %v1458, %v1570
  %v1739 = vmul.f32 %v1459, %v1571
  %v1740 = vmul.f32 %v1460, %v1572
  %v1741 = vadd.f32 %v1725, %v1733
  %v1742 = vadd.f32 %v1726, %v1734
  %v1743 = vadd.f32 %v1727, %v1735
  %v1744 = vadd.f32 %v1728, %v1736
  %v1745 = vadd.f32 %v1729, %v1737
  %v1746 = vadd.f32 %v1730, %v1738
  %v1747 = vadd.f32 %v1731, %v1739
  %v1748 = vadd.f32 %v1732, %v1740
  %v1749 = vmul.f32 %v1509, %v1453
  %v1750 = vmul.f32 %v1510, %v1454
  %v1751 = vmul.f32 %v1511, %v1455
  %v1752 = vmul.f32 %v1512, %v1456
  %v1753 = vmul.f32 %v1513, %v1457
  %v1754 = vmul.f32 %v1514, %v1458
  %v1755 = vmul.f32 %v1515, %v1459
  %v1756 = vmul.f32 %v1516, %v1460
  %v1757 = vmul.f32 %v1437, %v1525
  %v1758 = vmul.f32 %v1438, %v1526
  %v1759 = vmul.f32 %v1439, %v1527
  %v1760 = vmul.f32 %v1440, %v1528
  %v1761 = vmul.f32 %v1441, %v1529
  %v1762 = vmul.f32 %v1442, %v1530
  %v1763 = vmul.f32 %v1443, %v1531
  %v1764 = vmul.f32 %v1444, %v1532
  %v1765 = vadd.f32 %v1749, %v1757
  %v1766 = vadd.f32 %v1750, %v1758
  %v1767 = vadd.f32 %v1751, %v1759
  %v1768 = vadd.f32 %v1752, %v1760
  %v1769 = vadd.f32 %v1753, %v1761
  %v1770 = vadd.f32 %v1754, %v1762
  %v1771 = vadd.f32 %v1755, %v1763
  %v1772 = vadd.f32 %v1756, %v1764
  %v1773 = vmul.f32 %v1517, %v1477
  %v1774 = vmul.f32 %v1518, %v1478
  %v1775 = vmul.f32 %v1519, %v1479
  %v1776 = vmul.f32 %v1520, %v1480
  %v1777 = vmul.f32 %v1521, %v1481
  %v1778 = vmul.f32 %v1522, %v1482
  %v1779 = vmul.f32 %v1523, %v1483
  %v1780 = vmul.f32 %v1524, %v1484
  %v1781 = vadd.f32 %v1765, %v1773
  %v1782 = vadd.f32 %v1766, %v1774
  %v1783 = vadd.f32 %v1767, %v1775
  %v1784 = vadd.f32 %v1768, %v1776
  %v1785 = vadd.f32 %v1769, %v1777
  %v1786 = vadd.f32 %v1770, %v1778
  %v1787 = vadd.f32 %v1771, %v1779
  %v1788 = vadd.f32 %v1772, %v1780
  %v1789 = vmul.f32 %v1445, %v1549
  %v1790 = vmul.f32 %v1446, %v1550
  %v1791 = vmul.f32 %v1447, %v1551
  %v1792 = vmul.f32 %v1448, %v1552
  %v1793 = vmul.f32 %v1449, %v1553
  %v1794 = vmul.f32 %v1450, %v1554
  %v1795 = vmul.f32 %v1451, %v1555
  %v1796 = vmul.f32 %v1452, %v1556
  %v1797 = vadd.f32 %v1781, %v1789
  %v1798 = vadd.f32 %v1782, %v1790
  %v1799 = vadd.f32 %v1783, %v1791
  %v1800 = vadd.f32 %v1784, %v1792
  %v1801 = vadd.f32 %v1785, %v1793
  %v1802 = vadd.f32 %v1786, %v1794
  %v1803 = vadd.f32 %v1787, %v1795
  %v1804 = vadd.f32 %v1788, %v1796
  %v1805 = vmul.f32 %v1525, %v1501
  %v1806 = vmul.f32 %v1526, %v1502
  %v1807 = vmul.f32 %v1527, %v1503
  %v1808 = vmul.f32 %v1528, %v1504
  %v1809 = vmul.f32 %v1529, %v1505
  %v1810 = vmul.f32 %v1530, %v1506
  %v1811 = vmul.f32 %v1531, %v1507
  %v1812 = vmul.f32 %v1532, %v1508
  %v1813 = vadd.f32 %v1797, %v1805
  %v1814 = vadd.f32 %v1798, %v1806
  %v1815 = vadd.f32 %v1799, %v1807
  %v1816 = vadd.f32 %v1800, %v1808
  %v1817 = vadd.f32 %v1801, %v1809
  %v1818 = vadd.f32 %v1802, %v1810
  %v1819 = vadd.f32 %v1803, %v1811
  %v1820 = vadd.f32 %v1804, %v1812
  %v1821 = vmul.f32 %v1453, %v1573
  %v1822 = vmul.f32 %v1454, %v1574
  %v1823 = vmul.f32 %v1455, %v1575
  %v1824 = vmul.f32 %v1456, %v1576
  %v1825 = vmul.f32 %v1457, %v1577
  %v1826 = vmul.f32 %v1458, %v1578
  %v1827 = vmul.f32 %v1459, %v1579
  %v1828 = vmul.f32 %v1460, %v1580
  %v1829 = vadd.f32 %v1813, %v1821
  %v1830 = vadd.f32 %v1814, %v1822
  %v1831 = vadd.f32 %v1815, %v1823
  %v1832 = vadd.f32 %v1816, %v1824
  %v1833 = vadd.f32 %v1817, %v1825
  %v1834 = vadd.f32 %v1818, %v1826
  %v1835 = vadd.f32 %v1819, %v1827
  %v1836 = vadd.f32 %v1820, %v1828
  %v1837 = vmul.f32 %v1533, %v1437
  %v1838 = vmul.f32 %v1534, %v1438
  %v1839 = vmul.f32 %v1535, %v1439
  %v1840 = vmul.f32 %v1536, %v1440
  %v1841 = vmul.f32 %v1537, %v1441
  %v1842 = vmul.f32 %v1538, %v1442
  %v1843 = vmul.f32 %v1539, %v1443
  %v1844 = vmul.f32 %v1540, %v1444
  %v1845 = vmul.f32 %v1461, %v1509
  %v1846 = vmul.f32 %v1462, %v1510
  %v1847 = vmul.f32 %v1463, %v1511
  %v1848 = vmul.f32 %v1464, %v1512
  %v1849 = vmul.f32 %v1465, %v1513
  %v1850 = vmul.f32 %v1466, %v1514
  %v1851 = vmul.f32 %v1467, %v1515
  %v1852 = vmul.f32 %v1468, %v1516
  %v1853 = vadd.f32 %v1837, %v1845
  %v1854 = vadd.f32 %v1838, %v1846
  %v1855 = vadd.f32 %v1839, %v1847
  %v1856 = vadd.f32 %v1840, %v1848
  %v1857 = vadd.f32 %v1841, %v1849
  %v1858 = vadd.f32 %v1842, %v1850
  %v1859 = vadd.f32 %v1843, %v1851
  %v1860 = vadd.f32 %v1844, %v1852
  %v1861 = vmul.f32 %v1541, %v1461
  %v1862 = vmul.f32 %v1542, %v1462
  %v1863 = vmul.f32 %v1543, %v1463
  %v1864 = vmul.f32 %v1544, %v1464
  %v1865 = vmul.f32 %v1545, %v1465
  %v1866 = vmul.f32 %v1546, %v1466
  %v1867 = vmul.f32 %v1547, %v1467
  %v1868 = vmul.f32 %v1548, %v1468
  %v1869 = vadd.f32 %v1853, %v1861
  %v1870 = vadd.f32 %v1854, %v1862
  %v1871 = vadd.f32 %v1855, %v1863
  %v1872 = vadd.f32 %v1856, %v1864
  %v1873 = vadd.f32 %v1857, %v1865
  %v1874 = vadd.f32 %v1858, %v1866
  %v1875 = vadd.f32 %v1859, %v1867
  %v1876 = vadd.f32 %v1860, %v1868
  %v1877 = vmul.f32 %v1469, %v1533
  %v1878 = vmul.f32 %v1470, %v1534
  %v1879 = vmul.f32 %v1471, %v1535
  %v1880 = vmul.f32 %v1472, %v1536
  %v1881 = vmul.f32 %v1473, %v1537
  %v1882 = vmul.f32 %v1474, %v1538
  %v1883 = vmul.f32 %v1475, %v1539
  %v1884 = vmul.f32 %v1476, %v1540
  %v1885 = vadd.f32 %v1869, %v1877
  %v1886 = vadd.f32 %v1870, %v1878
  %v1887 = vadd.f32 %v1871, %v1879
  %v1888 = vadd.f32 %v1872, %v1880
  %v1889 = vadd.f32 %v1873, %v1881
  %v1890 = vadd.f32 %v1874, %v1882
  %v1891 = vadd.f32 %v1875, %v1883
  %v1892 = vadd.f32 %v1876, %v1884
  %v1893 = vmul.f32 %v1549, %v1485
  %v1894 = vmul.f32 %v1550, %v1486
  %v1895 = vmul.f32 %v1551, %v1487
  %v1896 = vmul.f32 %v1552, %v1488
  %v1897 = vmul.f32 %v1553, %v1489
  %v1898 = vmul.f32 %v1554, %v1490
  %v1899 = vmul.f32 %v1555, %v1491
  %v1900 = vmul.f32 %v1556, %v1492
  %v1901 = vadd.f32 %v1885, %v1893
  %v1902 = vadd.f32 %v1886, %v1894
  %v1903 = vadd.f32 %v1887, %v1895
  %v1904 = vadd.f32 %v1888, %v1896
  %v1905 = vadd.f32 %v1889, %v1897
  %v1906 = vadd.f32 %v1890, %v1898
  %v1907 = vadd.f32 %v1891, %v1899
  %v1908 = vadd.f32 %v1892, %v1900
  %v1909 = vmul.f32 %v1477, %v1557
  %v1910 = vmul.f32 %v1478, %v1558
  %v1911 = vmul.f32 %v1479, %v1559
  %v1912 = vmul.f32 %v1480, %v1560
  %v1913 = vmul.f32 %v1481, %v1561
  %v1914 = vmul.f32 %v1482, %v1562
  %v1915 = vmul.f32 %v1483, %v1563
  %v1916 = vmul.f32 %v1484, %v1564
  %v1917 = vadd.f32 %v1901, %v1909
  %v1918 = vadd.f32 %v1902, %v1910
  %v1919 = vadd.f32 %v1903, %v1911
  %v1920 = vadd.f32 %v1904, %v1912
  %v1921 = vadd.f32 %v1905, %v1913
  %v1922 = vadd.f32 %v1906, %v1914
  %v1923 = vadd.f32 %v1907, %v1915
  %v1924 = vadd.f32 %v1908, %v1916
  %v1925 = vadd.f32 %v1613, %v1597
  %v1926 = vadd.f32 %v1614, %v1598
  %v1927 = vadd.f32 %v1615, %v1599
  %v1928 = vadd.f32 %v1616, %v1600
  %v1929 = vadd.f32 %v1617, %v1601
  %v1930 = vadd.f32 %v1618, %v1602
  %v1931 = vadd.f32 %v1619, %v1603
  %v1932 = vadd.f32 %v1620, %v1604
  %v1933 = vmul.f32 %v1541, %v1469
  %v1934 = vmul.f32 %v1542, %v1470
  %v1935 = vmul.f32 %v1543, %v1471
  %v1936 = vmul.f32 %v1544, %v1472
  %v1937 = vmul.f32 %v1545, %v1473
  %v1938 = vmul.f32 %v1546, %v1474
  %v1939 = vmul.f32 %v1547, %v1475
  %v1940 = vmul.f32 %v1548, %v1476
  %v1941 = vadd.f32 %v1925, %v1933
  %v1942 = vadd.f32 %v1926, %v1934
  %v1943 = vadd.f32 %v1927, %v1935
  %v1944 = vadd.f32 %v1928, %v1936
  %v1945 = vadd.f32 %v1929, %v1937
  %v1946 = vadd.f32 %v1930, %v1938
  %v1947 = vadd.f32 %v1931, %v1939
  %v1948 = vadd.f32 %v1932, %v1940
  %v1949 = vadd.f32 %v1941, %v1933
  %v1950 = vadd.f32 %v1942, %v1934
  %v1951 = vadd.f32 %v1943, %v1935
  %v1952 = vadd.f32 %v1944, %v1936
  %v1953 = vadd.f32 %v1945, %v1937
  %v1954 = vadd.f32 %v1946, %v1938
  %v1955 = vadd.f32 %v1947, %v1939
  %v1956 = vadd.f32 %v1948, %v1940
  %v1957 = vmul.f32 %v1549, %v1493
  %v1958 = vmul.f32 %v1550, %v1494
  %v1959 = vmul.f32 %v1551, %v1495
  %v1960 = vmul.f32 %v1552, %v1496
  %v1961 = vmul.f32 %v1553, %v1497
  %v1962 = vmul.f32 %v1554, %v1498
  %v1963 = vmul.f32 %v1555, %v1499
  %v1964 = vmul.f32 %v1556, %v1500
  %v1965 = vadd.f32 %v1949, %v1957
  %v1966 = vadd.f32 %v1950, %v1958
  %v1967 = vadd.f32 %v1951, %v1959
  %v1968 = vadd.f32 %v1952, %v1960
  %v1969 = vadd.f32 %v1953, %v1961
  %v1970 = vadd.f32 %v1954, %v1962
  %v1971 = vadd.f32 %v1955, %v1963
  %v1972 = vadd.f32 %v1956, %v1964
  %v1973 = vmul.f32 %v1477, %v1565
  %v1974 = vmul.f32 %v1478, %v1566
  %v1975 = vmul.f32 %v1479, %v1567
  %v1976 = vmul.f32 %v1480, %v1568
  %v1977 = vmul.f32 %v1481, %v1569
  %v1978 = vmul.f32 %v1482, %v1570
  %v1979 = vmul.f32 %v1483, %v1571
  %v1980 = vmul.f32 %v1484, %v1572
  %v1981 = vadd.f32 %v1965, %v1973
  %v1982 = vadd.f32 %v1966, %v1974
  %v1983 = vadd.f32 %v1967, %v1975
  %v1984 = vadd.f32 %v1968, %v1976
  %v1985 = vadd.f32 %v1969, %v1977
  %v1986 = vadd.f32 %v1970, %v1978
  %v1987 = vadd.f32 %v1971, %v1979
  %v1988 = vadd.f32 %v1972, %v1980
  %v1989 = vmul.f32 %v1533, %v1453
  %v1990 = vmul.f32 %v1534, %v1454
  %v1991 = vmul.f32 %v1535, %v1455
  %v1992 = vmul.f32 %v1536, %v1456
  %v1993 = vmul.f32 %v1537, %v1457
  %v1994 = vmul.f32 %v1538, %v1458
  %v1995 = vmul.f32 %v1539, %v1459
  %v1996 = vmul.f32 %v1540, %v1460
  %v1997 = vmul.f32 %v1461, %v1525
  %v1998 = vmul.f32 %v1462, %v1526
  %v1999 = vmul.f32 %v1463, %v1527
  %v2000 = vmul.f32 %v1464, %v1528
  %v2001 = vmul.f32 %v1465, %v1529
  %v2002 = vmul.f32 %v1466, %v1530
  %v2003 = vmul.f32 %v1467, %v1531
  %v2004 = vmul.f32 %v1468, %v1532
  %v2005 = vadd.f32 %v1989, %v1997
  %v2006 = vadd.f32 %v1990, %v1998
  %v2007 = vadd.f32 %v1991, %v1999
  %v2008 = vadd.f32 %v1992, %v2000
  %v2009 = vadd.f32 %v1993, %v2001
  %v2010 = vadd.f32 %v1994, %v2002
  %v2011 = vadd.f32 %v1995, %v2003
  %v2012 = vadd.f32 %v1996, %v2004
  %v2013 = vmul.f32 %v1541, %v1477
  %v2014 = vmul.f32 %v1542, %v1478
  %v2015 = vmul.f32 %v1543, %v1479
  %v2016 = vmul.f32 %v1544, %v1480
  %v2017 = vmul.f32 %v1545, %v1481
  %v2018 = vmul.f32 %v1546, %v1482
  %v2019 = vmul.f32 %v1547, %v1483
  %v2020 = vmul.f32 %v1548, %v1484
  %v2021 = vadd.f32 %v2005, %v2013
  %v2022 = vadd.f32 %v2006, %v2014
  %v2023 = vadd.f32 %v2007, %v2015
  %v2024 = vadd.f32 %v2008, %v2016
  %v2025 = vadd.f32 %v2009, %v2017
  %v2026 = vadd.f32 %v2010, %v2018
  %v2027 = vadd.f32 %v2011, %v2019
  %v2028 = vadd.f32 %v2012, %v2020
  %v2029 = vmul.f32 %v1469, %v1549
  %v2030 = vmul.f32 %v1470, %v1550
  %v2031 = vmul.f32 %v1471, %v1551
  %v2032 = vmul.f32 %v1472, %v1552
  %v2033 = vmul.f32 %v1473, %v1553
  %v2034 = vmul.f32 %v1474, %v1554
  %v2035 = vmul.f32 %v1475, %v1555
  %v2036 = vmul.f32 %v1476, %v1556
  %v2037 = vadd.f32 %v2021, %v2029
  %v2038 = vadd.f32 %v2022, %v2030
  %v2039 = vadd.f32 %v2023, %v2031
  %v2040 = vadd.f32 %v2024, %v2032
  %v2041 = vadd.f32 %v2025, %v2033
  %v2042 = vadd.f32 %v2026, %v2034
  %v2043 = vadd.f32 %v2027, %v2035
  %v2044 = vadd.f32 %v2028, %v2036
  %v2045 = vmul.f32 %v1549, %v1501
  %v2046 = vmul.f32 %v1550, %v1502
  %v2047 = vmul.f32 %v1551, %v1503
  %v2048 = vmul.f32 %v1552, %v1504
  %v2049 = vmul.f32 %v1553, %v1505
  %v2050 = vmul.f32 %v1554, %v1506
  %v2051 = vmul.f32 %v1555, %v1507
  %v2052 = vmul.f32 %v1556, %v1508
  %v2053 = vadd.f32 %v2037, %v2045
  %v2054 = vadd.f32 %v2038, %v2046
  %v2055 = vadd.f32 %v2039, %v2047
  %v2056 = vadd.f32 %v2040, %v2048
  %v2057 = vadd.f32 %v2041, %v2049
  %v2058 = vadd.f32 %v2042, %v2050
  %v2059 = vadd.f32 %v2043, %v2051
  %v2060 = vadd.f32 %v2044, %v2052
  %v2061 = vmul.f32 %v1477, %v1573
  %v2062 = vmul.f32 %v1478, %v1574
  %v2063 = vmul.f32 %v1479, %v1575
  %v2064 = vmul.f32 %v1480, %v1576
  %v2065 = vmul.f32 %v1481, %v1577
  %v2066 = vmul.f32 %v1482, %v1578
  %v2067 = vmul.f32 %v1483, %v1579
  %v2068 = vmul.f32 %v1484, %v1580
  %v2069 = vadd.f32 %v2053, %v2061
  %v2070 = vadd.f32 %v2054, %v2062
  %v2071 = vadd.f32 %v2055, %v2063
  %v2072 = vadd.f32 %v2056, %v2064
  %v2073 = vadd.f32 %v2057, %v2065
  %v2074 = vadd.f32 %v2058, %v2066
  %v2075 = vadd.f32 %v2059, %v2067
  %v2076 = vadd.f32 %v2060, %v2068
  %v2077 = vmul.f32 %v1557, %v1437
  %v2078 = vmul.f32 %v1558, %v1438
  %v2079 = vmul.f32 %v1559, %v1439
  %v2080 = vmul.f32 %v1560, %v1440
  %v2081 = vmul.f32 %v1561, %v1441
  %v2082 = vmul.f32 %v1562, %v1442
  %v2083 = vmul.f32 %v1563, %v1443
  %v2084 = vmul.f32 %v1564, %v1444
  %v2085 = vmul.f32 %v1485, %v1509
  %v2086 = vmul.f32 %v1486, %v1510
  %v2087 = vmul.f32 %v1487, %v1511
  %v2088 = vmul.f32 %v1488, %v1512
  %v2089 = vmul.f32 %v1489, %v1513
  %v2090 = vmul.f32 %v1490, %v1514
  %v2091 = vmul.f32 %v1491, %v1515
  %v2092 = vmul.f32 %v1492, %v1516
  %v2093 = vadd.f32 %v2077, %v2085
  %v2094 = vadd.f32 %v2078, %v2086
  %v2095 = vadd.f32 %v2079, %v2087
  %v2096 = vadd.f32 %v2080, %v2088
  %v2097 = vadd.f32 %v2081, %v2089
  %v2098 = vadd.f32 %v2082, %v2090
  %v2099 = vadd.f32 %v2083, %v2091
  %v2100 = vadd.f32 %v2084, %v2092
  %v2101 = vmul.f32 %v1565, %v1461
  %v2102 = vmul.f32 %v1566, %v1462
  %v2103 = vmul.f32 %v1567, %v1463
  %v2104 = vmul.f32 %v1568, %v1464
  %v2105 = vmul.f32 %v1569, %v1465
  %v2106 = vmul.f32 %v1570, %v1466
  %v2107 = vmul.f32 %v1571, %v1467
  %v2108 = vmul.f32 %v1572, %v1468
  %v2109 = vadd.f32 %v2093, %v2101
  %v2110 = vadd.f32 %v2094, %v2102
  %v2111 = vadd.f32 %v2095, %v2103
  %v2112 = vadd.f32 %v2096, %v2104
  %v2113 = vadd.f32 %v2097, %v2105
  %v2114 = vadd.f32 %v2098, %v2106
  %v2115 = vadd.f32 %v2099, %v2107
  %v2116 = vadd.f32 %v2100, %v2108
  %v2117 = vmul.f32 %v1493, %v1533
  %v2118 = vmul.f32 %v1494, %v1534
  %v2119 = vmul.f32 %v1495, %v1535
  %v2120 = vmul.f32 %v1496, %v1536
  %v2121 = vmul.f32 %v1497, %v1537
  %v2122 = vmul.f32 %v1498, %v1538
  %v2123 = vmul.f32 %v1499, %v1539
  %v2124 = vmul.f32 %v1500, %v1540
  %v2125 = vadd.f32 %v2109, %v2117
  %v2126 = vadd.f32 %v2110, %v2118
  %v2127 = vadd.f32 %v2111, %v2119
  %v2128 = vadd.f32 %v2112, %v2120
  %v2129 = vadd.f32 %v2113, %v2121
  %v2130 = vadd.f32 %v2114, %v2122
  %v2131 = vadd.f32 %v2115, %v2123
  %v2132 = vadd.f32 %v2116, %v2124
  %v2133 = vmul.f32 %v1573, %v1485
  %v2134 = vmul.f32 %v1574, %v1486
  %v2135 = vmul.f32 %v1575, %v1487
  %v2136 = vmul.f32 %v1576, %v1488
  %v2137 = vmul.f32 %v1577, %v1489
  %v2138 = vmul.f32 %v1578, %v1490
  %v2139 = vmul.f32 %v1579, %v1491
  %v2140 = vmul.f32 %v1580, %v1492
  %v2141 = vadd.f32 %v2125, %v2133
  %v2142 = vadd.f32 %v2126, %v2134
  %v2143 = vadd.f32 %v2127, %v2135
  %v2144 = vadd.f32 %v2128, %v2136
  %v2145 = vadd.f32 %v2129, %v2137
  %v2146 = vadd.f32 %v2130, %v2138
  %v2147 = vadd.f32 %v2131, %v2139
  %v2148 = vadd.f32 %v2132, %v2140
  %v2149 = vmul.f32 %v1501, %v1557
  %v2150 = vmul.f32 %v1502, %v1558
  %v2151 = vmul.f32 %v1503, %v1559
  %v2152 = vmul.f32 %v1504, %v1560
  %v2153 = vmul.f32 %v1505, %v1561
  %v2154 = vmul.f32 %v1506, %v1562
  %v2155 = vmul.f32 %v1507, %v1563
  %v2156 = vmul.f32 %v1508, %v1564
  %v2157 = vadd.f32 %v2141, %v2149
  %v2158 = vadd.f32 %v2142, %v2150
  %v2159 = vadd.f32 %v2143, %v2151
  %v2160 = vadd.f32 %v2144, %v2152
  %v2161 = vadd.f32 %v2145, %v2153
  %v2162 = vadd.f32 %v2146, %v2154
  %v2163 = vadd.f32 %v2147, %v2155
  %v2164 = vadd.f32 %v2148, %v2156
  %v2165 = vmul.f32 %v1557, %v1445
  %v2166 = vmul.f32 %v1558, %v1446
  %v2167 = vmul.f32 %v1559, %v1447
  %v2168 = vmul.f32 %v1560, %v1448
  %v2169 = vmul.f32 %v1561, %v1449
  %v2170 = vmul.f32 %v1562, %v1450
  %v2171 = vmul.f32 %v1563, %v1451
  %v2172 = vmul.f32 %v1564, %v1452
  %v2173 = vmul.f32 %v1485, %v1517
  %v2174 = vmul.f32 %v1486, %v1518
  %v2175 = vmul.f32 %v1487, %v1519
  %v2176 = vmul.f32 %v1488, %v1520
  %v2177 = vmul.f32 %v1489, %v1521
  %v2178 = vmul.f32 %v1490, %v1522
  %v2179 = vmul.f32 %v1491, %v1523
  %v2180 = vmul.f32 %v1492, %v1524
  %v2181 = vadd.f32 %v2165, %v2173
  %v2182 = vadd.f32 %v2166, %v2174
  %v2183 = vadd.f32 %v2167, %v2175
  %v2184 = vadd.f32 %v2168, %v2176
  %v2185 = vadd.f32 %v2169, %v2177
  %v2186 = vadd.f32 %v2170, %v2178
  %v2187 = vadd.f32 %v2171, %v2179
  %v2188 = vadd.f32 %v2172, %v2180
  %v2189 = vmul.f32 %v1565, %v1469
  %v2190 = vmul.f32 %v1566, %v1470
  %v2191 = vmul.f32 %v1567, %v1471
  %v2192 = vmul.f32 %v1568, %v1472
  %v2193 = vmul.f32 %v1569, %v1473
  %v2194 = vmul.f32 %v1570, %v1474
  %v2195 = vmul.f32 %v1571, %v1475
  %v2196 = vmul.f32 %v1572, %v1476
  %v2197 = vadd.f32 %v2181, %v2189
  %v2198 = vadd.f32 %v2182, %v2190
  %v2199 = vadd.f32 %v2183, %v2191
  %v2200 = vadd.f32 %v2184, %v2192
  %v2201 = vadd.f32 %v2185, %v2193
  %v2202 = vadd.f32 %v2186, %v2194
  %v2203 = vadd.f32 %v2187, %v2195
  %v2204 = vadd.f32 %v2188, %v2196
  %v2205 = vmul.f32 %v1493, %v1541
  %v2206 = vmul.f32 %v1494, %v1542
  %v2207 = vmul.f32 %v1495, %v1543
  %v2208 = vmul.f32 %v1496, %v1544
  %v2209 = vmul.f32 %v1497, %v1545
  %v2210 = vmul.f32 %v1498, %v1546
  %v2211 = vmul.f32 %v1499, %v1547
  %v2212 = vmul.f32 %v1500, %v1548
  %v2213 = vadd.f32 %v2197, %v2205
  %v2214 = vadd.f32 %v2198, %v2206
  %v2215 = vadd.f32 %v2199, %v2207
  %v2216 = vadd.f32 %v2200, %v2208
  %v2217 = vadd.f32 %v2201, %v2209
  %v2218 = vadd.f32 %v2202, %v2210
  %v2219 = vadd.f32 %v2203, %v2211
  %v2220 = vadd.f32 %v2204, %v2212
  %v2221 = vmul.f32 %v1573, %v1493
  %v2222 = vmul.f32 %v1574, %v1494
  %v2223 = vmul.f32 %v1575, %v1495
  %v2224 = vmul.f32 %v1576, %v1496
  %v2225 = vmul.f32 %v1577, %v1497
  %v2226 = vmul.f32 %v1578, %v1498
  %v2227 = vmul.f32 %v1579, %v1499
  %v2228 = vmul.f32 %v1580, %v1500
  %v2229 = vadd.f32 %v2213, %v2221
  %v2230 = vadd.f32 %v2214, %v2222
  %v2231 = vadd.f32 %v2215, %v2223
  %v2232 = vadd.f32 %v2216, %v2224
  %v2233 = vadd.f32 %v2217, %v2225
  %v2234 = vadd.f32 %v2218, %v2226
  %v2235 = vadd.f32 %v2219, %v2227
  %v2236 = vadd.f32 %v2220, %v2228
  %v2237 = vmul.f32 %v1501, %v1565
  %v2238 = vmul.f32 %v1502, %v1566
  %v2239 = vmul.f32 %v1503, %v1567
  %v2240 = vmul.f32 %v1504, %v1568
  %v2241 = vmul.f32 %v1505, %v1569
  %v2242 = vmul.f32 %v1506, %v1570
  %v2243 = vmul.f32 %v1507, %v1571
  %v2244 = vmul.f32 %v1508, %v1572
  %v2245 = vadd.f32 %v2229, %v2237
  %v2246 = vadd.f32 %v2230, %v2238
  %v2247 = vadd.f32 %v2231, %v2239
  %v2248 = vadd.f32 %v2232, %v2240
  %v2249 = vadd.f32 %v2233, %v2241
  %v2250 = vadd.f32 %v2234, %v2242
  %v2251 = vadd.f32 %v2235, %v2243
  %v2252 = vadd.f32 %v2236, %v2244
  %v2253 = vadd.f32 %v1645, %v1629
  %v2254 = vadd.f32 %v1646, %v1630
  %v2255 = vadd.f32 %v1647, %v1631
  %v2256 = vadd.f32 %v1648, %v1632
  %v2257 = vadd.f32 %v1649, %v1633
  %v2258 = vadd.f32 %v1650, %v1634
  %v2259 = vadd.f32 %v1651, %v1635
  %v2260 = vadd.f32 %v1652, %v1636
  %v2261 = vadd.f32 %v2253, %v1973
  %v2262 = vadd.f32 %v2254, %v1974
  %v2263 = vadd.f32 %v2255, %v1975
  %v2264 = vadd.f32 %v2256, %v1976
  %v2265 = vadd.f32 %v2257, %v1977
  %v2266 = vadd.f32 %v2258, %v1978
  %v2267 = vadd.f32 %v2259, %v1979
  %v2268 = vadd.f32 %v2260, %v1980
  %v2269 = vadd.f32 %v2261, %v1957
  %v2270 = vadd.f32 %v2262, %v1958
  %v2271 = vadd.f32 %v2263, %v1959
  %v2272 = vadd.f32 %v2264, %v1960
  %v2273 = vadd.f32 %v2265, %v1961
  %v2274 = vadd.f32 %v2266, %v1962
  %v2275 = vadd.f32 %v2267, %v1963
  %v2276 = vadd.f32 %v2268, %v1964
  %v2277 = vmul.f32 %v1573, %v1501
  %v2278 = vmul.f32 %v1574, %v1502
  %v2279 = vmul.f32 %v1575, %v1503
  %v2280 = vmul.f32 %v1576, %v1504
  %v2281 = vmul.f32 %v1577, %v1505
  %v2282 = vmul.f32 %v1578, %v1506
  %v2283 = vmul.f32 %v1579, %v1507
  %v2284 = vmul.f32 %v1580, %v1508
  %v2285 = vadd.f32 %v2269, %v2277
  %v2286 = vadd.f32 %v2270, %v2278
  %v2287 = vadd.f32 %v2271, %v2279
  %v2288 = vadd.f32 %v2272, %v2280
  %v2289 = vadd.f32 %v2273, %v2281
  %v2290 = vadd.f32 %v2274, %v2282
  %v2291 = vadd.f32 %v2275, %v2283
  %v2292 = vadd.f32 %v2276, %v2284
  %v2293 = vadd.f32 %v2285, %v2277
  %v2294 = vadd.f32 %v2286, %v2278
  %v2295 = vadd.f32 %v2287, %v2279
  %v2296 = vadd.f32 %v2288, %v2280
  %v2297 = vadd.f32 %v2289, %v2281
  %v2298 = vadd.f32 %v2290, %v2282
  %v2299 = vadd.f32 %v2291, %v2283
  %v2300 = vadd.f32 %v2292, %v2284
  %v2301 = vmul.f32 %v1653, %v1653
  %v2302 = vmul.f32 %v1654, %v1654
  %v2303 = vmul.f32 %v1655, %v1655
  %v2304 = vmul.f32 %v1656, %v1656
  %v2305 = vmul.f32 %v1657, %v1657
  %v2306 = vmul.f32 %v1658, %v1658
  %v2307 = vmul.f32 %v1659, %v1659
  %v2308 = vmul.f32 %v1660, %v1660
  %v2309 = vmul.f32 %v1741, %v1741
  %v2310 = vmul.f32 %v1742, %v1742
  %v2311 = vmul.f32 %v1743, %v1743
  %v2312 = vmul.f32 %v1744, %v1744
  %v2313 = vmul.f32 %v1745, %v1745
  %v2314 = vmul.f32 %v1746, %v1746
  %v2315 = vmul.f32 %v1747, %v1747
  %v2316 = vmul.f32 %v1748, %v1748
  %v2317 = vadd.f32 %v2301, %v2309
  %v2318 = vadd.f32 %v2302, %v2310
  %v2319 = vadd.f32 %v2303, %v2311
  %v2320 = vadd.f32 %v2304, %v2312
  %v2321 = vadd.f32 %v2305, %v2313
  %v2322 = vadd.f32 %v2306, %v2314
  %v2323 = vadd.f32 %v2307, %v2315
  %v2324 = vadd.f32 %v2308, %v2316
  %v2325 = vmul.f32 %v1829, %v1829
  %v2326 = vmul.f32 %v1830, %v1830
  %v2327 = vmul.f32 %v1831, %v1831
  %v2328 = vmul.f32 %v1832, %v1832
  %v2329 = vmul.f32 %v1833, %v1833
  %v2330 = vmul.f32 %v1834, %v1834
  %v2331 = vmul.f32 %v1835, %v1835
  %v2332 = vmul.f32 %v1836, %v1836
  %v2333 = vadd.f32 %v2317, %v2325
  %v2334 = vadd.f32 %v2318, %v2326
  %v2335 = vadd.f32 %v2319, %v2327
  %v2336 = vadd.f32 %v2320, %v2328
  %v2337 = vadd.f32 %v2321, %v2329
  %v2338 = vadd.f32 %v2322, %v2330
  %v2339 = vadd.f32 %v2323, %v2331
  %v2340 = vadd.f32 %v2324, %v2332
  %v2341 = vmul.f32 %v1917, %v1917
  %v2342 = vmul.f32 %v1918, %v1918
  %v2343 = vmul.f32 %v1919, %v1919
  %v2344 = vmul.f32 %v1920, %v1920
  %v2345 = vmul.f32 %v1921, %v1921
  %v2346 = vmul.f32 %v1922, %v1922
  %v2347 = vmul.f32 %v1923, %v1923
  %v2348 = vmul.f32 %v1924, %v1924
  %v2349 = vadd.f32 %v2333, %v2341
  %v2350 = vadd.f32 %v2334, %v2342
  %v2351 = vadd.f32 %v2335, %v2343
  %v2352 = vadd.f32 %v2336, %v2344
  %v2353 = vadd.f32 %v2337, %v2345
  %v2354 = vadd.f32 %v2338, %v2346
  %v2355 = vadd.f32 %v2339, %v2347
  %v2356 = vadd.f32 %v2340, %v2348
  %v2357 = vmul.f32 %v1981, %v1981
  %v2358 = vmul.f32 %v1982, %v1982
  %v2359 = vmul.f32 %v1983, %v1983
  %v2360 = vmul.f32 %v1984, %v1984
  %v2361 = vmul.f32 %v1985, %v1985
  %v2362 = vmul.f32 %v1986, %v1986
  %v2363 = vmul.f32 %v1987, %v1987
  %v2364 = vmul.f32 %v1988, %v1988
  %v2365 = vadd.f32 %v2349, %v2357
  %v2366 = vadd.f32 %v2350, %v2358
  %v2367 = vadd.f32 %v2351, %v2359
  %v2368 = vadd.f32 %v2352, %v2360
  %v2369 = vadd.f32 %v2353, %v2361
  %v2370 = vadd.f32 %v2354, %v2362
  %v2371 = vadd.f32 %v2355, %v2363
  %v2372 = vadd.f32 %v2356, %v2364
  %v2373 = vmul.f32 %v2069, %v2069
  %v2374 = vmul.f32 %v2070, %v2070
  %v2375 = vmul.f32 %v2071, %v2071
  %v2376 = vmul.f32 %v2072, %v2072
  %v2377 = vmul.f32 %v2073, %v2073
  %v2378 = vmul.f32 %v2074, %v2074
  %v2379 = vmul.f32 %v2075, %v2075
  %v2380 = vmul.f32 %v2076, %v2076
  %v2381 = vadd.f32 %v2365, %v2373
  %v2382 = vadd.f32 %v2366, %v2374
  %v2383 = vadd.f32 %v2367, %v2375
  %v2384 = vadd.f32 %v2368, %v2376
  %v2385 = vadd.f32 %v2369, %v2377
  %v2386 = vadd.f32 %v2370, %v2378
  %v2387 = vadd.f32 %v2371, %v2379
  %v2388 = vadd.f32 %v2372, %v2380
  %v2389 = vmul.f32 %v2157, %v2157
  %v2390 = vmul.f32 %v2158, %v2158
  %v2391 = vmul.f32 %v2159, %v2159
  %v2392 = vmul.f32 %v2160, %v2160
  %v2393 = vmul.f32 %v2161, %v2161
  %v2394 = vmul.f32 %v2162, %v2162
  %v2395 = vmul.f32 %v2163, %v2163
  %v2396 = vmul.f32 %v2164, %v2164
  %v2397 = vadd.f32 %v2381, %v2389
  %v2398 = vadd.f32 %v2382, %v2390
  %v2399 = vadd.f32 %v2383, %v2391
  %v2400 = vadd.f32 %v2384, %v2392
  %v2401 = vadd.f32 %v2385, %v2393
  %v2402 = vadd.f32 %v2386, %v2394
  %v2403 = vadd.f32 %v2387, %v2395
  %v2404 = vadd.f32 %v2388, %v2396
  %v2405 = vmul.f32 %v2245, %v2245
  %v2406 = vmul.f32 %v2246, %v2246
  %v2407 = vmul.f32 %v2247, %v2247
  %v2408 = vmul.f32 %v2248, %v2248
  %v2409 = vmul.f32 %v2249, %v2249
  %v2410 = vmul.f32 %v2250, %v2250
  %v2411 = vmul.f32 %v2251, %v2251
  %v2412 = vmul.f32 %v2252, %v2252
  %v2413 = vadd.f32 %v2397, %v2405
  %v2414 = vadd.f32 %v2398, %v2406
  %v2415 = vadd.f32 %v2399, %v2407
  %v2416 = vadd.f32 %v2400, %v2408
  %v2417 = vadd.f32 %v2401, %v2409
  %v2418 = vadd.f32 %v2402, %v2410
  %v2419 = vadd.f32 %v2403, %v2411
  %v2420 = vadd.f32 %v2404, %v2412
  %v2421 = vmul.f32 %v2293, %v2293
  %v2422 = vmul.f32 %v2294, %v2294
  %v2423 = vmul.f32 %v2295, %v2295
  %v2424 = vmul.f32 %v2296, %v2296
  %v2425 = vmul.f32 %v2297, %v2297
  %v2426 = vmul.f32 %v2298, %v2298
  %v2427 = vmul.f32 %v2299, %v2299
  %v2428 = vmul.f32 %v2300, %v2300
  %v2429 = vadd.f32 %v2413, %v2421
  %v2430 = vadd.f32 %v2414, %v2422
  %v2431 = vadd.f32 %v2415, %v2423
  %v2432 = vadd.f32 %v2416, %v2424
  %v2433 = vadd.f32 %v2417, %v2425
  %v2434 = vadd.f32 %v2418, %v2426
  %v2435 = vadd.f32 %v2419, %v2427
  %v2436 = vadd.f32 %v2420, %v2428
  %v2437 = vadd.f32 %v2429, 1.0
  %v2438 = vadd.f32 %v2430, 1.0
  %v2439 = vadd.f32 %v2431, 1.0
  %v2440 = vadd.f32 %v2432, 1.0
  %v2441 = vadd.f32 %v2433, 1.0
  %v2442 = vadd.f32 %v2434, 1.0
  %v2443 = vadd.f32 %v2435, 1.0
  %v2444 = vadd.f32 %v2436, 1.0
  %v2445 = vrcp.pop %v2437
  %v2446 = vrcp.pop %v2438
  %v2447 = vrcp.pop %v2439
  %v2448 = vrcp.pop %v2440
  %v2449 = vrcp.pop %v2441
  %v2450 = vrcp.pop %v2442
  %v2451 = vrcp.pop %v2443
  %v2452 = vrcp.pop %v2444
  %v2453 = vadd.f32 %v1653, %v1981
  %v2454 = vadd.f32 %v1654, %v1982
  %v2455 = vadd.f32 %v1655, %v1983
  %v2456 = vadd.f32 %v1656, %v1984
  %v2457 = vadd.f32 %v1657, %v1985
  %v2458 = vadd.f32 %v1658, %v1986
  %v2459 = vadd.f32 %v1659, %v1987
  %v2460 = vadd.f32 %v1660, %v1988
  %v2461 = vadd.f32 %v2453, %v2293
  %v2462 = vadd.f32 %v2454, %v2294
  %v2463 = vadd.f32 %v2455, %v2295
  %v2464 = vadd.f32 %v2456, %v2296
  %v2465 = vadd.f32 %v2457, %v2297
  %v2466 = vadd.f32 %v2458, %v2298
  %v2467 = vadd.f32 %v2459, %v2299
  %v2468 = vadd.f32 %v2460, %v2300
  %v2469 = vmul.f32 %v2461, 0.33333334
  %v2470 = vmul.f32 %v2462, 0.33333334
  %v2471 = vmul.f32 %v2463, 0.33333334
  %v2472 = vmul.f32 %v2464, 0.33333334
  %v2473 = vmul.f32 %v2465, 0.33333334
  %v2474 = vmul.f32 %v2466, 0.33333334
  %v2475 = vmul.f32 %v2467, 0.33333334
  %v2476 = vmul.f32 %v2468, 0.33333334
  %v2477 = vsub.f32 %v1741, %v1917
  %v2478 = vsub.f32 %v1742, %v1918
  %v2479 = vsub.f32 %v1743, %v1919
  %v2480 = vsub.f32 %v1744, %v1920
  %v2481 = vsub.f32 %v1745, %v1921
  %v2482 = vsub.f32 %v1746, %v1922
  %v2483 = vsub.f32 %v1747, %v1923
  %v2484 = vsub.f32 %v1748, %v1924
  %v2485 = vmul.f32 %v2477, 0.5
  %v2486 = vmul.f32 %v2478, 0.5
  %v2487 = vmul.f32 %v2479, 0.5
  %v2488 = vmul.f32 %v2480, 0.5
  %v2489 = vmul.f32 %v2481, 0.5
  %v2490 = vmul.f32 %v2482, 0.5
  %v2491 = vmul.f32 %v2483, 0.5
  %v2492 = vmul.f32 %v2484, 0.5
  %v2493 = vmul.f32 %v2485, %v2445
  %v2494 = vmul.f32 %v2486, %v2446
  %v2495 = vmul.f32 %v2487, %v2447
  %v2496 = vmul.f32 %v2488, %v2448
  %v2497 = vmul.f32 %v2489, %v2449
  %v2498 = vmul.f32 %v2490, %v2450
  %v2499 = vmul.f32 %v2491, %v2451
  %v2500 = vmul.f32 %v2492, %v2452
  %v2501 = vsub.f32 %v1829, %v2157
  %v2502 = vsub.f32 %v1830, %v2158
  %v2503 = vsub.f32 %v1831, %v2159
  %v2504 = vsub.f32 %v1832, %v2160
  %v2505 = vsub.f32 %v1833, %v2161
  %v2506 = vsub.f32 %v1834, %v2162
  %v2507 = vsub.f32 %v1835, %v2163
  %v2508 = vsub.f32 %v1836, %v2164
  %v2509 = vmul.f32 %v2501, 0.5
  %v2510 = vmul.f32 %v2502, 0.5
  %v2511 = vmul.f32 %v2503, 0.5
  %v2512 = vmul.f32 %v2504, 0.5
  %v2513 = vmul.f32 %v2505, 0.5
  %v2514 = vmul.f32 %v2506, 0.5
  %v2515 = vmul.f32 %v2507, 0.5
  %v2516 = vmul.f32 %v2508, 0.5
  %v2517 = vmul.f32 %v2509, %v2445
  %v2518 = vmul.f32 %v2510, %v2446
  %v2519 = vmul.f32 %v2511, %v2447
  %v2520 = vmul.f32 %v2512, %v2448
  %v2521 = vmul.f32 %v2513, %v2449
  %v2522 = vmul.f32 %v2514, %v2450
  %v2523 = vmul.f32 %v2515, %v2451
  %v2524 = vmul.f32 %v2516, %v2452
  %v2525 = vsub.f32 %v2069, %v2245
  %v2526 = vsub.f32 %v2070, %v2246
  %v2527 = vsub.f32 %v2071, %v2247
  %v2528 = vsub.f32 %v2072, %v2248
  %v2529 = vsub.f32 %v2073, %v2249
  %v2530 = vsub.f32 %v2074, %v2250
  %v2531 = vsub.f32 %v2075, %v2251
  %v2532 = vsub.f32 %v2076, %v2252
  %v2533 = vmul.f32 %v2525, 0.5
  %v2534 = vmul.f32 %v2526, 0.5
  %v2535 = vmul.f32 %v2527, 0.5
  %v2536 = vmul.f32 %v2528, 0.5
  %v2537 = vmul.f32 %v2529, 0.5
  %v2538 = vmul.f32 %v2530, 0.5
  %v2539 = vmul.f32 %v2531, 0.5
  %v2540 = vmul.f32 %v2532, 0.5
  %v2541 = vmul.f32 %v2533, %v2445
  %v2542 = vmul.f32 %v2534, %v2446
  %v2543 = vmul.f32 %v2535, %v2447
  %v2544 = vmul.f32 %v2536, %v2448
  %v2545 = vmul.f32 %v2537, %v2449
  %v2546 = vmul.f32 %v2538, %v2450
  %v2547 = vmul.f32 %v2539, %v2451
  %v2548 = vmul.f32 %v2540, %v2452
  %v2549 = vsub.f32 %v1653, %v2469
  %v2550 = vsub.f32 %v1654, %v2470
  %v2551 = vsub.f32 %v1655, %v2471
  %v2552 = vsub.f32 %v1656, %v2472
  %v2553 = vsub.f32 %v1657, %v2473
  %v2554 = vsub.f32 %v1658, %v2474
  %v2555 = vsub.f32 %v1659, %v2475
  %v2556 = vsub.f32 %v1660, %v2476
  %v2557 = vmul.f32 %v2549, %v2445
  %v2558 = vmul.f32 %v2550, %v2446
  %v2559 = vmul.f32 %v2551, %v2447
  %v2560 = vmul.f32 %v2552, %v2448
  %v2561 = vmul.f32 %v2553, %v2449
  %v2562 = vmul.f32 %v2554, %v2450
  %v2563 = vmul.f32 %v2555, %v2451
  %v2564 = vmul.f32 %v2556, %v2452
  %v2565 = vsub.f32 %v1981, %v2469
  %v2566 = vsub.f32 %v1982, %v2470
  %v2567 = vsub.f32 %v1983, %v2471
  %v2568 = vsub.f32 %v1984, %v2472
  %v2569 = vsub.f32 %v1985, %v2473
  %v2570 = vsub.f32 %v1986, %v2474
  %v2571 = vsub.f32 %v1987, %v2475
  %v2572 = vsub.f32 %v1988, %v2476
  %v2573 = vmul.f32 %v2565, %v2445
  %v2574 = vmul.f32 %v2566, %v2446
  %v2575 = vmul.f32 %v2567, %v2447
  %v2576 = vmul.f32 %v2568, %v2448
  %v2577 = vmul.f32 %v2569, %v2449
  %v2578 = vmul.f32 %v2570, %v2450
  %v2579 = vmul.f32 %v2571, %v2451
  %v2580 = vmul.f32 %v2572, %v2452
  %v2581 = vsub.f32 %v2293, %v2469
  %v2582 = vsub.f32 %v2294, %v2470
  %v2583 = vsub.f32 %v2295, %v2471
  %v2584 = vsub.f32 %v2296, %v2472
  %v2585 = vsub.f32 %v2297, %v2473
  %v2586 = vsub.f32 %v2298, %v2474
  %v2587 = vsub.f32 %v2299, %v2475
  %v2588 = vsub.f32 %v2300, %v2476
  %v2589 = vmul.f32 %v2581, %v2445
  %v2590 = vmul.f32 %v2582, %v2446
  %v2591 = vmul.f32 %v2583, %v2447
  %v2592 = vmul.f32 %v2584, %v2448
  %v2593 = vmul.f32 %v2585, %v2449
  %v2594 = vmul.f32 %v2586, %v2450
  %v2595 = vmul.f32 %v2587, %v2451
  %v2596 = vmul.f32 %v2588, %v2452
  %v2597 = vadd.f32 %v1741, %v1917
  %v2598 = vadd.f32 %v1742, %v1918
  %v2599 = vadd.f32 %v1743, %v1919
  %v2600 = vadd.f32 %v1744, %v1920
  %v2601 = vadd.f32 %v1745, %v1921
  %v2602 = vadd.f32 %v1746, %v1922
  %v2603 = vadd.f32 %v1747, %v1923
  %v2604 = vadd.f32 %v1748, %v1924
  %v2605 = vmul.f32 %v2597, 0.5
  %v2606 = vmul.f32 %v2598, 0.5
  %v2607 = vmul.f32 %v2599, 0.5
  %v2608 = vmul.f32 %v2600, 0.5
  %v2609 = vmul.f32 %v2601, 0.5
  %v2610 = vmul.f32 %v2602, 0.5
  %v2611 = vmul.f32 %v2603, 0.5
  %v2612 = vmul.f32 %v2604, 0.5
  %v2613 = vmul.f32 %v2605, %v2445
  %v2614 = vmul.f32 %v2606, %v2446
  %v2615 = vmul.f32 %v2607, %v2447
  %v2616 = vmul.f32 %v2608, %v2448
  %v2617 = vmul.f32 %v2609, %v2449
  %v2618 = vmul.f32 %v2610, %v2450
  %v2619 = vmul.f32 %v2611, %v2451
  %v2620 = vmul.f32 %v2612, %v2452
  %v2621 = vadd.f32 %v1829, %v2157
  %v2622 = vadd.f32 %v1830, %v2158
  %v2623 = vadd.f32 %v1831, %v2159
  %v2624 = vadd.f32 %v1832, %v2160
  %v2625 = vadd.f32 %v1833, %v2161
  %v2626 = vadd.f32 %v1834, %v2162
  %v2627 = vadd.f32 %v1835, %v2163
  %v2628 = vadd.f32 %v1836, %v2164
  %v2629 = vmul.f32 %v2621, 0.5
  %v2630 = vmul.f32 %v2622, 0.5
  %v2631 = vmul.f32 %v2623, 0.5
  %v2632 = vmul.f32 %v2624, 0.5
  %v2633 = vmul.f32 %v2625, 0.5
  %v2634 = vmul.f32 %v2626, 0.5
  %v2635 = vmul.f32 %v2627, 0.5
  %v2636 = vmul.f32 %v2628, 0.5
  %v2637 = vmul.f32 %v2629, %v2445
  %v2638 = vmul.f32 %v2630, %v2446
  %v2639 = vmul.f32 %v2631, %v2447
  %v2640 = vmul.f32 %v2632, %v2448
  %v2641 = vmul.f32 %v2633, %v2449
  %v2642 = vmul.f32 %v2634, %v2450
  %v2643 = vmul.f32 %v2635, %v2451
  %v2644 = vmul.f32 %v2636, %v2452
  %v2645 = vadd.f32 %v2069, %v2245
  %v2646 = vadd.f32 %v2070, %v2246
  %v2647 = vadd.f32 %v2071, %v2247
  %v2648 = vadd.f32 %v2072, %v2248
  %v2649 = vadd.f32 %v2073, %v2249
  %v2650 = vadd.f32 %v2074, %v2250
  %v2651 = vadd.f32 %v2075, %v2251
  %v2652 = vadd.f32 %v2076, %v2252
  %v2653 = vmul.f32 %v2645, 0.5
  %v2654 = vmul.f32 %v2646, 0.5
  %v2655 = vmul.f32 %v2647, 0.5
  %v2656 = vmul.f32 %v2648, 0.5
  %v2657 = vmul.f32 %v2649, 0.5
  %v2658 = vmul.f32 %v2650, 0.5
  %v2659 = vmul.f32 %v2651, 0.5
  %v2660 = vmul.f32 %v2652, 0.5
  %v2661 = vmul.f32 %v2653, %v2445
  %v2662 = vmul.f32 %v2654, %v2446
  %v2663 = vmul.f32 %v2655, %v2447
  %v2664 = vmul.f32 %v2656, %v2448
  %v2665 = vmul.f32 %v2657, %v2449
  %v2666 = vmul.f32 %v2658, %v2450
  %v2667 = vmul.f32 %v2659, %v2451
  %v2668 = vmul.f32 %v2660, %v2452
  %v2669 = vmul.f32 %v2469, %v2445
  %v2670 = vmul.f32 %v2470, %v2446
  %v2671 = vmul.f32 %v2471, %v2447
  %v2672 = vmul.f32 %v2472, %v2448
  %v2673 = vmul.f32 %v2473, %v2449
  %v2674 = vmul.f32 %v2474, %v2450
  %v2675 = vmul.f32 %v2475, %v2451
  %v2676 = vmul.f32 %v2476, %v2452
  %s2677 = scalar_lea.vmem %s2, 384
  %v2678 = vld [vmem:[%s2677] sm:$0xff]
  %v2679 = vld [vmem:[%s2677 + $0x8] sm:$0xff]
  %v2680 = vld [vmem:[%s2677 + $0x10] sm:$0xff]
  %v2681 = vld [vmem:[%s2677 + $0x18] sm:$0xff]
  %v2682 = vld [vmem:[%s2677 + $0x20] sm:$0xff]
  %v2683 = vld [vmem:[%s2677 + $0x28] sm:$0xff]
  %v2684 = vld [vmem:[%s2677 + $0x30] sm:$0xff]
  %v2685 = vld [vmem:[%s2677 + $0x38] sm:$0xff]
  %v2686 = vld [vmem:[%s2677 + $0x40] sm:$0xff]
  %v2687 = vld [vmem:[%s2677 + $0x48] sm:$0xff]
  %v2688 = vld [vmem:[%s2677 + $0x50] sm:$0xff]
  %v2689 = vld [vmem:[%s2677 + $0x58] sm:$0xff]
  %v2690 = vld [vmem:[%s2677 + $0x60] sm:$0xff]
  %v2691 = vld [vmem:[%s2677 + $0x68] sm:$0xff]
  %v2692 = vld [vmem:[%s2677 + $0x70] sm:$0xff]
  %v2693 = vld [vmem:[%s2677 + $0x78] sm:$0xff]
  %2694 = vmatprep.subr.mxu0 0.0
  %2695 = vmatpush1.msra.mxu0 %v2693
  %2696 = vmatprep.subr.mxu0 0.0
  %2697 = vmatpush1.msra.mxu0 %v2692
  %2698 = vmatprep.subr.mxu0 0.0
  %2699 = vmatpush1.msra.mxu0 %v2691
  %2700 = vmatprep.subr.mxu0 0.0
  %2701 = vmatpush1.msra.mxu0 %v2690
  %2702 = vmatprep.subr.mxu0 0.0
  %2703 = vmatpush1.msra.mxu0 %v2689
  %2704 = vmatprep.subr.mxu0 0.0
  %2705 = vmatpush1.msra.mxu0 %v2688
  %2706 = vmatprep.subr.mxu0 0.0
  %2707 = vmatpush1.msra.mxu0 %v2687
  %2708 = vmatprep.subr.mxu0 0.0
  %2709 = vmatpush1.msra.mxu0 %v2686
  %2710 = vmatprep.subr.mxu0 0.0
  %2711 = vmatpush1.msra.mxu0 %v2685
  %2712 = vmatprep.subr.mxu0 0.0
  %2713 = vmatpush1.msra.mxu0 %v2684
  %2714 = vmatprep.subr.mxu0 0.0
  %2715 = vmatpush1.msra.mxu0 %v2683
  %2716 = vmatprep.subr.mxu0 0.0
  %2717 = vmatpush1.msra.mxu0 %v2682
  %2718 = vmatprep.subr.mxu0 0.0
  %2719 = vmatpush1.msra.mxu0 %v2681
  %2720 = vmatprep.subr.mxu0 0.0
  %2721 = vmatpush1.msra.mxu0 %v2680
  %2722 = vmatprep.subr.mxu0 0.0
  %2723 = vmatpush1.msra.mxu0 %v2679
  %2724 = vmatprep.subr.mxu0 0.0
  %2725 = vmatpush1.msra.mxu0 %v2678
  %2726 = vmatprep.subr.mxu0 0.0
  %2727 = vmatpush2.msra.mxu0 0.0
  %2728 = vmatprep.subr.mxu0 0.0
  %2729 = vmatpush2.msra.mxu0 0.0
  %2730 = vmatprep.subr.mxu0 0.0
  %2731 = vmatpush2.msra.mxu0 0.0
  %2732 = vmatprep.subr.mxu0 0.0
  %2733 = vmatpush2.msra.mxu0 0.0
  %2734 = vmatprep.subr.mxu0 0.0
  %2735 = vmatpush2.msra.mxu0 0.0
  %2736 = vmatprep.subr.mxu0 0.0
  %2737 = vmatpush2.msra.mxu0 0.0
  %2738 = vmatprep.subr.mxu0 0.0
  %2739 = vmatpush2.msra.mxu0 0.0
  %2740 = vmatprep.subr.mxu0 0.0
  %2741 = vmatpush2.msra.mxu0 0.0
  %2742 = vmatprep.subr.mxu0 0.0
  %2743 = vmatpush2.msra.mxu0 0.0
  %2744 = vmatprep.subr.mxu0 0.0
  %2745 = vmatpush2.msra.mxu0 0.0
  %2746 = vmatprep.subr.mxu0 0.0
  %2747 = vmatpush2.msra.mxu0 0.0
  %2748 = vmatprep.subr.mxu0 0.0
  %2749 = vmatpush2.msra.mxu0 0.0
  %2750 = vmatprep.subr.mxu0 0.0
  %2751 = vmatpush2.msra.mxu0 0.0
  %2752 = vmatprep.subr.mxu0 0.0
  %2753 = vmatpush2.msra.mxu0 0.0
  %2754 = vmatprep.subr.mxu0 0.0
  %2755 = vmatpush2.msra.mxu0 0.0
  %2756 = vmatprep.subr.mxu0 0.0
  %2757 = vmatpush2.msra.mxu0 0.0
  %2758 = vmatprep.mubr.f32.mxu0 0.0
  %2759 = vmatmul.mubr.f32.gmra.mxu0 %v2669
  %v2760 = vpop.f32.mrf.mxu0
  %v2761 = vadd.f32 0.0, %v2760
  %v2762 = vpop.f32.mrf.mxu0
  %2763 = vmatprep.mubr.f32.mxu0 0.0
  %2764 = vmatmul.mubr.f32.gmra.mxu0 %v2670
  %v2765 = vpop.f32.mrf.mxu0
  %v2766 = vadd.f32 0.0, %v2765
  %v2767 = vpop.f32.mrf.mxu0
  %2768 = vmatprep.mubr.f32.mxu0 0.0
  %2769 = vmatmul.mubr.f32.gmra.mxu0 %v2671
  %v2770 = vpop.f32.mrf.mxu0
  %v2771 = vadd.f32 0.0, %v2770
  %v2772 = vpop.f32.mrf.mxu0
  %2773 = vmatprep.mubr.f32.mxu0 0.0
  %2774 = vmatmul.mubr.f32.gmra.mxu0 %v2672
  %v2775 = vpop.f32.mrf.mxu0
  %v2776 = vadd.f32 0.0, %v2775
  %v2777 = vpop.f32.mrf.mxu0
  %2778 = vmatprep.mubr.f32.mxu0 0.0
  %2779 = vmatmul.mubr.f32.gmra.mxu0 %v2673
  %v2780 = vpop.f32.mrf.mxu0
  %v2781 = vadd.f32 0.0, %v2780
  %v2782 = vpop.f32.mrf.mxu0
  %2783 = vmatprep.mubr.f32.mxu0 0.0
  %2784 = vmatmul.mubr.f32.gmra.mxu0 %v2674
  %v2785 = vpop.f32.mrf.mxu0
  %v2786 = vadd.f32 0.0, %v2785
  %v2787 = vpop.f32.mrf.mxu0
  %2788 = vmatprep.mubr.f32.mxu0 0.0
  %2789 = vmatmul.mubr.f32.gmra.mxu0 %v2675
  %v2790 = vpop.f32.mrf.mxu0
  %v2791 = vadd.f32 0.0, %v2790
  %v2792 = vpop.f32.mrf.mxu0
  %2793 = vmatprep.mubr.f32.mxu0 0.0
  %2794 = vmatmul.mubr.f32.gmra.mxu0 %v2676
  %v2795 = vpop.f32.mrf.mxu0
  %v2796 = vadd.f32 0.0, %v2795
  %v2797 = vpop.f32.mrf.mxu0
  %2798 = vdwg.mxu0
  %2799 = vst [vmem:[#allocation2] sm:$0xff] %v2493
  %2800 = vst [vmem:[#allocation2 + $0x8] sm:$0xff] %v2494
  %2801 = vst [vmem:[#allocation2 + $0x10] sm:$0xff] %v2495
  %2802 = vst [vmem:[#allocation2 + $0x18] sm:$0xff] %v2496
  %2803 = vst [vmem:[#allocation2 + $0x20] sm:$0xff] %v2497
  %2804 = vst [vmem:[#allocation2 + $0x28] sm:$0xff] %v2498
  %2805 = vst [vmem:[#allocation2 + $0x30] sm:$0xff] %v2499
  %2806 = vst [vmem:[#allocation2 + $0x38] sm:$0xff] %v2500
  %2807 = vst [vmem:[#allocation2 + $0x40] sm:$0xff] %v2517
  %2808 = vst [vmem:[#allocation2 + $0x48] sm:$0xff] %v2518
  %2809 = vst [vmem:[#allocation2 + $0x50] sm:$0xff] %v2519
  %2810 = vst [vmem:[#allocation2 + $0x58] sm:$0xff] %v2520
  %2811 = vst [vmem:[#allocation2 + $0x60] sm:$0xff] %v2521
  %2812 = vst [vmem:[#allocation2 + $0x68] sm:$0xff] %v2522
  %2813 = vst [vmem:[#allocation2 + $0x70] sm:$0xff] %v2523
  %2814 = vst [vmem:[#allocation2 + $0x78] sm:$0xff] %v2524
  %2815 = vst [vmem:[#allocation2 + $0x80] sm:$0xff] %v2541
  %2816 = vst [vmem:[#allocation2 + $0x88] sm:$0xff] %v2542
  %2817 = vst [vmem:[#allocation2 + $0x90] sm:$0xff] %v2543
  %2818 = vst [vmem:[#allocation2 + $0x98] sm:$0xff] %v2544
  %2819 = vst [vmem:[#allocation2 + $0xa0] sm:$0xff] %v2545
  %2820 = vst [vmem:[#allocation2 + $0xa8] sm:$0xff] %v2546
  %2821 = vst [vmem:[#allocation2 + $0xb0] sm:$0xff] %v2547
  %2822 = vst [vmem:[#allocation2 + $0xb8] sm:$0xff] %v2548
  %v2823 = vld [vmem:[#allocation2] sm:$0xff]
  %v2824 = vld [vmem:[#allocation2 + $0x8] sm:$0xff]
  %v2825 = vld [vmem:[#allocation2 + $0x10] sm:$0xff]
  %v2826 = vld [vmem:[#allocation2 + $0x18] sm:$0xff]
  %v2827 = vld [vmem:[#allocation2 + $0x20] sm:$0xff]
  %v2828 = vld [vmem:[#allocation2 + $0x28] sm:$0xff]
  %v2829 = vld [vmem:[#allocation2 + $0x30] sm:$0xff]
  %v2830 = vld [vmem:[#allocation2 + $0x38] sm:$0xff]
  %v2831 = vld [vmem:[#allocation2 + $0x40] sm:$0xff]
  %v2832 = vld [vmem:[#allocation2 + $0x48] sm:$0xff]
  %v2833 = vld [vmem:[#allocation2 + $0x50] sm:$0xff]
  %v2834 = vld [vmem:[#allocation2 + $0x58] sm:$0xff]
  %v2835 = vld [vmem:[#allocation2 + $0x60] sm:$0xff]
  %v2836 = vld [vmem:[#allocation2 + $0x68] sm:$0xff]
  %v2837 = vld [vmem:[#allocation2 + $0x70] sm:$0xff]
  %v2838 = vld [vmem:[#allocation2 + $0x78] sm:$0xff]
  %v2839 = vld [vmem:[#allocation2 + $0x80] sm:$0xff]
  %v2840 = vld [vmem:[#allocation2 + $0x88] sm:$0xff]
  %v2841 = vld [vmem:[#allocation2 + $0x90] sm:$0xff]
  %v2842 = vld [vmem:[#allocation2 + $0x98] sm:$0xff]
  %v2843 = vld [vmem:[#allocation2 + $0xa0] sm:$0xff]
  %v2844 = vld [vmem:[#allocation2 + $0xa8] sm:$0xff]
  %v2845 = vld [vmem:[#allocation2 + $0xb0] sm:$0xff]
  %v2846 = vld [vmem:[#allocation2 + $0xb8] sm:$0xff]
  %s2847 = scalar_lea.vmem %s2, 512
  %v2848 = vld [vmem:[%s2847] sm:$0xff]
  %v2849 = vld [vmem:[%s2847 + $0x8] sm:$0xff]
  %v2850 = vld [vmem:[%s2847 + $0x10] sm:$0xff]
  %v2851 = vld [vmem:[%s2847 + $0x18] sm:$0xff]
  %v2852 = vld [vmem:[%s2847 + $0x20] sm:$0xff]
  %v2853 = vld [vmem:[%s2847 + $0x28] sm:$0xff]
  %v2854 = vld [vmem:[%s2847 + $0x30] sm:$0xff]
  %v2855 = vld [vmem:[%s2847 + $0x38] sm:$0xff]
  %v2856 = vld [vmem:[%s2847 + $0x40] sm:$0xff]
  %v2857 = vld [vmem:[%s2847 + $0x48] sm:$0xff]
  %v2858 = vld [vmem:[%s2847 + $0x50] sm:$0xff]
  %v2859 = vld [vmem:[%s2847 + $0x58] sm:$0xff]
  %v2860 = vld [vmem:[%s2847 + $0x60] sm:$0xff]
  %v2861 = vld [vmem:[%s2847 + $0x68] sm:$0xff]
  %v2862 = vld [vmem:[%s2847 + $0x70] sm:$0xff]
  %v2863 = vld [vmem:[%s2847 + $0x78] sm:$0xff]
  %2864 = vmatprep.subr.mxu0 0.0
  %2865 = vmatpush1.msra.mxu0 %v2863
  %2866 = vmatprep.subr.mxu0 0.0
  %2867 = vmatpush1.msra.mxu0 %v2862
  %2868 = vmatprep.subr.mxu0 0.0
  %2869 = vmatpush1.msra.mxu0 %v2861
  %2870 = vmatprep.subr.mxu0 0.0
  %2871 = vmatpush1.msra.mxu0 %v2860
  %2872 = vmatprep.subr.mxu0 0.0
  %2873 = vmatpush1.msra.mxu0 %v2859
  %2874 = vmatprep.subr.mxu0 0.0
  %2875 = vmatpush1.msra.mxu0 %v2858
  %2876 = vmatprep.subr.mxu0 0.0
  %2877 = vmatpush1.msra.mxu0 %v2857
  %2878 = vmatprep.subr.mxu0 0.0
  %2879 = vmatpush1.msra.mxu0 %v2856
  %2880 = vmatprep.subr.mxu0 0.0
  %2881 = vmatpush1.msra.mxu0 %v2855
  %2882 = vmatprep.subr.mxu0 0.0
  %2883 = vmatpush1.msra.mxu0 %v2854
  %2884 = vmatprep.subr.mxu0 0.0
  %2885 = vmatpush1.msra.mxu0 %v2853
  %2886 = vmatprep.subr.mxu0 0.0
  %2887 = vmatpush1.msra.mxu0 %v2852
  %2888 = vmatprep.subr.mxu0 0.0
  %2889 = vmatpush1.msra.mxu0 %v2851
  %2890 = vmatprep.subr.mxu0 0.0
  %2891 = vmatpush1.msra.mxu0 %v2850
  %2892 = vmatprep.subr.mxu0 0.0
  %2893 = vmatpush1.msra.mxu0 %v2849
  %2894 = vmatprep.subr.mxu0 0.0
  %2895 = vmatpush1.msra.mxu0 %v2848
  %2896 = vmatprep.subr.mxu0 0.0
  %2897 = vmatpush2.msra.mxu0 0.0
  %2898 = vmatprep.subr.mxu0 0.0
  %2899 = vmatpush2.msra.mxu0 0.0
  %2900 = vmatprep.subr.mxu0 0.0
  %2901 = vmatpush2.msra.mxu0 0.0
  %2902 = vmatprep.subr.mxu0 0.0
  %2903 = vmatpush2.msra.mxu0 0.0
  %2904 = vmatprep.subr.mxu0 0.0
  %2905 = vmatpush2.msra.mxu0 0.0
  %2906 = vmatprep.subr.mxu0 0.0
  %2907 = vmatpush2.msra.mxu0 0.0
  %2908 = vmatprep.subr.mxu0 0.0
  %2909 = vmatpush2.msra.mxu0 0.0
  %2910 = vmatprep.subr.mxu0 0.0
  %2911 = vmatpush2.msra.mxu0 0.0
  %2912 = vmatprep.subr.mxu0 0.0
  %2913 = vmatpush2.msra.mxu0 0.0
  %2914 = vmatprep.subr.mxu0 0.0
  %2915 = vmatpush2.msra.mxu0 0.0
  %2916 = vmatprep.subr.mxu0 0.0
  %2917 = vmatpush2.msra.mxu0 0.0
  %2918 = vmatprep.subr.mxu0 0.0
  %2919 = vmatpush2.msra.mxu0 0.0
  %2920 = vmatprep.subr.mxu0 0.0
  %2921 = vmatpush2.msra.mxu0 0.0
  %2922 = vmatprep.subr.mxu0 0.0
  %2923 = vmatpush2.msra.mxu0 0.0
  %2924 = vmatprep.subr.mxu0 0.0
  %2925 = vmatpush2.msra.mxu0 0.0
  %2926 = vmatprep.subr.mxu0 0.0
  %2927 = vmatpush2.msra.mxu0 0.0
  %2928 = vmatprep.mubr.f32.mxu0 0.0
  %2929 = vmatmul.mubr.f32.gmra.mxu0 %v2823
  %v2930 = vpop.f32.mrf.mxu0
  %v2931 = vadd.f32 0.0, %v2930
  %v2932 = vpop.f32.mrf.mxu0
  %2933 = vmatprep.mubr.f32.mxu0 0.0
  %2934 = vmatmul.mubr.f32.gmra.mxu0 %v2824
  %v2935 = vpop.f32.mrf.mxu0
  %v2936 = vadd.f32 0.0, %v2935
  %v2937 = vpop.f32.mrf.mxu0
  %2938 = vmatprep.mubr.f32.mxu0 0.0
  %2939 = vmatmul.mubr.f32.gmra.mxu0 %v2825
  %v2940 = vpop.f32.mrf.mxu0
  %v2941 = vadd.f32 0.0, %v2940
  %v2942 = vpop.f32.mrf.mxu0
  %2943 = vmatprep.mubr.f32.mxu0 0.0
  %2944 = vmatmul.mubr.f32.gmra.mxu0 %v2826
  %v2945 = vpop.f32.mrf.mxu0
  %v2946 = vadd.f32 0.0, %v2945
  %v2947 = vpop.f32.mrf.mxu0
  %2948 = vmatprep.mubr.f32.mxu0 0.0
  %2949 = vmatmul.mubr.f32.gmra.mxu0 %v2827
  %v2950 = vpop.f32.mrf.mxu0
  %v2951 = vadd.f32 0.0, %v2950
  %v2952 = vpop.f32.mrf.mxu0
  %2953 = vmatprep.mubr.f32.mxu0 0.0
  %2954 = vmatmul.mubr.f32.gmra.mxu0 %v2828
  %v2955 = vpop.f32.mrf.mxu0
  %v2956 = vadd.f32 0.0, %v2955
  %v2957 = vpop.f32.mrf.mxu0
  %2958 = vmatprep.mubr.f32.mxu0 0.0
  %2959 = vmatmul.mubr.f32.gmra.mxu0 %v2829
  %v2960 = vpop.f32.mrf.mxu0
  %v2961 = vadd.f32 0.0, %v2960
  %v2962 = vpop.f32.mrf.mxu0
  %2963 = vmatprep.mubr.f32.mxu0 0.0
  %2964 = vmatmul.mubr.f32.gmra.mxu0 %v2830
  %v2965 = vpop.f32.mrf.mxu0
  %v2966 = vadd.f32 0.0, %v2965
  %v2967 = vpop.f32.mrf.mxu0
  %2968 = vmatprep.mubr.f32.mxu0 0.0
  %2969 = vmatmul.mubr.f32.gmra.mxu0 %v2831
  %v2970 = vpop.f32.mrf.mxu0
  %v2971 = vadd.f32 0.0, %v2970
  %v2972 = vpop.f32.mrf.mxu0
  %2973 = vmatprep.mubr.f32.mxu0 0.0
  %2974 = vmatmul.mubr.f32.gmra.mxu0 %v2832
  %v2975 = vpop.f32.mrf.mxu0
  %v2976 = vadd.f32 0.0, %v2975
  %v2977 = vpop.f32.mrf.mxu0
  %2978 = vmatprep.mubr.f32.mxu0 0.0
  %2979 = vmatmul.mubr.f32.gmra.mxu0 %v2833
  %v2980 = vpop.f32.mrf.mxu0
  %v2981 = vadd.f32 0.0, %v2980
  %v2982 = vpop.f32.mrf.mxu0
  %2983 = vmatprep.mubr.f32.mxu0 0.0
  %2984 = vmatmul.mubr.f32.gmra.mxu0 %v2834
  %v2985 = vpop.f32.mrf.mxu0
  %v2986 = vadd.f32 0.0, %v2985
  %v2987 = vpop.f32.mrf.mxu0
  %2988 = vmatprep.mubr.f32.mxu0 0.0
  %2989 = vmatmul.mubr.f32.gmra.mxu0 %v2835
  %v2990 = vpop.f32.mrf.mxu0
  %v2991 = vadd.f32 0.0, %v2990
  %v2992 = vpop.f32.mrf.mxu0
  %2993 = vmatprep.mubr.f32.mxu0 0.0
  %2994 = vmatmul.mubr.f32.gmra.mxu0 %v2836
  %v2995 = vpop.f32.mrf.mxu0
  %v2996 = vadd.f32 0.0, %v2995
  %v2997 = vpop.f32.mrf.mxu0
  %2998 = vmatprep.mubr.f32.mxu0 0.0
  %2999 = vmatmul.mubr.f32.gmra.mxu0 %v2837
  %v3000 = vpop.f32.mrf.mxu0
  %v3001 = vadd.f32 0.0, %v3000
  %v3002 = vpop.f32.mrf.mxu0
  %3003 = vmatprep.mubr.f32.mxu0 0.0
  %3004 = vmatmul.mubr.f32.gmra.mxu0 %v2838
  %v3005 = vpop.f32.mrf.mxu0
  %v3006 = vadd.f32 0.0, %v3005
  %v3007 = vpop.f32.mrf.mxu0
  %3008 = vmatprep.mubr.f32.mxu0 0.0
  %3009 = vmatmul.mubr.f32.gmra.mxu0 %v2839
  %v3010 = vpop.f32.mrf.mxu0
  %v3011 = vadd.f32 0.0, %v3010
  %v3012 = vpop.f32.mrf.mxu0
  %3013 = vmatprep.mubr.f32.mxu0 0.0
  %3014 = vmatmul.mubr.f32.gmra.mxu0 %v2840
  %v3015 = vpop.f32.mrf.mxu0
  %v3016 = vadd.f32 0.0, %v3015
  %v3017 = vpop.f32.mrf.mxu0
  %3018 = vmatprep.mubr.f32.mxu0 0.0
  %3019 = vmatmul.mubr.f32.gmra.mxu0 %v2841
  %v3020 = vpop.f32.mrf.mxu0
  %v3021 = vadd.f32 0.0, %v3020
  %v3022 = vpop.f32.mrf.mxu0
  %3023 = vmatprep.mubr.f32.mxu0 0.0
  %3024 = vmatmul.mubr.f32.gmra.mxu0 %v2842
  %v3025 = vpop.f32.mrf.mxu0
  %v3026 = vadd.f32 0.0, %v3025
  %v3027 = vpop.f32.mrf.mxu0
  %3028 = vmatprep.mubr.f32.mxu0 0.0
  %3029 = vmatmul.mubr.f32.gmra.mxu0 %v2843
  %v3030 = vpop.f32.mrf.mxu0
  %v3031 = vadd.f32 0.0, %v3030
  %v3032 = vpop.f32.mrf.mxu0
  %3033 = vmatprep.mubr.f32.mxu0 0.0
  %3034 = vmatmul.mubr.f32.gmra.mxu0 %v2844
  %v3035 = vpop.f32.mrf.mxu0
  %v3036 = vadd.f32 0.0, %v3035
  %v3037 = vpop.f32.mrf.mxu0
  %3038 = vmatprep.mubr.f32.mxu0 0.0
  %3039 = vmatmul.mubr.f32.gmra.mxu0 %v2845
  %v3040 = vpop.f32.mrf.mxu0
  %v3041 = vadd.f32 0.0, %v3040
  %v3042 = vpop.f32.mrf.mxu0
  %3043 = vmatprep.mubr.f32.mxu0 0.0
  %3044 = vmatmul.mubr.f32.gmra.mxu0 %v2846
  %v3045 = vpop.f32.mrf.mxu0
  %v3046 = vadd.f32 0.0, %v3045
  %v3047 = vpop.f32.mrf.mxu0
  %3048 = vdwg.mxu0
  %3049 = vst [vmem:[#allocation3] sm:$0xff] %v2557
  %3050 = vst [vmem:[#allocation3 + $0x8] sm:$0xff] %v2558
  %3051 = vst [vmem:[#allocation3 + $0x10] sm:$0xff] %v2559
  %3052 = vst [vmem:[#allocation3 + $0x18] sm:$0xff] %v2560
  %3053 = vst [vmem:[#allocation3 + $0x20] sm:$0xff] %v2561
  %3054 = vst [vmem:[#allocation3 + $0x28] sm:$0xff] %v2562
  %3055 = vst [vmem:[#allocation3 + $0x30] sm:$0xff] %v2563
  %3056 = vst [vmem:[#allocation3 + $0x38] sm:$0xff] %v2564
  %3057 = vst [vmem:[#allocation3 + $0x40] sm:$0xff] %v2613
  %3058 = vst [vmem:[#allocation3 + $0x48] sm:$0xff] %v2614
  %3059 = vst [vmem:[#allocation3 + $0x50] sm:$0xff] %v2615
  %3060 = vst [vmem:[#allocation3 + $0x58] sm:$0xff] %v2616
  %3061 = vst [vmem:[#allocation3 + $0x60] sm:$0xff] %v2617
  %3062 = vst [vmem:[#allocation3 + $0x68] sm:$0xff] %v2618
  %3063 = vst [vmem:[#allocation3 + $0x70] sm:$0xff] %v2619
  %3064 = vst [vmem:[#allocation3 + $0x78] sm:$0xff] %v2620
  %3065 = vst [vmem:[#allocation3 + $0x80] sm:$0xff] %v2637
  %3066 = vst [vmem:[#allocation3 + $0x88] sm:$0xff] %v2638
  %3067 = vst [vmem:[#allocation3 + $0x90] sm:$0xff] %v2639
  %3068 = vst [vmem:[#allocation3 + $0x98] sm:$0xff] %v2640
  %3069 = vst [vmem:[#allocation3 + $0xa0] sm:$0xff] %v2641
  %3070 = vst [vmem:[#allocation3 + $0xa8] sm:$0xff] %v2642
  %3071 = vst [vmem:[#allocation3 + $0xb0] sm:$0xff] %v2643
  %3072 = vst [vmem:[#allocation3 + $0xb8] sm:$0xff] %v2644
  %3073 = vst [vmem:[#allocation3 + $0xc0] sm:$0xff] %v2573
  %3074 = vst [vmem:[#allocation3 + $0xc8] sm:$0xff] %v2574
  %3075 = vst [vmem:[#allocation3 + $0xd0] sm:$0xff] %v2575
  %3076 = vst [vmem:[#allocation3 + $0xd8] sm:$0xff] %v2576
  %3077 = vst [vmem:[#allocation3 + $0xe0] sm:$0xff] %v2577
  %3078 = vst [vmem:[#allocation3 + $0xe8] sm:$0xff] %v2578
  %3079 = vst [vmem:[#allocation3 + $0xf0] sm:$0xff] %v2579
  %3080 = vst [vmem:[#allocation3 + $0xf8] sm:$0xff] %v2580
  %3081 = vst [vmem:[#allocation3 + $0x100] sm:$0xff] %v2661
  %3082 = vst [vmem:[#allocation3 + $0x108] sm:$0xff] %v2662
  %3083 = vst [vmem:[#allocation3 + $0x110] sm:$0xff] %v2663
  %3084 = vst [vmem:[#allocation3 + $0x118] sm:$0xff] %v2664
  %3085 = vst [vmem:[#allocation3 + $0x120] sm:$0xff] %v2665
  %3086 = vst [vmem:[#allocation3 + $0x128] sm:$0xff] %v2666
  %3087 = vst [vmem:[#allocation3 + $0x130] sm:$0xff] %v2667
  %3088 = vst [vmem:[#allocation3 + $0x138] sm:$0xff] %v2668
  %3089 = vst [vmem:[#allocation3 + $0x140] sm:$0xff] %v2589
  %3090 = vst [vmem:[#allocation3 + $0x148] sm:$0xff] %v2590
  %3091 = vst [vmem:[#allocation3 + $0x150] sm:$0xff] %v2591
  %3092 = vst [vmem:[#allocation3 + $0x158] sm:$0xff] %v2592
  %3093 = vst [vmem:[#allocation3 + $0x160] sm:$0xff] %v2593
  %3094 = vst [vmem:[#allocation3 + $0x168] sm:$0xff] %v2594
  %3095 = vst [vmem:[#allocation3 + $0x170] sm:$0xff] %v2595
  %3096 = vst [vmem:[#allocation3 + $0x178] sm:$0xff] %v2596
  %v3097 = vld [vmem:[#allocation3] sm:$0xff]
  %v3098 = vld [vmem:[#allocation3 + $0x8] sm:$0xff]
  %v3099 = vld [vmem:[#allocation3 + $0x10] sm:$0xff]
  %v3100 = vld [vmem:[#allocation3 + $0x18] sm:$0xff]
  %v3101 = vld [vmem:[#allocation3 + $0x20] sm:$0xff]
  %v3102 = vld [vmem:[#allocation3 + $0x28] sm:$0xff]
  %v3103 = vld [vmem:[#allocation3 + $0x30] sm:$0xff]
  %v3104 = vld [vmem:[#allocation3 + $0x38] sm:$0xff]
  %v3105 = vld [vmem:[#allocation3 + $0x40] sm:$0xff]
  %v3106 = vld [vmem:[#allocation3 + $0x48] sm:$0xff]
  %v3107 = vld [vmem:[#allocation3 + $0x50] sm:$0xff]
  %v3108 = vld [vmem:[#allocation3 + $0x58] sm:$0xff]
  %v3109 = vld [vmem:[#allocation3 + $0x60] sm:$0xff]
  %v3110 = vld [vmem:[#allocation3 + $0x68] sm:$0xff]
  %v3111 = vld [vmem:[#allocation3 + $0x70] sm:$0xff]
  %v3112 = vld [vmem:[#allocation3 + $0x78] sm:$0xff]
  %v3113 = vld [vmem:[#allocation3 + $0x80] sm:$0xff]
  %v3114 = vld [vmem:[#allocation3 + $0x88] sm:$0xff]
  %v3115 = vld [vmem:[#allocation3 + $0x90] sm:$0xff]
  %v3116 = vld [vmem:[#allocation3 + $0x98] sm:$0xff]
  %v3117 = vld [vmem:[#allocation3 + $0xa0] sm:$0xff]
  %v3118 = vld [vmem:[#allocation3 + $0xa8] sm:$0xff]
  %v3119 = vld [vmem:[#allocation3 + $0xb0] sm:$0xff]
  %v3120 = vld [vmem:[#allocation3 + $0xb8] sm:$0xff]
  %v3121 = vld [vmem:[#allocation3 + $0xc0] sm:$0xff]
  %v3122 = vld [vmem:[#allocation3 + $0xc8] sm:$0xff]
  %v3123 = vld [vmem:[#allocation3 + $0xd0] sm:$0xff]
  %v3124 = vld [vmem:[#allocation3 + $0xd8] sm:$0xff]
  %v3125 = vld [vmem:[#allocation3 + $0xe0] sm:$0xff]
  %v3126 = vld [vmem:[#allocation3 + $0xe8] sm:$0xff]
  %v3127 = vld [vmem:[#allocation3 + $0xf0] sm:$0xff]
  %v3128 = vld [vmem:[#allocation3 + $0xf8] sm:$0xff]
  %v3129 = vld [vmem:[#allocation3 + $0x100] sm:$0xff]
  %v3130 = vld [vmem:[#allocation3 + $0x108] sm:$0xff]
  %v3131 = vld [vmem:[#allocation3 + $0x110] sm:$0xff]
  %v3132 = vld [vmem:[#allocation3 + $0x118] sm:$0xff]
  %v3133 = vld [vmem:[#allocation3 + $0x120] sm:$0xff]
  %v3134 = vld [vmem:[#allocation3 + $0x128] sm:$0xff]
  %v3135 = vld [vmem:[#allocation3 + $0x130] sm:$0xff]
  %v3136 = vld [vmem:[#allocation3 + $0x138] sm:$0xff]
  %v3137 = vld [vmem:[#allocation3 + $0x140] sm:$0xff]
  %v3138 = vld [vmem:[#allocation3 + $0x148] sm:$0xff]
  %v3139 = vld [vmem:[#allocation3 + $0x150] sm:$0xff]
  %v3140 = vld [vmem:[#allocation3 + $0x158] sm:$0xff]
  %v3141 = vld [vmem:[#allocation3 + $0x160] sm:$0xff]
  %v3142 = vld [vmem:[#allocation3 + $0x168] sm:$0xff]
  %v3143 = vld [vmem:[#allocation3 + $0x170] sm:$0xff]
  %v3144 = vld [vmem:[#allocation3 + $0x178] sm:$0xff]
  %s3145 = scalar_lea.vmem %s2, 640
  %v3146 = vld [vmem:[%s3145] sm:$0xff]
  %v3147 = vld [vmem:[%s3145 + $0x8] sm:$0xff]
  %v3148 = vld [vmem:[%s3145 + $0x10] sm:$0xff]
  %v3149 = vld [vmem:[%s3145 + $0x18] sm:$0xff]
  %v3150 = vld [vmem:[%s3145 + $0x20] sm:$0xff]
  %v3151 = vld [vmem:[%s3145 + $0x28] sm:$0xff]
  %v3152 = vld [vmem:[%s3145 + $0x30] sm:$0xff]
  %v3153 = vld [vmem:[%s3145 + $0x38] sm:$0xff]
  %v3154 = vld [vmem:[%s3145 + $0x40] sm:$0xff]
  %v3155 = vld [vmem:[%s3145 + $0x48] sm:$0xff]
  %v3156 = vld [vmem:[%s3145 + $0x50] sm:$0xff]
  %v3157 = vld [vmem:[%s3145 + $0x58] sm:$0xff]
  %v3158 = vld [vmem:[%s3145 + $0x60] sm:$0xff]
  %v3159 = vld [vmem:[%s3145 + $0x68] sm:$0xff]
  %v3160 = vld [vmem:[%s3145 + $0x70] sm:$0xff]
  %v3161 = vld [vmem:[%s3145 + $0x78] sm:$0xff]
  %3162 = vmatprep.subr.mxu0 0.0
  %3163 = vmatpush1.msra.mxu0 %v3161
  %3164 = vmatprep.subr.mxu0 0.0
  %3165 = vmatpush1.msra.mxu0 %v3160
  %3166 = vmatprep.subr.mxu0 0.0
  %3167 = vmatpush1.msra.mxu0 %v3159
  %3168 = vmatprep.subr.mxu0 0.0
  %3169 = vmatpush1.msra.mxu0 %v3158
  %3170 = vmatprep.subr.mxu0 0.0
  %3171 = vmatpush1.msra.mxu0 %v3157
  %3172 = vmatprep.subr.mxu0 0.0
  %3173 = vmatpush1.msra.mxu0 %v3156
  %3174 = vmatprep.subr.mxu0 0.0
  %3175 = vmatpush1.msra.mxu0 %v3155
  %3176 = vmatprep.subr.mxu0 0.0
  %3177 = vmatpush1.msra.mxu0 %v3154
  %3178 = vmatprep.subr.mxu0 0.0
  %3179 = vmatpush1.msra.mxu0 %v3153
  %3180 = vmatprep.subr.mxu0 0.0
  %3181 = vmatpush1.msra.mxu0 %v3152
  %3182 = vmatprep.subr.mxu0 0.0
  %3183 = vmatpush1.msra.mxu0 %v3151
  %3184 = vmatprep.subr.mxu0 0.0
  %3185 = vmatpush1.msra.mxu0 %v3150
  %3186 = vmatprep.subr.mxu0 0.0
  %3187 = vmatpush1.msra.mxu0 %v3149
  %3188 = vmatprep.subr.mxu0 0.0
  %3189 = vmatpush1.msra.mxu0 %v3148
  %3190 = vmatprep.subr.mxu0 0.0
  %3191 = vmatpush1.msra.mxu0 %v3147
  %3192 = vmatprep.subr.mxu0 0.0
  %3193 = vmatpush1.msra.mxu0 %v3146
  %3194 = vmatprep.subr.mxu0 0.0
  %3195 = vmatpush2.msra.mxu0 0.0
  %3196 = vmatprep.subr.mxu0 0.0
  %3197 = vmatpush2.msra.mxu0 0.0
  %3198 = vmatprep.subr.mxu0 0.0
  %3199 = vmatpush2.msra.mxu0 0.0
  %3200 = vmatprep.subr.mxu0 0.0
  %3201 = vmatpush2.msra.mxu0 0.0
  %3202 = vmatprep.subr.mxu0 0.0
  %3203 = vmatpush2.msra.mxu0 0.0
  %3204 = vmatprep.subr.mxu0 0.0
  %3205 = vmatpush2.msra.mxu0 0.0
  %3206 = vmatprep.subr.mxu0 0.0
  %3207 = vmatpush2.msra.mxu0 0.0
  %3208 = vmatprep.subr.mxu0 0.0
  %3209 = vmatpush2.msra.mxu0 0.0
  %3210 = vmatprep.subr.mxu0 0.0
  %3211 = vmatpush2.msra.mxu0 0.0
  %3212 = vmatprep.subr.mxu0 0.0
  %3213 = vmatpush2.msra.mxu0 0.0
  %3214 = vmatprep.subr.mxu0 0.0
  %3215 = vmatpush2.msra.mxu0 0.0
  %3216 = vmatprep.subr.mxu0 0.0
  %3217 = vmatpush2.msra.mxu0 0.0
  %3218 = vmatprep.subr.mxu0 0.0
  %3219 = vmatpush2.msra.mxu0 0.0
  %3220 = vmatprep.subr.mxu0 0.0
  %3221 = vmatpush2.msra.mxu0 0.0
  %3222 = vmatprep.subr.mxu0 0.0
  %3223 = vmatpush2.msra.mxu0 0.0
  %3224 = vmatprep.subr.mxu0 0.0
  %3225 = vmatpush2.msra.mxu0 0.0
  %3226 = vmatprep.mubr.f32.mxu0 0.0
  %3227 = vmatmul.mubr.f32.gmra.mxu0 %v3097
  %v3228 = vpop.f32.mrf.mxu0
  %v3229 = vadd.f32 0.0, %v3228
  %v3230 = vpop.f32.mrf.mxu0
  %3231 = vmatprep.mubr.f32.mxu0 0.0
  %3232 = vmatmul.mubr.f32.gmra.mxu0 %v3098
  %v3233 = vpop.f32.mrf.mxu0
  %v3234 = vadd.f32 0.0, %v3233
  %v3235 = vpop.f32.mrf.mxu0
  %3236 = vmatprep.mubr.f32.mxu0 0.0
  %3237 = vmatmul.mubr.f32.gmra.mxu0 %v3099
  %v3238 = vpop.f32.mrf.mxu0
  %v3239 = vadd.f32 0.0, %v3238
  %v3240 = vpop.f32.mrf.mxu0
  %3241 = vmatprep.mubr.f32.mxu0 0.0
  %3242 = vmatmul.mubr.f32.gmra.mxu0 %v3100
  %v3243 = vpop.f32.mrf.mxu0
  %v3244 = vadd.f32 0.0, %v3243
  %v3245 = vpop.f32.mrf.mxu0
  %3246 = vmatprep.mubr.f32.mxu0 0.0
  %3247 = vmatmul.mubr.f32.gmra.mxu0 %v3101
  %v3248 = vpop.f32.mrf.mxu0
  %v3249 = vadd.f32 0.0, %v3248
  %v3250 = vpop.f32.mrf.mxu0
  %3251 = vmatprep.mubr.f32.mxu0 0.0
  %3252 = vmatmul.mubr.f32.gmra.mxu0 %v3102
  %v3253 = vpop.f32.mrf.mxu0
  %v3254 = vadd.f32 0.0, %v3253
  %v3255 = vpop.f32.mrf.mxu0
  %3256 = vmatprep.mubr.f32.mxu0 0.0
  %3257 = vmatmul.mubr.f32.gmra.mxu0 %v3103
  %v3258 = vpop.f32.mrf.mxu0
  %v3259 = vadd.f32 0.0, %v3258
  %v3260 = vpop.f32.mrf.mxu0
  %3261 = vmatprep.mubr.f32.mxu0 0.0
  %3262 = vmatmul.mubr.f32.gmra.mxu0 %v3104
  %v3263 = vpop.f32.mrf.mxu0
  %v3264 = vadd.f32 0.0, %v3263
  %v3265 = vpop.f32.mrf.mxu0
  %3266 = vmatprep.mubr.f32.mxu0 0.0
  %3267 = vmatmul.mubr.f32.gmra.mxu0 %v3105
  %v3268 = vpop.f32.mrf.mxu0
  %v3269 = vadd.f32 0.0, %v3268
  %v3270 = vpop.f32.mrf.mxu0
  %3271 = vmatprep.mubr.f32.mxu0 0.0
  %3272 = vmatmul.mubr.f32.gmra.mxu0 %v3106
  %v3273 = vpop.f32.mrf.mxu0
  %v3274 = vadd.f32 0.0, %v3273
  %v3275 = vpop.f32.mrf.mxu0
  %3276 = vmatprep.mubr.f32.mxu0 0.0
  %3277 = vmatmul.mubr.f32.gmra.mxu0 %v3107
  %v3278 = vpop.f32.mrf.mxu0
  %v3279 = vadd.f32 0.0, %v3278
  %v3280 = vpop.f32.mrf.mxu0
  %3281 = vmatprep.mubr.f32.mxu0 0.0
  %3282 = vmatmul.mubr.f32.gmra.mxu0 %v3108
  %v3283 = vpop.f32.mrf.mxu0
  %v3284 = vadd.f32 0.0, %v3283
  %v3285 = vpop.f32.mrf.mxu0
  %3286 = vmatprep.mubr.f32.mxu0 0.0
  %3287 = vmatmul.mubr.f32.gmra.mxu0 %v3109
  %v3288 = vpop.f32.mrf.mxu0
  %v3289 = vadd.f32 0.0, %v3288
  %v3290 = vpop.f32.mrf.mxu0
  %3291 = vmatprep.mubr.f32.mxu0 0.0
  %3292 = vmatmul.mubr.f32.gmra.mxu0 %v3110
  %v3293 = vpop.f32.mrf.mxu0
  %v3294 = vadd.f32 0.0, %v3293
  %v3295 = vpop.f32.mrf.mxu0
  %3296 = vmatprep.mubr.f32.mxu0 0.0
  %3297 = vmatmul.mubr.f32.gmra.mxu0 %v3111
  %v3298 = vpop.f32.mrf.mxu0
  %v3299 = vadd.f32 0.0, %v3298
  %v3300 = vpop.f32.mrf.mxu0
  %3301 = vmatprep.mubr.f32.mxu0 0.0
  %3302 = vmatmul.mubr.f32.gmra.mxu0 %v3112
  %v3303 = vpop.f32.mrf.mxu0
  %v3304 = vadd.f32 0.0, %v3303
  %v3305 = vpop.f32.mrf.mxu0
  %3306 = vmatprep.mubr.f32.mxu0 0.0
  %3307 = vmatmul.mubr.f32.gmra.mxu0 %v3113
  %v3308 = vpop.f32.mrf.mxu0
  %v3309 = vadd.f32 0.0, %v3308
  %v3310 = vpop.f32.mrf.mxu0
  %3311 = vmatprep.mubr.f32.mxu0 0.0
  %3312 = vmatmul.mubr.f32.gmra.mxu0 %v3114
  %v3313 = vpop.f32.mrf.mxu0
  %v3314 = vadd.f32 0.0, %v3313
  %v3315 = vpop.f32.mrf.mxu0
  %3316 = vmatprep.mubr.f32.mxu0 0.0
  %3317 = vmatmul.mubr.f32.gmra.mxu0 %v3115
  %v3318 = vpop.f32.mrf.mxu0
  %v3319 = vadd.f32 0.0, %v3318
  %v3320 = vpop.f32.mrf.mxu0
  %3321 = vmatprep.mubr.f32.mxu0 0.0
  %3322 = vmatmul.mubr.f32.gmra.mxu0 %v3116
  %v3323 = vpop.f32.mrf.mxu0
  %v3324 = vadd.f32 0.0, %v3323
  %v3325 = vpop.f32.mrf.mxu0
  %3326 = vmatprep.mubr.f32.mxu0 0.0
  %3327 = vmatmul.mubr.f32.gmra.mxu0 %v3117
  %v3328 = vpop.f32.mrf.mxu0
  %v3329 = vadd.f32 0.0, %v3328
  %v3330 = vpop.f32.mrf.mxu0
  %3331 = vmatprep.mubr.f32.mxu0 0.0
  %3332 = vmatmul.mubr.f32.gmra.mxu0 %v3118
  %v3333 = vpop.f32.mrf.mxu0
  %v3334 = vadd.f32 0.0, %v3333
  %v3335 = vpop.f32.mrf.mxu0
  %3336 = vmatprep.mubr.f32.mxu0 0.0
  %3337 = vmatmul.mubr.f32.gmra.mxu0 %v3119
  %v3338 = vpop.f32.mrf.mxu0
  %v3339 = vadd.f32 0.0, %v3338
  %v3340 = vpop.f32.mrf.mxu0
  %3341 = vmatprep.mubr.f32.mxu0 0.0
  %3342 = vmatmul.mubr.f32.gmra.mxu0 %v3120
  %v3343 = vpop.f32.mrf.mxu0
  %v3344 = vadd.f32 0.0, %v3343
  %v3345 = vpop.f32.mrf.mxu0
  %3346 = vmatprep.mubr.f32.mxu0 0.0
  %3347 = vmatmul.mubr.f32.gmra.mxu0 %v3121
  %v3348 = vpop.f32.mrf.mxu0
  %v3349 = vadd.f32 0.0, %v3348
  %v3350 = vpop.f32.mrf.mxu0
  %3351 = vmatprep.mubr.f32.mxu0 0.0
  %3352 = vmatmul.mubr.f32.gmra.mxu0 %v3122
  %v3353 = vpop.f32.mrf.mxu0
  %v3354 = vadd.f32 0.0, %v3353
  %v3355 = vpop.f32.mrf.mxu0
  %3356 = vmatprep.mubr.f32.mxu0 0.0
  %3357 = vmatmul.mubr.f32.gmra.mxu0 %v3123
  %v3358 = vpop.f32.mrf.mxu0
  %v3359 = vadd.f32 0.0, %v3358
  %v3360 = vpop.f32.mrf.mxu0
  %3361 = vmatprep.mubr.f32.mxu0 0.0
  %3362 = vmatmul.mubr.f32.gmra.mxu0 %v3124
  %v3363 = vpop.f32.mrf.mxu0
  %v3364 = vadd.f32 0.0, %v3363
  %v3365 = vpop.f32.mrf.mxu0
  %3366 = vmatprep.mubr.f32.mxu0 0.0
  %3367 = vmatmul.mubr.f32.gmra.mxu0 %v3125
  %v3368 = vpop.f32.mrf.mxu0
  %v3369 = vadd.f32 0.0, %v3368
  %v3370 = vpop.f32.mrf.mxu0
  %3371 = vmatprep.mubr.f32.mxu0 0.0
  %3372 = vmatmul.mubr.f32.gmra.mxu0 %v3126
  %v3373 = vpop.f32.mrf.mxu0
  %v3374 = vadd.f32 0.0, %v3373
  %v3375 = vpop.f32.mrf.mxu0
  %3376 = vmatprep.mubr.f32.mxu0 0.0
  %3377 = vmatmul.mubr.f32.gmra.mxu0 %v3127
  %v3378 = vpop.f32.mrf.mxu0
  %v3379 = vadd.f32 0.0, %v3378
  %v3380 = vpop.f32.mrf.mxu0
  %3381 = vmatprep.mubr.f32.mxu0 0.0
  %3382 = vmatmul.mubr.f32.gmra.mxu0 %v3128
  %v3383 = vpop.f32.mrf.mxu0
  %v3384 = vadd.f32 0.0, %v3383
  %v3385 = vpop.f32.mrf.mxu0
  %3386 = vmatprep.mubr.f32.mxu0 0.0
  %3387 = vmatmul.mubr.f32.gmra.mxu0 %v3129
  %v3388 = vpop.f32.mrf.mxu0
  %v3389 = vadd.f32 0.0, %v3388
  %v3390 = vpop.f32.mrf.mxu0
  %3391 = vmatprep.mubr.f32.mxu0 0.0
  %3392 = vmatmul.mubr.f32.gmra.mxu0 %v3130
  %v3393 = vpop.f32.mrf.mxu0
  %v3394 = vadd.f32 0.0, %v3393
  %v3395 = vpop.f32.mrf.mxu0
  %3396 = vmatprep.mubr.f32.mxu0 0.0
  %3397 = vmatmul.mubr.f32.gmra.mxu0 %v3131
  %v3398 = vpop.f32.mrf.mxu0
  %v3399 = vadd.f32 0.0, %v3398
  %v3400 = vpop.f32.mrf.mxu0
  %3401 = vmatprep.mubr.f32.mxu0 0.0
  %3402 = vmatmul.mubr.f32.gmra.mxu0 %v3132
  %v3403 = vpop.f32.mrf.mxu0
  %v3404 = vadd.f32 0.0, %v3403
  %v3405 = vpop.f32.mrf.mxu0
  %3406 = vmatprep.mubr.f32.mxu0 0.0
  %3407 = vmatmul.mubr.f32.gmra.mxu0 %v3133
  %v3408 = vpop.f32.mrf.mxu0
  %v3409 = vadd.f32 0.0, %v3408
  %v3410 = vpop.f32.mrf.mxu0
  %3411 = vmatprep.mubr.f32.mxu0 0.0
  %3412 = vmatmul.mubr.f32.gmra.mxu0 %v3134
  %v3413 = vpop.f32.mrf.mxu0
  %v3414 = vadd.f32 0.0, %v3413
  %v3415 = vpop.f32.mrf.mxu0
  %3416 = vmatprep.mubr.f32.mxu0 0.0
  %3417 = vmatmul.mubr.f32.gmra.mxu0 %v3135
  %v3418 = vpop.f32.mrf.mxu0
  %v3419 = vadd.f32 0.0, %v3418
  %v3420 = vpop.f32.mrf.mxu0
  %3421 = vmatprep.mubr.f32.mxu0 0.0
  %3422 = vmatmul.mubr.f32.gmra.mxu0 %v3136
  %v3423 = vpop.f32.mrf.mxu0
  %v3424 = vadd.f32 0.0, %v3423
  %v3425 = vpop.f32.mrf.mxu0
  %3426 = vmatprep.mubr.f32.mxu0 0.0
  %3427 = vmatmul.mubr.f32.gmra.mxu0 %v3137
  %v3428 = vpop.f32.mrf.mxu0
  %v3429 = vadd.f32 0.0, %v3428
  %v3430 = vpop.f32.mrf.mxu0
  %3431 = vmatprep.mubr.f32.mxu0 0.0
  %3432 = vmatmul.mubr.f32.gmra.mxu0 %v3138
  %v3433 = vpop.f32.mrf.mxu0
  %v3434 = vadd.f32 0.0, %v3433
  %v3435 = vpop.f32.mrf.mxu0
  %3436 = vmatprep.mubr.f32.mxu0 0.0
  %3437 = vmatmul.mubr.f32.gmra.mxu0 %v3139
  %v3438 = vpop.f32.mrf.mxu0
  %v3439 = vadd.f32 0.0, %v3438
  %v3440 = vpop.f32.mrf.mxu0
  %3441 = vmatprep.mubr.f32.mxu0 0.0
  %3442 = vmatmul.mubr.f32.gmra.mxu0 %v3140
  %v3443 = vpop.f32.mrf.mxu0
  %v3444 = vadd.f32 0.0, %v3443
  %v3445 = vpop.f32.mrf.mxu0
  %3446 = vmatprep.mubr.f32.mxu0 0.0
  %3447 = vmatmul.mubr.f32.gmra.mxu0 %v3141
  %v3448 = vpop.f32.mrf.mxu0
  %v3449 = vadd.f32 0.0, %v3448
  %v3450 = vpop.f32.mrf.mxu0
  %3451 = vmatprep.mubr.f32.mxu0 0.0
  %3452 = vmatmul.mubr.f32.gmra.mxu0 %v3142
  %v3453 = vpop.f32.mrf.mxu0
  %v3454 = vadd.f32 0.0, %v3453
  %v3455 = vpop.f32.mrf.mxu0
  %3456 = vmatprep.mubr.f32.mxu0 0.0
  %3457 = vmatmul.mubr.f32.gmra.mxu0 %v3143
  %v3458 = vpop.f32.mrf.mxu0
  %v3459 = vadd.f32 0.0, %v3458
  %v3460 = vpop.f32.mrf.mxu0
  %3461 = vmatprep.mubr.f32.mxu0 0.0
  %3462 = vmatmul.mubr.f32.gmra.mxu0 %v3144
  %v3463 = vpop.f32.mrf.mxu0
  %v3464 = vadd.f32 0.0, %v3463
  %v3465 = vpop.f32.mrf.mxu0
  %3466 = vdwg.mxu0
  %v3467 = vadd.f32 %v2761, %v3229
  %v3468 = vadd.f32 %v2766, %v3234
  %v3469 = vadd.f32 %v2771, %v3239
  %v3470 = vadd.f32 %v2776, %v3244
  %v3471 = vadd.f32 %v2781, %v3249
  %v3472 = vadd.f32 %v2786, %v3254
  %v3473 = vadd.f32 %v2791, %v3259
  %v3474 = vadd.f32 %v2796, %v3264
  %v3475 = vadd.f32 %v2931, %v3269
  %v3476 = vadd.f32 %v2936, %v3274
  %v3477 = vadd.f32 %v2941, %v3279
  %v3478 = vadd.f32 %v2946, %v3284
  %v3479 = vadd.f32 %v2951, %v3289
  %v3480 = vadd.f32 %v2956, %v3294
  %v3481 = vadd.f32 %v2961, %v3299
  %v3482 = vadd.f32 %v2966, %v3304
  %v3483 = vadd.f32 %v2971, %v3309
  %v3484 = vadd.f32 %v2976, %v3314
  %v3485 = vadd.f32 %v2981, %v3319
  %v3486 = vadd.f32 %v2986, %v3324
  %v3487 = vadd.f32 %v2991, %v3329
  %v3488 = vadd.f32 %v2996, %v3334
  %v3489 = vadd.f32 %v3001, %v3339
  %v3490 = vadd.f32 %v3006, %v3344
  %v3491 = vsub.f32 %v3269, %v2931
  %v3492 = vsub.f32 %v3274, %v2936
  %v3493 = vsub.f32 %v3279, %v2941
  %v3494 = vsub.f32 %v3284, %v2946
  %v3495 = vsub.f32 %v3289, %v2951
  %v3496 = vsub.f32 %v3294, %v2956
  %v3497 = vsub.f32 %v3299, %v2961
  %v3498 = vsub.f32 %v3304, %v2966
  %v3499 = vadd.f32 %v2761, %v3349
  %v3500 = vadd.f32 %v2766, %v3354
  %v3501 = vadd.f32 %v2771, %v3359
  %v3502 = vadd.f32 %v2776, %v3364
  %v3503 = vadd.f32 %v2781, %v3369
  %v3504 = vadd.f32 %v2786, %v3374
  %v3505 = vadd.f32 %v2791, %v3379
  %v3506 = vadd.f32 %v2796, %v3384
  %v3507 = vadd.f32 %v3011, %v3389
  %v3508 = vadd.f32 %v3016, %v3394
  %v3509 = vadd.f32 %v3021, %v3399
  %v3510 = vadd.f32 %v3026, %v3404
  %v3511 = vadd.f32 %v3031, %v3409
  %v3512 = vadd.f32 %v3036, %v3414
  %v3513 = vadd.f32 %v3041, %v3419
  %v3514 = vadd.f32 %v3046, %v3424
  %v3515 = vsub.f32 %v3309, %v2971
  %v3516 = vsub.f32 %v3314, %v2976
  %v3517 = vsub.f32 %v3319, %v2981
  %v3518 = vsub.f32 %v3324, %v2986
  %v3519 = vsub.f32 %v3329, %v2991
  %v3520 = vsub.f32 %v3334, %v2996
  %v3521 = vsub.f32 %v3339, %v3001
  %v3522 = vsub.f32 %v3344, %v3006
  %v3523 = vsub.f32 %v3389, %v3011
  %v3524 = vsub.f32 %v3394, %v3016
  %v3525 = vsub.f32 %v3399, %v3021
  %v3526 = vsub.f32 %v3404, %v3026
  %v3527 = vsub.f32 %v3409, %v3031
  %v3528 = vsub.f32 %v3414, %v3036
  %v3529 = vsub.f32 %v3419, %v3041
  %v3530 = vsub.f32 %v3424, %v3046
  %v3531 = vadd.f32 %v2761, %v3429
  %v3532 = vadd.f32 %v2766, %v3434
  %v3533 = vadd.f32 %v2771, %v3439
  %v3534 = vadd.f32 %v2776, %v3444
  %v3535 = vadd.f32 %v2781, %v3449
  %v3536 = vadd.f32 %v2786, %v3454
  %v3537 = vadd.f32 %v2791, %v3459
  %v3538 = vadd.f32 %v2796, %v3464
  %v3539 = vmul.f32 %v3467, %v3467
  %v3540 = vmul.f32 %v3468, %v3468
  %v3541 = vmul.f32 %v3469, %v3469
  %v3542 = vmul.f32 %v3470, %v3470
  %v3543 = vmul.f32 %v3471, %v3471
  %v3544 = vmul.f32 %v3472, %v3472
  %v3545 = vmul.f32 %v3473, %v3473
  %v3546 = vmul.f32 %v3474, %v3474
  %v3547 = vmul.f32 %v3475, %v3491
  %v3548 = vmul.f32 %v3476, %v3492
  %v3549 = vmul.f32 %v3477, %v3493
  %v3550 = vmul.f32 %v3478, %v3494
  %v3551 = vmul.f32 %v3479, %v3495
  %v3552 = vmul.f32 %v3480, %v3496
  %v3553 = vmul.f32 %v3481, %v3497
  %v3554 = vmul.f32 %v3482, %v3498
  %v3555 = vadd.f32 %v3539, %v3547
  %v3556 = vadd.f32 %v3540, %v3548
  %v3557 = vadd.f32 %v3541, %v3549
  %v3558 = vadd.f32 %v3542, %v3550
  %v3559 = vadd.f32 %v3543, %v3551
  %v3560 = vadd.f32 %v3544, %v3552
  %v3561 = vadd.f32 %v3545, %v3553
  %v3562 = vadd.f32 %v3546, %v3554
  %v3563 = vmul.f32 %v3483, %v3515
  %v3564 = vmul.f32 %v3484, %v3516
  %v3565 = vmul.f32 %v3485, %v3517
  %v3566 = vmul.f32 %v3486, %v3518
  %v3567 = vmul.f32 %v3487, %v3519
  %v3568 = vmul.f32 %v3488, %v3520
  %v3569 = vmul.f32 %v3489, %v3521
  %v3570 = vmul.f32 %v3490, %v3522
  %v3571 = vadd.f32 %v3555, %v3563
  %v3572 = vadd.f32 %v3556, %v3564
  %v3573 = vadd.f32 %v3557, %v3565
  %v3574 = vadd.f32 %v3558, %v3566
  %v3575 = vadd.f32 %v3559, %v3567
  %v3576 = vadd.f32 %v3560, %v3568
  %v3577 = vadd.f32 %v3561, %v3569
  %v3578 = vadd.f32 %v3562, %v3570
  %v3579 = vld [vmem:[%s3] sm:$0xff]
  %v3580 = vld [vmem:[%s3 + $0x8] sm:$0xff]
  %v3581 = vld [vmem:[%s3 + $0x10] sm:$0xff]
  %v3582 = vld [vmem:[%s3 + $0x18] sm:$0xff]
  %v3583 = vld [vmem:[%s3 + $0x20] sm:$0xff]
  %v3584 = vld [vmem:[%s3 + $0x28] sm:$0xff]
  %v3585 = vld [vmem:[%s3 + $0x30] sm:$0xff]
  %v3586 = vld [vmem:[%s3 + $0x38] sm:$0xff]
  %v3587 = vadd.f32 %v3579, %v3467
  %v3588 = vadd.f32 %v3580, %v3468
  %v3589 = vadd.f32 %v3581, %v3469
  %v3590 = vadd.f32 %v3582, %v3470
  %v3591 = vadd.f32 %v3583, %v3471
  %v3592 = vadd.f32 %v3584, %v3472
  %v3593 = vadd.f32 %v3585, %v3473
  %v3594 = vadd.f32 %v3586, %v3474
  %v3595 = vadd.f32 %v3587, %v3571
  %v3596 = vadd.f32 %v3588, %v3572
  %v3597 = vadd.f32 %v3589, %v3573
  %v3598 = vadd.f32 %v3590, %v3574
  %v3599 = vadd.f32 %v3591, %v3575
  %v3600 = vadd.f32 %v3592, %v3576
  %v3601 = vadd.f32 %v3593, %v3577
  %v3602 = vadd.f32 %v3594, %v3578
  %3603 = vst [vmem:[%s3] sm:$0xff] %v3595
  %3604 = vst [vmem:[%s3 + $0x8] sm:$0xff] %v3596
  %3605 = vst [vmem:[%s3 + $0x10] sm:$0xff] %v3597
  %3606 = vst [vmem:[%s3 + $0x18] sm:$0xff] %v3598
  %3607 = vst [vmem:[%s3 + $0x20] sm:$0xff] %v3599
  %3608 = vst [vmem:[%s3 + $0x28] sm:$0xff] %v3600
  %3609 = vst [vmem:[%s3 + $0x30] sm:$0xff] %v3601
  %3610 = vst [vmem:[%s3 + $0x38] sm:$0xff] %v3602
  %v3611 = vmul.f32 %v3467, %v3475
  %v3612 = vmul.f32 %v3468, %v3476
  %v3613 = vmul.f32 %v3469, %v3477
  %v3614 = vmul.f32 %v3470, %v3478
  %v3615 = vmul.f32 %v3471, %v3479
  %v3616 = vmul.f32 %v3472, %v3480
  %v3617 = vmul.f32 %v3473, %v3481
  %v3618 = vmul.f32 %v3474, %v3482
  %v3619 = vmul.f32 %v3475, %v3499
  %v3620 = vmul.f32 %v3476, %v3500
  %v3621 = vmul.f32 %v3477, %v3501
  %v3622 = vmul.f32 %v3478, %v3502
  %v3623 = vmul.f32 %v3479, %v3503
  %v3624 = vmul.f32 %v3480, %v3504
  %v3625 = vmul.f32 %v3481, %v3505
  %v3626 = vmul.f32 %v3482, %v3506
  %v3627 = vadd.f32 %v3611, %v3619
  %v3628 = vadd.f32 %v3612, %v3620
  %v3629 = vadd.f32 %v3613, %v3621
  %v3630 = vadd.f32 %v3614, %v3622
  %v3631 = vadd.f32 %v3615, %v3623
  %v3632 = vadd.f32 %v3616, %v3624
  %v3633 = vadd.f32 %v3617, %v3625
  %v3634 = vadd.f32 %v3618, %v3626
  %v3635 = vmul.f32 %v3483, %v3523
  %v3636 = vmul.f32 %v3484, %v3524
  %v3637 = vmul.f32 %v3485, %v3525
  %v3638 = vmul.f32 %v3486, %v3526
  %v3639 = vmul.f32 %v3487, %v3527
  %v3640 = vmul.f32 %v3488, %v3528
  %v3641 = vmul.f32 %v3489, %v3529
  %v3642 = vmul.f32 %v3490, %v3530
  %v3643 = vadd.f32 %v3627, %v3635
  %v3644 = vadd.f32 %v3628, %v3636
  %v3645 = vadd.f32 %v3629, %v3637
  %v3646 = vadd.f32 %v3630, %v3638
  %v3647 = vadd.f32 %v3631, %v3639
  %v3648 = vadd.f32 %v3632, %v3640
  %v3649 = vadd.f32 %v3633, %v3641
  %v3650 = vadd.f32 %v3634, %v3642
  %v3651 = vld [vmem:[%s326] sm:$0xff]
  %v3652 = vld [vmem:[%s326 + $0x8] sm:$0xff]
  %v3653 = vld [vmem:[%s326 + $0x10] sm:$0xff]
  %v3654 = vld [vmem:[%s326 + $0x18] sm:$0xff]
  %v3655 = vld [vmem:[%s326 + $0x20] sm:$0xff]
  %v3656 = vld [vmem:[%s326 + $0x28] sm:$0xff]
  %v3657 = vld [vmem:[%s326 + $0x30] sm:$0xff]
  %v3658 = vld [vmem:[%s326 + $0x38] sm:$0xff]
  %v3659 = vadd.f32 %v3651, %v3475
  %v3660 = vadd.f32 %v3652, %v3476
  %v3661 = vadd.f32 %v3653, %v3477
  %v3662 = vadd.f32 %v3654, %v3478
  %v3663 = vadd.f32 %v3655, %v3479
  %v3664 = vadd.f32 %v3656, %v3480
  %v3665 = vadd.f32 %v3657, %v3481
  %v3666 = vadd.f32 %v3658, %v3482
  %v3667 = vadd.f32 %v3659, %v3643
  %v3668 = vadd.f32 %v3660, %v3644
  %v3669 = vadd.f32 %v3661, %v3645
  %v3670 = vadd.f32 %v3662, %v3646
  %v3671 = vadd.f32 %v3663, %v3647
  %v3672 = vadd.f32 %v3664, %v3648
  %v3673 = vadd.f32 %v3665, %v3649
  %v3674 = vadd.f32 %v3666, %v3650
  %3675 = vst [vmem:[%s326] sm:$0xff] %v3667
  %3676 = vst [vmem:[%s326 + $0x8] sm:$0xff] %v3668
  %3677 = vst [vmem:[%s326 + $0x10] sm:$0xff] %v3669
  %3678 = vst [vmem:[%s326 + $0x18] sm:$0xff] %v3670
  %3679 = vst [vmem:[%s326 + $0x20] sm:$0xff] %v3671
  %3680 = vst [vmem:[%s326 + $0x28] sm:$0xff] %v3672
  %3681 = vst [vmem:[%s326 + $0x30] sm:$0xff] %v3673
  %3682 = vst [vmem:[%s326 + $0x38] sm:$0xff] %v3674
  %v3683 = vmul.f32 %v3467, %v3483
  %v3684 = vmul.f32 %v3468, %v3484
  %v3685 = vmul.f32 %v3469, %v3485
  %v3686 = vmul.f32 %v3470, %v3486
  %v3687 = vmul.f32 %v3471, %v3487
  %v3688 = vmul.f32 %v3472, %v3488
  %v3689 = vmul.f32 %v3473, %v3489
  %v3690 = vmul.f32 %v3474, %v3490
  %v3691 = vmul.f32 %v3475, %v3507
  %v3692 = vmul.f32 %v3476, %v3508
  %v3693 = vmul.f32 %v3477, %v3509
  %v3694 = vmul.f32 %v3478, %v3510
  %v3695 = vmul.f32 %v3479, %v3511
  %v3696 = vmul.f32 %v3480, %v3512
  %v3697 = vmul.f32 %v3481, %v3513
  %v3698 = vmul.f32 %v3482, %v3514
  %v3699 = vadd.f32 %v3683, %v3691
  %v3700 = vadd.f32 %v3684, %v3692
  %v3701 = vadd.f32 %v3685, %v3693
  %v3702 = vadd.f32 %v3686, %v3694
  %v3703 = vadd.f32 %v3687, %v3695
  %v3704 = vadd.f32 %v3688, %v3696
  %v3705 = vadd.f32 %v3689, %v3697
  %v3706 = vadd.f32 %v3690, %v3698
  %v3707 = vmul.f32 %v3483, %v3531
  %v3708 = vmul.f32 %v3484, %v3532
  %v3709 = vmul.f32 %v3485, %v3533
  %v3710 = vmul.f32 %v3486, %v3534
  %v3711 = vmul.f32 %v3487, %v3535
  %v3712 = vmul.f32 %v3488, %v3536
  %v3713 = vmul.f32 %v3489, %v3537
  %v3714 = vmul.f32 %v3490, %v3538
  %v3715 = vadd.f32 %v3699, %v3707
  %v3716 = vadd.f32 %v3700, %v3708
  %v3717 = vadd.f32 %v3701, %v3709
  %v3718 = vadd.f32 %v3702, %v3710
  %v3719 = vadd.f32 %v3703, %v3711
  %v3720 = vadd.f32 %v3704, %v3712
  %v3721 = vadd.f32 %v3705, %v3713
  %v3722 = vadd.f32 %v3706, %v3714
  %v3723 = vld [vmem:[%s335] sm:$0xff]
  %v3724 = vld [vmem:[%s335 + $0x8] sm:$0xff]
  %v3725 = vld [vmem:[%s335 + $0x10] sm:$0xff]
  %v3726 = vld [vmem:[%s335 + $0x18] sm:$0xff]
  %v3727 = vld [vmem:[%s335 + $0x20] sm:$0xff]
  %v3728 = vld [vmem:[%s335 + $0x28] sm:$0xff]
  %v3729 = vld [vmem:[%s335 + $0x30] sm:$0xff]
  %v3730 = vld [vmem:[%s335 + $0x38] sm:$0xff]
  %v3731 = vadd.f32 %v3723, %v3483
  %v3732 = vadd.f32 %v3724, %v3484
  %v3733 = vadd.f32 %v3725, %v3485
  %v3734 = vadd.f32 %v3726, %v3486
  %v3735 = vadd.f32 %v3727, %v3487
  %v3736 = vadd.f32 %v3728, %v3488
  %v3737 = vadd.f32 %v3729, %v3489
  %v3738 = vadd.f32 %v3730, %v3490
  %v3739 = vadd.f32 %v3731, %v3715
  %v3740 = vadd.f32 %v3732, %v3716
  %v3741 = vadd.f32 %v3733, %v3717
  %v3742 = vadd.f32 %v3734, %v3718
  %v3743 = vadd.f32 %v3735, %v3719
  %v3744 = vadd.f32 %v3736, %v3720
  %v3745 = vadd.f32 %v3737, %v3721
  %v3746 = vadd.f32 %v3738, %v3722
  %3747 = vst [vmem:[%s335] sm:$0xff] %v3739
  %3748 = vst [vmem:[%s335 + $0x8] sm:$0xff] %v3740
  %3749 = vst [vmem:[%s335 + $0x10] sm:$0xff] %v3741
  %3750 = vst [vmem:[%s335 + $0x18] sm:$0xff] %v3742
  %3751 = vst [vmem:[%s335 + $0x20] sm:$0xff] %v3743
  %3752 = vst [vmem:[%s335 + $0x28] sm:$0xff] %v3744
  %3753 = vst [vmem:[%s335 + $0x30] sm:$0xff] %v3745
  %3754 = vst [vmem:[%s335 + $0x38] sm:$0xff] %v3746
  %v3755 = vmul.f32 %v3491, %v3467
  %v3756 = vmul.f32 %v3492, %v3468
  %v3757 = vmul.f32 %v3493, %v3469
  %v3758 = vmul.f32 %v3494, %v3470
  %v3759 = vmul.f32 %v3495, %v3471
  %v3760 = vmul.f32 %v3496, %v3472
  %v3761 = vmul.f32 %v3497, %v3473
  %v3762 = vmul.f32 %v3498, %v3474
  %v3763 = vmul.f32 %v3499, %v3491
  %v3764 = vmul.f32 %v3500, %v3492
  %v3765 = vmul.f32 %v3501, %v3493
  %v3766 = vmul.f32 %v3502, %v3494
  %v3767 = vmul.f32 %v3503, %v3495
  %v3768 = vmul.f32 %v3504, %v3496
  %v3769 = vmul.f32 %v3505, %v3497
  %v3770 = vmul.f32 %v3506, %v3498
  %v3771 = vadd.f32 %v3755, %v3763
  %v3772 = vadd.f32 %v3756, %v3764
  %v3773 = vadd.f32 %v3757, %v3765
  %v3774 = vadd.f32 %v3758, %v3766
  %v3775 = vadd.f32 %v3759, %v3767
  %v3776 = vadd.f32 %v3760, %v3768
  %v3777 = vadd.f32 %v3761, %v3769
  %v3778 = vadd.f32 %v3762, %v3770
  %v3779 = vmul.f32 %v3507, %v3515
  %v3780 = vmul.f32 %v3508, %v3516
  %v3781 = vmul.f32 %v3509, %v3517
  %v3782 = vmul.f32 %v3510, %v3518
  %v3783 = vmul.f32 %v3511, %v3519
  %v3784 = vmul.f32 %v3512, %v3520
  %v3785 = vmul.f32 %v3513, %v3521
  %v3786 = vmul.f32 %v3514, %v3522
  %v3787 = vadd.f32 %v3771, %v3779
  %v3788 = vadd.f32 %v3772, %v3780
  %v3789 = vadd.f32 %v3773, %v3781
  %v3790 = vadd.f32 %v3774, %v3782
  %v3791 = vadd.f32 %v3775, %v3783
  %v3792 = vadd.f32 %v3776, %v3784
  %v3793 = vadd.f32 %v3777, %v3785
  %v3794 = vadd.f32 %v3778, %v3786
  %v3795 = vld [vmem:[%s344] sm:$0xff]
  %v3796 = vld [vmem:[%s344 + $0x8] sm:$0xff]
  %v3797 = vld [vmem:[%s344 + $0x10] sm:$0xff]
  %v3798 = vld [vmem:[%s344 + $0x18] sm:$0xff]
  %v3799 = vld [vmem:[%s344 + $0x20] sm:$0xff]
  %v3800 = vld [vmem:[%s344 + $0x28] sm:$0xff]
  %v3801 = vld [vmem:[%s344 + $0x30] sm:$0xff]
  %v3802 = vld [vmem:[%s344 + $0x38] sm:$0xff]
  %v3803 = vadd.f32 %v3795, %v3491
  %v3804 = vadd.f32 %v3796, %v3492
  %v3805 = vadd.f32 %v3797, %v3493
  %v3806 = vadd.f32 %v3798, %v3494
  %v3807 = vadd.f32 %v3799, %v3495
  %v3808 = vadd.f32 %v3800, %v3496
  %v3809 = vadd.f32 %v3801, %v3497
  %v3810 = vadd.f32 %v3802, %v3498
  %v3811 = vadd.f32 %v3803, %v3787
  %v3812 = vadd.f32 %v3804, %v3788
  %v3813 = vadd.f32 %v3805, %v3789
  %v3814 = vadd.f32 %v3806, %v3790
  %v3815 = vadd.f32 %v3807, %v3791
  %v3816 = vadd.f32 %v3808, %v3792
  %v3817 = vadd.f32 %v3809, %v3793
  %v3818 = vadd.f32 %v3810, %v3794
  %3819 = vst [vmem:[%s344] sm:$0xff] %v3811
  %3820 = vst [vmem:[%s344 + $0x8] sm:$0xff] %v3812
  %3821 = vst [vmem:[%s344 + $0x10] sm:$0xff] %v3813
  %3822 = vst [vmem:[%s344 + $0x18] sm:$0xff] %v3814
  %3823 = vst [vmem:[%s344 + $0x20] sm:$0xff] %v3815
  %3824 = vst [vmem:[%s344 + $0x28] sm:$0xff] %v3816
  %3825 = vst [vmem:[%s344 + $0x30] sm:$0xff] %v3817
  %3826 = vst [vmem:[%s344 + $0x38] sm:$0xff] %v3818
  %v3827 = vmul.f32 %v3499, %v3499
  %v3828 = vmul.f32 %v3500, %v3500
  %v3829 = vmul.f32 %v3501, %v3501
  %v3830 = vmul.f32 %v3502, %v3502
  %v3831 = vmul.f32 %v3503, %v3503
  %v3832 = vmul.f32 %v3504, %v3504
  %v3833 = vmul.f32 %v3505, %v3505
  %v3834 = vmul.f32 %v3506, %v3506
  %v3835 = vadd.f32 %v3547, %v3827
  %v3836 = vadd.f32 %v3548, %v3828
  %v3837 = vadd.f32 %v3549, %v3829
  %v3838 = vadd.f32 %v3550, %v3830
  %v3839 = vadd.f32 %v3551, %v3831
  %v3840 = vadd.f32 %v3552, %v3832
  %v3841 = vadd.f32 %v3553, %v3833
  %v3842 = vadd.f32 %v3554, %v3834
  %v3843 = vmul.f32 %v3507, %v3523
  %v3844 = vmul.f32 %v3508, %v3524
  %v3845 = vmul.f32 %v3509, %v3525
  %v3846 = vmul.f32 %v3510, %v3526
  %v3847 = vmul.f32 %v3511, %v3527
  %v3848 = vmul.f32 %v3512, %v3528
  %v3849 = vmul.f32 %v3513, %v3529
  %v3850 = vmul.f32 %v3514, %v3530
  %v3851 = vadd.f32 %v3835, %v3843
  %v3852 = vadd.f32 %v3836, %v3844
  %v3853 = vadd.f32 %v3837, %v3845
  %v3854 = vadd.f32 %v3838, %v3846
  %v3855 = vadd.f32 %v3839, %v3847
  %v3856 = vadd.f32 %v3840, %v3848
  %v3857 = vadd.f32 %v3841, %v3849
  %v3858 = vadd.f32 %v3842, %v3850
  %v3859 = vld [vmem:[%s353] sm:$0xff]
  %v3860 = vld [vmem:[%s353 + $0x8] sm:$0xff]
  %v3861 = vld [vmem:[%s353 + $0x10] sm:$0xff]
  %v3862 = vld [vmem:[%s353 + $0x18] sm:$0xff]
  %v3863 = vld [vmem:[%s353 + $0x20] sm:$0xff]
  %v3864 = vld [vmem:[%s353 + $0x28] sm:$0xff]
  %v3865 = vld [vmem:[%s353 + $0x30] sm:$0xff]
  %v3866 = vld [vmem:[%s353 + $0x38] sm:$0xff]
  %v3867 = vadd.f32 %v3859, %v3499
  %v3868 = vadd.f32 %v3860, %v3500
  %v3869 = vadd.f32 %v3861, %v3501
  %v3870 = vadd.f32 %v3862, %v3502
  %v3871 = vadd.f32 %v3863, %v3503
  %v3872 = vadd.f32 %v3864, %v3504
  %v3873 = vadd.f32 %v3865, %v3505
  %v3874 = vadd.f32 %v3866, %v3506
  %v3875 = vadd.f32 %v3867, %v3851
  %v3876 = vadd.f32 %v3868, %v3852
  %v3877 = vadd.f32 %v3869, %v3853
  %v3878 = vadd.f32 %v3870, %v3854
  %v3879 = vadd.f32 %v3871, %v3855
  %v3880 = vadd.f32 %v3872, %v3856
  %v3881 = vadd.f32 %v3873, %v3857
  %v3882 = vadd.f32 %v3874, %v3858
  %3883 = vst [vmem:[%s353] sm:$0xff] %v3875
  %3884 = vst [vmem:[%s353 + $0x8] sm:$0xff] %v3876
  %3885 = vst [vmem:[%s353 + $0x10] sm:$0xff] %v3877
  %3886 = vst [vmem:[%s353 + $0x18] sm:$0xff] %v3878
  %3887 = vst [vmem:[%s353 + $0x20] sm:$0xff] %v3879
  %3888 = vst [vmem:[%s353 + $0x28] sm:$0xff] %v3880
  %3889 = vst [vmem:[%s353 + $0x30] sm:$0xff] %v3881
  %3890 = vst [vmem:[%s353 + $0x38] sm:$0xff] %v3882
  %v3891 = vmul.f32 %v3491, %v3483
  %v3892 = vmul.f32 %v3492, %v3484
  %v3893 = vmul.f32 %v3493, %v3485
  %v3894 = vmul.f32 %v3494, %v3486
  %v3895 = vmul.f32 %v3495, %v3487
  %v3896 = vmul.f32 %v3496, %v3488
  %v3897 = vmul.f32 %v3497, %v3489
  %v3898 = vmul.f32 %v3498, %v3490
  %v3899 = vmul.f32 %v3499, %v3507
  %v3900 = vmul.f32 %v3500, %v3508
  %v3901 = vmul.f32 %v3501, %v3509
  %v3902 = vmul.f32 %v3502, %v3510
  %v3903 = vmul.f32 %v3503, %v3511
  %v3904 = vmul.f32 %v3504, %v3512
  %v3905 = vmul.f32 %v3505, %v3513
  %v3906 = vmul.f32 %v3506, %v3514
  %v3907 = vadd.f32 %v3891, %v3899
  %v3908 = vadd.f32 %v3892, %v3900
  %v3909 = vadd.f32 %v3893, %v3901
  %v3910 = vadd.f32 %v3894, %v3902
  %v3911 = vadd.f32 %v3895, %v3903
  %v3912 = vadd.f32 %v3896, %v3904
  %v3913 = vadd.f32 %v3897, %v3905
  %v3914 = vadd.f32 %v3898, %v3906
  %v3915 = vmul.f32 %v3507, %v3531
  %v3916 = vmul.f32 %v3508, %v3532
  %v3917 = vmul.f32 %v3509, %v3533
  %v3918 = vmul.f32 %v3510, %v3534
  %v3919 = vmul.f32 %v3511, %v3535
  %v3920 = vmul.f32 %v3512, %v3536
  %v3921 = vmul.f32 %v3513, %v3537
  %v3922 = vmul.f32 %v3514, %v3538
  %v3923 = vadd.f32 %v3907, %v3915
  %v3924 = vadd.f32 %v3908, %v3916
  %v3925 = vadd.f32 %v3909, %v3917
  %v3926 = vadd.f32 %v3910, %v3918
  %v3927 = vadd.f32 %v3911, %v3919
  %v3928 = vadd.f32 %v3912, %v3920
  %v3929 = vadd.f32 %v3913, %v3921
  %v3930 = vadd.f32 %v3914, %v3922
  %v3931 = vld [vmem:[%s362] sm:$0xff]
  %v3932 = vld [vmem:[%s362 + $0x8] sm:$0xff]
  %v3933 = vld [vmem:[%s362 + $0x10] sm:$0xff]
  %v3934 = vld [vmem:[%s362 + $0x18] sm:$0xff]
  %v3935 = vld [vmem:[%s362 + $0x20] sm:$0xff]
  %v3936 = vld [vmem:[%s362 + $0x28] sm:$0xff]
  %v3937 = vld [vmem:[%s362 + $0x30] sm:$0xff]
  %v3938 = vld [vmem:[%s362 + $0x38] sm:$0xff]
  %v3939 = vadd.f32 %v3931, %v3507
  %v3940 = vadd.f32 %v3932, %v3508
  %v3941 = vadd.f32 %v3933, %v3509
  %v3942 = vadd.f32 %v3934, %v3510
  %v3943 = vadd.f32 %v3935, %v3511
  %v3944 = vadd.f32 %v3936, %v3512
  %v3945 = vadd.f32 %v3937, %v3513
  %v3946 = vadd.f32 %v3938, %v3514
  %v3947 = vadd.f32 %v3939, %v3923
  %v3948 = vadd.f32 %v3940, %v3924
  %v3949 = vadd.f32 %v3941, %v3925
  %v3950 = vadd.f32 %v3942, %v3926
  %v3951 = vadd.f32 %v3943, %v3927
  %v3952 = vadd.f32 %v3944, %v3928
  %v3953 = vadd.f32 %v3945, %v3929
  %v3954 = vadd.f32 %v3946, %v3930
  %3955 = vst [vmem:[%s362] sm:$0xff] %v3947
  %3956 = vst [vmem:[%s362 + $0x8] sm:$0xff] %v3948
  %3957 = vst [vmem:[%s362 + $0x10] sm:$0xff] %v3949
  %3958 = vst [vmem:[%s362 + $0x18] sm:$0xff] %v3950
  %3959 = vst [vmem:[%s362 + $0x20] sm:$0xff] %v3951
  %3960 = vst [vmem:[%s362 + $0x28] sm:$0xff] %v3952
  %3961 = vst [vmem:[%s362 + $0x30] sm:$0xff] %v3953
  %3962 = vst [vmem:[%s362 + $0x38] sm:$0xff] %v3954
  %v3963 = vmul.f32 %v3515, %v3467
  %v3964 = vmul.f32 %v3516, %v3468
  %v3965 = vmul.f32 %v3517, %v3469
  %v3966 = vmul.f32 %v3518, %v3470
  %v3967 = vmul.f32 %v3519, %v3471
  %v3968 = vmul.f32 %v3520, %v3472
  %v3969 = vmul.f32 %v3521, %v3473
  %v3970 = vmul.f32 %v3522, %v3474
  %v3971 = vmul.f32 %v3523, %v3491
  %v3972 = vmul.f32 %v3524, %v3492
  %v3973 = vmul.f32 %v3525, %v3493
  %v3974 = vmul.f32 %v3526, %v3494
  %v3975 = vmul.f32 %v3527, %v3495
  %v3976 = vmul.f32 %v3528, %v3496
  %v3977 = vmul.f32 %v3529, %v3497
  %v3978 = vmul.f32 %v3530, %v3498
  %v3979 = vadd.f32 %v3963, %v3971
  %v3980 = vadd.f32 %v3964, %v3972
  %v3981 = vadd.f32 %v3965, %v3973
  %v3982 = vadd.f32 %v3966, %v3974
  %v3983 = vadd.f32 %v3967, %v3975
  %v3984 = vadd.f32 %v3968, %v3976
  %v3985 = vadd.f32 %v3969, %v3977
  %v3986 = vadd.f32 %v3970, %v3978
  %v3987 = vmul.f32 %v3531, %v3515
  %v3988 = vmul.f32 %v3532, %v3516
  %v3989 = vmul.f32 %v3533, %v3517
  %v3990 = vmul.f32 %v3534, %v3518
  %v3991 = vmul.f32 %v3535, %v3519
  %v3992 = vmul.f32 %v3536, %v3520
  %v3993 = vmul.f32 %v3537, %v3521
  %v3994 = vmul.f32 %v3538, %v3522
  %v3995 = vadd.f32 %v3979, %v3987
  %v3996 = vadd.f32 %v3980, %v3988
  %v3997 = vadd.f32 %v3981, %v3989
  %v3998 = vadd.f32 %v3982, %v3990
  %v3999 = vadd.f32 %v3983, %v3991
  %v4000 = vadd.f32 %v3984, %v3992
  %v4001 = vadd.f32 %v3985, %v3993
  %v4002 = vadd.f32 %v3986, %v3994
  %v4003 = vld [vmem:[%s371] sm:$0xff]
  %v4004 = vld [vmem:[%s371 + $0x8] sm:$0xff]
  %v4005 = vld [vmem:[%s371 + $0x10] sm:$0xff]
  %v4006 = vld [vmem:[%s371 + $0x18] sm:$0xff]
  %v4007 = vld [vmem:[%s371 + $0x20] sm:$0xff]
  %v4008 = vld [vmem:[%s371 + $0x28] sm:$0xff]
  %v4009 = vld [vmem:[%s371 + $0x30] sm:$0xff]
  %v4010 = vld [vmem:[%s371 + $0x38] sm:$0xff]
  %v4011 = vadd.f32 %v4003, %v3515
  %v4012 = vadd.f32 %v4004, %v3516
  %v4013 = vadd.f32 %v4005, %v3517
  %v4014 = vadd.f32 %v4006, %v3518
  %v4015 = vadd.f32 %v4007, %v3519
  %v4016 = vadd.f32 %v4008, %v3520
  %v4017 = vadd.f32 %v4009, %v3521
  %v4018 = vadd.f32 %v4010, %v3522
  %v4019 = vadd.f32 %v4011, %v3995
  %v4020 = vadd.f32 %v4012, %v3996
  %v4021 = vadd.f32 %v4013, %v3997
  %v4022 = vadd.f32 %v4014, %v3998
  %v4023 = vadd.f32 %v4015, %v3999
  %v4024 = vadd.f32 %v4016, %v4000
  %v4025 = vadd.f32 %v4017, %v4001
  %v4026 = vadd.f32 %v4018, %v4002
  %4027 = vst [vmem:[%s371] sm:$0xff] %v4019
  %4028 = vst [vmem:[%s371 + $0x8] sm:$0xff] %v4020
  %4029 = vst [vmem:[%s371 + $0x10] sm:$0xff] %v4021
  %4030 = vst [vmem:[%s371 + $0x18] sm:$0xff] %v4022
  %4031 = vst [vmem:[%s371 + $0x20] sm:$0xff] %v4023
  %4032 = vst [vmem:[%s371 + $0x28] sm:$0xff] %v4024
  %4033 = vst [vmem:[%s371 + $0x30] sm:$0xff] %v4025
  %4034 = vst [vmem:[%s371 + $0x38] sm:$0xff] %v4026
  %v4035 = vmul.f32 %v3515, %v3475
  %v4036 = vmul.f32 %v3516, %v3476
  %v4037 = vmul.f32 %v3517, %v3477
  %v4038 = vmul.f32 %v3518, %v3478
  %v4039 = vmul.f32 %v3519, %v3479
  %v4040 = vmul.f32 %v3520, %v3480
  %v4041 = vmul.f32 %v3521, %v3481
  %v4042 = vmul.f32 %v3522, %v3482
  %v4043 = vmul.f32 %v3523, %v3499
  %v4044 = vmul.f32 %v3524, %v3500
  %v4045 = vmul.f32 %v3525, %v3501
  %v4046 = vmul.f32 %v3526, %v3502
  %v4047 = vmul.f32 %v3527, %v3503
  %v4048 = vmul.f32 %v3528, %v3504
  %v4049 = vmul.f32 %v3529, %v3505
  %v4050 = vmul.f32 %v3530, %v3506
  %v4051 = vadd.f32 %v4035, %v4043
  %v4052 = vadd.f32 %v4036, %v4044
  %v4053 = vadd.f32 %v4037, %v4045
  %v4054 = vadd.f32 %v4038, %v4046
  %v4055 = vadd.f32 %v4039, %v4047
  %v4056 = vadd.f32 %v4040, %v4048
  %v4057 = vadd.f32 %v4041, %v4049
  %v4058 = vadd.f32 %v4042, %v4050
  %v4059 = vmul.f32 %v3531, %v3523
  %v4060 = vmul.f32 %v3532, %v3524
  %v4061 = vmul.f32 %v3533, %v3525
  %v4062 = vmul.f32 %v3534, %v3526
  %v4063 = vmul.f32 %v3535, %v3527
  %v4064 = vmul.f32 %v3536, %v3528
  %v4065 = vmul.f32 %v3537, %v3529
  %v4066 = vmul.f32 %v3538, %v3530
  %v4067 = vadd.f32 %v4051, %v4059
  %v4068 = vadd.f32 %v4052, %v4060
  %v4069 = vadd.f32 %v4053, %v4061
  %v4070 = vadd.f32 %v4054, %v4062
  %v4071 = vadd.f32 %v4055, %v4063
  %v4072 = vadd.f32 %v4056, %v4064
  %v4073 = vadd.f32 %v4057, %v4065
  %v4074 = vadd.f32 %v4058, %v4066
  %v4075 = vld [vmem:[%s380] sm:$0xff]
  %v4076 = vld [vmem:[%s380 + $0x8] sm:$0xff]
  %v4077 = vld [vmem:[%s380 + $0x10] sm:$0xff]
  %v4078 = vld [vmem:[%s380 + $0x18] sm:$0xff]
  %v4079 = vld [vmem:[%s380 + $0x20] sm:$0xff]
  %v4080 = vld [vmem:[%s380 + $0x28] sm:$0xff]
  %v4081 = vld [vmem:[%s380 + $0x30] sm:$0xff]
  %v4082 = vld [vmem:[%s380 + $0x38] sm:$0xff]
  %v4083 = vadd.f32 %v4075, %v3523
  %v4084 = vadd.f32 %v4076, %v3524
  %v4085 = vadd.f32 %v4077, %v3525
  %v4086 = vadd.f32 %v4078, %v3526
  %v4087 = vadd.f32 %v4079, %v3527
  %v4088 = vadd.f32 %v4080, %v3528
  %v4089 = vadd.f32 %v4081, %v3529
  %v4090 = vadd.f32 %v4082, %v3530
  %v4091 = vadd.f32 %v4083, %v4067
  %v4092 = vadd.f32 %v4084, %v4068
  %v4093 = vadd.f32 %v4085, %v4069
  %v4094 = vadd.f32 %v4086, %v4070
  %v4095 = vadd.f32 %v4087, %v4071
  %v4096 = vadd.f32 %v4088, %v4072
  %v4097 = vadd.f32 %v4089, %v4073
  %v4098 = vadd.f32 %v4090, %v4074
  %4099 = vst [vmem:[%s380] sm:$0xff] %v4091
  %4100 = vst [vmem:[%s380 + $0x8] sm:$0xff] %v4092
  %4101 = vst [vmem:[%s380 + $0x10] sm:$0xff] %v4093
  %4102 = vst [vmem:[%s380 + $0x18] sm:$0xff] %v4094
  %4103 = vst [vmem:[%s380 + $0x20] sm:$0xff] %v4095
  %4104 = vst [vmem:[%s380 + $0x28] sm:$0xff] %v4096
  %4105 = vst [vmem:[%s380 + $0x30] sm:$0xff] %v4097
  %4106 = vst [vmem:[%s380 + $0x38] sm:$0xff] %v4098
  %v4107 = vadd.f32 %v3563, %v3843
  %v4108 = vadd.f32 %v3564, %v3844
  %v4109 = vadd.f32 %v3565, %v3845
  %v4110 = vadd.f32 %v3566, %v3846
  %v4111 = vadd.f32 %v3567, %v3847
  %v4112 = vadd.f32 %v3568, %v3848
  %v4113 = vadd.f32 %v3569, %v3849
  %v4114 = vadd.f32 %v3570, %v3850
  %v4115 = vmul.f32 %v3531, %v3531
  %v4116 = vmul.f32 %v3532, %v3532
  %v4117 = vmul.f32 %v3533, %v3533
  %v4118 = vmul.f32 %v3534, %v3534
  %v4119 = vmul.f32 %v3535, %v3535
  %v4120 = vmul.f32 %v3536, %v3536
  %v4121 = vmul.f32 %v3537, %v3537
  %v4122 = vmul.f32 %v3538, %v3538
  %v4123 = vadd.f32 %v4107, %v4115
  %v4124 = vadd.f32 %v4108, %v4116
  %v4125 = vadd.f32 %v4109, %v4117
  %v4126 = vadd.f32 %v4110, %v4118
  %v4127 = vadd.f32 %v4111, %v4119
  %v4128 = vadd.f32 %v4112, %v4120
  %v4129 = vadd.f32 %v4113, %v4121
  %v4130 = vadd.f32 %v4114, %v4122
  %v4131 = vld [vmem:[%s389] sm:$0xff]
  %v4132 = vld [vmem:[%s389 + $0x8] sm:$0xff]
  %v4133 = vld [vmem:[%s389 + $0x10] sm:$0xff]
  %v4134 = vld [vmem:[%s389 + $0x18] sm:$0xff]
  %v4135 = vld [vmem:[%s389 + $0x20] sm:$0xff]
  %v4136 = vld [vmem:[%s389 + $0x28] sm:$0xff]
  %v4137 = vld [vmem:[%s389 + $0x30] sm:$0xff]
  %v4138 = vld [vmem:[%s389 + $0x38] sm:$0xff]
  %v4139 = vadd.f32 %v4131, %v3531
  %v4140 = vadd.f32 %v4132, %v3532
  %v4141 = vadd.f32 %v4133, %v3533
  %v4142 = vadd.f32 %v4134, %v3534
  %v4143 = vadd.f32 %v4135, %v3535
  %v4144 = vadd.f32 %v4136, %v3536
  %v4145 = vadd.f32 %v4137, %v3537
  %v4146 = vadd.f32 %v4138, %v3538
  %v4147 = vadd.f32 %v4139, %v4123
  %v4148 = vadd.f32 %v4140, %v4124
  %v4149 = vadd.f32 %v4141, %v4125
  %v4150 = vadd.f32 %v4142, %v4126
  %v4151 = vadd.f32 %v4143, %v4127
  %v4152 = vadd.f32 %v4144, %v4128
  %v4153 = vadd.f32 %v4145, %v4129
  %v4154 = vadd.f32 %v4146, %v4130
  %4155 = vst [vmem:[%s389] sm:$0xff] %v4147
  %4156 = vst [vmem:[%s389 + $0x8] sm:$0xff] %v4148
  %4157 = vst [vmem:[%s389 + $0x10] sm:$0xff] %v4149
  %4158 = vst [vmem:[%s389 + $0x18] sm:$0xff] %v4150
  %4159 = vst [vmem:[%s389 + $0x20] sm:$0xff] %v4151
  %4160 = vst [vmem:[%s389 + $0x28] sm:$0xff] %v4152
  %4161 = vst [vmem:[%s389 + $0x30] sm:$0xff] %v4153
  %4162 = vst [vmem:[%s389 + $0x38] sm:$0xff] %v4154
  // Predicated region
  $region14: #{tensornet_interaction.3} parent=0 // pred_check
    _
  $region15: #{tensornet_interaction.3} parent=0 // pred_check_branch
    %4164 = sbr.rel (0) target = $region17
  $region16: #{tensornet_interaction.3} parent=0 // pred_region
    _
  $region17: #{tensornet_interaction.3} parent=0 // pred_fallthru
    _
  // Predicated region
  $region18: #{tensornet_interaction.3} parent=0 // pred_check
    _
  $region19: #{tensornet_interaction.3} parent=0 // pred_check_branch
    %4166 = sbr.rel (0) target = $region21
  $region20: #{tensornet_interaction.3} parent=0 // pred_region
    _
  $region21: #{tensornet_interaction.3} parent=0 // pred_fallthru
    _

</llo_original>
